<compile_context>
chip_gen: v5e
topology: v5e:2x2
jax: 0.10.0
libtpu: 0.0.40
codegen_flags: <defaults>
</compile_context>

<pallas_src>
import jax
import jax.numpy as jnp
from jax import lax
from jax.experimental import pallas as pl
from jax.experimental.pallas import tpu as pltpu

_VMEM = pl.BlockSpec(memory_space=pltpu.MemorySpace.VMEM)
_CP = pltpu.CompilerParams(vmem_limit_bytes=32 * 1024 * 1024)


# ----------------------------- Pallas kernels ------------------------------

def convT_relu_pool_kernel(p0_ref, p1_ref, p2_ref, p3_ref, w_ref, b_ref, o_ref):
    """Fused conv-as-matmul + bias + ReLU + 2x2 max-pool, lane-dense (Cout, Np) layout.

    p*_ref : (K, Np)   bf16  stride-2 im2col patches for one pool-window corner
    w_ref  : (Cout, K) bf16
    b_ref  : (Cout, 1) f32
    o_ref  : (Cout, Np) f32  pooled output, columns ordered (n, poh, pow)
    """
    w = w_ref[...]
    b = b_ref[...]

    def corner(p_ref):
        y = jnp.dot(w, p_ref[...], preferred_element_type=jnp.float32)
        return jnp.maximum(y + b, 0.0)

    o_ref[...] = jnp.maximum(jnp.maximum(corner(p0_ref), corner(p1_ref)),
                             jnp.maximum(corner(p2_ref), corner(p3_ref)))


def conv_relu_maskpool_kernel(p0_ref, p1_ref, p2_ref, p3_ref,
                              m0_ref, m1_ref, m2_ref, m3_ref,
                              w_ref, b_ref, o_ref):
    """Same fusion in (rows, Cout) orientation with per-corner validity masks that
    implement MaxPool2d(2, 2, padding=1) (-inf pool padding == mask-to-0 post-ReLU).

    p*_ref : (Np, K)    bf16
    m*_ref : (Np, 1)    f32  (0/1 validity of this corner's source position)
    w_ref  : (K, Cout)  bf16
    b_ref  : (1, Cout)  f32
    o_ref  : (Np, Cout) f32  rows ordered (n, poh, pow), channels on lanes (Cout=128)
    """
    w = w_ref[...]
    b = b_ref[...]

    def corner(p_ref, m_ref):
        y = jnp.dot(p_ref[...], w, preferred_element_type=jnp.float32)
        return jnp.maximum(y + b, 0.0) * m_ref[...]

    o_ref[...] = jnp.maximum(
        jnp.maximum(corner(p0_ref, m0_ref), corner(p1_ref, m1_ref)),
        jnp.maximum(corner(p2_ref, m2_ref), corner(p3_ref, m3_ref)))


def mlp_kernel(x_ref, w1_ref, b1_ref, w2_ref, b2_ref, o_ref):
    """fc1 -> fc2.  forward() skips layer4's ReLU/Dropout, so no activation in between."""
    h = jnp.dot(x_ref[...], w1_ref[...],
                preferred_element_type=jnp.float32) + b1_ref[...]
    o_ref[...] = jnp.dot(h.astype(jnp.bfloat16), w2_ref[...],
                         preferred_element_type=jnp.float32) + b2_ref[...]


def _pallas_full(kernel, out_shape, *args):
    """Run a kernel once on whole (small) arrays resident in VMEM."""
    return pl.pallas_call(
        kernel,
        out_shape=out_shape,
        in_specs=[_VMEM] * len(args),
        out_specs=_VMEM,
        compiler_params=_CP,
    )(*args)


# ------------------------------ JAX glue -----------------------------------

def _corner_patches(xp, k, ph, pw, pooled, transposed):
    """Stride-2 im2col for one 2x2 pool-window corner.

    xp: (N, Cin, Hp, Wp) spatially padded input.  Patch features are ordered
    (cin, kh, kw) to match the (Cout, Cin, KH, KW) weight flattening; the
    row/column index runs over (n, poh, pow).
    Returns (Cin*k*k, N*P*P) bf16 if transposed else (N*P*P, Cin*k*k) bf16.
    """
    n, c = xp.shape[0], xp.shape[1]
    span = 2 * pooled - 1            # last index touched = start + 2*(P-1)
    slabs = []
    for kh in range(k):
        for kw in range(k):
            hs, ws = ph + kh, pw + kw
            slabs.append(xp[:, :, hs:hs + span:2, ws:ws + span:2])   # (N,C,P,P)
    p = jnp.stack(slabs, axis=2)                                     # (N,C,k*k,P,P)
    if transposed:
        p = p.transpose(1, 2, 0, 3, 4)                               # (C,k*k,N,P,P)
        p = p.reshape(c * k * k, n * pooled * pooled)
    else:
        p = p.transpose(0, 3, 4, 1, 2)                               # (N,P,P,C,k*k)
        p = p.reshape(n * pooled * pooled, c * k * k)
    return p.astype(jnp.bfloat16)


def _pool_pad_mask(ph, pw, src, pooled, n):
    """0/1 validity mask (N*P*P, 1) for MaxPool2d(2,2,padding=1) corner (ph, pw)."""
    idx = jnp.arange(pooled)
    r = 2 * idx - 1 + ph
    c = 2 * idx - 1 + pw
    vr = (r >= 0) & (r <= src - 1)
    vc = (c >= 0) & (c <= src - 1)
    m = (vr[:, None] & vc[None, :]).astype(jnp.float32)              # (P, P)
    return jnp.tile(m[None], (n, 1, 1)).reshape(n * pooled * pooled, 1)


def cnn_mnist_forward(x, p):
    n = x.shape[0]

    # --- layer1: Conv2d(3, 32, 3, pad=1) + ReLU + MaxPool2d(2, 2) [+ Dropout id]
    xp = jnp.pad(x, ((0, 0), (0, 0), (1, 1), (1, 1)))
    P1 = 16
    patches = [_corner_patches(xp, 3, ph, pw, P1, transposed=True)
               for ph in (0, 1) for pw in (0, 1)]
    w = p['w1'].reshape(32, 3 * 9).astype(jnp.bfloat16)
    b = p['b1'].reshape(32, 1)
    pooled1 = _pallas_full(convT_relu_pool_kernel,
                           jax.ShapeDtypeStruct((32, n * P1 * P1), jnp.float32),
                           *patches, w, b)
    x2 = pooled1.reshape(32, n, P1, P1).transpose(1, 0, 2, 3)        # back to NCHW

    # --- layer2: Conv2d(32, 64, 3, pad=1) + ReLU + MaxPool2d(2, 2) [+ Dropout id]
    xp = jnp.pad(x2, ((0, 0), (0, 0), (1, 1), (1, 1)))
    P2 = 8
    patches = [_corner_patches(xp, 3, ph, pw, P2, transposed=True)
               for ph in (0, 1) for pw in (0, 1)]
    w = p['w2'].reshape(64, 32 * 9).astype(jnp.bfloat16)
    b = p['b2'].reshape(64, 1)
    pooled2 = _pallas_full(convT_relu_pool_kernel,
                           jax.ShapeDtypeStruct((64, n * P2 * P2), jnp.float32),
                           *patches, w, b)
    x3 = pooled2.reshape(64, n, P2, P2).transpose(1, 0, 2, 3)        # NCHW

    # --- layer3: Conv2d(64, 128, 3, pad=1) + ReLU + MaxPool2d(2, 2, pad=1) ----
    # conv padding 1 + pool padding 1 -> pad spatially by 2; corners that fall in
    # the pool-padding ring are zeroed by the mask (== -inf padding post-ReLU).
    xp = jnp.pad(x3, ((0, 0), (0, 0), (2, 2), (2, 2)))
    P3, S3 = 5, 8
    patches = [_corner_patches(xp, 3, ph, pw, P3, transposed=False)
               for ph in (0, 1) for pw in (0, 1)]
    masks = [_pool_pad_mask(ph, pw, S3, P3, n) for ph in (0, 1) for pw in (0, 1)]
    w = p['w3'].reshape(128, 64 * 9).T.astype(jnp.bfloat16)
    b = p['b3'].reshape(1, 128)
    pooled3 = _pallas_full(conv_relu_maskpool_kernel,
                           jax.ShapeDtypeStruct((n * P3 * P3, 128), jnp.float32),
                           *patches, *masks, w, b)

    # --- flatten + fc1 + fc2 ----------------------------------------------------
    # pooled3 rows are (n, h, w) with channels last (NHWC flatten).  Permute fc1's
    # weight rows once instead of transposing the activation back to NCHW order.
    feat = pooled3.reshape(n, P3 * P3 * 128).astype(jnp.bfloat16)
    w_fc1 = (p['fc1_w'].reshape(128, P3, P3, 625)
             .transpose(1, 2, 0, 3).reshape(128 * P3 * P3, 625).astype(jnp.bfloat16))
    w_fc2 = p['fc2_w'].astype(jnp.bfloat16)
    return _pallas_full(mlp_kernel,
                        jax.ShapeDtypeStruct((n, 10), jnp.float32),
                        feat, w_fc1, p['fc1_b'].reshape(1, 625),
                        w_fc2, p['fc2_b'].reshape(1, 10))


# ------------------------- deterministic parameters -------------------------

def init_params(key):
    ks = jax.random.split(key, 10)
    f32 = jnp.float32
    return {
        'w1': 0.20 * jax.random.normal(ks[0], (32, 3, 3, 3), f32),
        'b1': 0.05 * jax.random.normal(ks[1], (32,), f32),
        'w2': 0.06 * jax.random.normal(ks[2], (64, 32, 3, 3), f32),
        'b2': 0.05 * jax.random.normal(ks[3], (64,), f32),
        'w3': 0.04 * jax.random.normal(ks[4], (128, 64, 3, 3), f32),
        'b3': 0.05 * jax.random.normal(ks[5], (128,), f32),
        # fc1_w rows ordered (c, h, w), matching PyTorch's x.view(N, -1) on NCHW.
        'fc1_w': 0.02 * jax.random.normal(ks[6], (3200, 625), f32),
        'fc1_b': 0.05 * jax.random.normal(ks[7], (625,), f32),
        'fc2_w': 0.05 * jax.random.normal(ks[8], (625, 10), f32),
        'fc2_b': 0.05 * jax.random.normal(ks[9], (10,), f32),
    }


# ------------------------------- reference ----------------------------------

def reference_forward(x, p):
    def conv_relu(x, w, b):
        y = lax.conv_general_dilated(x, w, (1, 1), ((1, 1), (1, 1)),
                                     dimension_numbers=('NCHW', 'OIHW', 'NCHW'))
        return jnp.maximum(y + b[None, :, None, None], 0.0)

    def maxpool(x, pad=0):
        if pad:
            x = jnp.pad(x, ((0, 0), (0, 0), (pad, pad), (pad, pad)),
                        constant_values=-jnp.inf)
        n, c, h, w = x.shape
        return x.reshape(n, c, h // 2, 2, w // 2, 2).max(axis=(3, 5))

    y = maxpool(conv_relu(x, p['w1'], p['b1']))
    y = maxpool(conv_relu(y, p['w2'], p['b2']))
    y = maxpool(conv_relu(y, p['w3'], p['b3']), pad=1)
    y = y.reshape(y.shape[0], -1)                    # NCHW flatten (c, h, w)
    y = y @ p['fc1_w'] + p['fc1_b']                  # forward() has no ReLU here
    return y @ p['fc2_w'] + p['fc2_b']               # no softmax in forward()


if __name__ == "__main__":
    key = jax.random.PRNGKey(0)
    kx, kp = jax.random.split(key)
    # 3x32x32 input is required by the fc1(3200 = 128*5*5) geometry; batch = 2.
    x = jax.random.normal(kx, (2, 3, 32, 32), jnp.float32)
    params = init_params(kp)

    fwd = jax.jit(cnn_mnist_forward)
    out = jax.block_until_ready(fwd(x, params))
    assert out.shape == (2, 10) and out.dtype == jnp.float32

    ref = reference_forward(x, params)
    max_err = float(jnp.max(jnp.abs(out - ref)))
    # bf16 MXU operands (f32 accumulation) -> slightly loosened tolerance vs pure f32.
    assert jnp.allclose(out, ref, atol=3e-2, rtol=3e-2), max_err

    print("KERNEL_OK")
</pallas_src>

<mosaic_0001>
module attributes {stable_mosaic.version = 11 : i64} {
  func.func @convT_relu_pool_kernel(%arg0: memref<27x512xbf16, #tpu.memory_space<vmem>>, %arg1: memref<27x512xbf16, #tpu.memory_space<vmem>>, %arg2: memref<27x512xbf16, #tpu.memory_space<vmem>>, %arg3: memref<27x512xbf16, #tpu.memory_space<vmem>>, %arg4: memref<32x27xbf16, #tpu.memory_space<vmem>>, %arg5: memref<32x1xf32, #tpu.memory_space<vmem>>, %arg6: memref<32x512xf32, #tpu.memory_space<vmem>>) attributes {dimension_semantics = [], scalar_prefetch = 0 : i64, scratch_operands = 0 : i64, tpu.core_type = #tpu.core_type<tc>} {
    %c0 = arith.constant 0 : index
    %c0_0 = arith.constant 0 : index
    %0 = vector.load %arg4[%c0, %c0_0] : memref<32x27xbf16, #tpu.memory_space<vmem>>, vector<32x27xbf16>
    %c0_1 = arith.constant 0 : index
    %c0_2 = arith.constant 0 : index
    %1 = vector.load %arg5[%c0_1, %c0_2] : memref<32x1xf32, #tpu.memory_space<vmem>>, vector<32x1xf32>
    %c0_3 = arith.constant 0 : index
    %c0_4 = arith.constant 0 : index
    %2 = vector.load %arg0[%c0_3, %c0_4] : memref<27x512xbf16, #tpu.memory_space<vmem>>, vector<27x512xbf16>
    %cst = arith.constant dense<0.000000e+00> : vector<32x512xf32>
    %3 = tpu.matmul %0, %2, %cst {dimension_numbers = #tpu.dot_dimension_numbers<[1], [0], [0], [1], [0, 0, 1, 1], [], []>} : vector<32x27xbf16>, vector<27x512xbf16>, vector<32x512xf32> -> vector<32x512xf32>
    %4 = vector.broadcast %1 : vector<32x1xf32> to vector<32x512xf32>
    %5 = arith.addf %3, %4 : vector<32x512xf32>
    %cst_5 = arith.constant 0.000000e+00 : f32
    %6 = vector.broadcast %cst_5 : f32 to vector<32x512xf32>
    %7 = arith.maximumf %5, %6 : vector<32x512xf32>
    %c0_6 = arith.constant 0 : index
    %c0_7 = arith.constant 0 : index
    %8 = vector.load %arg1[%c0_6, %c0_7] : memref<27x512xbf16, #tpu.memory_space<vmem>>, vector<27x512xbf16>
    %cst_8 = arith.constant dense<0.000000e+00> : vector<32x512xf32>
    %9 = tpu.matmul %0, %8, %cst_8 {dimension_numbers = #tpu.dot_dimension_numbers<[1], [0], [0], [1], [0, 0, 1, 1], [], []>} : vector<32x27xbf16>, vector<27x512xbf16>, vector<32x512xf32> -> vector<32x512xf32>
    %10 = vector.broadcast %1 : vector<32x1xf32> to vector<32x512xf32>
    %11 = arith.addf %9, %10 : vector<32x512xf32>
    %cst_9 = arith.constant 0.000000e+00 : f32
    %12 = vector.broadcast %cst_9 : f32 to vector<32x512xf32>
    %13 = arith.maximumf %11, %12 : vector<32x512xf32>
    %14 = arith.maximumf %7, %13 : vector<32x512xf32>
    %c0_10 = arith.constant 0 : index
    %c0_11 = arith.constant 0 : index
    %15 = vector.load %arg2[%c0_10, %c0_11] : memref<27x512xbf16, #tpu.memory_space<vmem>>, vector<27x512xbf16>
    %cst_12 = arith.constant dense<0.000000e+00> : vector<32x512xf32>
    %16 = tpu.matmul %0, %15, %cst_12 {dimension_numbers = #tpu.dot_dimension_numbers<[1], [0], [0], [1], [0, 0, 1, 1], [], []>} : vector<32x27xbf16>, vector<27x512xbf16>, vector<32x512xf32> -> vector<32x512xf32>
    %17 = vector.broadcast %1 : vector<32x1xf32> to vector<32x512xf32>
    %18 = arith.addf %16, %17 : vector<32x512xf32>
    %cst_13 = arith.constant 0.000000e+00 : f32
    %19 = vector.broadcast %cst_13 : f32 to vector<32x512xf32>
    %20 = arith.maximumf %18, %19 : vector<32x512xf32>
    %c0_14 = arith.constant 0 : index
    %c0_15 = arith.constant 0 : index
    %21 = vector.load %arg3[%c0_14, %c0_15] : memref<27x512xbf16, #tpu.memory_space<vmem>>, vector<27x512xbf16>
    %cst_16 = arith.constant dense<0.000000e+00> : vector<32x512xf32>
    %22 = tpu.matmul %0, %21, %cst_16 {dimension_numbers = #tpu.dot_dimension_numbers<[1], [0], [0], [1], [0, 0, 1, 1], [], []>} : vector<32x27xbf16>, vector<27x512xbf16>, vector<32x512xf32> -> vector<32x512xf32>
    %23 = vector.broadcast %1 : vector<32x1xf32> to vector<32x512xf32>
    %24 = arith.addf %22, %23 : vector<32x512xf32>
    %cst_17 = arith.constant 0.000000e+00 : f32
    %25 = vector.broadcast %cst_17 : f32 to vector<32x512xf32>
    %26 = arith.maximumf %24, %25 : vector<32x512xf32>
    %27 = arith.maximumf %20, %26 : vector<32x512xf32>
    %28 = arith.maximumf %14, %27 : vector<32x512xf32>
    %c0_18 = arith.constant 0 : index
    %c0_19 = arith.constant 0 : index
    %29 = vector.load %arg6[%c0_18, %c0_19] : memref<32x512xf32, #tpu.memory_space<vmem>>, vector<32x512xf32>
    tpu.vector_store %arg6[%c0_18, %c0_19], %28 {strides = array<i32>} : memref<32x512xf32, #tpu.memory_space<vmem>>, vector<32x512xf32>,
    return
  }
}

module attributes {stable_mosaic.version = 11 : i64} {
  func.func @convT_relu_pool_kernel(%arg0: memref<288x128xbf16, #tpu.memory_space<vmem>>, %arg1: memref<288x128xbf16, #tpu.memory_space<vmem>>, %arg2: memref<288x128xbf16, #tpu.memory_space<vmem>>, %arg3: memref<288x128xbf16, #tpu.memory_space<vmem>>, %arg4: memref<64x288xbf16, #tpu.memory_space<vmem>>, %arg5: memref<64x1xf32, #tpu.memory_space<vmem>>, %arg6: memref<64x128xf32, #tpu.memory_space<vmem>>) attributes {dimension_semantics = [], scalar_prefetch = 0 : i64, scratch_operands = 0 : i64, tpu.core_type = #tpu.core_type<tc>} {
    %c0 = arith.constant 0 : index
    %c0_0 = arith.constant 0 : index
    %0 = vector.load %arg4[%c0, %c0_0] : memref<64x288xbf16, #tpu.memory_space<vmem>>, vector<64x288xbf16>
    %c0_1 = arith.constant 0 : index
    %c0_2 = arith.constant 0 : index
    %1 = vector.load %arg5[%c0_1, %c0_2] : memref<64x1xf32, #tpu.memory_space<vmem>>, vector<64x1xf32>
    %c0_3 = arith.constant 0 : index
    %c0_4 = arith.constant 0 : index
    %2 = vector.load %arg0[%c0_3, %c0_4] : memref<288x128xbf16, #tpu.memory_space<vmem>>, vector<288x128xbf16>
    %cst = arith.constant dense<0.000000e+00> : vector<64x128xf32>
    %3 = tpu.matmul %0, %2, %cst {dimension_numbers = #tpu.dot_dimension_numbers<[1], [0], [0], [1], [0, 0, 1, 1], [], []>} : vector<64x288xbf16>, vector<288x128xbf16>, vector<64x128xf32> -> vector<64x128xf32>
    %4 = vector.broadcast %1 : vector<64x1xf32> to vector<64x128xf32>
    %5 = arith.addf %3, %4 : vector<64x128xf32>
    %cst_5 = arith.constant 0.000000e+00 : f32
    %6 = vector.broadcast %cst_5 : f32 to vector<64x128xf32>
    %7 = arith.maximumf %5, %6 : vector<64x128xf32>
    %c0_6 = arith.constant 0 : index
    %c0_7 = arith.constant 0 : index
    %8 = vector.load %arg1[%c0_6, %c0_7] : memref<288x128xbf16, #tpu.memory_space<vmem>>, vector<288x128xbf16>
    %cst_8 = arith.constant dense<0.000000e+00> : vector<64x128xf32>
    %9 = tpu.matmul %0, %8, %cst_8 {dimension_numbers = #tpu.dot_dimension_numbers<[1], [0], [0], [1], [0, 0, 1, 1], [], []>} : vector<64x288xbf16>, vector<288x128xbf16>, vector<64x128xf32> -> vector<64x128xf32>
    %10 = vector.broadcast %1 : vector<64x1xf32> to vector<64x128xf32>
    %11 = arith.addf %9, %10 : vector<64x128xf32>
    %cst_9 = arith.constant 0.000000e+00 : f32
    %12 = vector.broadcast %cst_9 : f32 to vector<64x128xf32>
    %13 = arith.maximumf %11, %12 : vector<64x128xf32>
    %14 = arith.maximumf %7, %13 : vector<64x128xf32>
    %c0_10 = arith.constant 0 : index
    %c0_11 = arith.constant 0 : index
    %15 = vector.load %arg2[%c0_10, %c0_11] : memref<288x128xbf16, #tpu.memory_space<vmem>>, vector<288x128xbf16>
    %cst_12 = arith.constant dense<0.000000e+00> : vector<64x128xf32>
    %16 = tpu.matmul %0, %15, %cst_12 {dimension_numbers = #tpu.dot_dimension_numbers<[1], [0], [0], [1], [0, 0, 1, 1], [], []>} : vector<64x288xbf16>, vector<288x128xbf16>, vector<64x128xf32> -> vector<64x128xf32>
    %17 = vector.broadcast %1 : vector<64x1xf32> to vector<64x128xf32>
    %18 = arith.addf %16, %17 : vector<64x128xf32>
    %cst_13 = arith.constant 0.000000e+00 : f32
    %19 = vector.broadcast %cst_13 : f32 to vector<64x128xf32>
    %20 = arith.maximumf %18, %19 : vector<64x128xf32>
    %c0_14 = arith.constant 0 : index
    %c0_15 = arith.constant 0 : index
    %21 = vector.load %arg3[%c0_14, %c0_15] : memref<288x128xbf16, #tpu.memory_space<vmem>>, vector<288x128xbf16>
    %cst_16 = arith.constant dense<0.000000e+00> : vector<64x128xf32>
    %22 = tpu.matmul %0, %21, %cst_16 {dimension_numbers = #tpu.dot_dimension_numbers<[1], [0], [0], [1], [0, 0, 1, 1], [], []>} : vector<64x288xbf16>, vector<288x128xbf16>, vector<64x128xf32> -> vector<64x128xf32>
    %23 = vector.broadcast %1 : vector<64x1xf32> to vector<64x128xf32>
    %24 = arith.addf %22, %23 : vector<64x128xf32>
    %cst_17 = arith.constant 0.000000e+00 : f32
    %25 = vector.broadcast %cst_17 : f32 to vector<64x128xf32>
    %26 = arith.maximumf %24, %25 : vector<64x128xf32>
    %27 = arith.maximumf %20, %26 : vector<64x128xf32>
    %28 = arith.maximumf %14, %27 : vector<64x128xf32>
    %c0_18 = arith.constant 0 : index
    %c0_19 = arith.constant 0 : index
    %29 = vector.load %arg6[%c0_18, %c0_19] : memref<64x128xf32, #tpu.memory_space<vmem>>, vector<64x128xf32>
    tpu.vector_store %arg6[%c0_18, %c0_19], %28 {strides = array<i32>} : memref<64x128xf32, #tpu.memory_space<vmem>>, vector<64x128xf32>,
    return
  }
}

module attributes {stable_mosaic.version = 11 : i64} {
  func.func @conv_relu_maskpool_kernel(%arg0: memref<50x576xbf16, #tpu.memory_space<vmem>>, %arg1: memref<50x576xbf16, #tpu.memory_space<vmem>>, %arg2: memref<50x576xbf16, #tpu.memory_space<vmem>>, %arg3: memref<50x576xbf16, #tpu.memory_space<vmem>>, %arg4: memref<50x1xf32, #tpu.memory_space<vmem>>, %arg5: memref<50x1xf32, #tpu.memory_space<vmem>>, %arg6: memref<50x1xf32, #tpu.memory_space<vmem>>, %arg7: memref<50x1xf32, #tpu.memory_space<vmem>>, %arg8: memref<576x128xbf16, #tpu.memory_space<vmem>>, %arg9: memref<1x128xf32, #tpu.memory_space<vmem>>, %arg10: memref<50x128xf32, #tpu.memory_space<vmem>>) attributes {dimension_semantics = [], scalar_prefetch = 0 : i64, scratch_operands = 0 : i64, tpu.core_type = #tpu.core_type<tc>} {
    %c0 = arith.constant 0 : index
    %c0_0 = arith.constant 0 : index
    %0 = vector.load %arg8[%c0, %c0_0] : memref<576x128xbf16, #tpu.memory_space<vmem>>, vector<576x128xbf16>
    %c0_1 = arith.constant 0 : index
    %c0_2 = arith.constant 0 : index
    %1 = vector.load %arg9[%c0_1, %c0_2] : memref<1x128xf32, #tpu.memory_space<vmem>>, vector<1x128xf32>
    %c0_3 = arith.constant 0 : index
    %c0_4 = arith.constant 0 : index
    %2 = vector.load %arg0[%c0_3, %c0_4] : memref<50x576xbf16, #tpu.memory_space<vmem>>, vector<50x576xbf16>
    %cst = arith.constant dense<0.000000e+00> : vector<50x128xf32>
    %3 = tpu.matmul %2, %0, %cst {dimension_numbers = #tpu.dot_dimension_numbers<[1], [0], [0], [1], [0, 0, 1, 1], [], []>} : vector<50x576xbf16>, vector<576x128xbf16>, vector<50x128xf32> -> vector<50x128xf32>
    %4 = vector.broadcast %1 : vector<1x128xf32> to vector<50x128xf32>
    %5 = arith.addf %3, %4 : vector<50x128xf32>
    %cst_5 = arith.constant 0.000000e+00 : f32
    %6 = vector.broadcast %cst_5 : f32 to vector<50x128xf32>
    %7 = arith.maximumf %5, %6 : vector<50x128xf32>
    %c0_6 = arith.constant 0 : index
    %c0_7 = arith.constant 0 : index
    %8 = vector.load %arg4[%c0_6, %c0_7] : memref<50x1xf32, #tpu.memory_space<vmem>>, vector<50x1xf32>
    %9 = vector.broadcast %8 : vector<50x1xf32> to vector<50x128xf32>
    %10 = arith.mulf %7, %9 : vector<50x128xf32>
    %c0_8 = arith.constant 0 : index
    %c0_9 = arith.constant 0 : index
    %11 = vector.load %arg1[%c0_8, %c0_9] : memref<50x576xbf16, #tpu.memory_space<vmem>>, vector<50x576xbf16>
    %cst_10 = arith.constant dense<0.000000e+00> : vector<50x128xf32>
    %12 = tpu.matmul %11, %0, %cst_10 {dimension_numbers = #tpu.dot_dimension_numbers<[1], [0], [0], [1], [0, 0, 1, 1], [], []>} : vector<50x576xbf16>, vector<576x128xbf16>, vector<50x128xf32> -> vector<50x128xf32>
    %13 = vector.broadcast %1 : vector<1x128xf32> to vector<50x128xf32>
    %14 = arith.addf %12, %13 : vector<50x128xf32>
    %cst_11 = arith.constant 0.000000e+00 : f32
    %15 = vector.broadcast %cst_11 : f32 to vector<50x128xf32>
    %16 = arith.maximumf %14, %15 : vector<50x128xf32>
    %c0_12 = arith.constant 0 : index
    %c0_13 = arith.constant 0 : index
    %17 = vector.load %arg5[%c0_12, %c0_13] : memref<50x1xf32, #tpu.memory_space<vmem>>, vector<50x1xf32>
    %18 = vector.broadcast %17 : vector<50x1xf32> to vector<50x128xf32>
    %19 = arith.mulf %16, %18 : vector<50x128xf32>
    %20 = arith.maximumf %10, %19 : vector<50x128xf32>
    %c0_14 = arith.constant 0 : index
    %c0_15 = arith.constant 0 : index
    %21 = vector.load %arg2[%c0_14, %c0_15] : memref<50x576xbf16, #tpu.memory_space<vmem>>, vector<50x576xbf16>
    %cst_16 = arith.constant dense<0.000000e+00> : vector<50x128xf32>
    %22 = tpu.matmul %21, %0, %cst_16 {dimension_numbers = #tpu.dot_dimension_numbers<[1], [0], [0], [1], [0, 0, 1, 1], [], []>} : vector<50x576xbf16>, vector<576x128xbf16>, vector<50x128xf32> -> vector<50x128xf32>
    %23 = vector.broadcast %1 : vector<1x128xf32> to vector<50x128xf32>
    %24 = arith.addf %22, %23 : vector<50x128xf32>
    %cst_17 = arith.constant 0.000000e+00 : f32
    %25 = vector.broadcast %cst_17 : f32 to vector<50x128xf32>
    %26 = arith.maximumf %24, %25 : vector<50x128xf32>
    %c0_18 = arith.constant 0 : index
    %c0_19 = arith.constant 0 : index
    %27 = vector.load %arg6[%c0_18, %c0_19] : memref<50x1xf32, #tpu.memory_space<vmem>>, vector<50x1xf32>
    %28 = vector.broadcast %27 : vector<50x1xf32> to vector<50x128xf32>
    %29 = arith.mulf %26, %28 : vector<50x128xf32>
    %c0_20 = arith.constant 0 : index
    %c0_21 = arith.constant 0 : index
    %30 = vector.load %arg3[%c0_20, %c0_21] : memref<50x576xbf16, #tpu.memory_space<vmem>>, vector<50x576xbf16>
    %cst_22 = arith.constant dense<0.000000e+00> : vector<50x128xf32>
    %31 = tpu.matmul %30, %0, %cst_22 {dimension_numbers = #tpu.dot_dimension_numbers<[1], [0], [0], [1], [0, 0, 1, 1], [], []>} : vector<50x576xbf16>, vector<576x128xbf16>, vector<50x128xf32> -> vector<50x128xf32>
    %32 = vector.broadcast %1 : vector<1x128xf32> to vector<50x128xf32>
    %33 = arith.addf %31, %32 : vector<50x128xf32>
    %cst_23 = arith.constant 0.000000e+00 : f32
    %34 = vector.broadcast %cst_23 : f32 to vector<50x128xf32>
    %35 = arith.maximumf %33, %34 : vector<50x128xf32>
    %c0_24 = arith.constant 0 : index
    %c0_25 = arith.constant 0 : index
    %36 = vector.load %arg7[%c0_24, %c0_25] : memref<50x1xf32, #tpu.memory_space<vmem>>, vector<50x1xf32>
    %37 = vector.broadcast %36 : vector<50x1xf32> to vector<50x128xf32>
    %38 = arith.mulf %35, %37 : vector<50x128xf32>
    %39 = arith.maximumf %29, %38 : vector<50x128xf32>
    %40 = arith.maximumf %20, %39 : vector<50x128xf32>
    %c0_26 = arith.constant 0 : index
    %c0_27 = arith.constant 0 : index
    %41 = vector.load %arg10[%c0_26, %c0_27] : memref<50x128xf32, #tpu.memory_space<vmem>>, vector<50x128xf32>
    tpu.vector_store %arg10[%c0_26, %c0_27], %40 {strides = array<i32>} : memref<50x128xf32, #tpu.memory_space<vmem>>, vector<50x128xf32>,
    return
  }
}

module attributes {stable_mosaic.version = 11 : i64} {
  func.func @mlp_kernel(%arg0: memref<2x3200xbf16, #tpu.memory_space<vmem>>, %arg1: memref<3200x625xbf16, #tpu.memory_space<vmem>>, %arg2: memref<1x625xf32, #tpu.memory_space<vmem>>, %arg3: memref<625x10xbf16, #tpu.memory_space<vmem>>, %arg4: memref<1x10xf32, #tpu.memory_space<vmem>>, %arg5: memref<2x10xf32, #tpu.memory_space<vmem>>) attributes {dimension_semantics = [], scalar_prefetch = 0 : i64, scratch_operands = 0 : i64, tpu.core_type = #tpu.core_type<tc>} {
    %c0 = arith.constant 0 : index
    %c0_0 = arith.constant 0 : index
    %0 = vector.load %arg0[%c0, %c0_0] : memref<2x3200xbf16, #tpu.memory_space<vmem>>, vector<2x3200xbf16>
    %c0_1 = arith.constant 0 : index
    %c0_2 = arith.constant 0 : index
    %1 = vector.load %arg1[%c0_1, %c0_2] : memref<3200x625xbf16, #tpu.memory_space<vmem>>, vector<3200x625xbf16>
    %cst = arith.constant dense<0.000000e+00> : vector<2x625xf32>
    %2 = tpu.matmul %0, %1, %cst {dimension_numbers = #tpu.dot_dimension_numbers<[1], [0], [0], [1], [0, 0, 1, 1], [], []>} : vector<2x3200xbf16>, vector<3200x625xbf16>, vector<2x625xf32> -> vector<2x625xf32>
    %c0_3 = arith.constant 0 : index
    %c0_4 = arith.constant 0 : index
    %3 = vector.load %arg2[%c0_3, %c0_4] : memref<1x625xf32, #tpu.memory_space<vmem>>, vector<1x625xf32>
    %4 = vector.broadcast %3 : vector<1x625xf32> to vector<2x625xf32>
    %5 = arith.addf %2, %4 : vector<2x625xf32>
    %6 = arith.truncf %5 : vector<2x625xf32> to vector<2x625xbf16>
    %c0_5 = arith.constant 0 : index
    %c0_6 = arith.constant 0 : index
    %7 = vector.load %arg3[%c0_5, %c0_6] : memref<625x10xbf16, #tpu.memory_space<vmem>>, vector<625x10xbf16>
    %cst_7 = arith.constant dense<0.000000e+00> : vector<2x10xf32>
    %8 = tpu.matmul %6, %7, %cst_7 {dimension_numbers = #tpu.dot_dimension_numbers<[1], [0], [0], [1], [0, 0, 1, 1], [], []>} : vector<2x625xbf16>, vector<625x10xbf16>, vector<2x10xf32> -> vector<2x10xf32>
    %c0_8 = arith.constant 0 : index
    %c0_9 = arith.constant 0 : index
    %9 = vector.load %arg4[%c0_8, %c0_9] : memref<1x10xf32, #tpu.memory_space<vmem>>, vector<1x10xf32>
    %10 = vector.broadcast %9 : vector<1x10xf32> to vector<2x10xf32>
    %11 = arith.addf %8, %10 : vector<2x10xf32>
    %c0_10 = arith.constant 0 : index
    %c0_11 = arith.constant 0 : index
    %12 = vector.load %arg5[%c0_10, %c0_11] : memref<2x10xf32, #tpu.memory_space<vmem>>, vector<2x10xf32>
    tpu.vector_store %arg5[%c0_10, %c0_11], %11 {strides = array<i32>} : memref<2x10xf32, #tpu.memory_space<vmem>>, vector<2x10xf32>,
    return
  }
}

</mosaic_0001>

<llo_original>
// kernel: cnn_mnist_forward.4
$region0: #{cnn_mnist_forward.4}
  #allocation0 [shape = 'u32[]', space=smem, size = 0x4, offset = 0x4, fixed_abs, tag = 'smem constant byte address 0x4 - core index']
  #allocation1 [shape = 'u32[72,128]{1,0:T(1,128)}', space=vmem, size = 0x9000, scoped, tag = 'internal scratch']
  %s0 = inlined_call_operand.vmem [shape: bf16[27,512], index: 0, kind: input, shape index: {}]
  %s1 = inlined_call_operand.vmem [shape: bf16[27,512], index: 1, kind: input, shape index: {}]
  %s2 = inlined_call_operand.vmem [shape: bf16[27,512], index: 2, kind: input, shape index: {}]
  %s3 = inlined_call_operand.vmem [shape: bf16[27,512], index: 3, kind: input, shape index: {}]
  %s4 = inlined_call_operand.vmem [shape: bf16[32,27], index: 4, kind: input, shape index: {}]
  %s5 = inlined_call_operand.vmem [shape: f32[32,1], index: 5, kind: input, shape index: {}]
  %s6 = inlined_call_operand.vmem [shape: f32[32,512], index: 6, kind: output, shape index: {}]
  %s7 = sld [smem:[#allocation0]]
  $region34: #{cnn_mnist_forward.4} parent=0
    _
  %s9 = ssub.s32 1, %s7
  %s10 = scalar_select 0, %s9, %s7
  // Predicated region
  $region2: #{cnn_mnist_forward.4} parent=0 // pred_check
    _
  $region3: #{cnn_mnist_forward.4} parent=0 // pred_check_branch
    %12 = sbr.rel (0) target = $region5
  $region4: #{cnn_mnist_forward.4} parent=0 // pred_region
    _
  $region5: #{cnn_mnist_forward.4} parent=0 // pred_fallthru
    _
  // Predicated region
  $region6: #{cnn_mnist_forward.4} parent=0 // pred_check
    _
  $region7: #{cnn_mnist_forward.4} parent=0 // pred_check_branch
    %14 = sbr.rel (0) target = $region9
  $region8: #{cnn_mnist_forward.4} parent=0 // pred_region
    _
  $region9: #{cnn_mnist_forward.4} parent=0 // pred_fallthru
    _
  // Predicated region
  $region10: #{cnn_mnist_forward.4} parent=0 // pred_check
    _
  $region11: #{cnn_mnist_forward.4} parent=0 // pred_check_branch
    %16 = sbr.rel (0) target = $region13
  $region12: #{cnn_mnist_forward.4} parent=0 // pred_region
    _
  $region13: #{cnn_mnist_forward.4} parent=0 // pred_fallthru
    _
  // Predicated region
  $region14: #{cnn_mnist_forward.4} parent=0 // pred_check
    _
  $region15: #{cnn_mnist_forward.4} parent=0 // pred_check_branch
    %18 = sbr.rel (0) target = $region17
  $region16: #{cnn_mnist_forward.4} parent=0 // pred_region
    _
  $region17: #{cnn_mnist_forward.4} parent=0 // pred_fallthru
    _
  // Predicated region
  $region18: #{cnn_mnist_forward.4} parent=0 // pred_check
    _
  $region19: #{cnn_mnist_forward.4} parent=0 // pred_check_branch
    %20 = sbr.rel (0) target = $region21
  $region20: #{cnn_mnist_forward.4} parent=0 // pred_region
    _
  $region21: #{cnn_mnist_forward.4} parent=0 // pred_fallthru
    _
  // Predicated region
  $region22: #{cnn_mnist_forward.4} parent=0 // pred_check
    _
  $region23: #{cnn_mnist_forward.4} parent=0 // pred_check_branch
    %22 = sbr.rel (0) target = $region25
  $region24: #{cnn_mnist_forward.4} parent=0 // pred_region
    _
  $region25: #{cnn_mnist_forward.4} parent=0 // pred_fallthru
    _
  %v24 = vld [vmem:[%s4] sm:$0xf]
  %v25 = vld [vmem:[%s4 + $0x4] sm:$0xf]
  %v26 = vld [vmem:[%s4 + $0x8] sm:$0xf]
  %v27 = vld [vmem:[%s4 + $0xc] sm:$0xf]
  %v28 = vld [vmem:[%s5] sm:$0xff]
  %v29 = vld [vmem:[%s5 + $0x8] sm:$0xff]
  %v30 = vld [vmem:[%s5 + $0x10] sm:$0xff]
  %v31 = vld [vmem:[%s5 + $0x18] sm:$0xff]
  %v32 = vld [vmem:[%s0] sm:$0xff]
  %v33 = vld [vmem:[%s0 + $0x8] sm:$0xff]
  %v34 = vld [vmem:[%s0 + $0x10] sm:$0xff]
  %v35 = vld [vmem:[%s0 + $0x18] sm:$0xff]
  %v36 = vld [vmem:[%s0 + $0x20] sm:$0xff]
  %v37 = vld [vmem:[%s0 + $0x28] sm:$0xff]
  %v38 = vld [vmem:[%s0 + $0x30] sm:$0x33]
  %v39 = vld [vmem:[%s0 + $0x38] sm:$0x33]
  %41 = vset.pattern.permute.xlu0 0
  %42 = vperm.xlu0 %41, %v28
  %v43 = vpop.permute.xlu0 %42
  %46 = vset.pattern.permute.xlu0 0
  %47 = vperm.xlu0 %46, %v29
  %v48 = vpop.permute.xlu0 %47
  %51 = vset.pattern.permute.xlu0 0
  %52 = vperm.xlu0 %51, %v30
  %v53 = vpop.permute.xlu0 %52
  %56 = vset.pattern.permute.xlu0 0
  %57 = vperm.xlu0 %56, %v31
  %v58 = vpop.permute.xlu0 %57
  %v64 = vunpack.c.l.b16 %v24
  %v65 = vunpack.c.l.b16 %v25
  %v66 = vunpack.c.l.b16 %v26
  %v67 = vunpack.c.l.b16 %v27
  %v68 = vpack.c.b16 %v65, %v64
  %v69 = vpack.c.b16 %v67, %v66
  %v78 = vunpack.c.l.b16 %v32
  %v79 = vunpack.c.h.b16 %v32
  %v80 = vunpack.c.l.b16 %v33
  %v81 = vunpack.c.h.b16 %v33
  %v82 = vunpack.c.l.b16 %v34
  %v83 = vunpack.c.h.b16 %v34
  %v84 = vunpack.c.l.b16 %v35
  %v85 = vunpack.c.h.b16 %v35
  %v86 = vunpack.c.l.b16 %v36
  %v87 = vunpack.c.h.b16 %v36
  %v88 = vunpack.c.l.b16 %v37
  %v89 = vunpack.c.h.b16 %v37
  %v90 = vunpack.c.l.b16 %v38
  %v91 = vunpack.c.h.b16 %v38
  %v92 = vunpack.c.l.b16 %v39
  %v93 = vunpack.c.h.b16 %v39
  %v94 = vpack.c.b16 %v82, %v78
  %v95 = vpack.c.b16 %v83, %v79
  %v96 = vpack.c.b16 %v84, %v80
  %v97 = vpack.c.b16 %v85, %v81
  %v98 = vpack.c.b16 %v90, %v86
  %v99 = vpack.c.b16 %v91, %v87
  %v100 = vpack.c.b16 %v92, %v88
  %v101 = vpack.c.b16 %v93, %v89
  %vm106 = vcmask 220160
  %v108 = vsel %vm106, %v68, 0
  %v111 = vsel %vm106, %v69, 0
  %vm113 = vcmask 1044480
  %vm114 = vcmask 1045504
  %v115 = vsel %vm113, 4294967295, 65535
  %v116 = vsel %vm114, %v115, 0
  %v118 = vand.u32 %v98, %v116
  %v121 = vand.u32 %v99, %v116
  %v124 = vand.u32 %v100, %v116
  %v127 = vand.u32 %v101, %v116
  %129 = vmatpush.bf16.msra.mxu0 0
  %130 = vmatpush.bf16.msra.mxu0 0
  %131 = vmatpush.bf16.msra.mxu0 0
  %132 = vmatpush.bf16.msra.mxu0 0
  %133 = vmatpush.bf16.msra.mxu0 0
  %134 = vmatpush.bf16.msra.mxu0 0
  %135 = vmatpush.bf16.msra.mxu0 %v118
  %136 = vmatpush.bf16.msra.mxu0 %v94
  %137 = vmatmul.bf16.gmra.mxu0 %v108
  %v138 = vpop.f32.mrf.mxu0
  %v139 = vadd.f32 %v43, %v138
  %v140 = vpop.f32.mrf.mxu0
  %v141 = vadd.f32 %v48, %v140
  %142 = vmatmul.bf16.gmra.mxu0 %v111
  %v143 = vpop.f32.mrf.mxu0
  %v144 = vadd.f32 %v53, %v143
  %v145 = vpop.f32.mrf.mxu0
  %v146 = vadd.f32 %v58, %v145
  %147 = vdwg.mxu0
  %148 = vmatpush.bf16.msra.mxu0 0
  %149 = vmatpush.bf16.msra.mxu0 0
  %150 = vmatpush.bf16.msra.mxu0 0
  %151 = vmatpush.bf16.msra.mxu0 0
  %152 = vmatpush.bf16.msra.mxu0 0
  %153 = vmatpush.bf16.msra.mxu0 0
  %154 = vmatpush.bf16.msra.mxu0 %v121
  %155 = vmatpush.bf16.msra.mxu0 %v95
  %156 = vmatmul.bf16.gmra.mxu0 %v108
  %v157 = vpop.f32.mrf.mxu0
  %v158 = vadd.f32 %v43, %v157
  %v159 = vpop.f32.mrf.mxu0
  %v160 = vadd.f32 %v48, %v159
  %161 = vmatmul.bf16.gmra.mxu0 %v111
  %v162 = vpop.f32.mrf.mxu0
  %v163 = vadd.f32 %v53, %v162
  %v164 = vpop.f32.mrf.mxu0
  %v165 = vadd.f32 %v58, %v164
  %166 = vdwg.mxu0
  %167 = vmatpush.bf16.msra.mxu0 0
  %168 = vmatpush.bf16.msra.mxu0 0
  %169 = vmatpush.bf16.msra.mxu0 0
  %170 = vmatpush.bf16.msra.mxu0 0
  %171 = vmatpush.bf16.msra.mxu0 0
  %172 = vmatpush.bf16.msra.mxu0 0
  %173 = vmatpush.bf16.msra.mxu0 %v124
  %174 = vmatpush.bf16.msra.mxu0 %v96
  %175 = vmatmul.bf16.gmra.mxu0 %v108
  %v176 = vpop.f32.mrf.mxu0
  %v177 = vadd.f32 %v43, %v176
  %v178 = vpop.f32.mrf.mxu0
  %v179 = vadd.f32 %v48, %v178
  %180 = vmatmul.bf16.gmra.mxu0 %v111
  %v181 = vpop.f32.mrf.mxu0
  %v182 = vadd.f32 %v53, %v181
  %v183 = vpop.f32.mrf.mxu0
  %v184 = vadd.f32 %v58, %v183
  %185 = vdwg.mxu0
  %186 = vmatpush.bf16.msra.mxu0 0
  %187 = vmatpush.bf16.msra.mxu0 0
  %188 = vmatpush.bf16.msra.mxu0 0
  %189 = vmatpush.bf16.msra.mxu0 0
  %190 = vmatpush.bf16.msra.mxu0 0
  %191 = vmatpush.bf16.msra.mxu0 0
  %192 = vmatpush.bf16.msra.mxu0 %v127
  %193 = vmatpush.bf16.msra.mxu0 %v97
  %194 = vmatmul.bf16.gmra.mxu0 %v108
  %v195 = vpop.f32.mrf.mxu0
  %v196 = vadd.f32 %v43, %v195
  %v197 = vpop.f32.mrf.mxu0
  %v198 = vadd.f32 %v48, %v197
  %199 = vmatmul.bf16.gmra.mxu0 %v111
  %v200 = vpop.f32.mrf.mxu0
  %v201 = vadd.f32 %v53, %v200
  %v202 = vpop.f32.mrf.mxu0
  %v203 = vadd.f32 %v58, %v202
  %204 = vdwg.mxu0
  %v205 = vmax.f32 %v139, 0.0
  %v206 = vmax.f32 %v158, 0.0
  %v207 = vmax.f32 %v177, 0.0
  %v208 = vmax.f32 %v196, 0.0
  %v209 = vmax.f32 %v141, 0.0
  %v210 = vmax.f32 %v160, 0.0
  %v211 = vmax.f32 %v179, 0.0
  %v212 = vmax.f32 %v198, 0.0
  %v213 = vmax.f32 %v144, 0.0
  %v214 = vmax.f32 %v163, 0.0
  %v215 = vmax.f32 %v182, 0.0
  %v216 = vmax.f32 %v201, 0.0
  %v217 = vmax.f32 %v146, 0.0
  %v218 = vmax.f32 %v165, 0.0
  %v219 = vmax.f32 %v184, 0.0
  %v220 = vmax.f32 %v203, 0.0
  %v221 = vld [vmem:[%s1] sm:$0xff]
  %v222 = vld [vmem:[%s1 + $0x8] sm:$0xff]
  %v223 = vld [vmem:[%s1 + $0x10] sm:$0xff]
  %v224 = vld [vmem:[%s1 + $0x18] sm:$0xff]
  %v225 = vld [vmem:[%s1 + $0x20] sm:$0xff]
  %v226 = vld [vmem:[%s1 + $0x28] sm:$0xff]
  %v227 = vld [vmem:[%s1 + $0x30] sm:$0x33]
  %v228 = vld [vmem:[%s1 + $0x38] sm:$0x33]
  %v237 = vunpack.c.l.b16 %v221
  %v238 = vunpack.c.h.b16 %v221
  %v239 = vunpack.c.l.b16 %v222
  %v240 = vunpack.c.h.b16 %v222
  %v241 = vunpack.c.l.b16 %v223
  %v242 = vunpack.c.h.b16 %v223
  %v243 = vunpack.c.l.b16 %v224
  %v244 = vunpack.c.h.b16 %v224
  %v245 = vunpack.c.l.b16 %v225
  %v246 = vunpack.c.h.b16 %v225
  %v247 = vunpack.c.l.b16 %v226
  %v248 = vunpack.c.h.b16 %v226
  %v249 = vunpack.c.l.b16 %v227
  %v250 = vunpack.c.h.b16 %v227
  %v251 = vunpack.c.l.b16 %v228
  %v252 = vunpack.c.h.b16 %v228
  %v253 = vpack.c.b16 %v241, %v237
  %v254 = vpack.c.b16 %v242, %v238
  %v255 = vpack.c.b16 %v243, %v239
  %v256 = vpack.c.b16 %v244, %v240
  %v257 = vpack.c.b16 %v249, %v245
  %v258 = vpack.c.b16 %v250, %v246
  %v259 = vpack.c.b16 %v251, %v247
  %v260 = vpack.c.b16 %v252, %v248
  %v266 = vand.u32 %v257, %v116
  %v269 = vand.u32 %v258, %v116
  %v272 = vand.u32 %v259, %v116
  %v275 = vand.u32 %v260, %v116
  %277 = vmatpush.bf16.msra.mxu0 0
  %278 = vmatpush.bf16.msra.mxu0 0
  %279 = vmatpush.bf16.msra.mxu0 0
  %280 = vmatpush.bf16.msra.mxu0 0
  %281 = vmatpush.bf16.msra.mxu0 0
  %282 = vmatpush.bf16.msra.mxu0 0
  %283 = vmatpush.bf16.msra.mxu0 %v266
  %284 = vmatpush.bf16.msra.mxu0 %v253
  %285 = vmatmul.bf16.gmra.mxu0 %v108
  %v286 = vpop.f32.mrf.mxu0
  %v287 = vadd.f32 %v43, %v286
  %v288 = vpop.f32.mrf.mxu0
  %v289 = vadd.f32 %v48, %v288
  %290 = vmatmul.bf16.gmra.mxu0 %v111
  %v291 = vpop.f32.mrf.mxu0
  %v292 = vadd.f32 %v53, %v291
  %v293 = vpop.f32.mrf.mxu0
  %v294 = vadd.f32 %v58, %v293
  %295 = vdwg.mxu0
  %296 = vmatpush.bf16.msra.mxu0 0
  %297 = vmatpush.bf16.msra.mxu0 0
  %298 = vmatpush.bf16.msra.mxu0 0
  %299 = vmatpush.bf16.msra.mxu0 0
  %300 = vmatpush.bf16.msra.mxu0 0
  %301 = vmatpush.bf16.msra.mxu0 0
  %302 = vmatpush.bf16.msra.mxu0 %v269
  %303 = vmatpush.bf16.msra.mxu0 %v254
  %304 = vmatmul.bf16.gmra.mxu0 %v108
  %v305 = vpop.f32.mrf.mxu0
  %v306 = vadd.f32 %v43, %v305
  %v307 = vpop.f32.mrf.mxu0
  %v308 = vadd.f32 %v48, %v307
  %309 = vmatmul.bf16.gmra.mxu0 %v111
  %v310 = vpop.f32.mrf.mxu0
  %v311 = vadd.f32 %v53, %v310
  %v312 = vpop.f32.mrf.mxu0
  %v313 = vadd.f32 %v58, %v312
  %314 = vdwg.mxu0
  %315 = vmatpush.bf16.msra.mxu0 0
  %316 = vmatpush.bf16.msra.mxu0 0
  %317 = vmatpush.bf16.msra.mxu0 0
  %318 = vmatpush.bf16.msra.mxu0 0
  %319 = vmatpush.bf16.msra.mxu0 0
  %320 = vmatpush.bf16.msra.mxu0 0
  %321 = vmatpush.bf16.msra.mxu0 %v272
  %322 = vmatpush.bf16.msra.mxu0 %v255
  %323 = vmatmul.bf16.gmra.mxu0 %v108
  %v324 = vpop.f32.mrf.mxu0
  %v325 = vadd.f32 %v43, %v324
  %v326 = vpop.f32.mrf.mxu0
  %v327 = vadd.f32 %v48, %v326
  %328 = vmatmul.bf16.gmra.mxu0 %v111
  %v329 = vpop.f32.mrf.mxu0
  %v330 = vadd.f32 %v53, %v329
  %v331 = vpop.f32.mrf.mxu0
  %v332 = vadd.f32 %v58, %v331
  %333 = vdwg.mxu0
  %334 = vmatpush.bf16.msra.mxu0 0
  %335 = vmatpush.bf16.msra.mxu0 0
  %336 = vmatpush.bf16.msra.mxu0 0
  %337 = vmatpush.bf16.msra.mxu0 0
  %338 = vmatpush.bf16.msra.mxu0 0
  %339 = vmatpush.bf16.msra.mxu0 0
  %340 = vmatpush.bf16.msra.mxu0 %v275
  %341 = vmatpush.bf16.msra.mxu0 %v256
  %342 = vmatmul.bf16.gmra.mxu0 %v108
  %v343 = vpop.f32.mrf.mxu0
  %v344 = vadd.f32 %v43, %v343
  %v345 = vpop.f32.mrf.mxu0
  %v346 = vadd.f32 %v48, %v345
  %347 = vmatmul.bf16.gmra.mxu0 %v111
  %v348 = vpop.f32.mrf.mxu0
  %v349 = vadd.f32 %v53, %v348
  %v350 = vpop.f32.mrf.mxu0
  %v351 = vadd.f32 %v58, %v350
  %352 = vdwg.mxu0
  %v353 = vmax.f32 %v287, 0.0
  %v354 = vmax.f32 %v306, 0.0
  %v355 = vmax.f32 %v325, 0.0
  %v356 = vmax.f32 %v344, 0.0
  %v357 = vmax.f32 %v289, 0.0
  %v358 = vmax.f32 %v308, 0.0
  %v359 = vmax.f32 %v327, 0.0
  %v360 = vmax.f32 %v346, 0.0
  %v361 = vmax.f32 %v292, 0.0
  %v362 = vmax.f32 %v311, 0.0
  %v363 = vmax.f32 %v330, 0.0
  %v364 = vmax.f32 %v349, 0.0
  %v365 = vmax.f32 %v294, 0.0
  %v366 = vmax.f32 %v313, 0.0
  %v367 = vmax.f32 %v332, 0.0
  %v368 = vmax.f32 %v351, 0.0
  %v369 = vmax.f32 %v205, %v353
  %v370 = vmax.f32 %v206, %v354
  %v371 = vmax.f32 %v207, %v355
  %v372 = vmax.f32 %v208, %v356
  %v373 = vmax.f32 %v209, %v357
  %v374 = vmax.f32 %v210, %v358
  %v375 = vmax.f32 %v211, %v359
  %v376 = vmax.f32 %v212, %v360
  %v377 = vmax.f32 %v213, %v361
  %v378 = vmax.f32 %v214, %v362
  %v379 = vmax.f32 %v215, %v363
  %v380 = vmax.f32 %v216, %v364
  %v381 = vmax.f32 %v217, %v365
  %v382 = vmax.f32 %v218, %v366
  %v383 = vmax.f32 %v219, %v367
  %v384 = vmax.f32 %v220, %v368
  %v385 = vld [vmem:[%s2] sm:$0xff]
  %v386 = vld [vmem:[%s2 + $0x8] sm:$0xff]
  %v387 = vld [vmem:[%s2 + $0x10] sm:$0xff]
  %v388 = vld [vmem:[%s2 + $0x18] sm:$0xff]
  %v389 = vld [vmem:[%s2 + $0x20] sm:$0xff]
  %v390 = vld [vmem:[%s2 + $0x28] sm:$0xff]
  %v391 = vld [vmem:[%s2 + $0x30] sm:$0x33]
  %v392 = vld [vmem:[%s2 + $0x38] sm:$0x33]
  %v401 = vunpack.c.l.b16 %v385
  %v402 = vunpack.c.h.b16 %v385
  %v403 = vunpack.c.l.b16 %v386
  %v404 = vunpack.c.h.b16 %v386
  %v405 = vunpack.c.l.b16 %v387
  %v406 = vunpack.c.h.b16 %v387
  %v407 = vunpack.c.l.b16 %v388
  %v408 = vunpack.c.h.b16 %v388
  %v409 = vunpack.c.l.b16 %v389
  %v410 = vunpack.c.h.b16 %v389
  %v411 = vunpack.c.l.b16 %v390
  %v412 = vunpack.c.h.b16 %v390
  %v413 = vunpack.c.l.b16 %v391
  %v414 = vunpack.c.h.b16 %v391
  %v415 = vunpack.c.l.b16 %v392
  %v416 = vunpack.c.h.b16 %v392
  %v417 = vpack.c.b16 %v405, %v401
  %v418 = vpack.c.b16 %v406, %v402
  %v419 = vpack.c.b16 %v407, %v403
  %v420 = vpack.c.b16 %v408, %v404
  %v421 = vpack.c.b16 %v413, %v409
  %v422 = vpack.c.b16 %v414, %v410
  %v423 = vpack.c.b16 %v415, %v411
  %v424 = vpack.c.b16 %v416, %v412
  %v430 = vand.u32 %v421, %v116
  %v433 = vand.u32 %v422, %v116
  %v436 = vand.u32 %v423, %v116
  %v439 = vand.u32 %v424, %v116
  %441 = vmatpush.bf16.msra.mxu0 0
  %442 = vmatpush.bf16.msra.mxu0 0
  %443 = vmatpush.bf16.msra.mxu0 0
  %444 = vmatpush.bf16.msra.mxu0 0
  %445 = vmatpush.bf16.msra.mxu0 0
  %446 = vmatpush.bf16.msra.mxu0 0
  %447 = vmatpush.bf16.msra.mxu0 %v430
  %448 = vmatpush.bf16.msra.mxu0 %v417
  %449 = vmatmul.bf16.gmra.mxu0 %v108
  %v450 = vpop.f32.mrf.mxu0
  %v451 = vadd.f32 %v43, %v450
  %v452 = vpop.f32.mrf.mxu0
  %v453 = vadd.f32 %v48, %v452
  %454 = vmatmul.bf16.gmra.mxu0 %v111
  %v455 = vpop.f32.mrf.mxu0
  %v456 = vadd.f32 %v53, %v455
  %v457 = vpop.f32.mrf.mxu0
  %v458 = vadd.f32 %v58, %v457
  %459 = vdwg.mxu0
  %460 = vmatpush.bf16.msra.mxu0 0
  %461 = vmatpush.bf16.msra.mxu0 0
  %462 = vmatpush.bf16.msra.mxu0 0
  %463 = vmatpush.bf16.msra.mxu0 0
  %464 = vmatpush.bf16.msra.mxu0 0
  %465 = vmatpush.bf16.msra.mxu0 0
  %466 = vmatpush.bf16.msra.mxu0 %v433
  %467 = vmatpush.bf16.msra.mxu0 %v418
  %468 = vmatmul.bf16.gmra.mxu0 %v108
  %v469 = vpop.f32.mrf.mxu0
  %v470 = vadd.f32 %v43, %v469
  %v471 = vpop.f32.mrf.mxu0
  %v472 = vadd.f32 %v48, %v471
  %473 = vmatmul.bf16.gmra.mxu0 %v111
  %v474 = vpop.f32.mrf.mxu0
  %v475 = vadd.f32 %v53, %v474
  %v476 = vpop.f32.mrf.mxu0
  %v477 = vadd.f32 %v58, %v476
  %478 = vdwg.mxu0
  %479 = vmatpush.bf16.msra.mxu0 0
  %480 = vmatpush.bf16.msra.mxu0 0
  %481 = vmatpush.bf16.msra.mxu0 0
  %482 = vmatpush.bf16.msra.mxu0 0
  %483 = vmatpush.bf16.msra.mxu0 0
  %484 = vmatpush.bf16.msra.mxu0 0
  %485 = vmatpush.bf16.msra.mxu0 %v436
  %486 = vmatpush.bf16.msra.mxu0 %v419
  %487 = vmatmul.bf16.gmra.mxu0 %v108
  %v488 = vpop.f32.mrf.mxu0
  %v489 = vadd.f32 %v43, %v488
  %v490 = vpop.f32.mrf.mxu0
  %v491 = vadd.f32 %v48, %v490
  %492 = vmatmul.bf16.gmra.mxu0 %v111
  %v493 = vpop.f32.mrf.mxu0
  %v494 = vadd.f32 %v53, %v493
  %v495 = vpop.f32.mrf.mxu0
  %v496 = vadd.f32 %v58, %v495
  %497 = vdwg.mxu0
  %498 = vmatpush.bf16.msra.mxu0 0
  %499 = vmatpush.bf16.msra.mxu0 0
  %500 = vmatpush.bf16.msra.mxu0 0
  %501 = vmatpush.bf16.msra.mxu0 0
  %502 = vmatpush.bf16.msra.mxu0 0
  %503 = vmatpush.bf16.msra.mxu0 0
  %504 = vmatpush.bf16.msra.mxu0 %v439
  %505 = vmatpush.bf16.msra.mxu0 %v420
  %506 = vmatmul.bf16.gmra.mxu0 %v108
  %v507 = vpop.f32.mrf.mxu0
  %v508 = vadd.f32 %v43, %v507
  %v509 = vpop.f32.mrf.mxu0
  %v510 = vadd.f32 %v48, %v509
  %511 = vmatmul.bf16.gmra.mxu0 %v111
  %v512 = vpop.f32.mrf.mxu0
  %v513 = vadd.f32 %v53, %v512
  %v514 = vpop.f32.mrf.mxu0
  %v515 = vadd.f32 %v58, %v514
  %516 = vdwg.mxu0
  %v517 = vmax.f32 %v451, 0.0
  %v518 = vmax.f32 %v470, 0.0
  %v519 = vmax.f32 %v489, 0.0
  %v520 = vmax.f32 %v508, 0.0
  %v521 = vmax.f32 %v453, 0.0
  %v522 = vmax.f32 %v472, 0.0
  %v523 = vmax.f32 %v491, 0.0
  %v524 = vmax.f32 %v510, 0.0
  %v525 = vmax.f32 %v456, 0.0
  %v526 = vmax.f32 %v475, 0.0
  %v527 = vmax.f32 %v494, 0.0
  %v528 = vmax.f32 %v513, 0.0
  %v529 = vmax.f32 %v458, 0.0
  %v530 = vmax.f32 %v477, 0.0
  %v531 = vmax.f32 %v496, 0.0
  %v532 = vmax.f32 %v515, 0.0
  %v533 = vld [vmem:[%s3] sm:$0xff]
  %v534 = vld [vmem:[%s3 + $0x8] sm:$0xff]
  %v535 = vld [vmem:[%s3 + $0x10] sm:$0xff]
  %v536 = vld [vmem:[%s3 + $0x18] sm:$0xff]
  %v537 = vld [vmem:[%s3 + $0x20] sm:$0xff]
  %v538 = vld [vmem:[%s3 + $0x28] sm:$0xff]
  %v539 = vld [vmem:[%s3 + $0x30] sm:$0x33]
  %v540 = vld [vmem:[%s3 + $0x38] sm:$0x33]
  %v549 = vunpack.c.l.b16 %v533
  %v550 = vunpack.c.h.b16 %v533
  %v551 = vunpack.c.l.b16 %v534
  %v552 = vunpack.c.h.b16 %v534
  %v553 = vunpack.c.l.b16 %v535
  %v554 = vunpack.c.h.b16 %v535
  %v555 = vunpack.c.l.b16 %v536
  %v556 = vunpack.c.h.b16 %v536
  %v557 = vunpack.c.l.b16 %v537
  %v558 = vunpack.c.h.b16 %v537
  %v559 = vunpack.c.l.b16 %v538
  %v560 = vunpack.c.h.b16 %v538
  %v561 = vunpack.c.l.b16 %v539
  %v562 = vunpack.c.h.b16 %v539
  %v563 = vunpack.c.l.b16 %v540
  %v564 = vunpack.c.h.b16 %v540
  %v565 = vpack.c.b16 %v553, %v549
  %v566 = vpack.c.b16 %v554, %v550
  %v567 = vpack.c.b16 %v555, %v551
  %v568 = vpack.c.b16 %v556, %v552
  %v569 = vpack.c.b16 %v561, %v557
  %v570 = vpack.c.b16 %v562, %v558
  %v571 = vpack.c.b16 %v563, %v559
  %v572 = vpack.c.b16 %v564, %v560
  %v578 = vand.u32 %v569, %v116
  %v581 = vand.u32 %v570, %v116
  %v584 = vand.u32 %v571, %v116
  %v587 = vand.u32 %v572, %v116
  %589 = vmatpush.bf16.msra.mxu0 0
  %590 = vmatpush.bf16.msra.mxu0 0
  %591 = vmatpush.bf16.msra.mxu0 0
  %592 = vmatpush.bf16.msra.mxu0 0
  %593 = vmatpush.bf16.msra.mxu0 0
  %594 = vmatpush.bf16.msra.mxu0 0
  %595 = vmatpush.bf16.msra.mxu0 %v578
  %596 = vmatpush.bf16.msra.mxu0 %v565
  %597 = vmatmul.bf16.gmra.mxu0 %v108
  %v598 = vpop.f32.mrf.mxu0
  %v599 = vadd.f32 %v43, %v598
  %v600 = vpop.f32.mrf.mxu0
  %v601 = vadd.f32 %v48, %v600
  %602 = vmatmul.bf16.gmra.mxu0 %v111
  %v603 = vpop.f32.mrf.mxu0
  %v604 = vadd.f32 %v53, %v603
  %v605 = vpop.f32.mrf.mxu0
  %v606 = vadd.f32 %v58, %v605
  %607 = vdwg.mxu0
  %608 = vmatpush.bf16.msra.mxu0 0
  %609 = vmatpush.bf16.msra.mxu0 0
  %610 = vmatpush.bf16.msra.mxu0 0
  %611 = vmatpush.bf16.msra.mxu0 0
  %612 = vmatpush.bf16.msra.mxu0 0
  %613 = vmatpush.bf16.msra.mxu0 0
  %614 = vmatpush.bf16.msra.mxu0 %v581
  %615 = vmatpush.bf16.msra.mxu0 %v566
  %616 = vmatmul.bf16.gmra.mxu0 %v108
  %v617 = vpop.f32.mrf.mxu0
  %v618 = vadd.f32 %v43, %v617
  %v619 = vpop.f32.mrf.mxu0
  %v620 = vadd.f32 %v48, %v619
  %621 = vmatmul.bf16.gmra.mxu0 %v111
  %v622 = vpop.f32.mrf.mxu0
  %v623 = vadd.f32 %v53, %v622
  %v624 = vpop.f32.mrf.mxu0
  %v625 = vadd.f32 %v58, %v624
  %626 = vdwg.mxu0
  %627 = vmatpush.bf16.msra.mxu0 0
  %628 = vmatpush.bf16.msra.mxu0 0
  %629 = vmatpush.bf16.msra.mxu0 0
  %630 = vmatpush.bf16.msra.mxu0 0
  %631 = vmatpush.bf16.msra.mxu0 0
  %632 = vmatpush.bf16.msra.mxu0 0
  %633 = vmatpush.bf16.msra.mxu0 %v584
  %634 = vmatpush.bf16.msra.mxu0 %v567
  %635 = vmatmul.bf16.gmra.mxu0 %v108
  %v636 = vpop.f32.mrf.mxu0
  %v637 = vadd.f32 %v43, %v636
  %v638 = vpop.f32.mrf.mxu0
  %v639 = vadd.f32 %v48, %v638
  %640 = vmatmul.bf16.gmra.mxu0 %v111
  %v641 = vpop.f32.mrf.mxu0
  %v642 = vadd.f32 %v53, %v641
  %v643 = vpop.f32.mrf.mxu0
  %v644 = vadd.f32 %v58, %v643
  %645 = vdwg.mxu0
  %646 = vmatpush.bf16.msra.mxu0 0
  %647 = vmatpush.bf16.msra.mxu0 0
  %648 = vmatpush.bf16.msra.mxu0 0
  %649 = vmatpush.bf16.msra.mxu0 0
  %650 = vmatpush.bf16.msra.mxu0 0
  %651 = vmatpush.bf16.msra.mxu0 0
  %652 = vmatpush.bf16.msra.mxu0 %v587
  %653 = vmatpush.bf16.msra.mxu0 %v568
  %654 = vmatmul.bf16.gmra.mxu0 %v108
  %v655 = vpop.f32.mrf.mxu0
  %v656 = vadd.f32 %v43, %v655
  %v657 = vpop.f32.mrf.mxu0
  %v658 = vadd.f32 %v48, %v657
  %659 = vmatmul.bf16.gmra.mxu0 %v111
  %v660 = vpop.f32.mrf.mxu0
  %v661 = vadd.f32 %v53, %v660
  %v662 = vpop.f32.mrf.mxu0
  %v663 = vadd.f32 %v58, %v662
  %664 = vdwg.mxu0
  %v665 = vmax.f32 %v599, 0.0
  %v666 = vmax.f32 %v618, 0.0
  %v667 = vmax.f32 %v637, 0.0
  %v668 = vmax.f32 %v656, 0.0
  %v669 = vmax.f32 %v601, 0.0
  %v670 = vmax.f32 %v620, 0.0
  %v671 = vmax.f32 %v639, 0.0
  %v672 = vmax.f32 %v658, 0.0
  %v673 = vmax.f32 %v604, 0.0
  %v674 = vmax.f32 %v623, 0.0
  %v675 = vmax.f32 %v642, 0.0
  %v676 = vmax.f32 %v661, 0.0
  %v677 = vmax.f32 %v606, 0.0
  %v678 = vmax.f32 %v625, 0.0
  %v679 = vmax.f32 %v644, 0.0
  %v680 = vmax.f32 %v663, 0.0
  %v681 = vmax.f32 %v517, %v665
  %v682 = vmax.f32 %v518, %v666
  %v683 = vmax.f32 %v519, %v667
  %v684 = vmax.f32 %v520, %v668
  %v685 = vmax.f32 %v521, %v669
  %v686 = vmax.f32 %v522, %v670
  %v687 = vmax.f32 %v523, %v671
  %v688 = vmax.f32 %v524, %v672
  %v689 = vmax.f32 %v525, %v673
  %v690 = vmax.f32 %v526, %v674
  %v691 = vmax.f32 %v527, %v675
  %v692 = vmax.f32 %v528, %v676
  %v693 = vmax.f32 %v529, %v677
  %v694 = vmax.f32 %v530, %v678
  %v695 = vmax.f32 %v531, %v679
  %v696 = vmax.f32 %v532, %v680
  %v697 = vmax.f32 %v369, %v681
  %v698 = vmax.f32 %v370, %v682
  %v699 = vmax.f32 %v371, %v683
  %v700 = vmax.f32 %v372, %v684
  %v701 = vmax.f32 %v373, %v685
  %v702 = vmax.f32 %v374, %v686
  %v703 = vmax.f32 %v375, %v687
  %v704 = vmax.f32 %v376, %v688
  %v705 = vmax.f32 %v377, %v689
  %v706 = vmax.f32 %v378, %v690
  %v707 = vmax.f32 %v379, %v691
  %v708 = vmax.f32 %v380, %v692
  %v709 = vmax.f32 %v381, %v693
  %v710 = vmax.f32 %v382, %v694
  %v711 = vmax.f32 %v383, %v695
  %v712 = vmax.f32 %v384, %v696
  %713 = vst [vmem:[%s6] sm:$0xff] %v697
  %714 = vst [vmem:[%s6 + $0x8] sm:$0xff] %v698
  %715 = vst [vmem:[%s6 + $0x10] sm:$0xff] %v699
  %716 = vst [vmem:[%s6 + $0x18] sm:$0xff] %v700
  %717 = vst [vmem:[%s6 + $0x20] sm:$0xff] %v701
  %718 = vst [vmem:[%s6 + $0x28] sm:$0xff] %v702
  %719 = vst [vmem:[%s6 + $0x30] sm:$0xff] %v703
  %720 = vst [vmem:[%s6 + $0x38] sm:$0xff] %v704
  %721 = vst [vmem:[%s6 + $0x40] sm:$0xff] %v705
  %722 = vst [vmem:[%s6 + $0x48] sm:$0xff] %v706
  %723 = vst [vmem:[%s6 + $0x50] sm:$0xff] %v707
  %724 = vst [vmem:[%s6 + $0x58] sm:$0xff] %v708
  %725 = vst [vmem:[%s6 + $0x60] sm:$0xff] %v709
  %726 = vst [vmem:[%s6 + $0x68] sm:$0xff] %v710
  %727 = vst [vmem:[%s6 + $0x70] sm:$0xff] %v711
  %728 = vst [vmem:[%s6 + $0x78] sm:$0xff] %v712
  // Predicated region
  $region26: #{cnn_mnist_forward.4} parent=0 // pred_check
    _
  $region27: #{cnn_mnist_forward.4} parent=0 // pred_check_branch
    %730 = sbr.rel (0) target = $region29
  $region28: #{cnn_mnist_forward.4} parent=0 // pred_region
    _
  $region29: #{cnn_mnist_forward.4} parent=0 // pred_fallthru
    _
  // Predicated region
  $region30: #{cnn_mnist_forward.4} parent=0 // pred_check
    _
  $region31: #{cnn_mnist_forward.4} parent=0 // pred_check_branch
    %732 = sbr.rel (0) target = $region33
  $region32: #{cnn_mnist_forward.4} parent=0 // pred_region
    _
  $region33: #{cnn_mnist_forward.4} parent=0 // pred_fallthru
    _

// kernel: cnn_mnist_forward.5
$region0: #{cnn_mnist_forward.5}
  #allocation0 [shape = 'u32[]', space=smem, size = 0x4, offset = 0x4, fixed_abs, tag = 'smem constant byte address 0x4 - core index']
  #allocation1 [shape = 'u32[72,128]{1,0:T(1,128)}', space=vmem, size = 0x9000, scoped, tag = 'internal scratch']
  %s0 = inlined_call_operand.vmem [shape: bf16[288,128], index: 0, kind: input, shape index: {}]
  %s1 = inlined_call_operand.vmem [shape: bf16[288,128], index: 1, kind: input, shape index: {}]
  %s2 = inlined_call_operand.vmem [shape: bf16[288,128], index: 2, kind: input, shape index: {}]
  %s3 = inlined_call_operand.vmem [shape: bf16[288,128], index: 3, kind: input, shape index: {}]
  %s4 = inlined_call_operand.vmem [shape: bf16[64,288], index: 4, kind: input, shape index: {}]
  %s5 = inlined_call_operand.vmem [shape: f32[64,1], index: 5, kind: input, shape index: {}]
  %s6 = inlined_call_operand.vmem [shape: f32[64,128], index: 6, kind: output, shape index: {}]
  %s7 = sld [smem:[#allocation0]]
  $region34: #{cnn_mnist_forward.5} parent=0
    _
  %s9 = ssub.s32 1, %s7
  %s10 = scalar_select 0, %s9, %s7
  // Predicated region
  $region2: #{cnn_mnist_forward.5} parent=0 // pred_check
    _
  $region3: #{cnn_mnist_forward.5} parent=0 // pred_check_branch
    %12 = sbr.rel (0) target = $region5
  $region4: #{cnn_mnist_forward.5} parent=0 // pred_region
    _
  $region5: #{cnn_mnist_forward.5} parent=0 // pred_fallthru
    _
  // Predicated region
  $region6: #{cnn_mnist_forward.5} parent=0 // pred_check
    _
  $region7: #{cnn_mnist_forward.5} parent=0 // pred_check_branch
    %14 = sbr.rel (0) target = $region9
  $region8: #{cnn_mnist_forward.5} parent=0 // pred_region
    _
  $region9: #{cnn_mnist_forward.5} parent=0 // pred_fallthru
    _
  // Predicated region
  $region10: #{cnn_mnist_forward.5} parent=0 // pred_check
    _
  $region11: #{cnn_mnist_forward.5} parent=0 // pred_check_branch
    %16 = sbr.rel (0) target = $region13
  $region12: #{cnn_mnist_forward.5} parent=0 // pred_region
    _
  $region13: #{cnn_mnist_forward.5} parent=0 // pred_fallthru
    _
  // Predicated region
  $region14: #{cnn_mnist_forward.5} parent=0 // pred_check
    _
  $region15: #{cnn_mnist_forward.5} parent=0 // pred_check_branch
    %18 = sbr.rel (0) target = $region17
  $region16: #{cnn_mnist_forward.5} parent=0 // pred_region
    _
  $region17: #{cnn_mnist_forward.5} parent=0 // pred_fallthru
    _
  // Predicated region
  $region18: #{cnn_mnist_forward.5} parent=0 // pred_check
    _
  $region19: #{cnn_mnist_forward.5} parent=0 // pred_check_branch
    %20 = sbr.rel (0) target = $region21
  $region20: #{cnn_mnist_forward.5} parent=0 // pred_region
    _
  $region21: #{cnn_mnist_forward.5} parent=0 // pred_fallthru
    _
  // Predicated region
  $region22: #{cnn_mnist_forward.5} parent=0 // pred_check
    _
  $region23: #{cnn_mnist_forward.5} parent=0 // pred_check_branch
    %22 = sbr.rel (0) target = $region25
  $region24: #{cnn_mnist_forward.5} parent=0 // pred_region
    _
  $region25: #{cnn_mnist_forward.5} parent=0 // pred_fallthru
    _
  %v24 = vld [vmem:[%s4] sm:$0xff]
  %v25 = vld [vmem:[%s4 + $0x8] sm:$0xf]
  %v26 = vld [vmem:[%s4 + $0xc] sm:$0xff]
  %v27 = vld [vmem:[%s4 + $0x14] sm:$0xf]
  %v28 = vld [vmem:[%s4 + $0x18] sm:$0xff]
  %v29 = vld [vmem:[%s4 + $0x20] sm:$0xf]
  %v30 = vld [vmem:[%s4 + $0x24] sm:$0xff]
  %v31 = vld [vmem:[%s4 + $0x2c] sm:$0xf]
  %v32 = vld [vmem:[%s4 + $0x30] sm:$0xff]
  %v33 = vld [vmem:[%s4 + $0x38] sm:$0xf]
  %v34 = vld [vmem:[%s4 + $0x3c] sm:$0xff]
  %v35 = vld [vmem:[%s4 + $0x44] sm:$0xf]
  %v36 = vld [vmem:[%s4 + $0x48] sm:$0xff]
  %v37 = vld [vmem:[%s4 + $0x50] sm:$0xf]
  %v38 = vld [vmem:[%s4 + $0x54] sm:$0xff]
  %v39 = vld [vmem:[%s4 + $0x5c] sm:$0xf]
  %v40 = vld [vmem:[%s5] sm:$0xff]
  %v41 = vld [vmem:[%s5 + $0x8] sm:$0xff]
  %v42 = vld [vmem:[%s5 + $0x10] sm:$0xff]
  %v43 = vld [vmem:[%s5 + $0x18] sm:$0xff]
  %v44 = vld [vmem:[%s5 + $0x20] sm:$0xff]
  %v45 = vld [vmem:[%s5 + $0x28] sm:$0xff]
  %v46 = vld [vmem:[%s5 + $0x30] sm:$0xff]
  %v47 = vld [vmem:[%s5 + $0x38] sm:$0xff]
  %v48 = vld [vmem:[%s0] sm:$0xf]
  %v49 = vld [vmem:[%s0 + $0x4] sm:$0xf]
  %v50 = vld [vmem:[%s0 + $0x8] sm:$0xf]
  %v51 = vld [vmem:[%s0 + $0xc] sm:$0xf]
  %v52 = vld [vmem:[%s0 + $0x10] sm:$0xf]
  %v53 = vld [vmem:[%s0 + $0x14] sm:$0xf]
  %v54 = vld [vmem:[%s0 + $0x18] sm:$0xf]
  %v55 = vld [vmem:[%s0 + $0x1c] sm:$0xf]
  %v56 = vld [vmem:[%s0 + $0x20] sm:$0xf]
  %v57 = vld [vmem:[%s0 + $0x24] sm:$0xf]
  %v58 = vld [vmem:[%s0 + $0x28] sm:$0xf]
  %v59 = vld [vmem:[%s0 + $0x2c] sm:$0xf]
  %v60 = vld [vmem:[%s0 + $0x30] sm:$0xf]
  %v61 = vld [vmem:[%s0 + $0x34] sm:$0xf]
  %v62 = vld [vmem:[%s0 + $0x38] sm:$0xf]
  %v63 = vld [vmem:[%s0 + $0x3c] sm:$0xf]
  %v64 = vld [vmem:[%s0 + $0x40] sm:$0xf]
  %v65 = vld [vmem:[%s0 + $0x44] sm:$0xf]
  %v66 = vld [vmem:[%s0 + $0x48] sm:$0xf]
  %v67 = vld [vmem:[%s0 + $0x4c] sm:$0xf]
  %v68 = vld [vmem:[%s0 + $0x50] sm:$0xf]
  %v69 = vld [vmem:[%s0 + $0x54] sm:$0xf]
  %v70 = vld [vmem:[%s0 + $0x58] sm:$0xf]
  %v71 = vld [vmem:[%s0 + $0x5c] sm:$0xf]
  %v72 = vld [vmem:[%s0 + $0x60] sm:$0xf]
  %v73 = vld [vmem:[%s0 + $0x64] sm:$0xf]
  %v74 = vld [vmem:[%s0 + $0x68] sm:$0xf]
  %v75 = vld [vmem:[%s0 + $0x6c] sm:$0xf]
  %v76 = vld [vmem:[%s0 + $0x70] sm:$0xf]
  %v77 = vld [vmem:[%s0 + $0x74] sm:$0xf]
  %v78 = vld [vmem:[%s0 + $0x78] sm:$0xf]
  %v79 = vld [vmem:[%s0 + $0x7c] sm:$0xf]
  %v80 = vld [vmem:[%s0 + $0x80] sm:$0xf]
  %v81 = vld [vmem:[%s0 + $0x84] sm:$0xf]
  %v82 = vld [vmem:[%s0 + $0x88] sm:$0xf]
  %v83 = vld [vmem:[%s0 + $0x8c] sm:$0xf]
  %85 = vset.pattern.permute.xlu0 0
  %86 = vperm.xlu0 %85, %v40
  %v87 = vpop.permute.xlu0 %86
  %90 = vset.pattern.permute.xlu0 0
  %91 = vperm.xlu0 %90, %v41
  %v92 = vpop.permute.xlu0 %91
  %95 = vset.pattern.permute.xlu0 0
  %96 = vperm.xlu0 %95, %v42
  %v97 = vpop.permute.xlu0 %96
  %100 = vset.pattern.permute.xlu0 0
  %101 = vperm.xlu0 %100, %v43
  %v102 = vpop.permute.xlu0 %101
  %105 = vset.pattern.permute.xlu0 0
  %106 = vperm.xlu0 %105, %v44
  %v107 = vpop.permute.xlu0 %106
  %110 = vset.pattern.permute.xlu0 0
  %111 = vperm.xlu0 %110, %v45
  %v112 = vpop.permute.xlu0 %111
  %115 = vset.pattern.permute.xlu0 0
  %116 = vperm.xlu0 %115, %v46
  %v117 = vpop.permute.xlu0 %116
  %120 = vset.pattern.permute.xlu0 0
  %121 = vperm.xlu0 %120, %v47
  %v122 = vpop.permute.xlu0 %121
  %v140 = vunpack.c.l.b16 %v24
  %v141 = vunpack.c.h.b16 %v24
  %v142 = vunpack.c.l.b16 %v25
  %v143 = vunpack.c.l.b16 %v26
  %v144 = vunpack.c.h.b16 %v26
  %v145 = vunpack.c.l.b16 %v27
  %v146 = vunpack.c.l.b16 %v28
  %v147 = vunpack.c.h.b16 %v28
  %v148 = vunpack.c.l.b16 %v29
  %v149 = vunpack.c.l.b16 %v30
  %v150 = vunpack.c.h.b16 %v30
  %v151 = vunpack.c.l.b16 %v31
  %v152 = vunpack.c.l.b16 %v32
  %v153 = vunpack.c.h.b16 %v32
  %v154 = vunpack.c.l.b16 %v33
  %v155 = vunpack.c.l.b16 %v34
  %v156 = vunpack.c.h.b16 %v34
  %v157 = vunpack.c.l.b16 %v35
  %v158 = vunpack.c.l.b16 %v36
  %v159 = vunpack.c.h.b16 %v36
  %v160 = vunpack.c.l.b16 %v37
  %v161 = vunpack.c.l.b16 %v38
  %v162 = vunpack.c.h.b16 %v38
  %v163 = vunpack.c.l.b16 %v39
  %v164 = vpack.c.b16 %v143, %v140
  %v165 = vpack.c.b16 %v144, %v141
  %v166 = vpack.c.b16 %v145, %v142
  %v167 = vpack.c.b16 %v149, %v146
  %v168 = vpack.c.b16 %v150, %v147
  %v169 = vpack.c.b16 %v151, %v148
  %v170 = vpack.c.b16 %v155, %v152
  %v171 = vpack.c.b16 %v156, %v153
  %v172 = vpack.c.b16 %v157, %v154
  %v173 = vpack.c.b16 %v161, %v158
  %v174 = vpack.c.b16 %v162, %v159
  %v175 = vpack.c.b16 %v163, %v160
  %v220 = vunpack.c.l.b16 %v48
  %v221 = vunpack.c.l.b16 %v49
  %v222 = vunpack.c.l.b16 %v50
  %v223 = vunpack.c.l.b16 %v51
  %v224 = vunpack.c.l.b16 %v52
  %v225 = vunpack.c.l.b16 %v53
  %v226 = vunpack.c.l.b16 %v54
  %v227 = vunpack.c.l.b16 %v55
  %v228 = vunpack.c.l.b16 %v56
  %v229 = vunpack.c.l.b16 %v57
  %v230 = vunpack.c.l.b16 %v58
  %v231 = vunpack.c.l.b16 %v59
  %v232 = vunpack.c.l.b16 %v60
  %v233 = vunpack.c.l.b16 %v61
  %v234 = vunpack.c.l.b16 %v62
  %v235 = vunpack.c.l.b16 %v63
  %v236 = vunpack.c.l.b16 %v64
  %v237 = vunpack.c.l.b16 %v65
  %v238 = vunpack.c.l.b16 %v66
  %v239 = vunpack.c.l.b16 %v67
  %v240 = vunpack.c.l.b16 %v68
  %v241 = vunpack.c.l.b16 %v69
  %v242 = vunpack.c.l.b16 %v70
  %v243 = vunpack.c.l.b16 %v71
  %v244 = vunpack.c.l.b16 %v72
  %v245 = vunpack.c.l.b16 %v73
  %v246 = vunpack.c.l.b16 %v74
  %v247 = vunpack.c.l.b16 %v75
  %v248 = vunpack.c.l.b16 %v76
  %v249 = vunpack.c.l.b16 %v77
  %v250 = vunpack.c.l.b16 %v78
  %v251 = vunpack.c.l.b16 %v79
  %v252 = vunpack.c.l.b16 %v80
  %v253 = vunpack.c.l.b16 %v81
  %v254 = vunpack.c.l.b16 %v82
  %v255 = vunpack.c.l.b16 %v83
  %v256 = vpack.c.b16 %v221, %v220
  %v257 = vpack.c.b16 %v223, %v222
  %v258 = vpack.c.b16 %v225, %v224
  %v259 = vpack.c.b16 %v227, %v226
  %v260 = vpack.c.b16 %v229, %v228
  %v261 = vpack.c.b16 %v231, %v230
  %v262 = vpack.c.b16 %v233, %v232
  %v263 = vpack.c.b16 %v235, %v234
  %v264 = vpack.c.b16 %v237, %v236
  %v265 = vpack.c.b16 %v239, %v238
  %v266 = vpack.c.b16 %v241, %v240
  %v267 = vpack.c.b16 %v243, %v242
  %v268 = vpack.c.b16 %v245, %v244
  %v269 = vpack.c.b16 %v247, %v246
  %v270 = vpack.c.b16 %v249, %v248
  %v271 = vpack.c.b16 %v251, %v250
  %v272 = vpack.c.b16 %v253, %v252
  %v273 = vpack.c.b16 %v255, %v254
  %vm292 = vcmask 261120
  %v294 = vsel %vm292, %v166, 0
  %v297 = vsel %vm292, %v169, 0
  %v300 = vsel %vm292, %v172, 0
  %v303 = vsel %vm292, %v175, 0
  %305 = vmatpush.bf16.msra.mxu0 %v263
  %306 = vmatpush.bf16.msra.mxu0 %v262
  %307 = vmatpush.bf16.msra.mxu0 %v261
  %308 = vmatpush.bf16.msra.mxu0 %v260
  %309 = vmatpush.bf16.msra.mxu0 %v259
  %310 = vmatpush.bf16.msra.mxu0 %v258
  %311 = vmatpush.bf16.msra.mxu0 %v257
  %312 = vmatpush.bf16.msra.mxu0 %v256
  %313 = vmatmul.bf16.gmra.mxu0 %v164
  %v314 = vpop.f32.mrf.mxu0
  %v315 = vadd.f32 %v87, %v314
  %v316 = vpop.f32.mrf.mxu0
  %v317 = vadd.f32 %v92, %v316
  %318 = vmatmul.bf16.gmra.mxu0 %v167
  %v319 = vpop.f32.mrf.mxu0
  %v320 = vadd.f32 %v97, %v319
  %v321 = vpop.f32.mrf.mxu0
  %v322 = vadd.f32 %v102, %v321
  %323 = vmatmul.bf16.gmra.mxu0 %v170
  %v324 = vpop.f32.mrf.mxu0
  %v325 = vadd.f32 %v107, %v324
  %v326 = vpop.f32.mrf.mxu0
  %v327 = vadd.f32 %v112, %v326
  %328 = vmatmul.bf16.gmra.mxu0 %v173
  %v329 = vpop.f32.mrf.mxu0
  %v330 = vadd.f32 %v117, %v329
  %v331 = vpop.f32.mrf.mxu0
  %v332 = vadd.f32 %v122, %v331
  %333 = vdwg.mxu0
  %334 = vmatpush.bf16.msra.mxu0 %v271
  %335 = vmatpush.bf16.msra.mxu0 %v270
  %336 = vmatpush.bf16.msra.mxu0 %v269
  %337 = vmatpush.bf16.msra.mxu0 %v268
  %338 = vmatpush.bf16.msra.mxu0 %v267
  %339 = vmatpush.bf16.msra.mxu0 %v266
  %340 = vmatpush.bf16.msra.mxu0 %v265
  %341 = vmatpush.bf16.msra.mxu0 %v264
  %342 = vmatmul.bf16.gmra.mxu0 %v165
  %v343 = vpop.f32.mrf.mxu0
  %v344 = vadd.f32 %v315, %v343
  %v345 = vpop.f32.mrf.mxu0
  %v346 = vadd.f32 %v317, %v345
  %347 = vmatmul.bf16.gmra.mxu0 %v168
  %v348 = vpop.f32.mrf.mxu0
  %v349 = vadd.f32 %v320, %v348
  %v350 = vpop.f32.mrf.mxu0
  %v351 = vadd.f32 %v322, %v350
  %352 = vmatmul.bf16.gmra.mxu0 %v171
  %v353 = vpop.f32.mrf.mxu0
  %v354 = vadd.f32 %v325, %v353
  %v355 = vpop.f32.mrf.mxu0
  %v356 = vadd.f32 %v327, %v355
  %357 = vmatmul.bf16.gmra.mxu0 %v174
  %v358 = vpop.f32.mrf.mxu0
  %v359 = vadd.f32 %v330, %v358
  %v360 = vpop.f32.mrf.mxu0
  %v361 = vadd.f32 %v332, %v360
  %362 = vdwg.mxu0
  %363 = vmatpush.bf16.msra.mxu0 0
  %364 = vmatpush.bf16.msra.mxu0 0
  %365 = vmatpush.bf16.msra.mxu0 0
  %366 = vmatpush.bf16.msra.mxu0 0
  %367 = vmatpush.bf16.msra.mxu0 0
  %368 = vmatpush.bf16.msra.mxu0 0
  %369 = vmatpush.bf16.msra.mxu0 %v273
  %370 = vmatpush.bf16.msra.mxu0 %v272
  %371 = vmatmul.bf16.gmra.mxu0 %v294
  %v372 = vpop.f32.mrf.mxu0
  %v373 = vadd.f32 %v344, %v372
  %v374 = vpop.f32.mrf.mxu0
  %v375 = vadd.f32 %v346, %v374
  %376 = vmatmul.bf16.gmra.mxu0 %v297
  %v377 = vpop.f32.mrf.mxu0
  %v378 = vadd.f32 %v349, %v377
  %v379 = vpop.f32.mrf.mxu0
  %v380 = vadd.f32 %v351, %v379
  %381 = vmatmul.bf16.gmra.mxu0 %v300
  %v382 = vpop.f32.mrf.mxu0
  %v383 = vadd.f32 %v354, %v382
  %v384 = vpop.f32.mrf.mxu0
  %v385 = vadd.f32 %v356, %v384
  %386 = vmatmul.bf16.gmra.mxu0 %v303
  %v387 = vpop.f32.mrf.mxu0
  %v388 = vadd.f32 %v359, %v387
  %v389 = vpop.f32.mrf.mxu0
  %v390 = vadd.f32 %v361, %v389
  %391 = vdwg.mxu0
  %v392 = vmax.f32 %v373, 0.0
  %v393 = vmax.f32 %v375, 0.0
  %v394 = vmax.f32 %v378, 0.0
  %v395 = vmax.f32 %v380, 0.0
  %v396 = vmax.f32 %v383, 0.0
  %v397 = vmax.f32 %v385, 0.0
  %v398 = vmax.f32 %v388, 0.0
  %v399 = vmax.f32 %v390, 0.0
  %v400 = vld [vmem:[%s1] sm:$0xf]
  %v401 = vld [vmem:[%s1 + $0x4] sm:$0xf]
  %v402 = vld [vmem:[%s1 + $0x8] sm:$0xf]
  %v403 = vld [vmem:[%s1 + $0xc] sm:$0xf]
  %v404 = vld [vmem:[%s1 + $0x10] sm:$0xf]
  %v405 = vld [vmem:[%s1 + $0x14] sm:$0xf]
  %v406 = vld [vmem:[%s1 + $0x18] sm:$0xf]
  %v407 = vld [vmem:[%s1 + $0x1c] sm:$0xf]
  %v408 = vld [vmem:[%s1 + $0x20] sm:$0xf]
  %v409 = vld [vmem:[%s1 + $0x24] sm:$0xf]
  %v410 = vld [vmem:[%s1 + $0x28] sm:$0xf]
  %v411 = vld [vmem:[%s1 + $0x2c] sm:$0xf]
  %v412 = vld [vmem:[%s1 + $0x30] sm:$0xf]
  %v413 = vld [vmem:[%s1 + $0x34] sm:$0xf]
  %v414 = vld [vmem:[%s1 + $0x38] sm:$0xf]
  %v415 = vld [vmem:[%s1 + $0x3c] sm:$0xf]
  %v416 = vld [vmem:[%s1 + $0x40] sm:$0xf]
  %v417 = vld [vmem:[%s1 + $0x44] sm:$0xf]
  %v418 = vld [vmem:[%s1 + $0x48] sm:$0xf]
  %v419 = vld [vmem:[%s1 + $0x4c] sm:$0xf]
  %v420 = vld [vmem:[%s1 + $0x50] sm:$0xf]
  %v421 = vld [vmem:[%s1 + $0x54] sm:$0xf]
  %v422 = vld [vmem:[%s1 + $0x58] sm:$0xf]
  %v423 = vld [vmem:[%s1 + $0x5c] sm:$0xf]
  %v424 = vld [vmem:[%s1 + $0x60] sm:$0xf]
  %v425 = vld [vmem:[%s1 + $0x64] sm:$0xf]
  %v426 = vld [vmem:[%s1 + $0x68] sm:$0xf]
  %v427 = vld [vmem:[%s1 + $0x6c] sm:$0xf]
  %v428 = vld [vmem:[%s1 + $0x70] sm:$0xf]
  %v429 = vld [vmem:[%s1 + $0x74] sm:$0xf]
  %v430 = vld [vmem:[%s1 + $0x78] sm:$0xf]
  %v431 = vld [vmem:[%s1 + $0x7c] sm:$0xf]
  %v432 = vld [vmem:[%s1 + $0x80] sm:$0xf]
  %v433 = vld [vmem:[%s1 + $0x84] sm:$0xf]
  %v434 = vld [vmem:[%s1 + $0x88] sm:$0xf]
  %v435 = vld [vmem:[%s1 + $0x8c] sm:$0xf]
  %v472 = vunpack.c.l.b16 %v400
  %v473 = vunpack.c.l.b16 %v401
  %v474 = vunpack.c.l.b16 %v402
  %v475 = vunpack.c.l.b16 %v403
  %v476 = vunpack.c.l.b16 %v404
  %v477 = vunpack.c.l.b16 %v405
  %v478 = vunpack.c.l.b16 %v406
  %v479 = vunpack.c.l.b16 %v407
  %v480 = vunpack.c.l.b16 %v408
  %v481 = vunpack.c.l.b16 %v409
  %v482 = vunpack.c.l.b16 %v410
  %v483 = vunpack.c.l.b16 %v411
  %v484 = vunpack.c.l.b16 %v412
  %v485 = vunpack.c.l.b16 %v413
  %v486 = vunpack.c.l.b16 %v414
  %v487 = vunpack.c.l.b16 %v415
  %v488 = vunpack.c.l.b16 %v416
  %v489 = vunpack.c.l.b16 %v417
  %v490 = vunpack.c.l.b16 %v418
  %v491 = vunpack.c.l.b16 %v419
  %v492 = vunpack.c.l.b16 %v420
  %v493 = vunpack.c.l.b16 %v421
  %v494 = vunpack.c.l.b16 %v422
  %v495 = vunpack.c.l.b16 %v423
  %v496 = vunpack.c.l.b16 %v424
  %v497 = vunpack.c.l.b16 %v425
  %v498 = vunpack.c.l.b16 %v426
  %v499 = vunpack.c.l.b16 %v427
  %v500 = vunpack.c.l.b16 %v428
  %v501 = vunpack.c.l.b16 %v429
  %v502 = vunpack.c.l.b16 %v430
  %v503 = vunpack.c.l.b16 %v431
  %v504 = vunpack.c.l.b16 %v432
  %v505 = vunpack.c.l.b16 %v433
  %v506 = vunpack.c.l.b16 %v434
  %v507 = vunpack.c.l.b16 %v435
  %v508 = vpack.c.b16 %v473, %v472
  %v509 = vpack.c.b16 %v475, %v474
  %v510 = vpack.c.b16 %v477, %v476
  %v511 = vpack.c.b16 %v479, %v478
  %v512 = vpack.c.b16 %v481, %v480
  %v513 = vpack.c.b16 %v483, %v482
  %v514 = vpack.c.b16 %v485, %v484
  %v515 = vpack.c.b16 %v487, %v486
  %v516 = vpack.c.b16 %v489, %v488
  %v517 = vpack.c.b16 %v491, %v490
  %v518 = vpack.c.b16 %v493, %v492
  %v519 = vpack.c.b16 %v495, %v494
  %v520 = vpack.c.b16 %v497, %v496
  %v521 = vpack.c.b16 %v499, %v498
  %v522 = vpack.c.b16 %v501, %v500
  %v523 = vpack.c.b16 %v503, %v502
  %v524 = vpack.c.b16 %v505, %v504
  %v525 = vpack.c.b16 %v507, %v506
  %544 = vmatpush.bf16.msra.mxu0 %v515
  %545 = vmatpush.bf16.msra.mxu0 %v514
  %546 = vmatpush.bf16.msra.mxu0 %v513
  %547 = vmatpush.bf16.msra.mxu0 %v512
  %548 = vmatpush.bf16.msra.mxu0 %v511
  %549 = vmatpush.bf16.msra.mxu0 %v510
  %550 = vmatpush.bf16.msra.mxu0 %v509
  %551 = vmatpush.bf16.msra.mxu0 %v508
  %552 = vmatmul.bf16.gmra.mxu0 %v164
  %v553 = vpop.f32.mrf.mxu0
  %v554 = vadd.f32 %v87, %v553
  %v555 = vpop.f32.mrf.mxu0
  %v556 = vadd.f32 %v92, %v555
  %557 = vmatmul.bf16.gmra.mxu0 %v167
  %v558 = vpop.f32.mrf.mxu0
  %v559 = vadd.f32 %v97, %v558
  %v560 = vpop.f32.mrf.mxu0
  %v561 = vadd.f32 %v102, %v560
  %562 = vmatmul.bf16.gmra.mxu0 %v170
  %v563 = vpop.f32.mrf.mxu0
  %v564 = vadd.f32 %v107, %v563
  %v565 = vpop.f32.mrf.mxu0
  %v566 = vadd.f32 %v112, %v565
  %567 = vmatmul.bf16.gmra.mxu0 %v173
  %v568 = vpop.f32.mrf.mxu0
  %v569 = vadd.f32 %v117, %v568
  %v570 = vpop.f32.mrf.mxu0
  %v571 = vadd.f32 %v122, %v570
  %572 = vdwg.mxu0
  %573 = vmatpush.bf16.msra.mxu0 %v523
  %574 = vmatpush.bf16.msra.mxu0 %v522
  %575 = vmatpush.bf16.msra.mxu0 %v521
  %576 = vmatpush.bf16.msra.mxu0 %v520
  %577 = vmatpush.bf16.msra.mxu0 %v519
  %578 = vmatpush.bf16.msra.mxu0 %v518
  %579 = vmatpush.bf16.msra.mxu0 %v517
  %580 = vmatpush.bf16.msra.mxu0 %v516
  %581 = vmatmul.bf16.gmra.mxu0 %v165
  %v582 = vpop.f32.mrf.mxu0
  %v583 = vadd.f32 %v554, %v582
  %v584 = vpop.f32.mrf.mxu0
  %v585 = vadd.f32 %v556, %v584
  %586 = vmatmul.bf16.gmra.mxu0 %v168
  %v587 = vpop.f32.mrf.mxu0
  %v588 = vadd.f32 %v559, %v587
  %v589 = vpop.f32.mrf.mxu0
  %v590 = vadd.f32 %v561, %v589
  %591 = vmatmul.bf16.gmra.mxu0 %v171
  %v592 = vpop.f32.mrf.mxu0
  %v593 = vadd.f32 %v564, %v592
  %v594 = vpop.f32.mrf.mxu0
  %v595 = vadd.f32 %v566, %v594
  %596 = vmatmul.bf16.gmra.mxu0 %v174
  %v597 = vpop.f32.mrf.mxu0
  %v598 = vadd.f32 %v569, %v597
  %v599 = vpop.f32.mrf.mxu0
  %v600 = vadd.f32 %v571, %v599
  %601 = vdwg.mxu0
  %602 = vmatpush.bf16.msra.mxu0 0
  %603 = vmatpush.bf16.msra.mxu0 0
  %604 = vmatpush.bf16.msra.mxu0 0
  %605 = vmatpush.bf16.msra.mxu0 0
  %606 = vmatpush.bf16.msra.mxu0 0
  %607 = vmatpush.bf16.msra.mxu0 0
  %608 = vmatpush.bf16.msra.mxu0 %v525
  %609 = vmatpush.bf16.msra.mxu0 %v524
  %610 = vmatmul.bf16.gmra.mxu0 %v294
  %v611 = vpop.f32.mrf.mxu0
  %v612 = vadd.f32 %v583, %v611
  %v613 = vpop.f32.mrf.mxu0
  %v614 = vadd.f32 %v585, %v613
  %615 = vmatmul.bf16.gmra.mxu0 %v297
  %v616 = vpop.f32.mrf.mxu0
  %v617 = vadd.f32 %v588, %v616
  %v618 = vpop.f32.mrf.mxu0
  %v619 = vadd.f32 %v590, %v618
  %620 = vmatmul.bf16.gmra.mxu0 %v300
  %v621 = vpop.f32.mrf.mxu0
  %v622 = vadd.f32 %v593, %v621
  %v623 = vpop.f32.mrf.mxu0
  %v624 = vadd.f32 %v595, %v623
  %625 = vmatmul.bf16.gmra.mxu0 %v303
  %v626 = vpop.f32.mrf.mxu0
  %v627 = vadd.f32 %v598, %v626
  %v628 = vpop.f32.mrf.mxu0
  %v629 = vadd.f32 %v600, %v628
  %630 = vdwg.mxu0
  %v631 = vmax.f32 %v612, 0.0
  %v632 = vmax.f32 %v614, 0.0
  %v633 = vmax.f32 %v617, 0.0
  %v634 = vmax.f32 %v619, 0.0
  %v635 = vmax.f32 %v622, 0.0
  %v636 = vmax.f32 %v624, 0.0
  %v637 = vmax.f32 %v627, 0.0
  %v638 = vmax.f32 %v629, 0.0
  %v639 = vmax.f32 %v392, %v631
  %v640 = vmax.f32 %v393, %v632
  %v641 = vmax.f32 %v394, %v633
  %v642 = vmax.f32 %v395, %v634
  %v643 = vmax.f32 %v396, %v635
  %v644 = vmax.f32 %v397, %v636
  %v645 = vmax.f32 %v398, %v637
  %v646 = vmax.f32 %v399, %v638
  %v647 = vld [vmem:[%s2] sm:$0xf]
  %v648 = vld [vmem:[%s2 + $0x4] sm:$0xf]
  %v649 = vld [vmem:[%s2 + $0x8] sm:$0xf]
  %v650 = vld [vmem:[%s2 + $0xc] sm:$0xf]
  %v651 = vld [vmem:[%s2 + $0x10] sm:$0xf]
  %v652 = vld [vmem:[%s2 + $0x14] sm:$0xf]
  %v653 = vld [vmem:[%s2 + $0x18] sm:$0xf]
  %v654 = vld [vmem:[%s2 + $0x1c] sm:$0xf]
  %v655 = vld [vmem:[%s2 + $0x20] sm:$0xf]
  %v656 = vld [vmem:[%s2 + $0x24] sm:$0xf]
  %v657 = vld [vmem:[%s2 + $0x28] sm:$0xf]
  %v658 = vld [vmem:[%s2 + $0x2c] sm:$0xf]
  %v659 = vld [vmem:[%s2 + $0x30] sm:$0xf]
  %v660 = vld [vmem:[%s2 + $0x34] sm:$0xf]
  %v661 = vld [vmem:[%s2 + $0x38] sm:$0xf]
  %v662 = vld [vmem:[%s2 + $0x3c] sm:$0xf]
  %v663 = vld [vmem:[%s2 + $0x40] sm:$0xf]
  %v664 = vld [vmem:[%s2 + $0x44] sm:$0xf]
  %v665 = vld [vmem:[%s2 + $0x48] sm:$0xf]
  %v666 = vld [vmem:[%s2 + $0x4c] sm:$0xf]
  %v667 = vld [vmem:[%s2 + $0x50] sm:$0xf]
  %v668 = vld [vmem:[%s2 + $0x54] sm:$0xf]
  %v669 = vld [vmem:[%s2 + $0x58] sm:$0xf]
  %v670 = vld [vmem:[%s2 + $0x5c] sm:$0xf]
  %v671 = vld [vmem:[%s2 + $0x60] sm:$0xf]
  %v672 = vld [vmem:[%s2 + $0x64] sm:$0xf]
  %v673 = vld [vmem:[%s2 + $0x68] sm:$0xf]
  %v674 = vld [vmem:[%s2 + $0x6c] sm:$0xf]
  %v675 = vld [vmem:[%s2 + $0x70] sm:$0xf]
  %v676 = vld [vmem:[%s2 + $0x74] sm:$0xf]
  %v677 = vld [vmem:[%s2 + $0x78] sm:$0xf]
  %v678 = vld [vmem:[%s2 + $0x7c] sm:$0xf]
  %v679 = vld [vmem:[%s2 + $0x80] sm:$0xf]
  %v680 = vld [vmem:[%s2 + $0x84] sm:$0xf]
  %v681 = vld [vmem:[%s2 + $0x88] sm:$0xf]
  %v682 = vld [vmem:[%s2 + $0x8c] sm:$0xf]
  %v719 = vunpack.c.l.b16 %v647
  %v720 = vunpack.c.l.b16 %v648
  %v721 = vunpack.c.l.b16 %v649
  %v722 = vunpack.c.l.b16 %v650
  %v723 = vunpack.c.l.b16 %v651
  %v724 = vunpack.c.l.b16 %v652
  %v725 = vunpack.c.l.b16 %v653
  %v726 = vunpack.c.l.b16 %v654
  %v727 = vunpack.c.l.b16 %v655
  %v728 = vunpack.c.l.b16 %v656
  %v729 = vunpack.c.l.b16 %v657
  %v730 = vunpack.c.l.b16 %v658
  %v731 = vunpack.c.l.b16 %v659
  %v732 = vunpack.c.l.b16 %v660
  %v733 = vunpack.c.l.b16 %v661
  %v734 = vunpack.c.l.b16 %v662
  %v735 = vunpack.c.l.b16 %v663
  %v736 = vunpack.c.l.b16 %v664
  %v737 = vunpack.c.l.b16 %v665
  %v738 = vunpack.c.l.b16 %v666
  %v739 = vunpack.c.l.b16 %v667
  %v740 = vunpack.c.l.b16 %v668
  %v741 = vunpack.c.l.b16 %v669
  %v742 = vunpack.c.l.b16 %v670
  %v743 = vunpack.c.l.b16 %v671
  %v744 = vunpack.c.l.b16 %v672
  %v745 = vunpack.c.l.b16 %v673
  %v746 = vunpack.c.l.b16 %v674
  %v747 = vunpack.c.l.b16 %v675
  %v748 = vunpack.c.l.b16 %v676
  %v749 = vunpack.c.l.b16 %v677
  %v750 = vunpack.c.l.b16 %v678
  %v751 = vunpack.c.l.b16 %v679
  %v752 = vunpack.c.l.b16 %v680
  %v753 = vunpack.c.l.b16 %v681
  %v754 = vunpack.c.l.b16 %v682
  %v755 = vpack.c.b16 %v720, %v719
  %v756 = vpack.c.b16 %v722, %v721
  %v757 = vpack.c.b16 %v724, %v723
  %v758 = vpack.c.b16 %v726, %v725
  %v759 = vpack.c.b16 %v728, %v727
  %v760 = vpack.c.b16 %v730, %v729
  %v761 = vpack.c.b16 %v732, %v731
  %v762 = vpack.c.b16 %v734, %v733
  %v763 = vpack.c.b16 %v736, %v735
  %v764 = vpack.c.b16 %v738, %v737
  %v765 = vpack.c.b16 %v740, %v739
  %v766 = vpack.c.b16 %v742, %v741
  %v767 = vpack.c.b16 %v744, %v743
  %v768 = vpack.c.b16 %v746, %v745
  %v769 = vpack.c.b16 %v748, %v747
  %v770 = vpack.c.b16 %v750, %v749
  %v771 = vpack.c.b16 %v752, %v751
  %v772 = vpack.c.b16 %v754, %v753
  %791 = vmatpush.bf16.msra.mxu0 %v762
  %792 = vmatpush.bf16.msra.mxu0 %v761
  %793 = vmatpush.bf16.msra.mxu0 %v760
  %794 = vmatpush.bf16.msra.mxu0 %v759
  %795 = vmatpush.bf16.msra.mxu0 %v758
  %796 = vmatpush.bf16.msra.mxu0 %v757
  %797 = vmatpush.bf16.msra.mxu0 %v756
  %798 = vmatpush.bf16.msra.mxu0 %v755
  %799 = vmatmul.bf16.gmra.mxu0 %v164
  %v800 = vpop.f32.mrf.mxu0
  %v801 = vadd.f32 %v87, %v800
  %v802 = vpop.f32.mrf.mxu0
  %v803 = vadd.f32 %v92, %v802
  %804 = vmatmul.bf16.gmra.mxu0 %v167
  %v805 = vpop.f32.mrf.mxu0
  %v806 = vadd.f32 %v97, %v805
  %v807 = vpop.f32.mrf.mxu0
  %v808 = vadd.f32 %v102, %v807
  %809 = vmatmul.bf16.gmra.mxu0 %v170
  %v810 = vpop.f32.mrf.mxu0
  %v811 = vadd.f32 %v107, %v810
  %v812 = vpop.f32.mrf.mxu0
  %v813 = vadd.f32 %v112, %v812
  %814 = vmatmul.bf16.gmra.mxu0 %v173
  %v815 = vpop.f32.mrf.mxu0
  %v816 = vadd.f32 %v117, %v815
  %v817 = vpop.f32.mrf.mxu0
  %v818 = vadd.f32 %v122, %v817
  %819 = vdwg.mxu0
  %820 = vmatpush.bf16.msra.mxu0 %v770
  %821 = vmatpush.bf16.msra.mxu0 %v769
  %822 = vmatpush.bf16.msra.mxu0 %v768
  %823 = vmatpush.bf16.msra.mxu0 %v767
  %824 = vmatpush.bf16.msra.mxu0 %v766
  %825 = vmatpush.bf16.msra.mxu0 %v765
  %826 = vmatpush.bf16.msra.mxu0 %v764
  %827 = vmatpush.bf16.msra.mxu0 %v763
  %828 = vmatmul.bf16.gmra.mxu0 %v165
  %v829 = vpop.f32.mrf.mxu0
  %v830 = vadd.f32 %v801, %v829
  %v831 = vpop.f32.mrf.mxu0
  %v832 = vadd.f32 %v803, %v831
  %833 = vmatmul.bf16.gmra.mxu0 %v168
  %v834 = vpop.f32.mrf.mxu0
  %v835 = vadd.f32 %v806, %v834
  %v836 = vpop.f32.mrf.mxu0
  %v837 = vadd.f32 %v808, %v836
  %838 = vmatmul.bf16.gmra.mxu0 %v171
  %v839 = vpop.f32.mrf.mxu0
  %v840 = vadd.f32 %v811, %v839
  %v841 = vpop.f32.mrf.mxu0
  %v842 = vadd.f32 %v813, %v841
  %843 = vmatmul.bf16.gmra.mxu0 %v174
  %v844 = vpop.f32.mrf.mxu0
  %v845 = vadd.f32 %v816, %v844
  %v846 = vpop.f32.mrf.mxu0
  %v847 = vadd.f32 %v818, %v846
  %848 = vdwg.mxu0
  %849 = vmatpush.bf16.msra.mxu0 0
  %850 = vmatpush.bf16.msra.mxu0 0
  %851 = vmatpush.bf16.msra.mxu0 0
  %852 = vmatpush.bf16.msra.mxu0 0
  %853 = vmatpush.bf16.msra.mxu0 0
  %854 = vmatpush.bf16.msra.mxu0 0
  %855 = vmatpush.bf16.msra.mxu0 %v772
  %856 = vmatpush.bf16.msra.mxu0 %v771
  %857 = vmatmul.bf16.gmra.mxu0 %v294
  %v858 = vpop.f32.mrf.mxu0
  %v859 = vadd.f32 %v830, %v858
  %v860 = vpop.f32.mrf.mxu0
  %v861 = vadd.f32 %v832, %v860
  %862 = vmatmul.bf16.gmra.mxu0 %v297
  %v863 = vpop.f32.mrf.mxu0
  %v864 = vadd.f32 %v835, %v863
  %v865 = vpop.f32.mrf.mxu0
  %v866 = vadd.f32 %v837, %v865
  %867 = vmatmul.bf16.gmra.mxu0 %v300
  %v868 = vpop.f32.mrf.mxu0
  %v869 = vadd.f32 %v840, %v868
  %v870 = vpop.f32.mrf.mxu0
  %v871 = vadd.f32 %v842, %v870
  %872 = vmatmul.bf16.gmra.mxu0 %v303
  %v873 = vpop.f32.mrf.mxu0
  %v874 = vadd.f32 %v845, %v873
  %v875 = vpop.f32.mrf.mxu0
  %v876 = vadd.f32 %v847, %v875
  %877 = vdwg.mxu0
  %v878 = vmax.f32 %v859, 0.0
  %v879 = vmax.f32 %v861, 0.0
  %v880 = vmax.f32 %v864, 0.0
  %v881 = vmax.f32 %v866, 0.0
  %v882 = vmax.f32 %v869, 0.0
  %v883 = vmax.f32 %v871, 0.0
  %v884 = vmax.f32 %v874, 0.0
  %v885 = vmax.f32 %v876, 0.0
  %v886 = vld [vmem:[%s3] sm:$0xf]
  %v887 = vld [vmem:[%s3 + $0x4] sm:$0xf]
  %v888 = vld [vmem:[%s3 + $0x8] sm:$0xf]
  %v889 = vld [vmem:[%s3 + $0xc] sm:$0xf]
  %v890 = vld [vmem:[%s3 + $0x10] sm:$0xf]
  %v891 = vld [vmem:[%s3 + $0x14] sm:$0xf]
  %v892 = vld [vmem:[%s3 + $0x18] sm:$0xf]
  %v893 = vld [vmem:[%s3 + $0x1c] sm:$0xf]
  %v894 = vld [vmem:[%s3 + $0x20] sm:$0xf]
  %v895 = vld [vmem:[%s3 + $0x24] sm:$0xf]
  %v896 = vld [vmem:[%s3 + $0x28] sm:$0xf]
  %v897 = vld [vmem:[%s3 + $0x2c] sm:$0xf]
  %v898 = vld [vmem:[%s3 + $0x30] sm:$0xf]
  %v899 = vld [vmem:[%s3 + $0x34] sm:$0xf]
  %v900 = vld [vmem:[%s3 + $0x38] sm:$0xf]
  %v901 = vld [vmem:[%s3 + $0x3c] sm:$0xf]
  %v902 = vld [vmem:[%s3 + $0x40] sm:$0xf]
  %v903 = vld [vmem:[%s3 + $0x44] sm:$0xf]
  %v904 = vld [vmem:[%s3 + $0x48] sm:$0xf]
  %v905 = vld [vmem:[%s3 + $0x4c] sm:$0xf]
  %v906 = vld [vmem:[%s3 + $0x50] sm:$0xf]
  %v907 = vld [vmem:[%s3 + $0x54] sm:$0xf]
  %v908 = vld [vmem:[%s3 + $0x58] sm:$0xf]
  %v909 = vld [vmem:[%s3 + $0x5c] sm:$0xf]
  %v910 = vld [vmem:[%s3 + $0x60] sm:$0xf]
  %v911 = vld [vmem:[%s3 + $0x64] sm:$0xf]
  %v912 = vld [vmem:[%s3 + $0x68] sm:$0xf]
  %v913 = vld [vmem:[%s3 + $0x6c] sm:$0xf]
  %v914 = vld [vmem:[%s3 + $0x70] sm:$0xf]
  %v915 = vld [vmem:[%s3 + $0x74] sm:$0xf]
  %v916 = vld [vmem:[%s3 + $0x78] sm:$0xf]
  %v917 = vld [vmem:[%s3 + $0x7c] sm:$0xf]
  %v918 = vld [vmem:[%s3 + $0x80] sm:$0xf]
  %v919 = vld [vmem:[%s3 + $0x84] sm:$0xf]
  %v920 = vld [vmem:[%s3 + $0x88] sm:$0xf]
  %v921 = vld [vmem:[%s3 + $0x8c] sm:$0xf]
  %v958 = vunpack.c.l.b16 %v886
  %v959 = vunpack.c.l.b16 %v887
  %v960 = vunpack.c.l.b16 %v888
  %v961 = vunpack.c.l.b16 %v889
  %v962 = vunpack.c.l.b16 %v890
  %v963 = vunpack.c.l.b16 %v891
  %v964 = vunpack.c.l.b16 %v892
  %v965 = vunpack.c.l.b16 %v893
  %v966 = vunpack.c.l.b16 %v894
  %v967 = vunpack.c.l.b16 %v895
  %v968 = vunpack.c.l.b16 %v896
  %v969 = vunpack.c.l.b16 %v897
  %v970 = vunpack.c.l.b16 %v898
  %v971 = vunpack.c.l.b16 %v899
  %v972 = vunpack.c.l.b16 %v900
  %v973 = vunpack.c.l.b16 %v901
  %v974 = vunpack.c.l.b16 %v902
  %v975 = vunpack.c.l.b16 %v903
  %v976 = vunpack.c.l.b16 %v904
  %v977 = vunpack.c.l.b16 %v905
  %v978 = vunpack.c.l.b16 %v906
  %v979 = vunpack.c.l.b16 %v907
  %v980 = vunpack.c.l.b16 %v908
  %v981 = vunpack.c.l.b16 %v909
  %v982 = vunpack.c.l.b16 %v910
  %v983 = vunpack.c.l.b16 %v911
  %v984 = vunpack.c.l.b16 %v912
  %v985 = vunpack.c.l.b16 %v913
  %v986 = vunpack.c.l.b16 %v914
  %v987 = vunpack.c.l.b16 %v915
  %v988 = vunpack.c.l.b16 %v916
  %v989 = vunpack.c.l.b16 %v917
  %v990 = vunpack.c.l.b16 %v918
  %v991 = vunpack.c.l.b16 %v919
  %v992 = vunpack.c.l.b16 %v920
  %v993 = vunpack.c.l.b16 %v921
  %v994 = vpack.c.b16 %v959, %v958
  %v995 = vpack.c.b16 %v961, %v960
  %v996 = vpack.c.b16 %v963, %v962
  %v997 = vpack.c.b16 %v965, %v964
  %v998 = vpack.c.b16 %v967, %v966
  %v999 = vpack.c.b16 %v969, %v968
  %v1000 = vpack.c.b16 %v971, %v970
  %v1001 = vpack.c.b16 %v973, %v972
  %v1002 = vpack.c.b16 %v975, %v974
  %v1003 = vpack.c.b16 %v977, %v976
  %v1004 = vpack.c.b16 %v979, %v978
  %v1005 = vpack.c.b16 %v981, %v980
  %v1006 = vpack.c.b16 %v983, %v982
  %v1007 = vpack.c.b16 %v985, %v984
  %v1008 = vpack.c.b16 %v987, %v986
  %v1009 = vpack.c.b16 %v989, %v988
  %v1010 = vpack.c.b16 %v991, %v990
  %v1011 = vpack.c.b16 %v993, %v992
  %1030 = vmatpush.bf16.msra.mxu0 %v1001
  %1031 = vmatpush.bf16.msra.mxu0 %v1000
  %1032 = vmatpush.bf16.msra.mxu0 %v999
  %1033 = vmatpush.bf16.msra.mxu0 %v998
  %1034 = vmatpush.bf16.msra.mxu0 %v997
  %1035 = vmatpush.bf16.msra.mxu0 %v996
  %1036 = vmatpush.bf16.msra.mxu0 %v995
  %1037 = vmatpush.bf16.msra.mxu0 %v994
  %1038 = vmatmul.bf16.gmra.mxu0 %v164
  %v1039 = vpop.f32.mrf.mxu0
  %v1040 = vadd.f32 %v87, %v1039
  %v1041 = vpop.f32.mrf.mxu0
  %v1042 = vadd.f32 %v92, %v1041
  %1043 = vmatmul.bf16.gmra.mxu0 %v167
  %v1044 = vpop.f32.mrf.mxu0
  %v1045 = vadd.f32 %v97, %v1044
  %v1046 = vpop.f32.mrf.mxu0
  %v1047 = vadd.f32 %v102, %v1046
  %1048 = vmatmul.bf16.gmra.mxu0 %v170
  %v1049 = vpop.f32.mrf.mxu0
  %v1050 = vadd.f32 %v107, %v1049
  %v1051 = vpop.f32.mrf.mxu0
  %v1052 = vadd.f32 %v112, %v1051
  %1053 = vmatmul.bf16.gmra.mxu0 %v173
  %v1054 = vpop.f32.mrf.mxu0
  %v1055 = vadd.f32 %v117, %v1054
  %v1056 = vpop.f32.mrf.mxu0
  %v1057 = vadd.f32 %v122, %v1056
  %1058 = vdwg.mxu0
  %1059 = vmatpush.bf16.msra.mxu0 %v1009
  %1060 = vmatpush.bf16.msra.mxu0 %v1008
  %1061 = vmatpush.bf16.msra.mxu0 %v1007
  %1062 = vmatpush.bf16.msra.mxu0 %v1006
  %1063 = vmatpush.bf16.msra.mxu0 %v1005
  %1064 = vmatpush.bf16.msra.mxu0 %v1004
  %1065 = vmatpush.bf16.msra.mxu0 %v1003
  %1066 = vmatpush.bf16.msra.mxu0 %v1002
  %1067 = vmatmul.bf16.gmra.mxu0 %v165
  %v1068 = vpop.f32.mrf.mxu0
  %v1069 = vadd.f32 %v1040, %v1068
  %v1070 = vpop.f32.mrf.mxu0
  %v1071 = vadd.f32 %v1042, %v1070
  %1072 = vmatmul.bf16.gmra.mxu0 %v168
  %v1073 = vpop.f32.mrf.mxu0
  %v1074 = vadd.f32 %v1045, %v1073
  %v1075 = vpop.f32.mrf.mxu0
  %v1076 = vadd.f32 %v1047, %v1075
  %1077 = vmatmul.bf16.gmra.mxu0 %v171
  %v1078 = vpop.f32.mrf.mxu0
  %v1079 = vadd.f32 %v1050, %v1078
  %v1080 = vpop.f32.mrf.mxu0
  %v1081 = vadd.f32 %v1052, %v1080
  %1082 = vmatmul.bf16.gmra.mxu0 %v174
  %v1083 = vpop.f32.mrf.mxu0
  %v1084 = vadd.f32 %v1055, %v1083
  %v1085 = vpop.f32.mrf.mxu0
  %v1086 = vadd.f32 %v1057, %v1085
  %1087 = vdwg.mxu0
  %1088 = vmatpush.bf16.msra.mxu0 0
  %1089 = vmatpush.bf16.msra.mxu0 0
  %1090 = vmatpush.bf16.msra.mxu0 0
  %1091 = vmatpush.bf16.msra.mxu0 0
  %1092 = vmatpush.bf16.msra.mxu0 0
  %1093 = vmatpush.bf16.msra.mxu0 0
  %1094 = vmatpush.bf16.msra.mxu0 %v1011
  %1095 = vmatpush.bf16.msra.mxu0 %v1010
  %1096 = vmatmul.bf16.gmra.mxu0 %v294
  %v1097 = vpop.f32.mrf.mxu0
  %v1098 = vadd.f32 %v1069, %v1097
  %v1099 = vpop.f32.mrf.mxu0
  %v1100 = vadd.f32 %v1071, %v1099
  %1101 = vmatmul.bf16.gmra.mxu0 %v297
  %v1102 = vpop.f32.mrf.mxu0
  %v1103 = vadd.f32 %v1074, %v1102
  %v1104 = vpop.f32.mrf.mxu0
  %v1105 = vadd.f32 %v1076, %v1104
  %1106 = vmatmul.bf16.gmra.mxu0 %v300
  %v1107 = vpop.f32.mrf.mxu0
  %v1108 = vadd.f32 %v1079, %v1107
  %v1109 = vpop.f32.mrf.mxu0
  %v1110 = vadd.f32 %v1081, %v1109
  %1111 = vmatmul.bf16.gmra.mxu0 %v303
  %v1112 = vpop.f32.mrf.mxu0
  %v1113 = vadd.f32 %v1084, %v1112
  %v1114 = vpop.f32.mrf.mxu0
  %v1115 = vadd.f32 %v1086, %v1114
  %1116 = vdwg.mxu0
  %v1117 = vmax.f32 %v1098, 0.0
  %v1118 = vmax.f32 %v1100, 0.0
  %v1119 = vmax.f32 %v1103, 0.0
  %v1120 = vmax.f32 %v1105, 0.0
  %v1121 = vmax.f32 %v1108, 0.0
  %v1122 = vmax.f32 %v1110, 0.0
  %v1123 = vmax.f32 %v1113, 0.0
  %v1124 = vmax.f32 %v1115, 0.0
  %v1125 = vmax.f32 %v878, %v1117
  %v1126 = vmax.f32 %v879, %v1118
  %v1127 = vmax.f32 %v880, %v1119
  %v1128 = vmax.f32 %v881, %v1120
  %v1129 = vmax.f32 %v882, %v1121
  %v1130 = vmax.f32 %v883, %v1122
  %v1131 = vmax.f32 %v884, %v1123
  %v1132 = vmax.f32 %v885, %v1124
  %v1133 = vmax.f32 %v639, %v1125
  %v1134 = vmax.f32 %v640, %v1126
  %v1135 = vmax.f32 %v641, %v1127
  %v1136 = vmax.f32 %v642, %v1128
  %v1137 = vmax.f32 %v643, %v1129
  %v1138 = vmax.f32 %v644, %v1130
  %v1139 = vmax.f32 %v645, %v1131
  %v1140 = vmax.f32 %v646, %v1132
  %1141 = vst [vmem:[%s6] sm:$0xff] %v1133
  %1142 = vst [vmem:[%s6 + $0x8] sm:$0xff] %v1134
  %1143 = vst [vmem:[%s6 + $0x10] sm:$0xff] %v1135
  %1144 = vst [vmem:[%s6 + $0x18] sm:$0xff] %v1136
  %1145 = vst [vmem:[%s6 + $0x20] sm:$0xff] %v1137
  %1146 = vst [vmem:[%s6 + $0x28] sm:$0xff] %v1138
  %1147 = vst [vmem:[%s6 + $0x30] sm:$0xff] %v1139
  %1148 = vst [vmem:[%s6 + $0x38] sm:$0xff] %v1140
  // Predicated region
  $region26: #{cnn_mnist_forward.5} parent=0 // pred_check
    _
  $region27: #{cnn_mnist_forward.5} parent=0 // pred_check_branch
    %1150 = sbr.rel (0) target = $region29
  $region28: #{cnn_mnist_forward.5} parent=0 // pred_region
    _
  $region29: #{cnn_mnist_forward.5} parent=0 // pred_fallthru
    _
  // Predicated region
  $region30: #{cnn_mnist_forward.5} parent=0 // pred_check
    _
  $region31: #{cnn_mnist_forward.5} parent=0 // pred_check_branch
    %1152 = sbr.rel (0) target = $region33
  $region32: #{cnn_mnist_forward.5} parent=0 // pred_region
    _
  $region33: #{cnn_mnist_forward.5} parent=0 // pred_fallthru
    _

// kernel: tile.18
$region0: #{tile.18}
  #allocation0 [shape = 's32[1]{0}', space=sflag, size = 0x4, scoped, tag = 'scoped memory for tile.18']
  %s0 = inlined_call_operand.vmem [shape: f32[5,5], index: 0, kind: input, shape index: {}]
  %s1 = inlined_call_operand.vmem [shape: f32[2,1,1,5,1,5], index: 1, kind: output, shape index: {}]
  // Predicated region
  $region2: #{tile.18} parent=0 // pred_check
    _
  $region3: #{tile.18} parent=0 // pred_check_branch
    %3 = sbr.rel (0) target = $region5
  $region4: #{tile.18} parent=0 // pred_region
    _
  $region5: #{tile.18} parent=0 // pred_fallthru
    _
  %v4 = vld [vmem:[%s0] sm:$0x1f]
  %5 = vst [vmem:[%s1] sm:$0xff] %v4
  %s6 = scalar_lea.vmem %s1, 8
  %7 = vst [vmem:[%s6] sm:$0xff] %v4

// kernel: tile.0
$region0: #{tile.0}
  %s0 = inlined_call_operand.vmem [shape: f32[2,1,1,5,1,5], index: 0, kind: input, shape index: {}]
  %s1 = inlined_call_operand.vmem [shape: f32[50,1], index: 1, kind: output, shape index: {}]
  %v2 = vld [vmem:[%s0] sm:$0x1f]
  %vm3 = vcmask 7168
  %4 = vst.msk [vmem:[%s1] ss:$5 sm:$0x1f] %vm3, %v2
  %s5 = scalar_lea.vmem %s0, 8
  %v6 = vld [vmem:[%s5] sm:$0x1f]
  %vm7 = vcmask 7168
  %s8 = scalar_lea.vmem %s1, 25
  %9 = vst.msk [vmem:[%s8] ss:$5 sm:$0x1f] %vm7, %v6
  %v10 = vld.sshfl [vmem:[%s0] sm:$0xff pattern:$0x43c2b1a0]
  %11 = vrot.lane.b32.xlu0 %v10, 127
  %v12 = vpop.permute.xlu0 %11
  %vm13 = vcmask 7168
  %s14 = scalar_lea.vmem %s1, 1
  %15 = vst.msk [vmem:[%s14] ss:$35 sm:$0x3] %vm13, %v12
  %s16 = scalar_lea.vmem %s1, 4294967232
  %17 = vst.msk [vmem:[%s16] ss:$35 sm:$0xc] %vm13, %v12
  %s18 = scalar_lea.vmem %s1, 4294967167
  %19 = vst.msk [vmem:[%s18] ss:$35 sm:$0x30] %vm13, %v12
  %s20 = scalar_lea.vmem %s1, 4294967282
  %21 = vst.msk [vmem:[%s20] ss:$5 sm:$0xc0] %vm13, %v12
  %s22 = scalar_lea.vmem %s0, 8
  %v23 = vld [vmem:[%s22] sm:$0x3]
  %24 = vrot.lane.b32.xlu0 %v23, 127
  %v25 = vpop.permute.xlu0 %24
  %vm26 = vcmask 7168
  %s27 = scalar_lea.vmem %s1, 26
  %28 = vst.msk [vmem:[%s27] ss:$5 sm:$0x3] %vm26, %v25
  %v29 = vld.sshfl [vmem:[%s0] sm:$0xff pattern:$0x3c2b1a09]
  %30 = vrot.lane.b32.xlu0 %v29, 126
  %v31 = vpop.permute.xlu0 %30
  %vm32 = vcmask 7168
  %s33 = scalar_lea.vmem %s1, 32
  %34 = vst.msk [vmem:[%s33] ss:$-30 sm:$0x3] %vm32, %v31
  %s35 = scalar_lea.vmem %s1, 97
  %36 = vst.msk [vmem:[%s35] ss:$-30 sm:$0xc] %vm32, %v31
  %s37 = scalar_lea.vmem %s1, 162
  %38 = vst.msk [vmem:[%s37] ss:$-30 sm:$0x30] %vm32, %v31
  %s39 = scalar_lea.vmem %s1, 227
  %40 = vst.msk [vmem:[%s39] ss:$-30 sm:$0xc0] %vm32, %v31
  %s41 = scalar_lea.vmem %s0, 4
  %s42 = smov 3
  %v43 = vld [vmem:[%s41] ss:$4 sm:%s42]
  %44 = vrot.lane.b32.xlu0 %v43, 126
  %v45 = vpop.permute.xlu0 %44
  %vm46 = vcmask 7168
  %s47 = scalar_lea.vmem %s1, 22
  %48 = vst.msk [vmem:[%s47] ss:$5 sm:$0x3] %vm46, %v45
  %v49 = vld.sshfl [vmem:[%s0] sm:$0xff pattern:$0x3c2b1a09]
  %50 = vrot.lane.b32.xlu0 %v49, 125
  %v51 = vpop.permute.xlu0 %50
  %vm52 = vcmask 7168
  %s53 = scalar_lea.vmem %s1, 33
  %54 = vst.msk [vmem:[%s53] ss:$-30 sm:$0x3] %vm52, %v51
  %s55 = scalar_lea.vmem %s1, 98
  %56 = vst.msk [vmem:[%s55] ss:$-30 sm:$0xc] %vm52, %v51
  %s57 = scalar_lea.vmem %s1, 163
  %58 = vst.msk [vmem:[%s57] ss:$-30 sm:$0x30] %vm52, %v51
  %s59 = scalar_lea.vmem %s1, 228
  %60 = vst.msk [vmem:[%s59] ss:$-30 sm:$0xc0] %vm52, %v51
  %s61 = scalar_lea.vmem %s0, 4
  %s62 = smov 3
  %v63 = vld [vmem:[%s61] ss:$4 sm:%s62]
  %64 = vrot.lane.b32.xlu0 %v63, 125
  %v65 = vpop.permute.xlu0 %64
  %vm66 = vcmask 7168
  %s67 = scalar_lea.vmem %s1, 23
  %68 = vst.msk [vmem:[%s67] ss:$5 sm:$0x3] %vm66, %v65
  %v69 = vld.sshfl [vmem:[%s0] sm:$0xff pattern:$0x3c2b1a09]
  %70 = vrot.lane.b32.xlu0 %v69, 124
  %v71 = vpop.permute.xlu0 %70
  %vm72 = vcmask 7168
  %s73 = scalar_lea.vmem %s1, 34
  %74 = vst.msk [vmem:[%s73] ss:$-30 sm:$0x3] %vm72, %v71
  %s75 = scalar_lea.vmem %s1, 99
  %76 = vst.msk [vmem:[%s75] ss:$-30 sm:$0xc] %vm72, %v71
  %s77 = scalar_lea.vmem %s1, 164
  %78 = vst.msk [vmem:[%s77] ss:$-30 sm:$0x30] %vm72, %v71
  %s79 = scalar_lea.vmem %s1, 229
  %80 = vst.msk [vmem:[%s79] ss:$-30 sm:$0xc0] %vm72, %v71
  %s81 = scalar_lea.vmem %s0, 4
  %s82 = smov 3
  %v83 = vld [vmem:[%s81] ss:$4 sm:%s82]
  %84 = vrot.lane.b32.xlu0 %v83, 124
  %v85 = vpop.permute.xlu0 %84
  %vm86 = vcmask 7168
  %s87 = scalar_lea.vmem %s1, 24
  %88 = vst.msk [vmem:[%s87] ss:$5 sm:$0x3] %vm86, %v85

// kernel: cnn_mnist_forward.6
$region0: #{cnn_mnist_forward.6}
  #allocation0 [shape = 'u32[]', space=smem, size = 0x4, offset = 0x4, fixed_abs, tag = 'smem constant byte address 0x4 - core index']
  #allocation1 [shape = 'u32[72,128]{1,0:T(1,128)}', space=vmem, size = 0x9000, scoped, tag = 'internal scratch']
  %s0 = inlined_call_operand.vmem [shape: bf16[50,576], index: 0, kind: input, shape index: {}]
  %s1 = inlined_call_operand.vmem [shape: bf16[50,576], index: 1, kind: input, shape index: {}]
  %s2 = inlined_call_operand.vmem [shape: bf16[50,576], index: 2, kind: input, shape index: {}]
  %s3 = inlined_call_operand.vmem [shape: bf16[50,576], index: 3, kind: input, shape index: {}]
  %s4 = inlined_call_operand.vmem [shape: f32[50,1], index: 4, kind: input, shape index: {}]
  %s5 = inlined_call_operand.vmem [shape: f32[50,1], index: 5, kind: input, shape index: {}]
  %s6 = inlined_call_operand.vmem [shape: f32[50,1], index: 6, kind: input, shape index: {}]
  %s7 = inlined_call_operand.vmem [shape: f32[50,1], index: 7, kind: input, shape index: {}]
  %s8 = inlined_call_operand.vmem [shape: bf16[576,128], index: 8, kind: input, shape index: {}]
  %s9 = inlined_call_operand.vmem [shape: f32[1,128], index: 9, kind: input, shape index: {}]
  %s10 = inlined_call_operand.vmem [shape: f32[50,128], index: 10, kind: output, shape index: {}]
  %s11 = sld [smem:[#allocation0]]
  $region50: #{cnn_mnist_forward.6} parent=0
    _
  %s13 = ssub.s32 1, %s11
  %s14 = scalar_select 0, %s13, %s11
  // Predicated region
  $region2: #{cnn_mnist_forward.6} parent=0 // pred_check
    _
  $region3: #{cnn_mnist_forward.6} parent=0 // pred_check_branch
    %16 = sbr.rel (0) target = $region5
  $region4: #{cnn_mnist_forward.6} parent=0 // pred_region
    _
  $region5: #{cnn_mnist_forward.6} parent=0 // pred_fallthru
    _
  // Predicated region
  $region6: #{cnn_mnist_forward.6} parent=0 // pred_check
    _
  $region7: #{cnn_mnist_forward.6} parent=0 // pred_check_branch
    %18 = sbr.rel (0) target = $region9
  $region8: #{cnn_mnist_forward.6} parent=0 // pred_region
    _
  $region9: #{cnn_mnist_forward.6} parent=0 // pred_fallthru
    _
  // Predicated region
  $region10: #{cnn_mnist_forward.6} parent=0 // pred_check
    _
  $region11: #{cnn_mnist_forward.6} parent=0 // pred_check_branch
    %20 = sbr.rel (0) target = $region13
  $region12: #{cnn_mnist_forward.6} parent=0 // pred_region
    _
  $region13: #{cnn_mnist_forward.6} parent=0 // pred_fallthru
    _
  // Predicated region
  $region14: #{cnn_mnist_forward.6} parent=0 // pred_check
    _
  $region15: #{cnn_mnist_forward.6} parent=0 // pred_check_branch
    %22 = sbr.rel (0) target = $region17
  $region16: #{cnn_mnist_forward.6} parent=0 // pred_region
    _
  $region17: #{cnn_mnist_forward.6} parent=0 // pred_fallthru
    _
  // Predicated region
  $region18: #{cnn_mnist_forward.6} parent=0 // pred_check
    _
  $region19: #{cnn_mnist_forward.6} parent=0 // pred_check_branch
    %24 = sbr.rel (0) target = $region21
  $region20: #{cnn_mnist_forward.6} parent=0 // pred_region
    _
  $region21: #{cnn_mnist_forward.6} parent=0 // pred_fallthru
    _
  // Predicated region
  $region22: #{cnn_mnist_forward.6} parent=0 // pred_check
    _
  $region23: #{cnn_mnist_forward.6} parent=0 // pred_check_branch
    %26 = sbr.rel (0) target = $region25
  $region24: #{cnn_mnist_forward.6} parent=0 // pred_region
    _
  $region25: #{cnn_mnist_forward.6} parent=0 // pred_fallthru
    _
  // Predicated region
  $region26: #{cnn_mnist_forward.6} parent=0 // pred_check
    _
  $region27: #{cnn_mnist_forward.6} parent=0 // pred_check_branch
    %28 = sbr.rel (0) target = $region29
  $region28: #{cnn_mnist_forward.6} parent=0 // pred_region
    _
  $region29: #{cnn_mnist_forward.6} parent=0 // pred_fallthru
    _
  // Predicated region
  $region30: #{cnn_mnist_forward.6} parent=0 // pred_check
    _
  $region31: #{cnn_mnist_forward.6} parent=0 // pred_check_branch
    %30 = sbr.rel (0) target = $region33
  $region32: #{cnn_mnist_forward.6} parent=0 // pred_region
    _
  $region33: #{cnn_mnist_forward.6} parent=0 // pred_fallthru
    _
  // Predicated region
  $region34: #{cnn_mnist_forward.6} parent=0 // pred_check
    _
  $region35: #{cnn_mnist_forward.6} parent=0 // pred_check_branch
    %32 = sbr.rel (0) target = $region37
  $region36: #{cnn_mnist_forward.6} parent=0 // pred_region
    _
  $region37: #{cnn_mnist_forward.6} parent=0 // pred_fallthru
    _
  // Predicated region
  $region38: #{cnn_mnist_forward.6} parent=0 // pred_check
    _
  $region39: #{cnn_mnist_forward.6} parent=0 // pred_check_branch
    %34 = sbr.rel (0) target = $region41
  $region40: #{cnn_mnist_forward.6} parent=0 // pred_region
    _
  $region41: #{cnn_mnist_forward.6} parent=0 // pred_fallthru
    _
  %v36 = vld [vmem:[%s8] sm:$0xf]
  %v37 = vld [vmem:[%s8 + $0x4] sm:$0xf]
  %v38 = vld [vmem:[%s8 + $0x8] sm:$0xf]
  %v39 = vld [vmem:[%s8 + $0xc] sm:$0xf]
  %v40 = vld [vmem:[%s8 + $0x10] sm:$0xf]
  %v41 = vld [vmem:[%s8 + $0x14] sm:$0xf]
  %v42 = vld [vmem:[%s8 + $0x18] sm:$0xf]
  %v43 = vld [vmem:[%s8 + $0x1c] sm:$0xf]
  %v44 = vld [vmem:[%s8 + $0x20] sm:$0xf]
  %v45 = vld [vmem:[%s8 + $0x24] sm:$0xf]
  %v46 = vld [vmem:[%s8 + $0x28] sm:$0xf]
  %v47 = vld [vmem:[%s8 + $0x2c] sm:$0xf]
  %v48 = vld [vmem:[%s8 + $0x30] sm:$0xf]
  %v49 = vld [vmem:[%s8 + $0x34] sm:$0xf]
  %v50 = vld [vmem:[%s8 + $0x38] sm:$0xf]
  %v51 = vld [vmem:[%s8 + $0x3c] sm:$0xf]
  %v52 = vld [vmem:[%s8 + $0x40] sm:$0xf]
  %v53 = vld [vmem:[%s8 + $0x44] sm:$0xf]
  %v54 = vld [vmem:[%s8 + $0x48] sm:$0xf]
  %v55 = vld [vmem:[%s8 + $0x4c] sm:$0xf]
  %v56 = vld [vmem:[%s8 + $0x50] sm:$0xf]
  %v57 = vld [vmem:[%s8 + $0x54] sm:$0xf]
  %v58 = vld [vmem:[%s8 + $0x58] sm:$0xf]
  %v59 = vld [vmem:[%s8 + $0x5c] sm:$0xf]
  %v60 = vld [vmem:[%s8 + $0x60] sm:$0xf]
  %v61 = vld [vmem:[%s8 + $0x64] sm:$0xf]
  %v62 = vld [vmem:[%s8 + $0x68] sm:$0xf]
  %v63 = vld [vmem:[%s8 + $0x6c] sm:$0xf]
  %v64 = vld [vmem:[%s8 + $0x70] sm:$0xf]
  %v65 = vld [vmem:[%s8 + $0x74] sm:$0xf]
  %v66 = vld [vmem:[%s8 + $0x78] sm:$0xf]
  %v67 = vld [vmem:[%s8 + $0x7c] sm:$0xf]
  %v68 = vld [vmem:[%s8 + $0x80] sm:$0xf]
  %v69 = vld [vmem:[%s8 + $0x84] sm:$0xf]
  %v70 = vld [vmem:[%s8 + $0x88] sm:$0xf]
  %v71 = vld [vmem:[%s8 + $0x8c] sm:$0xf]
  %v72 = vld [vmem:[%s8 + $0x90] sm:$0xf]
  %v73 = vld [vmem:[%s8 + $0x94] sm:$0xf]
  %v74 = vld [vmem:[%s8 + $0x98] sm:$0xf]
  %v75 = vld [vmem:[%s8 + $0x9c] sm:$0xf]
  %v76 = vld [vmem:[%s8 + $0xa0] sm:$0xf]
  %v77 = vld [vmem:[%s8 + $0xa4] sm:$0xf]
  %v78 = vld [vmem:[%s8 + $0xa8] sm:$0xf]
  %v79 = vld [vmem:[%s8 + $0xac] sm:$0xf]
  %v80 = vld [vmem:[%s8 + $0xb0] sm:$0xf]
  %v81 = vld [vmem:[%s8 + $0xb4] sm:$0xf]
  %v82 = vld [vmem:[%s8 + $0xb8] sm:$0xf]
  %v83 = vld [vmem:[%s8 + $0xbc] sm:$0xf]
  %v84 = vld [vmem:[%s8 + $0xc0] sm:$0xf]
  %v85 = vld [vmem:[%s8 + $0xc4] sm:$0xf]
  %v86 = vld [vmem:[%s8 + $0xc8] sm:$0xf]
  %v87 = vld [vmem:[%s8 + $0xcc] sm:$0xf]
  %v88 = vld [vmem:[%s8 + $0xd0] sm:$0xf]
  %v89 = vld [vmem:[%s8 + $0xd4] sm:$0xf]
  %v90 = vld [vmem:[%s8 + $0xd8] sm:$0xf]
  %v91 = vld [vmem:[%s8 + $0xdc] sm:$0xf]
  %v92 = vld [vmem:[%s8 + $0xe0] sm:$0xf]
  %v93 = vld [vmem:[%s8 + $0xe4] sm:$0xf]
  %v94 = vld [vmem:[%s8 + $0xe8] sm:$0xf]
  %v95 = vld [vmem:[%s8 + $0xec] sm:$0xf]
  %v96 = vld [vmem:[%s8 + $0xf0] sm:$0xf]
  %v97 = vld [vmem:[%s8 + $0xf4] sm:$0xf]
  %v98 = vld [vmem:[%s8 + $0xf8] sm:$0xf]
  %v99 = vld [vmem:[%s8 + $0xfc] sm:$0xf]
  %v100 = vld [vmem:[%s8 + $0x100] sm:$0xf]
  %v101 = vld [vmem:[%s8 + $0x104] sm:$0xf]
  %v102 = vld [vmem:[%s8 + $0x108] sm:$0xf]
  %v103 = vld [vmem:[%s8 + $0x10c] sm:$0xf]
  %v104 = vld [vmem:[%s8 + $0x110] sm:$0xf]
  %v105 = vld [vmem:[%s8 + $0x114] sm:$0xf]
  %v106 = vld [vmem:[%s8 + $0x118] sm:$0xf]
  %v107 = vld [vmem:[%s8 + $0x11c] sm:$0xf]
  %v108 = vld [vmem:[%s9] sm:$0x1]
  %v109 = vld [vmem:[%s0] sm:$0xff]
  %v110 = vld [vmem:[%s0 + $0x8] sm:$0xff]
  %v111 = vld [vmem:[%s0 + $0x10] sm:$0xf]
  %v112 = vld [vmem:[%s0 + $0x14] sm:$0xff]
  %v113 = vld [vmem:[%s0 + $0x1c] sm:$0xff]
  %v114 = vld [vmem:[%s0 + $0x24] sm:$0xf]
  %v115 = vld [vmem:[%s0 + $0x28] sm:$0xff]
  %v116 = vld [vmem:[%s0 + $0x30] sm:$0xff]
  %v117 = vld [vmem:[%s0 + $0x38] sm:$0xf]
  %v118 = vld [vmem:[%s0 + $0x3c] sm:$0xff]
  %v119 = vld [vmem:[%s0 + $0x44] sm:$0xff]
  %v120 = vld [vmem:[%s0 + $0x4c] sm:$0xf]
  %v121 = vld [vmem:[%s0 + $0x50] sm:$0xff]
  %v122 = vld [vmem:[%s0 + $0x58] sm:$0xff]
  %v123 = vld [vmem:[%s0 + $0x60] sm:$0xf]
  %v124 = vld [vmem:[%s0 + $0x64] sm:$0xff]
  %v125 = vld [vmem:[%s0 + $0x6c] sm:$0xff]
  %v126 = vld [vmem:[%s0 + $0x74] sm:$0xf]
  %v127 = vld [vmem:[%s0 + $0x78] sm:$0x11]
  %v128 = vld [vmem:[%s0 + $0x80] sm:$0x11]
  %v129 = vld [vmem:[%s0 + $0x88] sm:$0x1]
  %v131 = vperm.slane %v108, 0
  %v154 = vunpack.c.l.b16 %v109
  %v155 = vunpack.c.h.b16 %v109
  %v156 = vunpack.c.l.b16 %v110
  %v157 = vunpack.c.h.b16 %v110
  %v158 = vunpack.c.l.b16 %v111
  %v159 = vunpack.c.l.b16 %v112
  %v160 = vunpack.c.h.b16 %v112
  %v161 = vunpack.c.l.b16 %v113
  %v162 = vunpack.c.h.b16 %v113
  %v163 = vunpack.c.l.b16 %v114
  %v164 = vunpack.c.l.b16 %v115
  %v165 = vunpack.c.h.b16 %v115
  %v166 = vunpack.c.l.b16 %v116
  %v167 = vunpack.c.h.b16 %v116
  %v168 = vunpack.c.l.b16 %v117
  %v169 = vunpack.c.l.b16 %v118
  %v170 = vunpack.c.h.b16 %v118
  %v171 = vunpack.c.l.b16 %v119
  %v172 = vunpack.c.h.b16 %v119
  %v173 = vunpack.c.l.b16 %v120
  %v174 = vunpack.c.l.b16 %v121
  %v175 = vunpack.c.h.b16 %v121
  %v176 = vunpack.c.l.b16 %v122
  %v177 = vunpack.c.h.b16 %v122
  %v178 = vunpack.c.l.b16 %v123
  %v179 = vunpack.c.l.b16 %v124
  %v180 = vunpack.c.h.b16 %v124
  %v181 = vunpack.c.l.b16 %v125
  %v182 = vunpack.c.h.b16 %v125
  %v183 = vunpack.c.l.b16 %v126
  %v184 = vunpack.c.l.b16 %v127
  %v185 = vunpack.c.h.b16 %v127
  %v186 = vunpack.c.l.b16 %v128
  %v187 = vunpack.c.h.b16 %v128
  %v188 = vunpack.c.l.b16 %v129
  %v189 = vpack.c.b16 %v159, %v154
  %v190 = vpack.c.b16 %v160, %v155
  %v191 = vpack.c.b16 %v161, %v156
  %v192 = vpack.c.b16 %v162, %v157
  %v193 = vpack.c.b16 %v163, %v158
  %v194 = vpack.c.b16 %v169, %v164
  %v195 = vpack.c.b16 %v170, %v165
  %v196 = vpack.c.b16 %v171, %v166
  %v197 = vpack.c.b16 %v172, %v167
  %v198 = vpack.c.b16 %v173, %v168
  %v199 = vpack.c.b16 %v179, %v174
  %v200 = vpack.c.b16 %v180, %v175
  %v201 = vpack.c.b16 %v181, %v176
  %v202 = vpack.c.b16 %v182, %v177
  %v203 = vpack.c.b16 %v183, %v178
  %v204 = vpack.c.b16 %v184, %v184
  %v205 = vpack.c.b16 %v185, %v185
  %v206 = vpack.c.b16 %v186, %v186
  %v207 = vpack.c.b16 %v187, %v187
  %v208 = vpack.c.b16 %v188, %v188
  %v297 = vunpack.c.l.b16 %v36
  %v298 = vunpack.c.l.b16 %v37
  %v299 = vunpack.c.l.b16 %v38
  %v300 = vunpack.c.l.b16 %v39
  %v301 = vunpack.c.l.b16 %v40
  %v302 = vunpack.c.l.b16 %v41
  %v303 = vunpack.c.l.b16 %v42
  %v304 = vunpack.c.l.b16 %v43
  %v305 = vunpack.c.l.b16 %v44
  %v306 = vunpack.c.l.b16 %v45
  %v307 = vunpack.c.l.b16 %v46
  %v308 = vunpack.c.l.b16 %v47
  %v309 = vunpack.c.l.b16 %v48
  %v310 = vunpack.c.l.b16 %v49
  %v311 = vunpack.c.l.b16 %v50
  %v312 = vunpack.c.l.b16 %v51
  %v313 = vunpack.c.l.b16 %v52
  %v314 = vunpack.c.l.b16 %v53
  %v315 = vunpack.c.l.b16 %v54
  %v316 = vunpack.c.l.b16 %v55
  %v317 = vunpack.c.l.b16 %v56
  %v318 = vunpack.c.l.b16 %v57
  %v319 = vunpack.c.l.b16 %v58
  %v320 = vunpack.c.l.b16 %v59
  %v321 = vunpack.c.l.b16 %v60
  %v322 = vunpack.c.l.b16 %v61
  %v323 = vunpack.c.l.b16 %v62
  %v324 = vunpack.c.l.b16 %v63
  %v325 = vunpack.c.l.b16 %v64
  %v326 = vunpack.c.l.b16 %v65
  %v327 = vunpack.c.l.b16 %v66
  %v328 = vunpack.c.l.b16 %v67
  %v329 = vunpack.c.l.b16 %v68
  %v330 = vunpack.c.l.b16 %v69
  %v331 = vunpack.c.l.b16 %v70
  %v332 = vunpack.c.l.b16 %v71
  %v333 = vunpack.c.l.b16 %v72
  %v334 = vunpack.c.l.b16 %v73
  %v335 = vunpack.c.l.b16 %v74
  %v336 = vunpack.c.l.b16 %v75
  %v337 = vunpack.c.l.b16 %v76
  %v338 = vunpack.c.l.b16 %v77
  %v339 = vunpack.c.l.b16 %v78
  %v340 = vunpack.c.l.b16 %v79
  %v341 = vunpack.c.l.b16 %v80
  %v342 = vunpack.c.l.b16 %v81
  %v343 = vunpack.c.l.b16 %v82
  %v344 = vunpack.c.l.b16 %v83
  %v345 = vunpack.c.l.b16 %v84
  %v346 = vunpack.c.l.b16 %v85
  %v347 = vunpack.c.l.b16 %v86
  %v348 = vunpack.c.l.b16 %v87
  %v349 = vunpack.c.l.b16 %v88
  %v350 = vunpack.c.l.b16 %v89
  %v351 = vunpack.c.l.b16 %v90
  %v352 = vunpack.c.l.b16 %v91
  %v353 = vunpack.c.l.b16 %v92
  %v354 = vunpack.c.l.b16 %v93
  %v355 = vunpack.c.l.b16 %v94
  %v356 = vunpack.c.l.b16 %v95
  %v357 = vunpack.c.l.b16 %v96
  %v358 = vunpack.c.l.b16 %v97
  %v359 = vunpack.c.l.b16 %v98
  %v360 = vunpack.c.l.b16 %v99
  %v361 = vunpack.c.l.b16 %v100
  %v362 = vunpack.c.l.b16 %v101
  %v363 = vunpack.c.l.b16 %v102
  %v364 = vunpack.c.l.b16 %v103
  %v365 = vunpack.c.l.b16 %v104
  %v366 = vunpack.c.l.b16 %v105
  %v367 = vunpack.c.l.b16 %v106
  %v368 = vunpack.c.l.b16 %v107
  %v369 = vpack.c.b16 %v298, %v297
  %v370 = vpack.c.b16 %v300, %v299
  %v371 = vpack.c.b16 %v302, %v301
  %v372 = vpack.c.b16 %v304, %v303
  %v373 = vpack.c.b16 %v306, %v305
  %v374 = vpack.c.b16 %v308, %v307
  %v375 = vpack.c.b16 %v310, %v309
  %v376 = vpack.c.b16 %v312, %v311
  %v377 = vpack.c.b16 %v314, %v313
  %v378 = vpack.c.b16 %v316, %v315
  %v379 = vpack.c.b16 %v318, %v317
  %v380 = vpack.c.b16 %v320, %v319
  %v381 = vpack.c.b16 %v322, %v321
  %v382 = vpack.c.b16 %v324, %v323
  %v383 = vpack.c.b16 %v326, %v325
  %v384 = vpack.c.b16 %v328, %v327
  %v385 = vpack.c.b16 %v330, %v329
  %v386 = vpack.c.b16 %v332, %v331
  %v387 = vpack.c.b16 %v334, %v333
  %v388 = vpack.c.b16 %v336, %v335
  %v389 = vpack.c.b16 %v338, %v337
  %v390 = vpack.c.b16 %v340, %v339
  %v391 = vpack.c.b16 %v342, %v341
  %v392 = vpack.c.b16 %v344, %v343
  %v393 = vpack.c.b16 %v346, %v345
  %v394 = vpack.c.b16 %v348, %v347
  %v395 = vpack.c.b16 %v350, %v349
  %v396 = vpack.c.b16 %v352, %v351
  %v397 = vpack.c.b16 %v354, %v353
  %v398 = vpack.c.b16 %v356, %v355
  %v399 = vpack.c.b16 %v358, %v357
  %v400 = vpack.c.b16 %v360, %v359
  %v401 = vpack.c.b16 %v362, %v361
  %v402 = vpack.c.b16 %v364, %v363
  %v403 = vpack.c.b16 %v366, %v365
  %v404 = vpack.c.b16 %v368, %v367
  %vm441 = vcmask 523264
  %v443 = vsel %vm441, %v193, 0
  %v446 = vsel %vm441, %v198, 0
  %v449 = vsel %vm441, %v203, 0
  %v452 = vsel %vm441, %v208, 0
  %454 = vmatpush.bf16.msra.mxu0 %v376
  %455 = vmatpush.bf16.msra.mxu0 %v375
  %456 = vmatpush.bf16.msra.mxu0 %v374
  %457 = vmatpush.bf16.msra.mxu0 %v373
  %458 = vmatpush.bf16.msra.mxu0 %v372
  %459 = vmatpush.bf16.msra.mxu0 %v371
  %460 = vmatpush.bf16.msra.mxu0 %v370
  %461 = vmatpush.bf16.msra.mxu0 %v369
  %462 = vmatmul.bf16.gmra.mxu0 %v189
  %v463 = vpop.f32.mrf.mxu0
  %v464 = vadd.f32 %v131, %v463
  %v465 = vpop.f32.mrf.mxu0
  %v466 = vadd.f32 %v131, %v465
  %467 = vmatmul.bf16.gmra.mxu0 %v194
  %v468 = vpop.f32.mrf.mxu0
  %v469 = vadd.f32 %v131, %v468
  %v470 = vpop.f32.mrf.mxu0
  %v471 = vadd.f32 %v131, %v470
  %472 = vmatmul.bf16.gmra.mxu0 %v199
  %v473 = vpop.f32.mrf.mxu0
  %v474 = vadd.f32 %v131, %v473
  %v475 = vpop.f32.mrf.mxu0
  %v476 = vadd.f32 %v131, %v475
  %477 = vmatmul.bf16.gmra.mxu0 %v204
  %v478 = vpop.f32.mrf.mxu0
  %v479 = vadd.f32 %v131, %v478
  %v480 = vpop.f32.mrf.mxu0
  %481 = vdwg.mxu0
  %482 = vmatpush.bf16.msra.mxu0 %v384
  %483 = vmatpush.bf16.msra.mxu0 %v383
  %484 = vmatpush.bf16.msra.mxu0 %v382
  %485 = vmatpush.bf16.msra.mxu0 %v381
  %486 = vmatpush.bf16.msra.mxu0 %v380
  %487 = vmatpush.bf16.msra.mxu0 %v379
  %488 = vmatpush.bf16.msra.mxu0 %v378
  %489 = vmatpush.bf16.msra.mxu0 %v377
  %490 = vmatmul.bf16.gmra.mxu0 %v190
  %v491 = vpop.f32.mrf.mxu0
  %v492 = vadd.f32 %v464, %v491
  %v493 = vpop.f32.mrf.mxu0
  %v494 = vadd.f32 %v466, %v493
  %495 = vmatmul.bf16.gmra.mxu0 %v195
  %v496 = vpop.f32.mrf.mxu0
  %v497 = vadd.f32 %v469, %v496
  %v498 = vpop.f32.mrf.mxu0
  %v499 = vadd.f32 %v471, %v498
  %500 = vmatmul.bf16.gmra.mxu0 %v200
  %v501 = vpop.f32.mrf.mxu0
  %v502 = vadd.f32 %v474, %v501
  %v503 = vpop.f32.mrf.mxu0
  %v504 = vadd.f32 %v476, %v503
  %505 = vmatmul.bf16.gmra.mxu0 %v205
  %v506 = vpop.f32.mrf.mxu0
  %v507 = vadd.f32 %v479, %v506
  %v508 = vpop.f32.mrf.mxu0
  %509 = vdwg.mxu0
  %510 = vmatpush.bf16.msra.mxu0 %v392
  %511 = vmatpush.bf16.msra.mxu0 %v391
  %512 = vmatpush.bf16.msra.mxu0 %v390
  %513 = vmatpush.bf16.msra.mxu0 %v389
  %514 = vmatpush.bf16.msra.mxu0 %v388
  %515 = vmatpush.bf16.msra.mxu0 %v387
  %516 = vmatpush.bf16.msra.mxu0 %v386
  %517 = vmatpush.bf16.msra.mxu0 %v385
  %518 = vmatmul.bf16.gmra.mxu0 %v191
  %v519 = vpop.f32.mrf.mxu0
  %v520 = vadd.f32 %v492, %v519
  %v521 = vpop.f32.mrf.mxu0
  %v522 = vadd.f32 %v494, %v521
  %523 = vmatmul.bf16.gmra.mxu0 %v196
  %v524 = vpop.f32.mrf.mxu0
  %v525 = vadd.f32 %v497, %v524
  %v526 = vpop.f32.mrf.mxu0
  %v527 = vadd.f32 %v499, %v526
  %528 = vmatmul.bf16.gmra.mxu0 %v201
  %v529 = vpop.f32.mrf.mxu0
  %v530 = vadd.f32 %v502, %v529
  %v531 = vpop.f32.mrf.mxu0
  %v532 = vadd.f32 %v504, %v531
  %533 = vmatmul.bf16.gmra.mxu0 %v206
  %v534 = vpop.f32.mrf.mxu0
  %v535 = vadd.f32 %v507, %v534
  %v536 = vpop.f32.mrf.mxu0
  %537 = vdwg.mxu0
  %538 = vmatpush.bf16.msra.mxu0 %v400
  %539 = vmatpush.bf16.msra.mxu0 %v399
  %540 = vmatpush.bf16.msra.mxu0 %v398
  %541 = vmatpush.bf16.msra.mxu0 %v397
  %542 = vmatpush.bf16.msra.mxu0 %v396
  %543 = vmatpush.bf16.msra.mxu0 %v395
  %544 = vmatpush.bf16.msra.mxu0 %v394
  %545 = vmatpush.bf16.msra.mxu0 %v393
  %546 = vmatmul.bf16.gmra.mxu0 %v192
  %v547 = vpop.f32.mrf.mxu0
  %v548 = vadd.f32 %v520, %v547
  %v549 = vpop.f32.mrf.mxu0
  %v550 = vadd.f32 %v522, %v549
  %551 = vmatmul.bf16.gmra.mxu0 %v197
  %v552 = vpop.f32.mrf.mxu0
  %v553 = vadd.f32 %v525, %v552
  %v554 = vpop.f32.mrf.mxu0
  %v555 = vadd.f32 %v527, %v554
  %556 = vmatmul.bf16.gmra.mxu0 %v202
  %v557 = vpop.f32.mrf.mxu0
  %v558 = vadd.f32 %v530, %v557
  %v559 = vpop.f32.mrf.mxu0
  %v560 = vadd.f32 %v532, %v559
  %561 = vmatmul.bf16.gmra.mxu0 %v207
  %v562 = vpop.f32.mrf.mxu0
  %v563 = vadd.f32 %v535, %v562
  %v564 = vpop.f32.mrf.mxu0
  %565 = vdwg.mxu0
  %566 = vmatpush.bf16.msra.mxu0 0
  %567 = vmatpush.bf16.msra.mxu0 0
  %568 = vmatpush.bf16.msra.mxu0 0
  %569 = vmatpush.bf16.msra.mxu0 0
  %570 = vmatpush.bf16.msra.mxu0 %v404
  %571 = vmatpush.bf16.msra.mxu0 %v403
  %572 = vmatpush.bf16.msra.mxu0 %v402
  %573 = vmatpush.bf16.msra.mxu0 %v401
  %574 = vmatmul.bf16.gmra.mxu0 %v443
  %v575 = vpop.f32.mrf.mxu0
  %v576 = vadd.f32 %v548, %v575
  %v577 = vpop.f32.mrf.mxu0
  %v578 = vadd.f32 %v550, %v577
  %579 = vmatmul.bf16.gmra.mxu0 %v446
  %v580 = vpop.f32.mrf.mxu0
  %v581 = vadd.f32 %v553, %v580
  %v582 = vpop.f32.mrf.mxu0
  %v583 = vadd.f32 %v555, %v582
  %584 = vmatmul.bf16.gmra.mxu0 %v449
  %v585 = vpop.f32.mrf.mxu0
  %v586 = vadd.f32 %v558, %v585
  %v587 = vpop.f32.mrf.mxu0
  %v588 = vadd.f32 %v560, %v587
  %589 = vmatmul.bf16.gmra.mxu0 %v452
  %v590 = vpop.f32.mrf.mxu0
  %v591 = vadd.f32 %v563, %v590
  %v592 = vpop.f32.mrf.mxu0
  %593 = vdwg.mxu0
  %v594 = vmax.f32 %v576, 0.0
  %v595 = vmax.f32 %v578, 0.0
  %v596 = vmax.f32 %v581, 0.0
  %v597 = vmax.f32 %v583, 0.0
  %v598 = vmax.f32 %v586, 0.0
  %v599 = vmax.f32 %v588, 0.0
  %v600 = vmax.f32 %v591, 0.0
  %v601 = vld [vmem:[%s4] sm:$0xff]
  %v602 = vld [vmem:[%s4 + $0x8] sm:$0xff]
  %v603 = vld [vmem:[%s4 + $0x10] sm:$0xff]
  %v604 = vld [vmem:[%s4 + $0x18] sm:$0xff]
  %v605 = vld [vmem:[%s4 + $0x20] sm:$0xff]
  %v606 = vld [vmem:[%s4 + $0x28] sm:$0xff]
  %v607 = vld [vmem:[%s4 + $0x30] sm:$0x3]
  %609 = vset.pattern.permute.xlu0 0
  %610 = vperm.xlu0 %609, %v601
  %v611 = vpop.permute.xlu0 %610
  %614 = vset.pattern.permute.xlu0 0
  %615 = vperm.xlu0 %614, %v602
  %v616 = vpop.permute.xlu0 %615
  %619 = vset.pattern.permute.xlu0 0
  %620 = vperm.xlu0 %619, %v603
  %v621 = vpop.permute.xlu0 %620
  %624 = vset.pattern.permute.xlu0 0
  %625 = vperm.xlu0 %624, %v604
  %v626 = vpop.permute.xlu0 %625
  %629 = vset.pattern.permute.xlu0 0
  %630 = vperm.xlu0 %629, %v605
  %v631 = vpop.permute.xlu0 %630
  %634 = vset.pattern.permute.xlu0 0
  %635 = vperm.xlu0 %634, %v606
  %v636 = vpop.permute.xlu0 %635
  %639 = vset.pattern.permute.xlu0 0
  %640 = vperm.xlu0 %639, %v607
  %v641 = vpop.permute.xlu0 %640
  %v643 = vmul.f32 %v594, %v611
  %v644 = vmul.f32 %v595, %v616
  %v645 = vmul.f32 %v596, %v621
  %v646 = vmul.f32 %v597, %v626
  %v647 = vmul.f32 %v598, %v631
  %v648 = vmul.f32 %v599, %v636
  %v649 = vmul.f32 %v600, %v641
  %v650 = vld [vmem:[%s1] sm:$0xff]
  %v651 = vld [vmem:[%s1 + $0x8] sm:$0xff]
  %v652 = vld [vmem:[%s1 + $0x10] sm:$0xf]
  %v653 = vld [vmem:[%s1 + $0x14] sm:$0xff]
  %v654 = vld [vmem:[%s1 + $0x1c] sm:$0xff]
  %v655 = vld [vmem:[%s1 + $0x24] sm:$0xf]
  %v656 = vld [vmem:[%s1 + $0x28] sm:$0xff]
  %v657 = vld [vmem:[%s1 + $0x30] sm:$0xff]
  %v658 = vld [vmem:[%s1 + $0x38] sm:$0xf]
  %v659 = vld [vmem:[%s1 + $0x3c] sm:$0xff]
  %v660 = vld [vmem:[%s1 + $0x44] sm:$0xff]
  %v661 = vld [vmem:[%s1 + $0x4c] sm:$0xf]
  %v662 = vld [vmem:[%s1 + $0x50] sm:$0xff]
  %v663 = vld [vmem:[%s1 + $0x58] sm:$0xff]
  %v664 = vld [vmem:[%s1 + $0x60] sm:$0xf]
  %v665 = vld [vmem:[%s1 + $0x64] sm:$0xff]
  %v666 = vld [vmem:[%s1 + $0x6c] sm:$0xff]
  %v667 = vld [vmem:[%s1 + $0x74] sm:$0xf]
  %v668 = vld [vmem:[%s1 + $0x78] sm:$0x11]
  %v669 = vld [vmem:[%s1 + $0x80] sm:$0x11]
  %v670 = vld [vmem:[%s1 + $0x88] sm:$0x1]
  %v692 = vunpack.c.l.b16 %v650
  %v693 = vunpack.c.h.b16 %v650
  %v694 = vunpack.c.l.b16 %v651
  %v695 = vunpack.c.h.b16 %v651
  %v696 = vunpack.c.l.b16 %v652
  %v697 = vunpack.c.l.b16 %v653
  %v698 = vunpack.c.h.b16 %v653
  %v699 = vunpack.c.l.b16 %v654
  %v700 = vunpack.c.h.b16 %v654
  %v701 = vunpack.c.l.b16 %v655
  %v702 = vunpack.c.l.b16 %v656
  %v703 = vunpack.c.h.b16 %v656
  %v704 = vunpack.c.l.b16 %v657
  %v705 = vunpack.c.h.b16 %v657
  %v706 = vunpack.c.l.b16 %v658
  %v707 = vunpack.c.l.b16 %v659
  %v708 = vunpack.c.h.b16 %v659
  %v709 = vunpack.c.l.b16 %v660
  %v710 = vunpack.c.h.b16 %v660
  %v711 = vunpack.c.l.b16 %v661
  %v712 = vunpack.c.l.b16 %v662
  %v713 = vunpack.c.h.b16 %v662
  %v714 = vunpack.c.l.b16 %v663
  %v715 = vunpack.c.h.b16 %v663
  %v716 = vunpack.c.l.b16 %v664
  %v717 = vunpack.c.l.b16 %v665
  %v718 = vunpack.c.h.b16 %v665
  %v719 = vunpack.c.l.b16 %v666
  %v720 = vunpack.c.h.b16 %v666
  %v721 = vunpack.c.l.b16 %v667
  %v722 = vunpack.c.l.b16 %v668
  %v723 = vunpack.c.h.b16 %v668
  %v724 = vunpack.c.l.b16 %v669
  %v725 = vunpack.c.h.b16 %v669
  %v726 = vunpack.c.l.b16 %v670
  %v727 = vpack.c.b16 %v697, %v692
  %v728 = vpack.c.b16 %v698, %v693
  %v729 = vpack.c.b16 %v699, %v694
  %v730 = vpack.c.b16 %v700, %v695
  %v731 = vpack.c.b16 %v701, %v696
  %v732 = vpack.c.b16 %v707, %v702
  %v733 = vpack.c.b16 %v708, %v703
  %v734 = vpack.c.b16 %v709, %v704
  %v735 = vpack.c.b16 %v710, %v705
  %v736 = vpack.c.b16 %v711, %v706
  %v737 = vpack.c.b16 %v717, %v712
  %v738 = vpack.c.b16 %v718, %v713
  %v739 = vpack.c.b16 %v719, %v714
  %v740 = vpack.c.b16 %v720, %v715
  %v741 = vpack.c.b16 %v721, %v716
  %v742 = vpack.c.b16 %v722, %v722
  %v743 = vpack.c.b16 %v723, %v723
  %v744 = vpack.c.b16 %v724, %v724
  %v745 = vpack.c.b16 %v725, %v725
  %v746 = vpack.c.b16 %v726, %v726
  %v764 = vsel %vm441, %v731, 0
  %v767 = vsel %vm441, %v736, 0
  %v770 = vsel %vm441, %v741, 0
  %v773 = vsel %vm441, %v746, 0
  %775 = vmatpush.bf16.msra.mxu0 %v376
  %776 = vmatpush.bf16.msra.mxu0 %v375
  %777 = vmatpush.bf16.msra.mxu0 %v374
  %778 = vmatpush.bf16.msra.mxu0 %v373
  %779 = vmatpush.bf16.msra.mxu0 %v372
  %780 = vmatpush.bf16.msra.mxu0 %v371
  %781 = vmatpush.bf16.msra.mxu0 %v370
  %782 = vmatpush.bf16.msra.mxu0 %v369
  %783 = vmatmul.bf16.gmra.mxu0 %v727
  %v784 = vpop.f32.mrf.mxu0
  %v785 = vadd.f32 %v131, %v784
  %v786 = vpop.f32.mrf.mxu0
  %v787 = vadd.f32 %v131, %v786
  %788 = vmatmul.bf16.gmra.mxu0 %v732
  %v789 = vpop.f32.mrf.mxu0
  %v790 = vadd.f32 %v131, %v789
  %v791 = vpop.f32.mrf.mxu0
  %v792 = vadd.f32 %v131, %v791
  %793 = vmatmul.bf16.gmra.mxu0 %v737
  %v794 = vpop.f32.mrf.mxu0
  %v795 = vadd.f32 %v131, %v794
  %v796 = vpop.f32.mrf.mxu0
  %v797 = vadd.f32 %v131, %v796
  %798 = vmatmul.bf16.gmra.mxu0 %v742
  %v799 = vpop.f32.mrf.mxu0
  %v800 = vadd.f32 %v131, %v799
  %v801 = vpop.f32.mrf.mxu0
  %802 = vdwg.mxu0
  %803 = vmatpush.bf16.msra.mxu0 %v384
  %804 = vmatpush.bf16.msra.mxu0 %v383
  %805 = vmatpush.bf16.msra.mxu0 %v382
  %806 = vmatpush.bf16.msra.mxu0 %v381
  %807 = vmatpush.bf16.msra.mxu0 %v380
  %808 = vmatpush.bf16.msra.mxu0 %v379
  %809 = vmatpush.bf16.msra.mxu0 %v378
  %810 = vmatpush.bf16.msra.mxu0 %v377
  %811 = vmatmul.bf16.gmra.mxu0 %v728
  %v812 = vpop.f32.mrf.mxu0
  %v813 = vadd.f32 %v785, %v812
  %v814 = vpop.f32.mrf.mxu0
  %v815 = vadd.f32 %v787, %v814
  %816 = vmatmul.bf16.gmra.mxu0 %v733
  %v817 = vpop.f32.mrf.mxu0
  %v818 = vadd.f32 %v790, %v817
  %v819 = vpop.f32.mrf.mxu0
  %v820 = vadd.f32 %v792, %v819
  %821 = vmatmul.bf16.gmra.mxu0 %v738
  %v822 = vpop.f32.mrf.mxu0
  %v823 = vadd.f32 %v795, %v822
  %v824 = vpop.f32.mrf.mxu0
  %v825 = vadd.f32 %v797, %v824
  %826 = vmatmul.bf16.gmra.mxu0 %v743
  %v827 = vpop.f32.mrf.mxu0
  %v828 = vadd.f32 %v800, %v827
  %v829 = vpop.f32.mrf.mxu0
  %830 = vdwg.mxu0
  %831 = vmatpush.bf16.msra.mxu0 %v392
  %832 = vmatpush.bf16.msra.mxu0 %v391
  %833 = vmatpush.bf16.msra.mxu0 %v390
  %834 = vmatpush.bf16.msra.mxu0 %v389
  %835 = vmatpush.bf16.msra.mxu0 %v388
  %836 = vmatpush.bf16.msra.mxu0 %v387
  %837 = vmatpush.bf16.msra.mxu0 %v386
  %838 = vmatpush.bf16.msra.mxu0 %v385
  %839 = vmatmul.bf16.gmra.mxu0 %v729
  %v840 = vpop.f32.mrf.mxu0
  %v841 = vadd.f32 %v813, %v840
  %v842 = vpop.f32.mrf.mxu0
  %v843 = vadd.f32 %v815, %v842
  %844 = vmatmul.bf16.gmra.mxu0 %v734
  %v845 = vpop.f32.mrf.mxu0
  %v846 = vadd.f32 %v818, %v845
  %v847 = vpop.f32.mrf.mxu0
  %v848 = vadd.f32 %v820, %v847
  %849 = vmatmul.bf16.gmra.mxu0 %v739
  %v850 = vpop.f32.mrf.mxu0
  %v851 = vadd.f32 %v823, %v850
  %v852 = vpop.f32.mrf.mxu0
  %v853 = vadd.f32 %v825, %v852
  %854 = vmatmul.bf16.gmra.mxu0 %v744
  %v855 = vpop.f32.mrf.mxu0
  %v856 = vadd.f32 %v828, %v855
  %v857 = vpop.f32.mrf.mxu0
  %858 = vdwg.mxu0
  %859 = vmatpush.bf16.msra.mxu0 %v400
  %860 = vmatpush.bf16.msra.mxu0 %v399
  %861 = vmatpush.bf16.msra.mxu0 %v398
  %862 = vmatpush.bf16.msra.mxu0 %v397
  %863 = vmatpush.bf16.msra.mxu0 %v396
  %864 = vmatpush.bf16.msra.mxu0 %v395
  %865 = vmatpush.bf16.msra.mxu0 %v394
  %866 = vmatpush.bf16.msra.mxu0 %v393
  %867 = vmatmul.bf16.gmra.mxu0 %v730
  %v868 = vpop.f32.mrf.mxu0
  %v869 = vadd.f32 %v841, %v868
  %v870 = vpop.f32.mrf.mxu0
  %v871 = vadd.f32 %v843, %v870
  %872 = vmatmul.bf16.gmra.mxu0 %v735
  %v873 = vpop.f32.mrf.mxu0
  %v874 = vadd.f32 %v846, %v873
  %v875 = vpop.f32.mrf.mxu0
  %v876 = vadd.f32 %v848, %v875
  %877 = vmatmul.bf16.gmra.mxu0 %v740
  %v878 = vpop.f32.mrf.mxu0
  %v879 = vadd.f32 %v851, %v878
  %v880 = vpop.f32.mrf.mxu0
  %v881 = vadd.f32 %v853, %v880
  %882 = vmatmul.bf16.gmra.mxu0 %v745
  %v883 = vpop.f32.mrf.mxu0
  %v884 = vadd.f32 %v856, %v883
  %v885 = vpop.f32.mrf.mxu0
  %886 = vdwg.mxu0
  %887 = vmatpush.bf16.msra.mxu0 0
  %888 = vmatpush.bf16.msra.mxu0 0
  %889 = vmatpush.bf16.msra.mxu0 0
  %890 = vmatpush.bf16.msra.mxu0 0
  %891 = vmatpush.bf16.msra.mxu0 %v404
  %892 = vmatpush.bf16.msra.mxu0 %v403
  %893 = vmatpush.bf16.msra.mxu0 %v402
  %894 = vmatpush.bf16.msra.mxu0 %v401
  %895 = vmatmul.bf16.gmra.mxu0 %v764
  %v896 = vpop.f32.mrf.mxu0
  %v897 = vadd.f32 %v869, %v896
  %v898 = vpop.f32.mrf.mxu0
  %v899 = vadd.f32 %v871, %v898
  %900 = vmatmul.bf16.gmra.mxu0 %v767
  %v901 = vpop.f32.mrf.mxu0
  %v902 = vadd.f32 %v874, %v901
  %v903 = vpop.f32.mrf.mxu0
  %v904 = vadd.f32 %v876, %v903
  %905 = vmatmul.bf16.gmra.mxu0 %v770
  %v906 = vpop.f32.mrf.mxu0
  %v907 = vadd.f32 %v879, %v906
  %v908 = vpop.f32.mrf.mxu0
  %v909 = vadd.f32 %v881, %v908
  %910 = vmatmul.bf16.gmra.mxu0 %v773
  %v911 = vpop.f32.mrf.mxu0
  %v912 = vadd.f32 %v884, %v911
  %v913 = vpop.f32.mrf.mxu0
  %914 = vdwg.mxu0
  %v915 = vmax.f32 %v897, 0.0
  %v916 = vmax.f32 %v899, 0.0
  %v917 = vmax.f32 %v902, 0.0
  %v918 = vmax.f32 %v904, 0.0
  %v919 = vmax.f32 %v907, 0.0
  %v920 = vmax.f32 %v909, 0.0
  %v921 = vmax.f32 %v912, 0.0
  %v922 = vld [vmem:[%s5] sm:$0xff]
  %v923 = vld [vmem:[%s5 + $0x8] sm:$0xff]
  %v924 = vld [vmem:[%s5 + $0x10] sm:$0xff]
  %v925 = vld [vmem:[%s5 + $0x18] sm:$0xff]
  %v926 = vld [vmem:[%s5 + $0x20] sm:$0xff]
  %v927 = vld [vmem:[%s5 + $0x28] sm:$0xff]
  %v928 = vld [vmem:[%s5 + $0x30] sm:$0x3]
  %930 = vset.pattern.permute.xlu0 0
  %931 = vperm.xlu0 %930, %v922
  %v932 = vpop.permute.xlu0 %931
  %935 = vset.pattern.permute.xlu0 0
  %936 = vperm.xlu0 %935, %v923
  %v937 = vpop.permute.xlu0 %936
  %940 = vset.pattern.permute.xlu0 0
  %941 = vperm.xlu0 %940, %v924
  %v942 = vpop.permute.xlu0 %941
  %945 = vset.pattern.permute.xlu0 0
  %946 = vperm.xlu0 %945, %v925
  %v947 = vpop.permute.xlu0 %946
  %950 = vset.pattern.permute.xlu0 0
  %951 = vperm.xlu0 %950, %v926
  %v952 = vpop.permute.xlu0 %951
  %955 = vset.pattern.permute.xlu0 0
  %956 = vperm.xlu0 %955, %v927
  %v957 = vpop.permute.xlu0 %956
  %960 = vset.pattern.permute.xlu0 0
  %961 = vperm.xlu0 %960, %v928
  %v962 = vpop.permute.xlu0 %961
  %v964 = vmul.f32 %v915, %v932
  %v965 = vmul.f32 %v916, %v937
  %v966 = vmul.f32 %v917, %v942
  %v967 = vmul.f32 %v918, %v947
  %v968 = vmul.f32 %v919, %v952
  %v969 = vmul.f32 %v920, %v957
  %v970 = vmul.f32 %v921, %v962
  %v971 = vmax.f32 %v643, %v964
  %v972 = vmax.f32 %v644, %v965
  %v973 = vmax.f32 %v645, %v966
  %v974 = vmax.f32 %v646, %v967
  %v975 = vmax.f32 %v647, %v968
  %v976 = vmax.f32 %v648, %v969
  %v977 = vmax.f32 %v649, %v970
  %v978 = vld [vmem:[%s2] sm:$0xff]
  %v979 = vld [vmem:[%s2 + $0x8] sm:$0xff]
  %v980 = vld [vmem:[%s2 + $0x10] sm:$0xf]
  %v981 = vld [vmem:[%s2 + $0x14] sm:$0xff]
  %v982 = vld [vmem:[%s2 + $0x1c] sm:$0xff]
  %v983 = vld [vmem:[%s2 + $0x24] sm:$0xf]
  %v984 = vld [vmem:[%s2 + $0x28] sm:$0xff]
  %v985 = vld [vmem:[%s2 + $0x30] sm:$0xff]
  %v986 = vld [vmem:[%s2 + $0x38] sm:$0xf]
  %v987 = vld [vmem:[%s2 + $0x3c] sm:$0xff]
  %v988 = vld [vmem:[%s2 + $0x44] sm:$0xff]
  %v989 = vld [vmem:[%s2 + $0x4c] sm:$0xf]
  %v990 = vld [vmem:[%s2 + $0x50] sm:$0xff]
  %v991 = vld [vmem:[%s2 + $0x58] sm:$0xff]
  %v992 = vld [vmem:[%s2 + $0x60] sm:$0xf]
  %v993 = vld [vmem:[%s2 + $0x64] sm:$0xff]
  %v994 = vld [vmem:[%s2 + $0x6c] sm:$0xff]
  %v995 = vld [vmem:[%s2 + $0x74] sm:$0xf]
  %v996 = vld [vmem:[%s2 + $0x78] sm:$0x11]
  %v997 = vld [vmem:[%s2 + $0x80] sm:$0x11]
  %v998 = vld [vmem:[%s2 + $0x88] sm:$0x1]
  %v1020 = vunpack.c.l.b16 %v978
  %v1021 = vunpack.c.h.b16 %v978
  %v1022 = vunpack.c.l.b16 %v979
  %v1023 = vunpack.c.h.b16 %v979
  %v1024 = vunpack.c.l.b16 %v980
  %v1025 = vunpack.c.l.b16 %v981
  %v1026 = vunpack.c.h.b16 %v981
  %v1027 = vunpack.c.l.b16 %v982
  %v1028 = vunpack.c.h.b16 %v982
  %v1029 = vunpack.c.l.b16 %v983
  %v1030 = vunpack.c.l.b16 %v984
  %v1031 = vunpack.c.h.b16 %v984
  %v1032 = vunpack.c.l.b16 %v985
  %v1033 = vunpack.c.h.b16 %v985
  %v1034 = vunpack.c.l.b16 %v986
  %v1035 = vunpack.c.l.b16 %v987
  %v1036 = vunpack.c.h.b16 %v987
  %v1037 = vunpack.c.l.b16 %v988
  %v1038 = vunpack.c.h.b16 %v988
  %v1039 = vunpack.c.l.b16 %v989
  %v1040 = vunpack.c.l.b16 %v990
  %v1041 = vunpack.c.h.b16 %v990
  %v1042 = vunpack.c.l.b16 %v991
  %v1043 = vunpack.c.h.b16 %v991
  %v1044 = vunpack.c.l.b16 %v992
  %v1045 = vunpack.c.l.b16 %v993
  %v1046 = vunpack.c.h.b16 %v993
  %v1047 = vunpack.c.l.b16 %v994
  %v1048 = vunpack.c.h.b16 %v994
  %v1049 = vunpack.c.l.b16 %v995
  %v1050 = vunpack.c.l.b16 %v996
  %v1051 = vunpack.c.h.b16 %v996
  %v1052 = vunpack.c.l.b16 %v997
  %v1053 = vunpack.c.h.b16 %v997
  %v1054 = vunpack.c.l.b16 %v998
  %v1055 = vpack.c.b16 %v1025, %v1020
  %v1056 = vpack.c.b16 %v1026, %v1021
  %v1057 = vpack.c.b16 %v1027, %v1022
  %v1058 = vpack.c.b16 %v1028, %v1023
  %v1059 = vpack.c.b16 %v1029, %v1024
  %v1060 = vpack.c.b16 %v1035, %v1030
  %v1061 = vpack.c.b16 %v1036, %v1031
  %v1062 = vpack.c.b16 %v1037, %v1032
  %v1063 = vpack.c.b16 %v1038, %v1033
  %v1064 = vpack.c.b16 %v1039, %v1034
  %v1065 = vpack.c.b16 %v1045, %v1040
  %v1066 = vpack.c.b16 %v1046, %v1041
  %v1067 = vpack.c.b16 %v1047, %v1042
  %v1068 = vpack.c.b16 %v1048, %v1043
  %v1069 = vpack.c.b16 %v1049, %v1044
  %v1070 = vpack.c.b16 %v1050, %v1050
  %v1071 = vpack.c.b16 %v1051, %v1051
  %v1072 = vpack.c.b16 %v1052, %v1052
  %v1073 = vpack.c.b16 %v1053, %v1053
  %v1074 = vpack.c.b16 %v1054, %v1054
  %v1092 = vsel %vm441, %v1059, 0
  %v1095 = vsel %vm441, %v1064, 0
  %v1098 = vsel %vm441, %v1069, 0
  %v1101 = vsel %vm441, %v1074, 0
  %1103 = vmatpush.bf16.msra.mxu0 %v376
  %1104 = vmatpush.bf16.msra.mxu0 %v375
  %1105 = vmatpush.bf16.msra.mxu0 %v374
  %1106 = vmatpush.bf16.msra.mxu0 %v373
  %1107 = vmatpush.bf16.msra.mxu0 %v372
  %1108 = vmatpush.bf16.msra.mxu0 %v371
  %1109 = vmatpush.bf16.msra.mxu0 %v370
  %1110 = vmatpush.bf16.msra.mxu0 %v369
  %1111 = vmatmul.bf16.gmra.mxu0 %v1055
  %v1112 = vpop.f32.mrf.mxu0
  %v1113 = vadd.f32 %v131, %v1112
  %v1114 = vpop.f32.mrf.mxu0
  %v1115 = vadd.f32 %v131, %v1114
  %1116 = vmatmul.bf16.gmra.mxu0 %v1060
  %v1117 = vpop.f32.mrf.mxu0
  %v1118 = vadd.f32 %v131, %v1117
  %v1119 = vpop.f32.mrf.mxu0
  %v1120 = vadd.f32 %v131, %v1119
  %1121 = vmatmul.bf16.gmra.mxu0 %v1065
  %v1122 = vpop.f32.mrf.mxu0
  %v1123 = vadd.f32 %v131, %v1122
  %v1124 = vpop.f32.mrf.mxu0
  %v1125 = vadd.f32 %v131, %v1124
  %1126 = vmatmul.bf16.gmra.mxu0 %v1070
  %v1127 = vpop.f32.mrf.mxu0
  %v1128 = vadd.f32 %v131, %v1127
  %v1129 = vpop.f32.mrf.mxu0
  %1130 = vdwg.mxu0
  %1131 = vmatpush.bf16.msra.mxu0 %v384
  %1132 = vmatpush.bf16.msra.mxu0 %v383
  %1133 = vmatpush.bf16.msra.mxu0 %v382
  %1134 = vmatpush.bf16.msra.mxu0 %v381
  %1135 = vmatpush.bf16.msra.mxu0 %v380
  %1136 = vmatpush.bf16.msra.mxu0 %v379
  %1137 = vmatpush.bf16.msra.mxu0 %v378
  %1138 = vmatpush.bf16.msra.mxu0 %v377
  %1139 = vmatmul.bf16.gmra.mxu0 %v1056
  %v1140 = vpop.f32.mrf.mxu0
  %v1141 = vadd.f32 %v1113, %v1140
  %v1142 = vpop.f32.mrf.mxu0
  %v1143 = vadd.f32 %v1115, %v1142
  %1144 = vmatmul.bf16.gmra.mxu0 %v1061
  %v1145 = vpop.f32.mrf.mxu0
  %v1146 = vadd.f32 %v1118, %v1145
  %v1147 = vpop.f32.mrf.mxu0
  %v1148 = vadd.f32 %v1120, %v1147
  %1149 = vmatmul.bf16.gmra.mxu0 %v1066
  %v1150 = vpop.f32.mrf.mxu0
  %v1151 = vadd.f32 %v1123, %v1150
  %v1152 = vpop.f32.mrf.mxu0
  %v1153 = vadd.f32 %v1125, %v1152
  %1154 = vmatmul.bf16.gmra.mxu0 %v1071
  %v1155 = vpop.f32.mrf.mxu0
  %v1156 = vadd.f32 %v1128, %v1155
  %v1157 = vpop.f32.mrf.mxu0
  %1158 = vdwg.mxu0
  %1159 = vmatpush.bf16.msra.mxu0 %v392
  %1160 = vmatpush.bf16.msra.mxu0 %v391
  %1161 = vmatpush.bf16.msra.mxu0 %v390
  %1162 = vmatpush.bf16.msra.mxu0 %v389
  %1163 = vmatpush.bf16.msra.mxu0 %v388
  %1164 = vmatpush.bf16.msra.mxu0 %v387
  %1165 = vmatpush.bf16.msra.mxu0 %v386
  %1166 = vmatpush.bf16.msra.mxu0 %v385
  %1167 = vmatmul.bf16.gmra.mxu0 %v1057
  %v1168 = vpop.f32.mrf.mxu0
  %v1169 = vadd.f32 %v1141, %v1168
  %v1170 = vpop.f32.mrf.mxu0
  %v1171 = vadd.f32 %v1143, %v1170
  %1172 = vmatmul.bf16.gmra.mxu0 %v1062
  %v1173 = vpop.f32.mrf.mxu0
  %v1174 = vadd.f32 %v1146, %v1173
  %v1175 = vpop.f32.mrf.mxu0
  %v1176 = vadd.f32 %v1148, %v1175
  %1177 = vmatmul.bf16.gmra.mxu0 %v1067
  %v1178 = vpop.f32.mrf.mxu0
  %v1179 = vadd.f32 %v1151, %v1178
  %v1180 = vpop.f32.mrf.mxu0
  %v1181 = vadd.f32 %v1153, %v1180
  %1182 = vmatmul.bf16.gmra.mxu0 %v1072
  %v1183 = vpop.f32.mrf.mxu0
  %v1184 = vadd.f32 %v1156, %v1183
  %v1185 = vpop.f32.mrf.mxu0
  %1186 = vdwg.mxu0
  %1187 = vmatpush.bf16.msra.mxu0 %v400
  %1188 = vmatpush.bf16.msra.mxu0 %v399
  %1189 = vmatpush.bf16.msra.mxu0 %v398
  %1190 = vmatpush.bf16.msra.mxu0 %v397
  %1191 = vmatpush.bf16.msra.mxu0 %v396
  %1192 = vmatpush.bf16.msra.mxu0 %v395
  %1193 = vmatpush.bf16.msra.mxu0 %v394
  %1194 = vmatpush.bf16.msra.mxu0 %v393
  %1195 = vmatmul.bf16.gmra.mxu0 %v1058
  %v1196 = vpop.f32.mrf.mxu0
  %v1197 = vadd.f32 %v1169, %v1196
  %v1198 = vpop.f32.mrf.mxu0
  %v1199 = vadd.f32 %v1171, %v1198
  %1200 = vmatmul.bf16.gmra.mxu0 %v1063
  %v1201 = vpop.f32.mrf.mxu0
  %v1202 = vadd.f32 %v1174, %v1201
  %v1203 = vpop.f32.mrf.mxu0
  %v1204 = vadd.f32 %v1176, %v1203
  %1205 = vmatmul.bf16.gmra.mxu0 %v1068
  %v1206 = vpop.f32.mrf.mxu0
  %v1207 = vadd.f32 %v1179, %v1206
  %v1208 = vpop.f32.mrf.mxu0
  %v1209 = vadd.f32 %v1181, %v1208
  %1210 = vmatmul.bf16.gmra.mxu0 %v1073
  %v1211 = vpop.f32.mrf.mxu0
  %v1212 = vadd.f32 %v1184, %v1211
  %v1213 = vpop.f32.mrf.mxu0
  %1214 = vdwg.mxu0
  %1215 = vmatpush.bf16.msra.mxu0 0
  %1216 = vmatpush.bf16.msra.mxu0 0
  %1217 = vmatpush.bf16.msra.mxu0 0
  %1218 = vmatpush.bf16.msra.mxu0 0
  %1219 = vmatpush.bf16.msra.mxu0 %v404
  %1220 = vmatpush.bf16.msra.mxu0 %v403
  %1221 = vmatpush.bf16.msra.mxu0 %v402
  %1222 = vmatpush.bf16.msra.mxu0 %v401
  %1223 = vmatmul.bf16.gmra.mxu0 %v1092
  %v1224 = vpop.f32.mrf.mxu0
  %v1225 = vadd.f32 %v1197, %v1224
  %v1226 = vpop.f32.mrf.mxu0
  %v1227 = vadd.f32 %v1199, %v1226
  %1228 = vmatmul.bf16.gmra.mxu0 %v1095
  %v1229 = vpop.f32.mrf.mxu0
  %v1230 = vadd.f32 %v1202, %v1229
  %v1231 = vpop.f32.mrf.mxu0
  %v1232 = vadd.f32 %v1204, %v1231
  %1233 = vmatmul.bf16.gmra.mxu0 %v1098
  %v1234 = vpop.f32.mrf.mxu0
  %v1235 = vadd.f32 %v1207, %v1234
  %v1236 = vpop.f32.mrf.mxu0
  %v1237 = vadd.f32 %v1209, %v1236
  %1238 = vmatmul.bf16.gmra.mxu0 %v1101
  %v1239 = vpop.f32.mrf.mxu0
  %v1240 = vadd.f32 %v1212, %v1239
  %v1241 = vpop.f32.mrf.mxu0
  %1242 = vdwg.mxu0
  %v1243 = vmax.f32 %v1225, 0.0
  %v1244 = vmax.f32 %v1227, 0.0
  %v1245 = vmax.f32 %v1230, 0.0
  %v1246 = vmax.f32 %v1232, 0.0
  %v1247 = vmax.f32 %v1235, 0.0
  %v1248 = vmax.f32 %v1237, 0.0
  %v1249 = vmax.f32 %v1240, 0.0
  %v1250 = vld [vmem:[%s6] sm:$0xff]
  %v1251 = vld [vmem:[%s6 + $0x8] sm:$0xff]
  %v1252 = vld [vmem:[%s6 + $0x10] sm:$0xff]
  %v1253 = vld [vmem:[%s6 + $0x18] sm:$0xff]
  %v1254 = vld [vmem:[%s6 + $0x20] sm:$0xff]
  %v1255 = vld [vmem:[%s6 + $0x28] sm:$0xff]
  %v1256 = vld [vmem:[%s6 + $0x30] sm:$0x3]
  %1258 = vset.pattern.permute.xlu0 0
  %1259 = vperm.xlu0 %1258, %v1250
  %v1260 = vpop.permute.xlu0 %1259
  %1263 = vset.pattern.permute.xlu0 0
  %1264 = vperm.xlu0 %1263, %v1251
  %v1265 = vpop.permute.xlu0 %1264
  %1268 = vset.pattern.permute.xlu0 0
  %1269 = vperm.xlu0 %1268, %v1252
  %v1270 = vpop.permute.xlu0 %1269
  %1273 = vset.pattern.permute.xlu0 0
  %1274 = vperm.xlu0 %1273, %v1253
  %v1275 = vpop.permute.xlu0 %1274
  %1278 = vset.pattern.permute.xlu0 0
  %1279 = vperm.xlu0 %1278, %v1254
  %v1280 = vpop.permute.xlu0 %1279
  %1283 = vset.pattern.permute.xlu0 0
  %1284 = vperm.xlu0 %1283, %v1255
  %v1285 = vpop.permute.xlu0 %1284
  %1288 = vset.pattern.permute.xlu0 0
  %1289 = vperm.xlu0 %1288, %v1256
  %v1290 = vpop.permute.xlu0 %1289
  %v1292 = vmul.f32 %v1243, %v1260
  %v1293 = vmul.f32 %v1244, %v1265
  %v1294 = vmul.f32 %v1245, %v1270
  %v1295 = vmul.f32 %v1246, %v1275
  %v1296 = vmul.f32 %v1247, %v1280
  %v1297 = vmul.f32 %v1248, %v1285
  %v1298 = vmul.f32 %v1249, %v1290
  %v1299 = vld [vmem:[%s3] sm:$0xff]
  %v1300 = vld [vmem:[%s3 + $0x8] sm:$0xff]
  %v1301 = vld [vmem:[%s3 + $0x10] sm:$0xf]
  %v1302 = vld [vmem:[%s3 + $0x14] sm:$0xff]
  %v1303 = vld [vmem:[%s3 + $0x1c] sm:$0xff]
  %v1304 = vld [vmem:[%s3 + $0x24] sm:$0xf]
  %v1305 = vld [vmem:[%s3 + $0x28] sm:$0xff]
  %v1306 = vld [vmem:[%s3 + $0x30] sm:$0xff]
  %v1307 = vld [vmem:[%s3 + $0x38] sm:$0xf]
  %v1308 = vld [vmem:[%s3 + $0x3c] sm:$0xff]
  %v1309 = vld [vmem:[%s3 + $0x44] sm:$0xff]
  %v1310 = vld [vmem:[%s3 + $0x4c] sm:$0xf]
  %v1311 = vld [vmem:[%s3 + $0x50] sm:$0xff]
  %v1312 = vld [vmem:[%s3 + $0x58] sm:$0xff]
  %v1313 = vld [vmem:[%s3 + $0x60] sm:$0xf]
  %v1314 = vld [vmem:[%s3 + $0x64] sm:$0xff]
  %v1315 = vld [vmem:[%s3 + $0x6c] sm:$0xff]
  %v1316 = vld [vmem:[%s3 + $0x74] sm:$0xf]
  %v1317 = vld [vmem:[%s3 + $0x78] sm:$0x11]
  %v1318 = vld [vmem:[%s3 + $0x80] sm:$0x11]
  %v1319 = vld [vmem:[%s3 + $0x88] sm:$0x1]
  %v1341 = vunpack.c.l.b16 %v1299
  %v1342 = vunpack.c.h.b16 %v1299
  %v1343 = vunpack.c.l.b16 %v1300
  %v1344 = vunpack.c.h.b16 %v1300
  %v1345 = vunpack.c.l.b16 %v1301
  %v1346 = vunpack.c.l.b16 %v1302
  %v1347 = vunpack.c.h.b16 %v1302
  %v1348 = vunpack.c.l.b16 %v1303
  %v1349 = vunpack.c.h.b16 %v1303
  %v1350 = vunpack.c.l.b16 %v1304
  %v1351 = vunpack.c.l.b16 %v1305
  %v1352 = vunpack.c.h.b16 %v1305
  %v1353 = vunpack.c.l.b16 %v1306
  %v1354 = vunpack.c.h.b16 %v1306
  %v1355 = vunpack.c.l.b16 %v1307
  %v1356 = vunpack.c.l.b16 %v1308
  %v1357 = vunpack.c.h.b16 %v1308
  %v1358 = vunpack.c.l.b16 %v1309
  %v1359 = vunpack.c.h.b16 %v1309
  %v1360 = vunpack.c.l.b16 %v1310
  %v1361 = vunpack.c.l.b16 %v1311
  %v1362 = vunpack.c.h.b16 %v1311
  %v1363 = vunpack.c.l.b16 %v1312
  %v1364 = vunpack.c.h.b16 %v1312
  %v1365 = vunpack.c.l.b16 %v1313
  %v1366 = vunpack.c.l.b16 %v1314
  %v1367 = vunpack.c.h.b16 %v1314
  %v1368 = vunpack.c.l.b16 %v1315
  %v1369 = vunpack.c.h.b16 %v1315
  %v1370 = vunpack.c.l.b16 %v1316
  %v1371 = vunpack.c.l.b16 %v1317
  %v1372 = vunpack.c.h.b16 %v1317
  %v1373 = vunpack.c.l.b16 %v1318
  %v1374 = vunpack.c.h.b16 %v1318
  %v1375 = vunpack.c.l.b16 %v1319
  %v1376 = vpack.c.b16 %v1346, %v1341
  %v1377 = vpack.c.b16 %v1347, %v1342
  %v1378 = vpack.c.b16 %v1348, %v1343
  %v1379 = vpack.c.b16 %v1349, %v1344
  %v1380 = vpack.c.b16 %v1350, %v1345
  %v1381 = vpack.c.b16 %v1356, %v1351
  %v1382 = vpack.c.b16 %v1357, %v1352
  %v1383 = vpack.c.b16 %v1358, %v1353
  %v1384 = vpack.c.b16 %v1359, %v1354
  %v1385 = vpack.c.b16 %v1360, %v1355
  %v1386 = vpack.c.b16 %v1366, %v1361
  %v1387 = vpack.c.b16 %v1367, %v1362
  %v1388 = vpack.c.b16 %v1368, %v1363
  %v1389 = vpack.c.b16 %v1369, %v1364
  %v1390 = vpack.c.b16 %v1370, %v1365
  %v1391 = vpack.c.b16 %v1371, %v1371
  %v1392 = vpack.c.b16 %v1372, %v1372
  %v1393 = vpack.c.b16 %v1373, %v1373
  %v1394 = vpack.c.b16 %v1374, %v1374
  %v1395 = vpack.c.b16 %v1375, %v1375
  %v1413 = vsel %vm441, %v1380, 0
  %v1416 = vsel %vm441, %v1385, 0
  %v1419 = vsel %vm441, %v1390, 0
  %v1422 = vsel %vm441, %v1395, 0
  %1424 = vmatpush.bf16.msra.mxu0 %v376
  %1425 = vmatpush.bf16.msra.mxu0 %v375
  %1426 = vmatpush.bf16.msra.mxu0 %v374
  %1427 = vmatpush.bf16.msra.mxu0 %v373
  %1428 = vmatpush.bf16.msra.mxu0 %v372
  %1429 = vmatpush.bf16.msra.mxu0 %v371
  %1430 = vmatpush.bf16.msra.mxu0 %v370
  %1431 = vmatpush.bf16.msra.mxu0 %v369
  %1432 = vmatmul.bf16.gmra.mxu0 %v1376
  %v1433 = vpop.f32.mrf.mxu0
  %v1434 = vadd.f32 %v131, %v1433
  %v1435 = vpop.f32.mrf.mxu0
  %v1436 = vadd.f32 %v131, %v1435
  %1437 = vmatmul.bf16.gmra.mxu0 %v1381
  %v1438 = vpop.f32.mrf.mxu0
  %v1439 = vadd.f32 %v131, %v1438
  %v1440 = vpop.f32.mrf.mxu0
  %v1441 = vadd.f32 %v131, %v1440
  %1442 = vmatmul.bf16.gmra.mxu0 %v1386
  %v1443 = vpop.f32.mrf.mxu0
  %v1444 = vadd.f32 %v131, %v1443
  %v1445 = vpop.f32.mrf.mxu0
  %v1446 = vadd.f32 %v131, %v1445
  %1447 = vmatmul.bf16.gmra.mxu0 %v1391
  %v1448 = vpop.f32.mrf.mxu0
  %v1449 = vadd.f32 %v131, %v1448
  %v1450 = vpop.f32.mrf.mxu0
  %1451 = vdwg.mxu0
  %1452 = vmatpush.bf16.msra.mxu0 %v384
  %1453 = vmatpush.bf16.msra.mxu0 %v383
  %1454 = vmatpush.bf16.msra.mxu0 %v382
  %1455 = vmatpush.bf16.msra.mxu0 %v381
  %1456 = vmatpush.bf16.msra.mxu0 %v380
  %1457 = vmatpush.bf16.msra.mxu0 %v379
  %1458 = vmatpush.bf16.msra.mxu0 %v378
  %1459 = vmatpush.bf16.msra.mxu0 %v377
  %1460 = vmatmul.bf16.gmra.mxu0 %v1377
  %v1461 = vpop.f32.mrf.mxu0
  %v1462 = vadd.f32 %v1434, %v1461
  %v1463 = vpop.f32.mrf.mxu0
  %v1464 = vadd.f32 %v1436, %v1463
  %1465 = vmatmul.bf16.gmra.mxu0 %v1382
  %v1466 = vpop.f32.mrf.mxu0
  %v1467 = vadd.f32 %v1439, %v1466
  %v1468 = vpop.f32.mrf.mxu0
  %v1469 = vadd.f32 %v1441, %v1468
  %1470 = vmatmul.bf16.gmra.mxu0 %v1387
  %v1471 = vpop.f32.mrf.mxu0
  %v1472 = vadd.f32 %v1444, %v1471
  %v1473 = vpop.f32.mrf.mxu0
  %v1474 = vadd.f32 %v1446, %v1473
  %1475 = vmatmul.bf16.gmra.mxu0 %v1392
  %v1476 = vpop.f32.mrf.mxu0
  %v1477 = vadd.f32 %v1449, %v1476
  %v1478 = vpop.f32.mrf.mxu0
  %1479 = vdwg.mxu0
  %1480 = vmatpush.bf16.msra.mxu0 %v392
  %1481 = vmatpush.bf16.msra.mxu0 %v391
  %1482 = vmatpush.bf16.msra.mxu0 %v390
  %1483 = vmatpush.bf16.msra.mxu0 %v389
  %1484 = vmatpush.bf16.msra.mxu0 %v388
  %1485 = vmatpush.bf16.msra.mxu0 %v387
  %1486 = vmatpush.bf16.msra.mxu0 %v386
  %1487 = vmatpush.bf16.msra.mxu0 %v385
  %1488 = vmatmul.bf16.gmra.mxu0 %v1378
  %v1489 = vpop.f32.mrf.mxu0
  %v1490 = vadd.f32 %v1462, %v1489
  %v1491 = vpop.f32.mrf.mxu0
  %v1492 = vadd.f32 %v1464, %v1491
  %1493 = vmatmul.bf16.gmra.mxu0 %v1383
  %v1494 = vpop.f32.mrf.mxu0
  %v1495 = vadd.f32 %v1467, %v1494
  %v1496 = vpop.f32.mrf.mxu0
  %v1497 = vadd.f32 %v1469, %v1496
  %1498 = vmatmul.bf16.gmra.mxu0 %v1388
  %v1499 = vpop.f32.mrf.mxu0
  %v1500 = vadd.f32 %v1472, %v1499
  %v1501 = vpop.f32.mrf.mxu0
  %v1502 = vadd.f32 %v1474, %v1501
  %1503 = vmatmul.bf16.gmra.mxu0 %v1393
  %v1504 = vpop.f32.mrf.mxu0
  %v1505 = vadd.f32 %v1477, %v1504
  %v1506 = vpop.f32.mrf.mxu0
  %1507 = vdwg.mxu0
  %1508 = vmatpush.bf16.msra.mxu0 %v400
  %1509 = vmatpush.bf16.msra.mxu0 %v399
  %1510 = vmatpush.bf16.msra.mxu0 %v398
  %1511 = vmatpush.bf16.msra.mxu0 %v397
  %1512 = vmatpush.bf16.msra.mxu0 %v396
  %1513 = vmatpush.bf16.msra.mxu0 %v395
  %1514 = vmatpush.bf16.msra.mxu0 %v394
  %1515 = vmatpush.bf16.msra.mxu0 %v393
  %1516 = vmatmul.bf16.gmra.mxu0 %v1379
  %v1517 = vpop.f32.mrf.mxu0
  %v1518 = vadd.f32 %v1490, %v1517
  %v1519 = vpop.f32.mrf.mxu0
  %v1520 = vadd.f32 %v1492, %v1519
  %1521 = vmatmul.bf16.gmra.mxu0 %v1384
  %v1522 = vpop.f32.mrf.mxu0
  %v1523 = vadd.f32 %v1495, %v1522
  %v1524 = vpop.f32.mrf.mxu0
  %v1525 = vadd.f32 %v1497, %v1524
  %1526 = vmatmul.bf16.gmra.mxu0 %v1389
  %v1527 = vpop.f32.mrf.mxu0
  %v1528 = vadd.f32 %v1500, %v1527
  %v1529 = vpop.f32.mrf.mxu0
  %v1530 = vadd.f32 %v1502, %v1529
  %1531 = vmatmul.bf16.gmra.mxu0 %v1394
  %v1532 = vpop.f32.mrf.mxu0
  %v1533 = vadd.f32 %v1505, %v1532
  %v1534 = vpop.f32.mrf.mxu0
  %1535 = vdwg.mxu0
  %1536 = vmatpush.bf16.msra.mxu0 0
  %1537 = vmatpush.bf16.msra.mxu0 0
  %1538 = vmatpush.bf16.msra.mxu0 0
  %1539 = vmatpush.bf16.msra.mxu0 0
  %1540 = vmatpush.bf16.msra.mxu0 %v404
  %1541 = vmatpush.bf16.msra.mxu0 %v403
  %1542 = vmatpush.bf16.msra.mxu0 %v402
  %1543 = vmatpush.bf16.msra.mxu0 %v401
  %1544 = vmatmul.bf16.gmra.mxu0 %v1413
  %v1545 = vpop.f32.mrf.mxu0
  %v1546 = vadd.f32 %v1518, %v1545
  %v1547 = vpop.f32.mrf.mxu0
  %v1548 = vadd.f32 %v1520, %v1547
  %1549 = vmatmul.bf16.gmra.mxu0 %v1416
  %v1550 = vpop.f32.mrf.mxu0
  %v1551 = vadd.f32 %v1523, %v1550
  %v1552 = vpop.f32.mrf.mxu0
  %v1553 = vadd.f32 %v1525, %v1552
  %1554 = vmatmul.bf16.gmra.mxu0 %v1419
  %v1555 = vpop.f32.mrf.mxu0
  %v1556 = vadd.f32 %v1528, %v1555
  %v1557 = vpop.f32.mrf.mxu0
  %v1558 = vadd.f32 %v1530, %v1557
  %1559 = vmatmul.bf16.gmra.mxu0 %v1422
  %v1560 = vpop.f32.mrf.mxu0
  %v1561 = vadd.f32 %v1533, %v1560
  %v1562 = vpop.f32.mrf.mxu0
  %1563 = vdwg.mxu0
  %v1564 = vmax.f32 %v1546, 0.0
  %v1565 = vmax.f32 %v1548, 0.0
  %v1566 = vmax.f32 %v1551, 0.0
  %v1567 = vmax.f32 %v1553, 0.0
  %v1568 = vmax.f32 %v1556, 0.0
  %v1569 = vmax.f32 %v1558, 0.0
  %v1570 = vmax.f32 %v1561, 0.0
  %v1571 = vld [vmem:[%s7] sm:$0xff]
  %v1572 = vld [vmem:[%s7 + $0x8] sm:$0xff]
  %v1573 = vld [vmem:[%s7 + $0x10] sm:$0xff]
  %v1574 = vld [vmem:[%s7 + $0x18] sm:$0xff]
  %v1575 = vld [vmem:[%s7 + $0x20] sm:$0xff]
  %v1576 = vld [vmem:[%s7 + $0x28] sm:$0xff]
  %v1577 = vld [vmem:[%s7 + $0x30] sm:$0x3]
  %1579 = vset.pattern.permute.xlu0 0
  %1580 = vperm.xlu0 %1579, %v1571
  %v1581 = vpop.permute.xlu0 %1580
  %1584 = vset.pattern.permute.xlu0 0
  %1585 = vperm.xlu0 %1584, %v1572
  %v1586 = vpop.permute.xlu0 %1585
  %1589 = vset.pattern.permute.xlu0 0
  %1590 = vperm.xlu0 %1589, %v1573
  %v1591 = vpop.permute.xlu0 %1590
  %1594 = vset.pattern.permute.xlu0 0
  %1595 = vperm.xlu0 %1594, %v1574
  %v1596 = vpop.permute.xlu0 %1595
  %1599 = vset.pattern.permute.xlu0 0
  %1600 = vperm.xlu0 %1599, %v1575
  %v1601 = vpop.permute.xlu0 %1600
  %1604 = vset.pattern.permute.xlu0 0
  %1605 = vperm.xlu0 %1604, %v1576
  %v1606 = vpop.permute.xlu0 %1605
  %1609 = vset.pattern.permute.xlu0 0
  %1610 = vperm.xlu0 %1609, %v1577
  %v1611 = vpop.permute.xlu0 %1610
  %v1613 = vmul.f32 %v1564, %v1581
  %v1614 = vmul.f32 %v1565, %v1586
  %v1615 = vmul.f32 %v1566, %v1591
  %v1616 = vmul.f32 %v1567, %v1596
  %v1617 = vmul.f32 %v1568, %v1601
  %v1618 = vmul.f32 %v1569, %v1606
  %v1619 = vmul.f32 %v1570, %v1611
  %v1620 = vmax.f32 %v1292, %v1613
  %v1621 = vmax.f32 %v1293, %v1614
  %v1622 = vmax.f32 %v1294, %v1615
  %v1623 = vmax.f32 %v1295, %v1616
  %v1624 = vmax.f32 %v1296, %v1617
  %v1625 = vmax.f32 %v1297, %v1618
  %v1626 = vmax.f32 %v1298, %v1619
  %v1627 = vmax.f32 %v971, %v1620
  %v1628 = vmax.f32 %v972, %v1621
  %v1629 = vmax.f32 %v973, %v1622
  %v1630 = vmax.f32 %v974, %v1623
  %v1631 = vmax.f32 %v975, %v1624
  %v1632 = vmax.f32 %v976, %v1625
  %v1633 = vmax.f32 %v977, %v1626
  %1634 = vst [vmem:[%s10] sm:$0xff] %v1627
  %1635 = vst [vmem:[%s10 + $0x8] sm:$0xff] %v1628
  %1636 = vst [vmem:[%s10 + $0x10] sm:$0xff] %v1629
  %1637 = vst [vmem:[%s10 + $0x18] sm:$0xff] %v1630
  %1638 = vst [vmem:[%s10 + $0x20] sm:$0xff] %v1631
  %1639 = vst [vmem:[%s10 + $0x28] sm:$0xff] %v1632
  %1640 = vst [vmem:[%s10 + $0x30] sm:$0x3] %v1633
  // Predicated region
  $region42: #{cnn_mnist_forward.6} parent=0 // pred_check
    _
  $region43: #{cnn_mnist_forward.6} parent=0 // pred_check_branch
    %1642 = sbr.rel (0) target = $region45
  $region44: #{cnn_mnist_forward.6} parent=0 // pred_region
    _
  $region45: #{cnn_mnist_forward.6} parent=0 // pred_fallthru
    _
  // Predicated region
  $region46: #{cnn_mnist_forward.6} parent=0 // pred_check
    _
  $region47: #{cnn_mnist_forward.6} parent=0 // pred_check_branch
    %1644 = sbr.rel (0) target = $region49
  $region48: #{cnn_mnist_forward.6} parent=0 // pred_region
    _
  $region49: #{cnn_mnist_forward.6} parent=0 // pred_fallthru
    _

// kernel: cnn_mnist_forward.7
$region0: #{cnn_mnist_forward.7}
  #allocation0 [shape = 'u32[]', space=smem, size = 0x4, offset = 0x4, fixed_abs, tag = 'smem constant byte address 0x4 - core index']
  #allocation1 [shape = 'u32[72,128]{1,0:T(1,128)}', space=vmem, size = 0x9000, scoped, tag = 'internal scratch']
  %s0 = inlined_call_operand.vmem [shape: bf16[2,3200], index: 0, kind: input, shape index: {}]
  %s1 = inlined_call_operand.vmem [shape: bf16[3200,625], index: 1, kind: input, shape index: {}]
  %s2 = inlined_call_operand.vmem [shape: f32[1,625], index: 2, kind: input, shape index: {}]
  %s3 = inlined_call_operand.vmem [shape: bf16[625,10], index: 3, kind: input, shape index: {}]
  %s4 = inlined_call_operand.vmem [shape: f32[1,10], index: 4, kind: input, shape index: {}]
  %s5 = inlined_call_operand.hbm [shape: f32[2,10], index: 5, kind: output, shape index: {}]
  %s6 = sld [smem:[#allocation0]]
  $region30: #{cnn_mnist_forward.7} parent=0
    _
  %s8 = ssub.s32 1, %s6
  %s9 = scalar_select 0, %s8, %s6
  $region1: #{cnn_mnist_forward.7} parent=0
    #allocation2 [shape = 'u8[1024]{0}', space=vmem, size = 0x400, scoped, tag = 'output window, operand 0, single buffered']
    #allocation3 [shape = 's32[1]{0}', space=sflag, size = 0x4, scoped, tag = 'scoped memory for cnn_mnist_forward.7']
    %10 = vsyncpa [#allocation3], 0
    // Predicated region
    $region2: #{cnn_mnist_forward.7} parent=1 // pred_check
      _
    $region3: #{cnn_mnist_forward.7} parent=1 // pred_check_branch
      %12 = sbr.rel (0) target = $region5
    $region4: #{cnn_mnist_forward.7} parent=1 // pred_region
      _
    $region5: #{cnn_mnist_forward.7} parent=1 // pred_fallthru
      _
    // Predicated region
    $region6: #{cnn_mnist_forward.7} parent=1 // pred_check
      _
    $region7: #{cnn_mnist_forward.7} parent=1 // pred_check_branch
      %14 = sbr.rel (0) target = $region9
    $region8: #{cnn_mnist_forward.7} parent=1 // pred_region
      _
    $region9: #{cnn_mnist_forward.7} parent=1 // pred_fallthru
      _
    // Predicated region
    $region10: #{cnn_mnist_forward.7} parent=1 // pred_check
      _
    $region11: #{cnn_mnist_forward.7} parent=1 // pred_check_branch
      %16 = sbr.rel (0) target = $region13
    $region12: #{cnn_mnist_forward.7} parent=1 // pred_region
      _
    $region13: #{cnn_mnist_forward.7} parent=1 // pred_fallthru
      _
    // Predicated region
    $region14: #{cnn_mnist_forward.7} parent=1 // pred_check
      _
    $region15: #{cnn_mnist_forward.7} parent=1 // pred_check_branch
      %18 = sbr.rel (0) target = $region17
    $region16: #{cnn_mnist_forward.7} parent=1 // pred_region
      _
    $region17: #{cnn_mnist_forward.7} parent=1 // pred_fallthru
      _
    // Predicated region
    $region18: #{cnn_mnist_forward.7} parent=1 // pred_check
      _
    $region19: #{cnn_mnist_forward.7} parent=1 // pred_check_branch
      %20 = sbr.rel (0) target = $region21
    $region20: #{cnn_mnist_forward.7} parent=1 // pred_region
      _
    $region21: #{cnn_mnist_forward.7} parent=1 // pred_fallthru
      _
    %v21 = vld [vmem:[%s0] sm:$0xff]
    %v22 = vld [vmem:[%s0 + $0x8] sm:$0xff]
    %v23 = vld [vmem:[%s0 + $0x10] sm:$0xff]
    %v24 = vld [vmem:[%s0 + $0x18] sm:$0x1]
    %v25 = vld [vmem:[%s1] sm:$0xff]
    %v26 = vld [vmem:[%s1 + $0x8] sm:$0xff]
    %v27 = vld [vmem:[%s1 + $0x10] sm:$0xf]
    %v28 = vld [vmem:[%s1 + $0x14] sm:$0xff]
    %v29 = vld [vmem:[%s1 + $0x1c] sm:$0xff]
    %v30 = vld [vmem:[%s1 + $0x24] sm:$0xf]
    %v31 = vld [vmem:[%s1 + $0x28] sm:$0xff]
    %v32 = vld [vmem:[%s1 + $0x30] sm:$0xff]
    %v33 = vld [vmem:[%s1 + $0x38] sm:$0xf]
    %v34 = vld [vmem:[%s1 + $0x3c] sm:$0xff]
    %v35 = vld [vmem:[%s1 + $0x44] sm:$0xff]
    %v36 = vld [vmem:[%s1 + $0x4c] sm:$0xf]
    %v37 = vld [vmem:[%s1 + $0x50] sm:$0xff]
    %v38 = vld [vmem:[%s1 + $0x58] sm:$0xff]
    %v39 = vld [vmem:[%s1 + $0x60] sm:$0xf]
    %v40 = vld [vmem:[%s1 + $0x64] sm:$0xff]
    %v41 = vld [vmem:[%s1 + $0x6c] sm:$0xff]
    %v42 = vld [vmem:[%s1 + $0x74] sm:$0xf]
    %v43 = vld [vmem:[%s1 + $0x78] sm:$0xff]
    %v44 = vld [vmem:[%s1 + $0x80] sm:$0xff]
    %v45 = vld [vmem:[%s1 + $0x88] sm:$0xf]
    %v46 = vld [vmem:[%s1 + $0x8c] sm:$0xff]
    %v47 = vld [vmem:[%s1 + $0x94] sm:$0xff]
    %v48 = vld [vmem:[%s1 + $0x9c] sm:$0xf]
    %v49 = vld [vmem:[%s1 + $0xa0] sm:$0xff]
    %v50 = vld [vmem:[%s1 + $0xa8] sm:$0xff]
    %v51 = vld [vmem:[%s1 + $0xb0] sm:$0xf]
    %v52 = vld [vmem:[%s1 + $0xb4] sm:$0xff]
    %v53 = vld [vmem:[%s1 + $0xbc] sm:$0xff]
    %v54 = vld [vmem:[%s1 + $0xc4] sm:$0xf]
    %v55 = vld [vmem:[%s1 + $0xc8] sm:$0xff]
    %v56 = vld [vmem:[%s1 + $0xd0] sm:$0xff]
    %v57 = vld [vmem:[%s1 + $0xd8] sm:$0xf]
    %v58 = vld [vmem:[%s1 + $0xdc] sm:$0xff]
    %v59 = vld [vmem:[%s1 + $0xe4] sm:$0xff]
    %v60 = vld [vmem:[%s1 + $0xec] sm:$0xf]
    %v61 = vld [vmem:[%s1 + $0xf0] sm:$0xff]
    %v62 = vld [vmem:[%s1 + $0xf8] sm:$0xff]
    %v63 = vld [vmem:[%s1 + $0x100] sm:$0xf]
    %v64 = vld [vmem:[%s1 + $0x104] sm:$0xff]
    %v65 = vld [vmem:[%s1 + $0x10c] sm:$0xff]
    %v66 = vld [vmem:[%s1 + $0x114] sm:$0xf]
    %v67 = vld [vmem:[%s1 + $0x118] sm:$0xff]
    %v68 = vld [vmem:[%s1 + $0x120] sm:$0xff]
    %v69 = vld [vmem:[%s1 + $0x128] sm:$0xf]
    %v70 = vld [vmem:[%s1 + $0x12c] sm:$0xff]
    %v71 = vld [vmem:[%s1 + $0x134] sm:$0xff]
    %v72 = vld [vmem:[%s1 + $0x13c] sm:$0xf]
    %v73 = vld [vmem:[%s1 + $0x140] sm:$0xff]
    %v74 = vld [vmem:[%s1 + $0x148] sm:$0xff]
    %v75 = vld [vmem:[%s1 + $0x150] sm:$0xf]
    %v76 = vld [vmem:[%s1 + $0x154] sm:$0xff]
    %v77 = vld [vmem:[%s1 + $0x15c] sm:$0xff]
    %v78 = vld [vmem:[%s1 + $0x164] sm:$0xf]
    %v79 = vld [vmem:[%s1 + $0x168] sm:$0xff]
    %v80 = vld [vmem:[%s1 + $0x170] sm:$0xff]
    %v81 = vld [vmem:[%s1 + $0x178] sm:$0xf]
    %v82 = vld [vmem:[%s1 + $0x17c] sm:$0xff]
    %v83 = vld [vmem:[%s1 + $0x184] sm:$0xff]
    %v84 = vld [vmem:[%s1 + $0x18c] sm:$0xf]
    %v85 = vld [vmem:[%s1 + $0x190] sm:$0xff]
    %v86 = vld [vmem:[%s1 + $0x198] sm:$0xff]
    %v87 = vld [vmem:[%s1 + $0x1a0] sm:$0xf]
    %v88 = vld [vmem:[%s1 + $0x1a4] sm:$0xff]
    %v89 = vld [vmem:[%s1 + $0x1ac] sm:$0xff]
    %v90 = vld [vmem:[%s1 + $0x1b4] sm:$0xf]
    %v91 = vld [vmem:[%s1 + $0x1b8] sm:$0xff]
    %v92 = vld [vmem:[%s1 + $0x1c0] sm:$0xff]
    %v93 = vld [vmem:[%s1 + $0x1c8] sm:$0xf]
    %v94 = vld [vmem:[%s1 + $0x1cc] sm:$0xff]
    %v95 = vld [vmem:[%s1 + $0x1d4] sm:$0xff]
    %v96 = vld [vmem:[%s1 + $0x1dc] sm:$0xf]
    %v97 = vld [vmem:[%s1 + $0x1e0] sm:$0xff]
    %v98 = vld [vmem:[%s1 + $0x1e8] sm:$0xff]
    %v99 = vld [vmem:[%s1 + $0x1f0] sm:$0xf]
    %v100 = vld [vmem:[%s1 + $0x1f4] sm:$0xff]
    %v101 = vld [vmem:[%s1 + $0x1fc] sm:$0xff]
    %v102 = vld [vmem:[%s1 + $0x204] sm:$0xf]
    %v103 = vld [vmem:[%s1 + $0x208] sm:$0xff]
    %v104 = vld [vmem:[%s1 + $0x210] sm:$0xff]
    %v105 = vld [vmem:[%s1 + $0x218] sm:$0xf]
    %v106 = vld [vmem:[%s1 + $0x21c] sm:$0xff]
    %v107 = vld [vmem:[%s1 + $0x224] sm:$0xff]
    %v108 = vld [vmem:[%s1 + $0x22c] sm:$0xf]
    %v109 = vld [vmem:[%s1 + $0x230] sm:$0xff]
    %v110 = vld [vmem:[%s1 + $0x238] sm:$0xff]
    %v111 = vld [vmem:[%s1 + $0x240] sm:$0xf]
    %v112 = vld [vmem:[%s1 + $0x244] sm:$0xff]
    %v113 = vld [vmem:[%s1 + $0x24c] sm:$0xff]
    %v114 = vld [vmem:[%s1 + $0x254] sm:$0xf]
    %v115 = vld [vmem:[%s1 + $0x258] sm:$0xff]
    %v116 = vld [vmem:[%s1 + $0x260] sm:$0xff]
    %v117 = vld [vmem:[%s1 + $0x268] sm:$0xf]
    %v118 = vld [vmem:[%s1 + $0x26c] sm:$0xff]
    %v119 = vld [vmem:[%s1 + $0x274] sm:$0xff]
    %v120 = vld [vmem:[%s1 + $0x27c] sm:$0xf]
    %v121 = vld [vmem:[%s1 + $0x280] sm:$0xff]
    %v122 = vld [vmem:[%s1 + $0x288] sm:$0xff]
    %v123 = vld [vmem:[%s1 + $0x290] sm:$0xf]
    %v124 = vld [vmem:[%s1 + $0x294] sm:$0xff]
    %v125 = vld [vmem:[%s1 + $0x29c] sm:$0xff]
    %v126 = vld [vmem:[%s1 + $0x2a4] sm:$0xf]
    %v127 = vld [vmem:[%s1 + $0x2a8] sm:$0xff]
    %v128 = vld [vmem:[%s1 + $0x2b0] sm:$0xff]
    %v129 = vld [vmem:[%s1 + $0x2b8] sm:$0xf]
    %v130 = vld [vmem:[%s1 + $0x2bc] sm:$0xff]
    %v131 = vld [vmem:[%s1 + $0x2c4] sm:$0xff]
    %v132 = vld [vmem:[%s1 + $0x2cc] sm:$0xf]
    %v133 = vld [vmem:[%s1 + $0x2d0] sm:$0xff]
    %v134 = vld [vmem:[%s1 + $0x2d8] sm:$0xff]
    %v135 = vld [vmem:[%s1 + $0x2e0] sm:$0xf]
    %v136 = vld [vmem:[%s1 + $0x2e4] sm:$0xff]
    %v137 = vld [vmem:[%s1 + $0x2ec] sm:$0xff]
    %v138 = vld [vmem:[%s1 + $0x2f4] sm:$0xf]
    %v139 = vld [vmem:[%s1 + $0x2f8] sm:$0xff]
    %v140 = vld [vmem:[%s1 + $0x300] sm:$0xff]
    %v141 = vld [vmem:[%s1 + $0x308] sm:$0xf]
    %v142 = vld [vmem:[%s1 + $0x30c] sm:$0xff]
    %v143 = vld [vmem:[%s1 + $0x314] sm:$0xff]
    %v144 = vld [vmem:[%s1 + $0x31c] sm:$0xf]
    %v145 = vld [vmem:[%s1 + $0x320] sm:$0xff]
    %v146 = vld [vmem:[%s1 + $0x328] sm:$0xff]
    %v147 = vld [vmem:[%s1 + $0x330] sm:$0xf]
    %v148 = vld [vmem:[%s1 + $0x334] sm:$0xff]
    %v149 = vld [vmem:[%s1 + $0x33c] sm:$0xff]
    %v150 = vld [vmem:[%s1 + $0x344] sm:$0xf]
    %v151 = vld [vmem:[%s1 + $0x348] sm:$0xff]
    %v152 = vld [vmem:[%s1 + $0x350] sm:$0xff]
    %v153 = vld [vmem:[%s1 + $0x358] sm:$0xf]
    %v154 = vld [vmem:[%s1 + $0x35c] sm:$0xff]
    %v155 = vld [vmem:[%s1 + $0x364] sm:$0xff]
    %v156 = vld [vmem:[%s1 + $0x36c] sm:$0xf]
    %v157 = vld [vmem:[%s1 + $0x370] sm:$0xff]
    %v158 = vld [vmem:[%s1 + $0x378] sm:$0xff]
    %v159 = vld [vmem:[%s1 + $0x380] sm:$0xf]
    %v160 = vld [vmem:[%s1 + $0x384] sm:$0xff]
    %v161 = vld [vmem:[%s1 + $0x38c] sm:$0xff]
    %v162 = vld [vmem:[%s1 + $0x394] sm:$0xf]
    %v163 = vld [vmem:[%s1 + $0x398] sm:$0xff]
    %v164 = vld [vmem:[%s1 + $0x3a0] sm:$0xff]
    %v165 = vld [vmem:[%s1 + $0x3a8] sm:$0xf]
    %v166 = vld [vmem:[%s1 + $0x3ac] sm:$0xff]
    %v167 = vld [vmem:[%s1 + $0x3b4] sm:$0xff]
    %v168 = vld [vmem:[%s1 + $0x3bc] sm:$0xf]
    %v169 = vld [vmem:[%s1 + $0x3c0] sm:$0xff]
    %v170 = vld [vmem:[%s1 + $0x3c8] sm:$0xff]
    %v171 = vld [vmem:[%s1 + $0x3d0] sm:$0xf]
    %v172 = vld [vmem:[%s1 + $0x3d4] sm:$0xff]
    %v173 = vld [vmem:[%s1 + $0x3dc] sm:$0xff]
    %v174 = vld [vmem:[%s1 + $0x3e4] sm:$0xf]
    %v175 = vld [vmem:[%s1 + $0x3e8] sm:$0xff]
    %v176 = vld [vmem:[%s1 + $0x3f0] sm:$0xff]
    %v177 = vld [vmem:[%s1 + $0x3f8] sm:$0xf]
    %v178 = vld [vmem:[%s1 + $0x3fc] sm:$0xff]
    %v179 = vld [vmem:[%s1 + $0x404] sm:$0xff]
    %v180 = vld [vmem:[%s1 + $0x40c] sm:$0xf]
    %v181 = vld [vmem:[%s1 + $0x410] sm:$0xff]
    %v182 = vld [vmem:[%s1 + $0x418] sm:$0xff]
    %v183 = vld [vmem:[%s1 + $0x420] sm:$0xf]
    %v184 = vld [vmem:[%s1 + $0x424] sm:$0xff]
    %v185 = vld [vmem:[%s1 + $0x42c] sm:$0xff]
    %v186 = vld [vmem:[%s1 + $0x434] sm:$0xf]
    %v187 = vld [vmem:[%s1 + $0x438] sm:$0xff]
    %v188 = vld [vmem:[%s1 + $0x440] sm:$0xff]
    %v189 = vld [vmem:[%s1 + $0x448] sm:$0xf]
    %v190 = vld [vmem:[%s1 + $0x44c] sm:$0xff]
    %v191 = vld [vmem:[%s1 + $0x454] sm:$0xff]
    %v192 = vld [vmem:[%s1 + $0x45c] sm:$0xf]
    %v193 = vld [vmem:[%s1 + $0x460] sm:$0xff]
    %v194 = vld [vmem:[%s1 + $0x468] sm:$0xff]
    %v195 = vld [vmem:[%s1 + $0x470] sm:$0xf]
    %v196 = vld [vmem:[%s1 + $0x474] sm:$0xff]
    %v197 = vld [vmem:[%s1 + $0x47c] sm:$0xff]
    %v198 = vld [vmem:[%s1 + $0x484] sm:$0xf]
    %v199 = vld [vmem:[%s1 + $0x488] sm:$0xff]
    %v200 = vld [vmem:[%s1 + $0x490] sm:$0xff]
    %v201 = vld [vmem:[%s1 + $0x498] sm:$0xf]
    %v202 = vld [vmem:[%s1 + $0x49c] sm:$0xff]
    %v203 = vld [vmem:[%s1 + $0x4a4] sm:$0xff]
    %v204 = vld [vmem:[%s1 + $0x4ac] sm:$0xf]
    %v205 = vld [vmem:[%s1 + $0x4b0] sm:$0xff]
    %v206 = vld [vmem:[%s1 + $0x4b8] sm:$0xff]
    %v207 = vld [vmem:[%s1 + $0x4c0] sm:$0xf]
    %v208 = vld [vmem:[%s1 + $0x4c4] sm:$0xff]
    %v209 = vld [vmem:[%s1 + $0x4cc] sm:$0xff]
    %v210 = vld [vmem:[%s1 + $0x4d4] sm:$0xf]
    %v211 = vld [vmem:[%s1 + $0x4d8] sm:$0xff]
    %v212 = vld [vmem:[%s1 + $0x4e0] sm:$0xff]
    %v213 = vld [vmem:[%s1 + $0x4e8] sm:$0xf]
    %v214 = vld [vmem:[%s1 + $0x4ec] sm:$0xff]
    %v215 = vld [vmem:[%s1 + $0x4f4] sm:$0xff]
    %v216 = vld [vmem:[%s1 + $0x4fc] sm:$0xf]
    %v217 = vld [vmem:[%s1 + $0x500] sm:$0xff]
    %v218 = vld [vmem:[%s1 + $0x508] sm:$0xff]
    %v219 = vld [vmem:[%s1 + $0x510] sm:$0xf]
    %v220 = vld [vmem:[%s1 + $0x514] sm:$0xff]
    %v221 = vld [vmem:[%s1 + $0x51c] sm:$0xff]
    %v222 = vld [vmem:[%s1 + $0x524] sm:$0xf]
    %v223 = vld [vmem:[%s1 + $0x528] sm:$0xff]
    %v224 = vld [vmem:[%s1 + $0x530] sm:$0xff]
    %v225 = vld [vmem:[%s1 + $0x538] sm:$0xf]
    %v226 = vld [vmem:[%s1 + $0x53c] sm:$0xff]
    %v227 = vld [vmem:[%s1 + $0x544] sm:$0xff]
    %v228 = vld [vmem:[%s1 + $0x54c] sm:$0xf]
    %v229 = vld [vmem:[%s1 + $0x550] sm:$0xff]
    %v230 = vld [vmem:[%s1 + $0x558] sm:$0xff]
    %v231 = vld [vmem:[%s1 + $0x560] sm:$0xf]
    %v232 = vld [vmem:[%s1 + $0x564] sm:$0xff]
    %v233 = vld [vmem:[%s1 + $0x56c] sm:$0xff]
    %v234 = vld [vmem:[%s1 + $0x574] sm:$0xf]
    %v235 = vld [vmem:[%s1 + $0x578] sm:$0xff]
    %v236 = vld [vmem:[%s1 + $0x580] sm:$0xff]
    %v237 = vld [vmem:[%s1 + $0x588] sm:$0xf]
    %v238 = vld [vmem:[%s1 + $0x58c] sm:$0xff]
    %v239 = vld [vmem:[%s1 + $0x594] sm:$0xff]
    %v240 = vld [vmem:[%s1 + $0x59c] sm:$0xf]
    %v241 = vld [vmem:[%s1 + $0x5a0] sm:$0xff]
    %v242 = vld [vmem:[%s1 + $0x5a8] sm:$0xff]
    %v243 = vld [vmem:[%s1 + $0x5b0] sm:$0xf]
    %v244 = vld [vmem:[%s1 + $0x5b4] sm:$0xff]
    %v245 = vld [vmem:[%s1 + $0x5bc] sm:$0xff]
    %v246 = vld [vmem:[%s1 + $0x5c4] sm:$0xf]
    %v247 = vld [vmem:[%s1 + $0x5c8] sm:$0xff]
    %v248 = vld [vmem:[%s1 + $0x5d0] sm:$0xff]
    %v249 = vld [vmem:[%s1 + $0x5d8] sm:$0xf]
    %v250 = vld [vmem:[%s1 + $0x5dc] sm:$0xff]
    %v251 = vld [vmem:[%s1 + $0x5e4] sm:$0xff]
    %v252 = vld [vmem:[%s1 + $0x5ec] sm:$0xf]
    %v253 = vld [vmem:[%s1 + $0x5f0] sm:$0xff]
    %v254 = vld [vmem:[%s1 + $0x5f8] sm:$0xff]
    %v255 = vld [vmem:[%s1 + $0x600] sm:$0xf]
    %v256 = vld [vmem:[%s1 + $0x604] sm:$0xff]
    %v257 = vld [vmem:[%s1 + $0x60c] sm:$0xff]
    %v258 = vld [vmem:[%s1 + $0x614] sm:$0xf]
    %v259 = vld [vmem:[%s1 + $0x618] sm:$0xff]
    %v260 = vld [vmem:[%s1 + $0x620] sm:$0xff]
    %v261 = vld [vmem:[%s1 + $0x628] sm:$0xf]
    %v262 = vld [vmem:[%s1 + $0x62c] sm:$0xff]
    %v263 = vld [vmem:[%s1 + $0x634] sm:$0xff]
    %v264 = vld [vmem:[%s1 + $0x63c] sm:$0xf]
    %v265 = vld [vmem:[%s1 + $0x640] sm:$0xff]
    %v266 = vld [vmem:[%s1 + $0x648] sm:$0xff]
    %v267 = vld [vmem:[%s1 + $0x650] sm:$0xf]
    %v268 = vld [vmem:[%s1 + $0x654] sm:$0xff]
    %v269 = vld [vmem:[%s1 + $0x65c] sm:$0xff]
    %v270 = vld [vmem:[%s1 + $0x664] sm:$0xf]
    %v271 = vld [vmem:[%s1 + $0x668] sm:$0xff]
    %v272 = vld [vmem:[%s1 + $0x670] sm:$0xff]
    %v273 = vld [vmem:[%s1 + $0x678] sm:$0xf]
    %v274 = vld [vmem:[%s1 + $0x67c] sm:$0xff]
    %v275 = vld [vmem:[%s1 + $0x684] sm:$0xff]
    %v276 = vld [vmem:[%s1 + $0x68c] sm:$0xf]
    %v277 = vld [vmem:[%s1 + $0x690] sm:$0xff]
    %v278 = vld [vmem:[%s1 + $0x698] sm:$0xff]
    %v279 = vld [vmem:[%s1 + $0x6a0] sm:$0xf]
    %v280 = vld [vmem:[%s1 + $0x6a4] sm:$0xff]
    %v281 = vld [vmem:[%s1 + $0x6ac] sm:$0xff]
    %v282 = vld [vmem:[%s1 + $0x6b4] sm:$0xf]
    %v283 = vld [vmem:[%s1 + $0x6b8] sm:$0xff]
    %v284 = vld [vmem:[%s1 + $0x6c0] sm:$0xff]
    %v285 = vld [vmem:[%s1 + $0x6c8] sm:$0xf]
    %v286 = vld [vmem:[%s1 + $0x6cc] sm:$0xff]
    %v287 = vld [vmem:[%s1 + $0x6d4] sm:$0xff]
    %v288 = vld [vmem:[%s1 + $0x6dc] sm:$0xf]
    %v289 = vld [vmem:[%s1 + $0x6e0] sm:$0xff]
    %v290 = vld [vmem:[%s1 + $0x6e8] sm:$0xff]
    %v291 = vld [vmem:[%s1 + $0x6f0] sm:$0xf]
    %v292 = vld [vmem:[%s1 + $0x6f4] sm:$0xff]
    %v293 = vld [vmem:[%s1 + $0x6fc] sm:$0xff]
    %v294 = vld [vmem:[%s1 + $0x704] sm:$0xf]
    %v295 = vld [vmem:[%s1 + $0x708] sm:$0xff]
    %v296 = vld [vmem:[%s1 + $0x710] sm:$0xff]
    %v297 = vld [vmem:[%s1 + $0x718] sm:$0xf]
    %v298 = vld [vmem:[%s1 + $0x71c] sm:$0xff]
    %v299 = vld [vmem:[%s1 + $0x724] sm:$0xff]
    %v300 = vld [vmem:[%s1 + $0x72c] sm:$0xf]
    %v301 = vld [vmem:[%s1 + $0x730] sm:$0xff]
    %v302 = vld [vmem:[%s1 + $0x738] sm:$0xff]
    %v303 = vld [vmem:[%s1 + $0x740] sm:$0xf]
    %v304 = vld [vmem:[%s1 + $0x744] sm:$0xff]
    %v305 = vld [vmem:[%s1 + $0x74c] sm:$0xff]
    %v306 = vld [vmem:[%s1 + $0x754] sm:$0xf]
    %v307 = vld [vmem:[%s1 + $0x758] sm:$0xff]
    %v308 = vld [vmem:[%s1 + $0x760] sm:$0xff]
    %v309 = vld [vmem:[%s1 + $0x768] sm:$0xf]
    %v310 = vld [vmem:[%s1 + $0x76c] sm:$0xff]
    %v311 = vld [vmem:[%s1 + $0x774] sm:$0xff]
    %v312 = vld [vmem:[%s1 + $0x77c] sm:$0xf]
    %v313 = vld [vmem:[%s1 + $0x780] sm:$0xff]
    %v314 = vld [vmem:[%s1 + $0x788] sm:$0xff]
    %v315 = vld [vmem:[%s1 + $0x790] sm:$0xf]
    %v316 = vld [vmem:[%s1 + $0x794] sm:$0xff]
    %v317 = vld [vmem:[%s1 + $0x79c] sm:$0xff]
    %v318 = vld [vmem:[%s1 + $0x7a4] sm:$0xf]
    %v319 = vld [vmem:[%s1 + $0x7a8] sm:$0xff]
    %v320 = vld [vmem:[%s1 + $0x7b0] sm:$0xff]
    %v321 = vld [vmem:[%s1 + $0x7b8] sm:$0xf]
    %v322 = vld [vmem:[%s1 + $0x7bc] sm:$0xff]
    %v323 = vld [vmem:[%s1 + $0x7c4] sm:$0xff]
    %v324 = vld [vmem:[%s1 + $0x7cc] sm:$0xf]
    %v325 = vld [vmem:[%s1 + $0x7d0] sm:$0xff]
    %v326 = vld [vmem:[%s1 + $0x7d8] sm:$0xff]
    %v327 = vld [vmem:[%s1 + $0x7e0] sm:$0xf]
    %v328 = vld [vmem:[%s1 + $0x7e4] sm:$0xff]
    %v329 = vld [vmem:[%s1 + $0x7ec] sm:$0xff]
    %v330 = vld [vmem:[%s1 + $0x7f4] sm:$0xf]
    %v331 = vld [vmem:[%s1 + $0x7f8] sm:$0xff]
    %v332 = vld [vmem:[%s1 + $0x800] sm:$0xff]
    %v333 = vld [vmem:[%s1 + $0x808] sm:$0xf]
    %v334 = vld [vmem:[%s1 + $0x80c] sm:$0xff]
    %v335 = vld [vmem:[%s1 + $0x814] sm:$0xff]
    %v336 = vld [vmem:[%s1 + $0x81c] sm:$0xf]
    %v337 = vld [vmem:[%s1 + $0x820] sm:$0xff]
    %v338 = vld [vmem:[%s1 + $0x828] sm:$0xff]
    %v339 = vld [vmem:[%s1 + $0x830] sm:$0xf]
    %v340 = vld [vmem:[%s1 + $0x834] sm:$0xff]
    %v341 = vld [vmem:[%s1 + $0x83c] sm:$0xff]
    %v342 = vld [vmem:[%s1 + $0x844] sm:$0xf]
    %v343 = vld [vmem:[%s1 + $0x848] sm:$0xff]
    %v344 = vld [vmem:[%s1 + $0x850] sm:$0xff]
    %v345 = vld [vmem:[%s1 + $0x858] sm:$0xf]
    %v346 = vld [vmem:[%s1 + $0x85c] sm:$0xff]
    %v347 = vld [vmem:[%s1 + $0x864] sm:$0xff]
    %v348 = vld [vmem:[%s1 + $0x86c] sm:$0xf]
    %v349 = vld [vmem:[%s1 + $0x870] sm:$0xff]
    %v350 = vld [vmem:[%s1 + $0x878] sm:$0xff]
    %v351 = vld [vmem:[%s1 + $0x880] sm:$0xf]
    %v352 = vld [vmem:[%s1 + $0x884] sm:$0xff]
    %v353 = vld [vmem:[%s1 + $0x88c] sm:$0xff]
    %v354 = vld [vmem:[%s1 + $0x894] sm:$0xf]
    %v355 = vld [vmem:[%s1 + $0x898] sm:$0xff]
    %v356 = vld [vmem:[%s1 + $0x8a0] sm:$0xff]
    %v357 = vld [vmem:[%s1 + $0x8a8] sm:$0xf]
    %v358 = vld [vmem:[%s1 + $0x8ac] sm:$0xff]
    %v359 = vld [vmem:[%s1 + $0x8b4] sm:$0xff]
    %v360 = vld [vmem:[%s1 + $0x8bc] sm:$0xf]
    %v361 = vld [vmem:[%s1 + $0x8c0] sm:$0xff]
    %v362 = vld [vmem:[%s1 + $0x8c8] sm:$0xff]
    %v363 = vld [vmem:[%s1 + $0x8d0] sm:$0xf]
    %v364 = vld [vmem:[%s1 + $0x8d4] sm:$0xff]
    %v365 = vld [vmem:[%s1 + $0x8dc] sm:$0xff]
    %v366 = vld [vmem:[%s1 + $0x8e4] sm:$0xf]
    %v367 = vld [vmem:[%s1 + $0x8e8] sm:$0xff]
    %v368 = vld [vmem:[%s1 + $0x8f0] sm:$0xff]
    %v369 = vld [vmem:[%s1 + $0x8f8] sm:$0xf]
    %v370 = vld [vmem:[%s1 + $0x8fc] sm:$0xff]
    %v371 = vld [vmem:[%s1 + $0x904] sm:$0xff]
    %v372 = vld [vmem:[%s1 + $0x90c] sm:$0xf]
    %v373 = vld [vmem:[%s1 + $0x910] sm:$0xff]
    %v374 = vld [vmem:[%s1 + $0x918] sm:$0xff]
    %v375 = vld [vmem:[%s1 + $0x920] sm:$0xf]
    %v376 = vld [vmem:[%s1 + $0x924] sm:$0xff]
    %v377 = vld [vmem:[%s1 + $0x92c] sm:$0xff]
    %v378 = vld [vmem:[%s1 + $0x934] sm:$0xf]
    %v379 = vld [vmem:[%s1 + $0x938] sm:$0xff]
    %v380 = vld [vmem:[%s1 + $0x940] sm:$0xff]
    %v381 = vld [vmem:[%s1 + $0x948] sm:$0xf]
    %v382 = vld [vmem:[%s1 + $0x94c] sm:$0xff]
    %v383 = vld [vmem:[%s1 + $0x954] sm:$0xff]
    %v384 = vld [vmem:[%s1 + $0x95c] sm:$0xf]
    %v385 = vld [vmem:[%s1 + $0x960] sm:$0xff]
    %v386 = vld [vmem:[%s1 + $0x968] sm:$0xff]
    %v387 = vld [vmem:[%s1 + $0x970] sm:$0xf]
    %v388 = vld [vmem:[%s1 + $0x974] sm:$0xff]
    %v389 = vld [vmem:[%s1 + $0x97c] sm:$0xff]
    %v390 = vld [vmem:[%s1 + $0x984] sm:$0xf]
    %v391 = vld [vmem:[%s1 + $0x988] sm:$0xff]
    %v392 = vld [vmem:[%s1 + $0x990] sm:$0xff]
    %v393 = vld [vmem:[%s1 + $0x998] sm:$0xf]
    %v394 = vld [vmem:[%s1 + $0x99c] sm:$0xff]
    %v395 = vld [vmem:[%s1 + $0x9a4] sm:$0xff]
    %v396 = vld [vmem:[%s1 + $0x9ac] sm:$0xf]
    %v397 = vld [vmem:[%s1 + $0x9b0] sm:$0xff]
    %v398 = vld [vmem:[%s1 + $0x9b8] sm:$0xff]
    %v399 = vld [vmem:[%s1 + $0x9c0] sm:$0xf]
    %v400 = vld [vmem:[%s1 + $0x9c4] sm:$0xff]
    %v401 = vld [vmem:[%s1 + $0x9cc] sm:$0xff]
    %v402 = vld [vmem:[%s1 + $0x9d4] sm:$0xf]
    %v403 = vld [vmem:[%s1 + $0x9d8] sm:$0xff]
    %v404 = vld [vmem:[%s1 + $0x9e0] sm:$0xff]
    %v405 = vld [vmem:[%s1 + $0x9e8] sm:$0xf]
    %v406 = vld [vmem:[%s1 + $0x9ec] sm:$0xff]
    %v407 = vld [vmem:[%s1 + $0x9f4] sm:$0xff]
    %v408 = vld [vmem:[%s1 + $0x9fc] sm:$0xf]
    %v409 = vld [vmem:[%s1 + $0xa00] sm:$0xff]
    %v410 = vld [vmem:[%s1 + $0xa08] sm:$0xff]
    %v411 = vld [vmem:[%s1 + $0xa10] sm:$0xf]
    %v412 = vld [vmem:[%s1 + $0xa14] sm:$0xff]
    %v413 = vld [vmem:[%s1 + $0xa1c] sm:$0xff]
    %v414 = vld [vmem:[%s1 + $0xa24] sm:$0xf]
    %v415 = vld [vmem:[%s1 + $0xa28] sm:$0xff]
    %v416 = vld [vmem:[%s1 + $0xa30] sm:$0xff]
    %v417 = vld [vmem:[%s1 + $0xa38] sm:$0xf]
    %v418 = vld [vmem:[%s1 + $0xa3c] sm:$0xff]
    %v419 = vld [vmem:[%s1 + $0xa44] sm:$0xff]
    %v420 = vld [vmem:[%s1 + $0xa4c] sm:$0xf]
    %v421 = vld [vmem:[%s1 + $0xa50] sm:$0xff]
    %v422 = vld [vmem:[%s1 + $0xa58] sm:$0xff]
    %v423 = vld [vmem:[%s1 + $0xa60] sm:$0xf]
    %v424 = vld [vmem:[%s1 + $0xa64] sm:$0xff]
    %v425 = vld [vmem:[%s1 + $0xa6c] sm:$0xff]
    %v426 = vld [vmem:[%s1 + $0xa74] sm:$0xf]
    %v427 = vld [vmem:[%s1 + $0xa78] sm:$0xff]
    %v428 = vld [vmem:[%s1 + $0xa80] sm:$0xff]
    %v429 = vld [vmem:[%s1 + $0xa88] sm:$0xf]
    %v430 = vld [vmem:[%s1 + $0xa8c] sm:$0xff]
    %v431 = vld [vmem:[%s1 + $0xa94] sm:$0xff]
    %v432 = vld [vmem:[%s1 + $0xa9c] sm:$0xf]
    %v433 = vld [vmem:[%s1 + $0xaa0] sm:$0xff]
    %v434 = vld [vmem:[%s1 + $0xaa8] sm:$0xff]
    %v435 = vld [vmem:[%s1 + $0xab0] sm:$0xf]
    %v436 = vld [vmem:[%s1 + $0xab4] sm:$0xff]
    %v437 = vld [vmem:[%s1 + $0xabc] sm:$0xff]
    %v438 = vld [vmem:[%s1 + $0xac4] sm:$0xf]
    %v439 = vld [vmem:[%s1 + $0xac8] sm:$0xff]
    %v440 = vld [vmem:[%s1 + $0xad0] sm:$0xff]
    %v441 = vld [vmem:[%s1 + $0xad8] sm:$0xf]
    %v442 = vld [vmem:[%s1 + $0xadc] sm:$0xff]
    %v443 = vld [vmem:[%s1 + $0xae4] sm:$0xff]
    %v444 = vld [vmem:[%s1 + $0xaec] sm:$0xf]
    %v445 = vld [vmem:[%s1 + $0xaf0] sm:$0xff]
    %v446 = vld [vmem:[%s1 + $0xaf8] sm:$0xff]
    %v447 = vld [vmem:[%s1 + $0xb00] sm:$0xf]
    %v448 = vld [vmem:[%s1 + $0xb04] sm:$0xff]
    %v449 = vld [vmem:[%s1 + $0xb0c] sm:$0xff]
    %v450 = vld [vmem:[%s1 + $0xb14] sm:$0xf]
    %v451 = vld [vmem:[%s1 + $0xb18] sm:$0xff]
    %v452 = vld [vmem:[%s1 + $0xb20] sm:$0xff]
    %v453 = vld [vmem:[%s1 + $0xb28] sm:$0xf]
    %v454 = vld [vmem:[%s1 + $0xb2c] sm:$0xff]
    %v455 = vld [vmem:[%s1 + $0xb34] sm:$0xff]
    %v456 = vld [vmem:[%s1 + $0xb3c] sm:$0xf]
    %v457 = vld [vmem:[%s1 + $0xb40] sm:$0xff]
    %v458 = vld [vmem:[%s1 + $0xb48] sm:$0xff]
    %v459 = vld [vmem:[%s1 + $0xb50] sm:$0xf]
    %v460 = vld [vmem:[%s1 + $0xb54] sm:$0xff]
    %v461 = vld [vmem:[%s1 + $0xb5c] sm:$0xff]
    %v462 = vld [vmem:[%s1 + $0xb64] sm:$0xf]
    %v463 = vld [vmem:[%s1 + $0xb68] sm:$0xff]
    %v464 = vld [vmem:[%s1 + $0xb70] sm:$0xff]
    %v465 = vld [vmem:[%s1 + $0xb78] sm:$0xf]
    %v466 = vld [vmem:[%s1 + $0xb7c] sm:$0xff]
    %v467 = vld [vmem:[%s1 + $0xb84] sm:$0xff]
    %v468 = vld [vmem:[%s1 + $0xb8c] sm:$0xf]
    %v469 = vld [vmem:[%s1 + $0xb90] sm:$0xff]
    %v470 = vld [vmem:[%s1 + $0xb98] sm:$0xff]
    %v471 = vld [vmem:[%s1 + $0xba0] sm:$0xf]
    %v472 = vld [vmem:[%s1 + $0xba4] sm:$0xff]
    %v473 = vld [vmem:[%s1 + $0xbac] sm:$0xff]
    %v474 = vld [vmem:[%s1 + $0xbb4] sm:$0xf]
    %v475 = vld [vmem:[%s1 + $0xbb8] sm:$0xff]
    %v476 = vld [vmem:[%s1 + $0xbc0] sm:$0xff]
    %v477 = vld [vmem:[%s1 + $0xbc8] sm:$0xf]
    %v478 = vld [vmem:[%s1 + $0xbcc] sm:$0xff]
    %v479 = vld [vmem:[%s1 + $0xbd4] sm:$0xff]
    %v480 = vld [vmem:[%s1 + $0xbdc] sm:$0xf]
    %v481 = vld [vmem:[%s1 + $0xbe0] sm:$0xff]
    %v482 = vld [vmem:[%s1 + $0xbe8] sm:$0xff]
    %v483 = vld [vmem:[%s1 + $0xbf0] sm:$0xf]
    %v484 = vld [vmem:[%s1 + $0xbf4] sm:$0xff]
    %v485 = vld [vmem:[%s1 + $0xbfc] sm:$0xff]
    %v486 = vld [vmem:[%s1 + $0xc04] sm:$0xf]
    %v487 = vld [vmem:[%s1 + $0xc08] sm:$0xff]
    %v488 = vld [vmem:[%s1 + $0xc10] sm:$0xff]
    %v489 = vld [vmem:[%s1 + $0xc18] sm:$0xf]
    %v490 = vld [vmem:[%s1 + $0xc1c] sm:$0xff]
    %v491 = vld [vmem:[%s1 + $0xc24] sm:$0xff]
    %v492 = vld [vmem:[%s1 + $0xc2c] sm:$0xf]
    %v493 = vld [vmem:[%s1 + $0xc30] sm:$0xff]
    %v494 = vld [vmem:[%s1 + $0xc38] sm:$0xff]
    %v495 = vld [vmem:[%s1 + $0xc40] sm:$0xf]
    %v496 = vld [vmem:[%s1 + $0xc44] sm:$0xff]
    %v497 = vld [vmem:[%s1 + $0xc4c] sm:$0xff]
    %v498 = vld [vmem:[%s1 + $0xc54] sm:$0xf]
    %v499 = vld [vmem:[%s1 + $0xc58] sm:$0xff]
    %v500 = vld [vmem:[%s1 + $0xc60] sm:$0xff]
    %v501 = vld [vmem:[%s1 + $0xc68] sm:$0xf]
    %v502 = vld [vmem:[%s1 + $0xc6c] sm:$0xff]
    %v503 = vld [vmem:[%s1 + $0xc74] sm:$0xff]
    %v504 = vld [vmem:[%s1 + $0xc7c] sm:$0xf]
    %v505 = vld [vmem:[%s1 + $0xc80] sm:$0xff]
    %v506 = vld [vmem:[%s1 + $0xc88] sm:$0xff]
    %v507 = vld [vmem:[%s1 + $0xc90] sm:$0xf]
    %v508 = vld [vmem:[%s1 + $0xc94] sm:$0xff]
    %v509 = vld [vmem:[%s1 + $0xc9c] sm:$0xff]
    %v510 = vld [vmem:[%s1 + $0xca4] sm:$0xf]
    %v511 = vld [vmem:[%s1 + $0xca8] sm:$0xff]
    %v512 = vld [vmem:[%s1 + $0xcb0] sm:$0xff]
    %v513 = vld [vmem:[%s1 + $0xcb8] sm:$0xf]
    %v514 = vld [vmem:[%s1 + $0xcbc] sm:$0xff]
    %v515 = vld [vmem:[%s1 + $0xcc4] sm:$0xff]
    %v516 = vld [vmem:[%s1 + $0xccc] sm:$0xf]
    %v517 = vld [vmem:[%s1 + $0xcd0] sm:$0xff]
    %v518 = vld [vmem:[%s1 + $0xcd8] sm:$0xff]
    %v519 = vld [vmem:[%s1 + $0xce0] sm:$0xf]
    %v520 = vld [vmem:[%s1 + $0xce4] sm:$0xff]
    %v521 = vld [vmem:[%s1 + $0xcec] sm:$0xff]
    %v522 = vld [vmem:[%s1 + $0xcf4] sm:$0xf]
    %v523 = vld [vmem:[%s1 + $0xcf8] sm:$0xff]
    %v524 = vld [vmem:[%s1 + $0xd00] sm:$0xff]
    %v525 = vld [vmem:[%s1 + $0xd08] sm:$0xf]
    %v526 = vld [vmem:[%s1 + $0xd0c] sm:$0xff]
    %v527 = vld [vmem:[%s1 + $0xd14] sm:$0xff]
    %v528 = vld [vmem:[%s1 + $0xd1c] sm:$0xf]
    %v529 = vld [vmem:[%s1 + $0xd20] sm:$0xff]
    %v530 = vld [vmem:[%s1 + $0xd28] sm:$0xff]
    %v531 = vld [vmem:[%s1 + $0xd30] sm:$0xf]
    %v532 = vld [vmem:[%s1 + $0xd34] sm:$0xff]
    %v533 = vld [vmem:[%s1 + $0xd3c] sm:$0xff]
    %v534 = vld [vmem:[%s1 + $0xd44] sm:$0xf]
    %v535 = vld [vmem:[%s1 + $0xd48] sm:$0xff]
    %v536 = vld [vmem:[%s1 + $0xd50] sm:$0xff]
    %v537 = vld [vmem:[%s1 + $0xd58] sm:$0xf]
    %v538 = vld [vmem:[%s1 + $0xd5c] sm:$0xff]
    %v539 = vld [vmem:[%s1 + $0xd64] sm:$0xff]
    %v540 = vld [vmem:[%s1 + $0xd6c] sm:$0xf]
    %v541 = vld [vmem:[%s1 + $0xd70] sm:$0xff]
    %v542 = vld [vmem:[%s1 + $0xd78] sm:$0xff]
    %v543 = vld [vmem:[%s1 + $0xd80] sm:$0xf]
    %v544 = vld [vmem:[%s1 + $0xd84] sm:$0xff]
    %v545 = vld [vmem:[%s1 + $0xd8c] sm:$0xff]
    %v546 = vld [vmem:[%s1 + $0xd94] sm:$0xf]
    %v547 = vld [vmem:[%s1 + $0xd98] sm:$0xff]
    %v548 = vld [vmem:[%s1 + $0xda0] sm:$0xff]
    %v549 = vld [vmem:[%s1 + $0xda8] sm:$0xf]
    %v550 = vld [vmem:[%s1 + $0xdac] sm:$0xff]
    %v551 = vld [vmem:[%s1 + $0xdb4] sm:$0xff]
    %v552 = vld [vmem:[%s1 + $0xdbc] sm:$0xf]
    %v553 = vld [vmem:[%s1 + $0xdc0] sm:$0xff]
    %v554 = vld [vmem:[%s1 + $0xdc8] sm:$0xff]
    %v555 = vld [vmem:[%s1 + $0xdd0] sm:$0xf]
    %v556 = vld [vmem:[%s1 + $0xdd4] sm:$0xff]
    %v557 = vld [vmem:[%s1 + $0xddc] sm:$0xff]
    %v558 = vld [vmem:[%s1 + $0xde4] sm:$0xf]
    %v559 = vld [vmem:[%s1 + $0xde8] sm:$0xff]
    %v560 = vld [vmem:[%s1 + $0xdf0] sm:$0xff]
    %v561 = vld [vmem:[%s1 + $0xdf8] sm:$0xf]
    %v562 = vld [vmem:[%s1 + $0xdfc] sm:$0xff]
    %v563 = vld [vmem:[%s1 + $0xe04] sm:$0xff]
    %v564 = vld [vmem:[%s1 + $0xe0c] sm:$0xf]
    %v565 = vld [vmem:[%s1 + $0xe10] sm:$0xff]
    %v566 = vld [vmem:[%s1 + $0xe18] sm:$0xff]
    %v567 = vld [vmem:[%s1 + $0xe20] sm:$0xf]
    %v568 = vld [vmem:[%s1 + $0xe24] sm:$0xff]
    %v569 = vld [vmem:[%s1 + $0xe2c] sm:$0xff]
    %v570 = vld [vmem:[%s1 + $0xe34] sm:$0xf]
    %v571 = vld [vmem:[%s1 + $0xe38] sm:$0xff]
    %v572 = vld [vmem:[%s1 + $0xe40] sm:$0xff]
    %v573 = vld [vmem:[%s1 + $0xe48] sm:$0xf]
    %v574 = vld [vmem:[%s1 + $0xe4c] sm:$0xff]
    %v575 = vld [vmem:[%s1 + $0xe54] sm:$0xff]
    %v576 = vld [vmem:[%s1 + $0xe5c] sm:$0xf]
    %v577 = vld [vmem:[%s1 + $0xe60] sm:$0xff]
    %v578 = vld [vmem:[%s1 + $0xe68] sm:$0xff]
    %v579 = vld [vmem:[%s1 + $0xe70] sm:$0xf]
    %v580 = vld [vmem:[%s1 + $0xe74] sm:$0xff]
    %v581 = vld [vmem:[%s1 + $0xe7c] sm:$0xff]
    %v582 = vld [vmem:[%s1 + $0xe84] sm:$0xf]
    %v583 = vld [vmem:[%s1 + $0xe88] sm:$0xff]
    %v584 = vld [vmem:[%s1 + $0xe90] sm:$0xff]
    %v585 = vld [vmem:[%s1 + $0xe98] sm:$0xf]
    %v586 = vld [vmem:[%s1 + $0xe9c] sm:$0xff]
    %v587 = vld [vmem:[%s1 + $0xea4] sm:$0xff]
    %v588 = vld [vmem:[%s1 + $0xeac] sm:$0xf]
    %v589 = vld [vmem:[%s1 + $0xeb0] sm:$0xff]
    %v590 = vld [vmem:[%s1 + $0xeb8] sm:$0xff]
    %v591 = vld [vmem:[%s1 + $0xec0] sm:$0xf]
    %v592 = vld [vmem:[%s1 + $0xec4] sm:$0xff]
    %v593 = vld [vmem:[%s1 + $0xecc] sm:$0xff]
    %v594 = vld [vmem:[%s1 + $0xed4] sm:$0xf]
    %v595 = vld [vmem:[%s1 + $0xed8] sm:$0xff]
    %v596 = vld [vmem:[%s1 + $0xee0] sm:$0xff]
    %v597 = vld [vmem:[%s1 + $0xee8] sm:$0xf]
    %v598 = vld [vmem:[%s1 + $0xeec] sm:$0xff]
    %v599 = vld [vmem:[%s1 + $0xef4] sm:$0xff]
    %v600 = vld [vmem:[%s1 + $0xefc] sm:$0xf]
    %v601 = vld [vmem:[%s1 + $0xf00] sm:$0xff]
    %v602 = vld [vmem:[%s1 + $0xf08] sm:$0xff]
    %v603 = vld [vmem:[%s1 + $0xf10] sm:$0xf]
    %v604 = vld [vmem:[%s1 + $0xf14] sm:$0xff]
    %v605 = vld [vmem:[%s1 + $0xf1c] sm:$0xff]
    %v606 = vld [vmem:[%s1 + $0xf24] sm:$0xf]
    %v607 = vld [vmem:[%s1 + $0xf28] sm:$0xff]
    %v608 = vld [vmem:[%s1 + $0xf30] sm:$0xff]
    %v609 = vld [vmem:[%s1 + $0xf38] sm:$0xf]
    %v610 = vld [vmem:[%s1 + $0xf3c] sm:$0xff]
    %v611 = vld [vmem:[%s1 + $0xf44] sm:$0xff]
    %v612 = vld [vmem:[%s1 + $0xf4c] sm:$0xf]
    %v613 = vld [vmem:[%s1 + $0xf50] sm:$0xff]
    %v614 = vld [vmem:[%s1 + $0xf58] sm:$0xff]
    %v615 = vld [vmem:[%s1 + $0xf60] sm:$0xf]
    %v616 = vld [vmem:[%s1 + $0xf64] sm:$0xff]
    %v617 = vld [vmem:[%s1 + $0xf6c] sm:$0xff]
    %v618 = vld [vmem:[%s1 + $0xf74] sm:$0xf]
    %v619 = vld [vmem:[%s1 + $0xf78] sm:$0xff]
    %v620 = vld [vmem:[%s1 + $0xf80] sm:$0xff]
    %v621 = vld [vmem:[%s1 + $0xf88] sm:$0xf]
    %v622 = vld [vmem:[%s1 + $0xf8c] sm:$0xff]
    %v623 = vld [vmem:[%s1 + $0xf94] sm:$0xff]
    %v624 = vld [vmem:[%s1 + $0xf9c] sm:$0xf]
    %v625 = vld [vmem:[%s1 + $0xfa0] sm:$0xff]
    %v626 = vld [vmem:[%s1 + $0xfa8] sm:$0xff]
    %v627 = vld [vmem:[%s1 + $0xfb0] sm:$0xf]
    %v628 = vld [vmem:[%s1 + $0xfb4] sm:$0xff]
    %v629 = vld [vmem:[%s1 + $0xfbc] sm:$0xff]
    %v630 = vld [vmem:[%s1 + $0xfc4] sm:$0xf]
    %v631 = vld [vmem:[%s1 + $0xfc8] sm:$0xff]
    %v632 = vld [vmem:[%s1 + $0xfd0] sm:$0xff]
    %v633 = vld [vmem:[%s1 + $0xfd8] sm:$0xf]
    %v634 = vld [vmem:[%s1 + $0xfdc] sm:$0xff]
    %v635 = vld [vmem:[%s1 + $0xfe4] sm:$0xff]
    %v636 = vld [vmem:[%s1 + $0xfec] sm:$0xf]
    %v637 = vld [vmem:[%s1 + $0xff0] sm:$0xff]
    %v638 = vld [vmem:[%s1 + $0xff8] sm:$0xff]
    %v639 = vld [vmem:[%s1 + $0x1000] sm:$0xf]
    %v640 = vld [vmem:[%s1 + $0x1004] sm:$0xff]
    %v641 = vld [vmem:[%s1 + $0x100c] sm:$0xff]
    %v642 = vld [vmem:[%s1 + $0x1014] sm:$0xf]
    %v643 = vld [vmem:[%s1 + $0x1018] sm:$0xff]
    %v644 = vld [vmem:[%s1 + $0x1020] sm:$0xff]
    %v645 = vld [vmem:[%s1 + $0x1028] sm:$0xf]
    %v646 = vld [vmem:[%s1 + $0x102c] sm:$0xff]
    %v647 = vld [vmem:[%s1 + $0x1034] sm:$0xff]
    %v648 = vld [vmem:[%s1 + $0x103c] sm:$0xf]
    %v649 = vld [vmem:[%s1 + $0x1040] sm:$0xff]
    %v650 = vld [vmem:[%s1 + $0x1048] sm:$0xff]
    %v651 = vld [vmem:[%s1 + $0x1050] sm:$0xf]
    %v652 = vld [vmem:[%s1 + $0x1054] sm:$0xff]
    %v653 = vld [vmem:[%s1 + $0x105c] sm:$0xff]
    %v654 = vld [vmem:[%s1 + $0x1064] sm:$0xf]
    %v655 = vld [vmem:[%s1 + $0x1068] sm:$0xff]
    %v656 = vld [vmem:[%s1 + $0x1070] sm:$0xff]
    %v657 = vld [vmem:[%s1 + $0x1078] sm:$0xf]
    %v658 = vld [vmem:[%s1 + $0x107c] sm:$0xff]
    %v659 = vld [vmem:[%s1 + $0x1084] sm:$0xff]
    %v660 = vld [vmem:[%s1 + $0x108c] sm:$0xf]
    %v661 = vld [vmem:[%s1 + $0x1090] sm:$0xff]
    %v662 = vld [vmem:[%s1 + $0x1098] sm:$0xff]
    %v663 = vld [vmem:[%s1 + $0x10a0] sm:$0xf]
    %v664 = vld [vmem:[%s1 + $0x10a4] sm:$0xff]
    %v665 = vld [vmem:[%s1 + $0x10ac] sm:$0xff]
    %v666 = vld [vmem:[%s1 + $0x10b4] sm:$0xf]
    %v667 = vld [vmem:[%s1 + $0x10b8] sm:$0xff]
    %v668 = vld [vmem:[%s1 + $0x10c0] sm:$0xff]
    %v669 = vld [vmem:[%s1 + $0x10c8] sm:$0xf]
    %v670 = vld [vmem:[%s1 + $0x10cc] sm:$0xff]
    %v671 = vld [vmem:[%s1 + $0x10d4] sm:$0xff]
    %v672 = vld [vmem:[%s1 + $0x10dc] sm:$0xf]
    %v673 = vld [vmem:[%s1 + $0x10e0] sm:$0xff]
    %v674 = vld [vmem:[%s1 + $0x10e8] sm:$0xff]
    %v675 = vld [vmem:[%s1 + $0x10f0] sm:$0xf]
    %v676 = vld [vmem:[%s1 + $0x10f4] sm:$0xff]
    %v677 = vld [vmem:[%s1 + $0x10fc] sm:$0xff]
    %v678 = vld [vmem:[%s1 + $0x1104] sm:$0xf]
    %v679 = vld [vmem:[%s1 + $0x1108] sm:$0xff]
    %v680 = vld [vmem:[%s1 + $0x1110] sm:$0xff]
    %v681 = vld [vmem:[%s1 + $0x1118] sm:$0xf]
    %v682 = vld [vmem:[%s1 + $0x111c] sm:$0xff]
    %v683 = vld [vmem:[%s1 + $0x1124] sm:$0xff]
    %v684 = vld [vmem:[%s1 + $0x112c] sm:$0xf]
    %v685 = vld [vmem:[%s1 + $0x1130] sm:$0xff]
    %v686 = vld [vmem:[%s1 + $0x1138] sm:$0xff]
    %v687 = vld [vmem:[%s1 + $0x1140] sm:$0xf]
    %v688 = vld [vmem:[%s1 + $0x1144] sm:$0xff]
    %v689 = vld [vmem:[%s1 + $0x114c] sm:$0xff]
    %v690 = vld [vmem:[%s1 + $0x1154] sm:$0xf]
    %v691 = vld [vmem:[%s1 + $0x1158] sm:$0xff]
    %v692 = vld [vmem:[%s1 + $0x1160] sm:$0xff]
    %v693 = vld [vmem:[%s1 + $0x1168] sm:$0xf]
    %v694 = vld [vmem:[%s1 + $0x116c] sm:$0xff]
    %v695 = vld [vmem:[%s1 + $0x1174] sm:$0xff]
    %v696 = vld [vmem:[%s1 + $0x117c] sm:$0xf]
    %v697 = vld [vmem:[%s1 + $0x1180] sm:$0xff]
    %v698 = vld [vmem:[%s1 + $0x1188] sm:$0xff]
    %v699 = vld [vmem:[%s1 + $0x1190] sm:$0xf]
    %v700 = vld [vmem:[%s1 + $0x1194] sm:$0xff]
    %v701 = vld [vmem:[%s1 + $0x119c] sm:$0xff]
    %v702 = vld [vmem:[%s1 + $0x11a4] sm:$0xf]
    %v703 = vld [vmem:[%s1 + $0x11a8] sm:$0xff]
    %v704 = vld [vmem:[%s1 + $0x11b0] sm:$0xff]
    %v705 = vld [vmem:[%s1 + $0x11b8] sm:$0xf]
    %v706 = vld [vmem:[%s1 + $0x11bc] sm:$0xff]
    %v707 = vld [vmem:[%s1 + $0x11c4] sm:$0xff]
    %v708 = vld [vmem:[%s1 + $0x11cc] sm:$0xf]
    %v709 = vld [vmem:[%s1 + $0x11d0] sm:$0xff]
    %v710 = vld [vmem:[%s1 + $0x11d8] sm:$0xff]
    %v711 = vld [vmem:[%s1 + $0x11e0] sm:$0xf]
    %v712 = vld [vmem:[%s1 + $0x11e4] sm:$0xff]
    %v713 = vld [vmem:[%s1 + $0x11ec] sm:$0xff]
    %v714 = vld [vmem:[%s1 + $0x11f4] sm:$0xf]
    %v715 = vld [vmem:[%s1 + $0x11f8] sm:$0xff]
    %v716 = vld [vmem:[%s1 + $0x1200] sm:$0xff]
    %v717 = vld [vmem:[%s1 + $0x1208] sm:$0xf]
    %v718 = vld [vmem:[%s1 + $0x120c] sm:$0xff]
    %v719 = vld [vmem:[%s1 + $0x1214] sm:$0xff]
    %v720 = vld [vmem:[%s1 + $0x121c] sm:$0xf]
    %v721 = vld [vmem:[%s1 + $0x1220] sm:$0xff]
    %v722 = vld [vmem:[%s1 + $0x1228] sm:$0xff]
    %v723 = vld [vmem:[%s1 + $0x1230] sm:$0xf]
    %v724 = vld [vmem:[%s1 + $0x1234] sm:$0xff]
    %v725 = vld [vmem:[%s1 + $0x123c] sm:$0xff]
    %v726 = vld [vmem:[%s1 + $0x1244] sm:$0xf]
    %v727 = vld [vmem:[%s1 + $0x1248] sm:$0xff]
    %v728 = vld [vmem:[%s1 + $0x1250] sm:$0xff]
    %v729 = vld [vmem:[%s1 + $0x1258] sm:$0xf]
    %v730 = vld [vmem:[%s1 + $0x125c] sm:$0xff]
    %v731 = vld [vmem:[%s1 + $0x1264] sm:$0xff]
    %v732 = vld [vmem:[%s1 + $0x126c] sm:$0xf]
    %v733 = vld [vmem:[%s1 + $0x1270] sm:$0xff]
    %v734 = vld [vmem:[%s1 + $0x1278] sm:$0xff]
    %v735 = vld [vmem:[%s1 + $0x1280] sm:$0xf]
    %v736 = vld [vmem:[%s1 + $0x1284] sm:$0xff]
    %v737 = vld [vmem:[%s1 + $0x128c] sm:$0xff]
    %v738 = vld [vmem:[%s1 + $0x1294] sm:$0xf]
    %v739 = vld [vmem:[%s1 + $0x1298] sm:$0xff]
    %v740 = vld [vmem:[%s1 + $0x12a0] sm:$0xff]
    %v741 = vld [vmem:[%s1 + $0x12a8] sm:$0xf]
    %v742 = vld [vmem:[%s1 + $0x12ac] sm:$0xff]
    %v743 = vld [vmem:[%s1 + $0x12b4] sm:$0xff]
    %v744 = vld [vmem:[%s1 + $0x12bc] sm:$0xf]
    %v745 = vld [vmem:[%s1 + $0x12c0] sm:$0xff]
    %v746 = vld [vmem:[%s1 + $0x12c8] sm:$0xff]
    %v747 = vld [vmem:[%s1 + $0x12d0] sm:$0xf]
    %v748 = vld [vmem:[%s1 + $0x12d4] sm:$0xff]
    %v749 = vld [vmem:[%s1 + $0x12dc] sm:$0xff]
    %v750 = vld [vmem:[%s1 + $0x12e4] sm:$0xf]
    %v751 = vld [vmem:[%s1 + $0x12e8] sm:$0xff]
    %v752 = vld [vmem:[%s1 + $0x12f0] sm:$0xff]
    %v753 = vld [vmem:[%s1 + $0x12f8] sm:$0xf]
    %v754 = vld [vmem:[%s1 + $0x12fc] sm:$0xff]
    %v755 = vld [vmem:[%s1 + $0x1304] sm:$0xff]
    %v756 = vld [vmem:[%s1 + $0x130c] sm:$0xf]
    %v757 = vld [vmem:[%s1 + $0x1310] sm:$0xff]
    %v758 = vld [vmem:[%s1 + $0x1318] sm:$0xff]
    %v759 = vld [vmem:[%s1 + $0x1320] sm:$0xf]
    %v760 = vld [vmem:[%s1 + $0x1324] sm:$0xff]
    %v761 = vld [vmem:[%s1 + $0x132c] sm:$0xff]
    %v762 = vld [vmem:[%s1 + $0x1334] sm:$0xf]
    %v763 = vld [vmem:[%s1 + $0x1338] sm:$0xff]
    %v764 = vld [vmem:[%s1 + $0x1340] sm:$0xff]
    %v765 = vld [vmem:[%s1 + $0x1348] sm:$0xf]
    %v766 = vld [vmem:[%s1 + $0x134c] sm:$0xff]
    %v767 = vld [vmem:[%s1 + $0x1354] sm:$0xff]
    %v768 = vld [vmem:[%s1 + $0x135c] sm:$0xf]
    %v769 = vld [vmem:[%s1 + $0x1360] sm:$0xff]
    %v770 = vld [vmem:[%s1 + $0x1368] sm:$0xff]
    %v771 = vld [vmem:[%s1 + $0x1370] sm:$0xf]
    %v772 = vld [vmem:[%s1 + $0x1374] sm:$0xff]
    %v773 = vld [vmem:[%s1 + $0x137c] sm:$0xff]
    %v774 = vld [vmem:[%s1 + $0x1384] sm:$0xf]
    %v775 = vld [vmem:[%s1 + $0x1388] sm:$0xff]
    %v776 = vld [vmem:[%s1 + $0x1390] sm:$0xff]
    %v777 = vld [vmem:[%s1 + $0x1398] sm:$0xf]
    %v778 = vld [vmem:[%s1 + $0x139c] sm:$0xff]
    %v779 = vld [vmem:[%s1 + $0x13a4] sm:$0xff]
    %v780 = vld [vmem:[%s1 + $0x13ac] sm:$0xf]
    %v781 = vld [vmem:[%s1 + $0x13b0] sm:$0xff]
    %v782 = vld [vmem:[%s1 + $0x13b8] sm:$0xff]
    %v783 = vld [vmem:[%s1 + $0x13c0] sm:$0xf]
    %v784 = vld [vmem:[%s1 + $0x13c4] sm:$0xff]
    %v785 = vld [vmem:[%s1 + $0x13cc] sm:$0xff]
    %v786 = vld [vmem:[%s1 + $0x13d4] sm:$0xf]
    %v787 = vld [vmem:[%s1 + $0x13d8] sm:$0xff]
    %v788 = vld [vmem:[%s1 + $0x13e0] sm:$0xff]
    %v789 = vld [vmem:[%s1 + $0x13e8] sm:$0xf]
    %v790 = vld [vmem:[%s1 + $0x13ec] sm:$0xff]
    %v791 = vld [vmem:[%s1 + $0x13f4] sm:$0xff]
    %v792 = vld [vmem:[%s1 + $0x13fc] sm:$0xf]
    %v793 = vld [vmem:[%s1 + $0x1400] sm:$0xff]
    %v794 = vld [vmem:[%s1 + $0x1408] sm:$0xff]
    %v795 = vld [vmem:[%s1 + $0x1410] sm:$0xf]
    %v796 = vld [vmem:[%s1 + $0x1414] sm:$0xff]
    %v797 = vld [vmem:[%s1 + $0x141c] sm:$0xff]
    %v798 = vld [vmem:[%s1 + $0x1424] sm:$0xf]
    %v799 = vld [vmem:[%s1 + $0x1428] sm:$0xff]
    %v800 = vld [vmem:[%s1 + $0x1430] sm:$0xff]
    %v801 = vld [vmem:[%s1 + $0x1438] sm:$0xf]
    %v802 = vld [vmem:[%s1 + $0x143c] sm:$0xff]
    %v803 = vld [vmem:[%s1 + $0x1444] sm:$0xff]
    %v804 = vld [vmem:[%s1 + $0x144c] sm:$0xf]
    %v805 = vld [vmem:[%s1 + $0x1450] sm:$0xff]
    %v806 = vld [vmem:[%s1 + $0x1458] sm:$0xff]
    %v807 = vld [vmem:[%s1 + $0x1460] sm:$0xf]
    %v808 = vld [vmem:[%s1 + $0x1464] sm:$0xff]
    %v809 = vld [vmem:[%s1 + $0x146c] sm:$0xff]
    %v810 = vld [vmem:[%s1 + $0x1474] sm:$0xf]
    %v811 = vld [vmem:[%s1 + $0x1478] sm:$0xff]
    %v812 = vld [vmem:[%s1 + $0x1480] sm:$0xff]
    %v813 = vld [vmem:[%s1 + $0x1488] sm:$0xf]
    %v814 = vld [vmem:[%s1 + $0x148c] sm:$0xff]
    %v815 = vld [vmem:[%s1 + $0x1494] sm:$0xff]
    %v816 = vld [vmem:[%s1 + $0x149c] sm:$0xf]
    %v817 = vld [vmem:[%s1 + $0x14a0] sm:$0xff]
    %v818 = vld [vmem:[%s1 + $0x14a8] sm:$0xff]
    %v819 = vld [vmem:[%s1 + $0x14b0] sm:$0xf]
    %v820 = vld [vmem:[%s1 + $0x14b4] sm:$0xff]
    %v821 = vld [vmem:[%s1 + $0x14bc] sm:$0xff]
    %v822 = vld [vmem:[%s1 + $0x14c4] sm:$0xf]
    %v823 = vld [vmem:[%s1 + $0x14c8] sm:$0xff]
    %v824 = vld [vmem:[%s1 + $0x14d0] sm:$0xff]
    %v825 = vld [vmem:[%s1 + $0x14d8] sm:$0xf]
    %v826 = vld [vmem:[%s1 + $0x14dc] sm:$0xff]
    %v827 = vld [vmem:[%s1 + $0x14e4] sm:$0xff]
    %v828 = vld [vmem:[%s1 + $0x14ec] sm:$0xf]
    %v829 = vld [vmem:[%s1 + $0x14f0] sm:$0xff]
    %v830 = vld [vmem:[%s1 + $0x14f8] sm:$0xff]
    %v831 = vld [vmem:[%s1 + $0x1500] sm:$0xf]
    %v832 = vld [vmem:[%s1 + $0x1504] sm:$0xff]
    %v833 = vld [vmem:[%s1 + $0x150c] sm:$0xff]
    %v834 = vld [vmem:[%s1 + $0x1514] sm:$0xf]
    %v835 = vld [vmem:[%s1 + $0x1518] sm:$0xff]
    %v836 = vld [vmem:[%s1 + $0x1520] sm:$0xff]
    %v837 = vld [vmem:[%s1 + $0x1528] sm:$0xf]
    %v838 = vld [vmem:[%s1 + $0x152c] sm:$0xff]
    %v839 = vld [vmem:[%s1 + $0x1534] sm:$0xff]
    %v840 = vld [vmem:[%s1 + $0x153c] sm:$0xf]
    %v841 = vld [vmem:[%s1 + $0x1540] sm:$0xff]
    %v842 = vld [vmem:[%s1 + $0x1548] sm:$0xff]
    %v843 = vld [vmem:[%s1 + $0x1550] sm:$0xf]
    %v844 = vld [vmem:[%s1 + $0x1554] sm:$0xff]
    %v845 = vld [vmem:[%s1 + $0x155c] sm:$0xff]
    %v846 = vld [vmem:[%s1 + $0x1564] sm:$0xf]
    %v847 = vld [vmem:[%s1 + $0x1568] sm:$0xff]
    %v848 = vld [vmem:[%s1 + $0x1570] sm:$0xff]
    %v849 = vld [vmem:[%s1 + $0x1578] sm:$0xf]
    %v850 = vld [vmem:[%s1 + $0x157c] sm:$0xff]
    %v851 = vld [vmem:[%s1 + $0x1584] sm:$0xff]
    %v852 = vld [vmem:[%s1 + $0x158c] sm:$0xf]
    %v853 = vld [vmem:[%s1 + $0x1590] sm:$0xff]
    %v854 = vld [vmem:[%s1 + $0x1598] sm:$0xff]
    %v855 = vld [vmem:[%s1 + $0x15a0] sm:$0xf]
    %v856 = vld [vmem:[%s1 + $0x15a4] sm:$0xff]
    %v857 = vld [vmem:[%s1 + $0x15ac] sm:$0xff]
    %v858 = vld [vmem:[%s1 + $0x15b4] sm:$0xf]
    %v859 = vld [vmem:[%s1 + $0x15b8] sm:$0xff]
    %v860 = vld [vmem:[%s1 + $0x15c0] sm:$0xff]
    %v861 = vld [vmem:[%s1 + $0x15c8] sm:$0xf]
    %v862 = vld [vmem:[%s1 + $0x15cc] sm:$0xff]
    %v863 = vld [vmem:[%s1 + $0x15d4] sm:$0xff]
    %v864 = vld [vmem:[%s1 + $0x15dc] sm:$0xf]
    %v865 = vld [vmem:[%s1 + $0x15e0] sm:$0xff]
    %v866 = vld [vmem:[%s1 + $0x15e8] sm:$0xff]
    %v867 = vld [vmem:[%s1 + $0x15f0] sm:$0xf]
    %v868 = vld [vmem:[%s1 + $0x15f4] sm:$0xff]
    %v869 = vld [vmem:[%s1 + $0x15fc] sm:$0xff]
    %v870 = vld [vmem:[%s1 + $0x1604] sm:$0xf]
    %v871 = vld [vmem:[%s1 + $0x1608] sm:$0xff]
    %v872 = vld [vmem:[%s1 + $0x1610] sm:$0xff]
    %v873 = vld [vmem:[%s1 + $0x1618] sm:$0xf]
    %v874 = vld [vmem:[%s1 + $0x161c] sm:$0xff]
    %v875 = vld [vmem:[%s1 + $0x1624] sm:$0xff]
    %v876 = vld [vmem:[%s1 + $0x162c] sm:$0xf]
    %v877 = vld [vmem:[%s1 + $0x1630] sm:$0xff]
    %v878 = vld [vmem:[%s1 + $0x1638] sm:$0xff]
    %v879 = vld [vmem:[%s1 + $0x1640] sm:$0xf]
    %v880 = vld [vmem:[%s1 + $0x1644] sm:$0xff]
    %v881 = vld [vmem:[%s1 + $0x164c] sm:$0xff]
    %v882 = vld [vmem:[%s1 + $0x1654] sm:$0xf]
    %v883 = vld [vmem:[%s1 + $0x1658] sm:$0xff]
    %v884 = vld [vmem:[%s1 + $0x1660] sm:$0xff]
    %v885 = vld [vmem:[%s1 + $0x1668] sm:$0xf]
    %v886 = vld [vmem:[%s1 + $0x166c] sm:$0xff]
    %v887 = vld [vmem:[%s1 + $0x1674] sm:$0xff]
    %v888 = vld [vmem:[%s1 + $0x167c] sm:$0xf]
    %v889 = vld [vmem:[%s1 + $0x1680] sm:$0xff]
    %v890 = vld [vmem:[%s1 + $0x1688] sm:$0xff]
    %v891 = vld [vmem:[%s1 + $0x1690] sm:$0xf]
    %v892 = vld [vmem:[%s1 + $0x1694] sm:$0xff]
    %v893 = vld [vmem:[%s1 + $0x169c] sm:$0xff]
    %v894 = vld [vmem:[%s1 + $0x16a4] sm:$0xf]
    %v895 = vld [vmem:[%s1 + $0x16a8] sm:$0xff]
    %v896 = vld [vmem:[%s1 + $0x16b0] sm:$0xff]
    %v897 = vld [vmem:[%s1 + $0x16b8] sm:$0xf]
    %v898 = vld [vmem:[%s1 + $0x16bc] sm:$0xff]
    %v899 = vld [vmem:[%s1 + $0x16c4] sm:$0xff]
    %v900 = vld [vmem:[%s1 + $0x16cc] sm:$0xf]
    %v901 = vld [vmem:[%s1 + $0x16d0] sm:$0xff]
    %v902 = vld [vmem:[%s1 + $0x16d8] sm:$0xff]
    %v903 = vld [vmem:[%s1 + $0x16e0] sm:$0xf]
    %v904 = vld [vmem:[%s1 + $0x16e4] sm:$0xff]
    %v905 = vld [vmem:[%s1 + $0x16ec] sm:$0xff]
    %v906 = vld [vmem:[%s1 + $0x16f4] sm:$0xf]
    %v907 = vld [vmem:[%s1 + $0x16f8] sm:$0xff]
    %v908 = vld [vmem:[%s1 + $0x1700] sm:$0xff]
    %v909 = vld [vmem:[%s1 + $0x1708] sm:$0xf]
    %v910 = vld [vmem:[%s1 + $0x170c] sm:$0xff]
    %v911 = vld [vmem:[%s1 + $0x1714] sm:$0xff]
    %v912 = vld [vmem:[%s1 + $0x171c] sm:$0xf]
    %v913 = vld [vmem:[%s1 + $0x1720] sm:$0xff]
    %v914 = vld [vmem:[%s1 + $0x1728] sm:$0xff]
    %v915 = vld [vmem:[%s1 + $0x1730] sm:$0xf]
    %v916 = vld [vmem:[%s1 + $0x1734] sm:$0xff]
    %v917 = vld [vmem:[%s1 + $0x173c] sm:$0xff]
    %v918 = vld [vmem:[%s1 + $0x1744] sm:$0xf]
    %v919 = vld [vmem:[%s1 + $0x1748] sm:$0xff]
    %v920 = vld [vmem:[%s1 + $0x1750] sm:$0xff]
    %v921 = vld [vmem:[%s1 + $0x1758] sm:$0xf]
    %v922 = vld [vmem:[%s1 + $0x175c] sm:$0xff]
    %v923 = vld [vmem:[%s1 + $0x1764] sm:$0xff]
    %v924 = vld [vmem:[%s1 + $0x176c] sm:$0xf]
    %v925 = vld [vmem:[%s1 + $0x1770] sm:$0xff]
    %v926 = vld [vmem:[%s1 + $0x1778] sm:$0xff]
    %v927 = vld [vmem:[%s1 + $0x1780] sm:$0xf]
    %v928 = vld [vmem:[%s1 + $0x1784] sm:$0xff]
    %v929 = vld [vmem:[%s1 + $0x178c] sm:$0xff]
    %v930 = vld [vmem:[%s1 + $0x1794] sm:$0xf]
    %v931 = vld [vmem:[%s1 + $0x1798] sm:$0xff]
    %v932 = vld [vmem:[%s1 + $0x17a0] sm:$0xff]
    %v933 = vld [vmem:[%s1 + $0x17a8] sm:$0xf]
    %v934 = vld [vmem:[%s1 + $0x17ac] sm:$0xff]
    %v935 = vld [vmem:[%s1 + $0x17b4] sm:$0xff]
    %v936 = vld [vmem:[%s1 + $0x17bc] sm:$0xf]
    %v937 = vld [vmem:[%s1 + $0x17c0] sm:$0xff]
    %v938 = vld [vmem:[%s1 + $0x17c8] sm:$0xff]
    %v939 = vld [vmem:[%s1 + $0x17d0] sm:$0xf]
    %v940 = vld [vmem:[%s1 + $0x17d4] sm:$0xff]
    %v941 = vld [vmem:[%s1 + $0x17dc] sm:$0xff]
    %v942 = vld [vmem:[%s1 + $0x17e4] sm:$0xf]
    %v943 = vld [vmem:[%s1 + $0x17e8] sm:$0xff]
    %v944 = vld [vmem:[%s1 + $0x17f0] sm:$0xff]
    %v945 = vld [vmem:[%s1 + $0x17f8] sm:$0xf]
    %v946 = vld [vmem:[%s1 + $0x17fc] sm:$0xff]
    %v947 = vld [vmem:[%s1 + $0x1804] sm:$0xff]
    %v948 = vld [vmem:[%s1 + $0x180c] sm:$0xf]
    %v949 = vld [vmem:[%s1 + $0x1810] sm:$0xff]
    %v950 = vld [vmem:[%s1 + $0x1818] sm:$0xff]
    %v951 = vld [vmem:[%s1 + $0x1820] sm:$0xf]
    %v952 = vld [vmem:[%s1 + $0x1824] sm:$0xff]
    %v953 = vld [vmem:[%s1 + $0x182c] sm:$0xff]
    %v954 = vld [vmem:[%s1 + $0x1834] sm:$0xf]
    %v955 = vld [vmem:[%s1 + $0x1838] sm:$0xff]
    %v956 = vld [vmem:[%s1 + $0x1840] sm:$0xff]
    %v957 = vld [vmem:[%s1 + $0x1848] sm:$0xf]
    %v958 = vld [vmem:[%s1 + $0x184c] sm:$0xff]
    %v959 = vld [vmem:[%s1 + $0x1854] sm:$0xff]
    %v960 = vld [vmem:[%s1 + $0x185c] sm:$0xf]
    %v961 = vld [vmem:[%s1 + $0x1860] sm:$0xff]
    %v962 = vld [vmem:[%s1 + $0x1868] sm:$0xff]
    %v963 = vld [vmem:[%s1 + $0x1870] sm:$0xf]
    %v964 = vld [vmem:[%s1 + $0x1874] sm:$0xff]
    %v965 = vld [vmem:[%s1 + $0x187c] sm:$0xff]
    %v966 = vld [vmem:[%s1 + $0x1884] sm:$0xf]
    %v967 = vld [vmem:[%s1 + $0x1888] sm:$0xff]
    %v968 = vld [vmem:[%s1 + $0x1890] sm:$0xff]
    %v969 = vld [vmem:[%s1 + $0x1898] sm:$0xf]
    %v970 = vld [vmem:[%s1 + $0x189c] sm:$0xff]
    %v971 = vld [vmem:[%s1 + $0x18a4] sm:$0xff]
    %v972 = vld [vmem:[%s1 + $0x18ac] sm:$0xf]
    %v973 = vld [vmem:[%s1 + $0x18b0] sm:$0xff]
    %v974 = vld [vmem:[%s1 + $0x18b8] sm:$0xff]
    %v975 = vld [vmem:[%s1 + $0x18c0] sm:$0xf]
    %v976 = vld [vmem:[%s1 + $0x18c4] sm:$0xff]
    %v977 = vld [vmem:[%s1 + $0x18cc] sm:$0xff]
    %v978 = vld [vmem:[%s1 + $0x18d4] sm:$0xf]
    %v979 = vld [vmem:[%s1 + $0x18d8] sm:$0xff]
    %v980 = vld [vmem:[%s1 + $0x18e0] sm:$0xff]
    %v981 = vld [vmem:[%s1 + $0x18e8] sm:$0xf]
    %v982 = vld [vmem:[%s1 + $0x18ec] sm:$0xff]
    %v983 = vld [vmem:[%s1 + $0x18f4] sm:$0xff]
    %v984 = vld [vmem:[%s1 + $0x18fc] sm:$0xf]
    %v985 = vld [vmem:[%s1 + $0x1900] sm:$0xff]
    %v986 = vld [vmem:[%s1 + $0x1908] sm:$0xff]
    %v987 = vld [vmem:[%s1 + $0x1910] sm:$0xf]
    %v988 = vld [vmem:[%s1 + $0x1914] sm:$0xff]
    %v989 = vld [vmem:[%s1 + $0x191c] sm:$0xff]
    %v990 = vld [vmem:[%s1 + $0x1924] sm:$0xf]
    %v991 = vld [vmem:[%s1 + $0x1928] sm:$0xff]
    %v992 = vld [vmem:[%s1 + $0x1930] sm:$0xff]
    %v993 = vld [vmem:[%s1 + $0x1938] sm:$0xf]
    %v994 = vld [vmem:[%s1 + $0x193c] sm:$0xff]
    %v995 = vld [vmem:[%s1 + $0x1944] sm:$0xff]
    %v996 = vld [vmem:[%s1 + $0x194c] sm:$0xf]
    %v997 = vld [vmem:[%s1 + $0x1950] sm:$0xff]
    %v998 = vld [vmem:[%s1 + $0x1958] sm:$0xff]
    %v999 = vld [vmem:[%s1 + $0x1960] sm:$0xf]
    %v1000 = vld [vmem:[%s1 + $0x1964] sm:$0xff]
    %v1001 = vld [vmem:[%s1 + $0x196c] sm:$0xff]
    %v1002 = vld [vmem:[%s1 + $0x1974] sm:$0xf]
    %v1003 = vld [vmem:[%s1 + $0x1978] sm:$0xff]
    %v1004 = vld [vmem:[%s1 + $0x1980] sm:$0xff]
    %v1005 = vld [vmem:[%s1 + $0x1988] sm:$0xf]
    %v1006 = vld [vmem:[%s1 + $0x198c] sm:$0xff]
    %v1007 = vld [vmem:[%s1 + $0x1994] sm:$0xff]
    %v1008 = vld [vmem:[%s1 + $0x199c] sm:$0xf]
    %v1009 = vld [vmem:[%s1 + $0x19a0] sm:$0xff]
    %v1010 = vld [vmem:[%s1 + $0x19a8] sm:$0xff]
    %v1011 = vld [vmem:[%s1 + $0x19b0] sm:$0xf]
    %v1012 = vld [vmem:[%s1 + $0x19b4] sm:$0xff]
    %v1013 = vld [vmem:[%s1 + $0x19bc] sm:$0xff]
    %v1014 = vld [vmem:[%s1 + $0x19c4] sm:$0xf]
    %v1015 = vld [vmem:[%s1 + $0x19c8] sm:$0xff]
    %v1016 = vld [vmem:[%s1 + $0x19d0] sm:$0xff]
    %v1017 = vld [vmem:[%s1 + $0x19d8] sm:$0xf]
    %v1018 = vld [vmem:[%s1 + $0x19dc] sm:$0xff]
    %v1019 = vld [vmem:[%s1 + $0x19e4] sm:$0xff]
    %v1020 = vld [vmem:[%s1 + $0x19ec] sm:$0xf]
    %v1021 = vld [vmem:[%s1 + $0x19f0] sm:$0xff]
    %v1022 = vld [vmem:[%s1 + $0x19f8] sm:$0xff]
    %v1023 = vld [vmem:[%s1 + $0x1a00] sm:$0xf]
    %v1024 = vld [vmem:[%s1 + $0x1a04] sm:$0xff]
    %v1025 = vld [vmem:[%s1 + $0x1a0c] sm:$0xff]
    %v1026 = vld [vmem:[%s1 + $0x1a14] sm:$0xf]
    %v1027 = vld [vmem:[%s1 + $0x1a18] sm:$0xff]
    %v1028 = vld [vmem:[%s1 + $0x1a20] sm:$0xff]
    %v1029 = vld [vmem:[%s1 + $0x1a28] sm:$0xf]
    %v1030 = vld [vmem:[%s1 + $0x1a2c] sm:$0xff]
    %v1031 = vld [vmem:[%s1 + $0x1a34] sm:$0xff]
    %v1032 = vld [vmem:[%s1 + $0x1a3c] sm:$0xf]
    %v1033 = vld [vmem:[%s1 + $0x1a40] sm:$0xff]
    %v1034 = vld [vmem:[%s1 + $0x1a48] sm:$0xff]
    %v1035 = vld [vmem:[%s1 + $0x1a50] sm:$0xf]
    %v1036 = vld [vmem:[%s1 + $0x1a54] sm:$0xff]
    %v1037 = vld [vmem:[%s1 + $0x1a5c] sm:$0xff]
    %v1038 = vld [vmem:[%s1 + $0x1a64] sm:$0xf]
    %v1039 = vld [vmem:[%s1 + $0x1a68] sm:$0xff]
    %v1040 = vld [vmem:[%s1 + $0x1a70] sm:$0xff]
    %v1041 = vld [vmem:[%s1 + $0x1a78] sm:$0xf]
    %v1042 = vld [vmem:[%s1 + $0x1a7c] sm:$0xff]
    %v1043 = vld [vmem:[%s1 + $0x1a84] sm:$0xff]
    %v1044 = vld [vmem:[%s1 + $0x1a8c] sm:$0xf]
    %v1045 = vld [vmem:[%s1 + $0x1a90] sm:$0xff]
    %v1046 = vld [vmem:[%s1 + $0x1a98] sm:$0xff]
    %v1047 = vld [vmem:[%s1 + $0x1aa0] sm:$0xf]
    %v1048 = vld [vmem:[%s1 + $0x1aa4] sm:$0xff]
    %v1049 = vld [vmem:[%s1 + $0x1aac] sm:$0xff]
    %v1050 = vld [vmem:[%s1 + $0x1ab4] sm:$0xf]
    %v1051 = vld [vmem:[%s1 + $0x1ab8] sm:$0xff]
    %v1052 = vld [vmem:[%s1 + $0x1ac0] sm:$0xff]
    %v1053 = vld [vmem:[%s1 + $0x1ac8] sm:$0xf]
    %v1054 = vld [vmem:[%s1 + $0x1acc] sm:$0xff]
    %v1055 = vld [vmem:[%s1 + $0x1ad4] sm:$0xff]
    %v1056 = vld [vmem:[%s1 + $0x1adc] sm:$0xf]
    %v1057 = vld [vmem:[%s1 + $0x1ae0] sm:$0xff]
    %v1058 = vld [vmem:[%s1 + $0x1ae8] sm:$0xff]
    %v1059 = vld [vmem:[%s1 + $0x1af0] sm:$0xf]
    %v1060 = vld [vmem:[%s1 + $0x1af4] sm:$0xff]
    %v1061 = vld [vmem:[%s1 + $0x1afc] sm:$0xff]
    %v1062 = vld [vmem:[%s1 + $0x1b04] sm:$0xf]
    %v1063 = vld [vmem:[%s1 + $0x1b08] sm:$0xff]
    %v1064 = vld [vmem:[%s1 + $0x1b10] sm:$0xff]
    %v1065 = vld [vmem:[%s1 + $0x1b18] sm:$0xf]
    %v1066 = vld [vmem:[%s1 + $0x1b1c] sm:$0xff]
    %v1067 = vld [vmem:[%s1 + $0x1b24] sm:$0xff]
    %v1068 = vld [vmem:[%s1 + $0x1b2c] sm:$0xf]
    %v1069 = vld [vmem:[%s1 + $0x1b30] sm:$0xff]
    %v1070 = vld [vmem:[%s1 + $0x1b38] sm:$0xff]
    %v1071 = vld [vmem:[%s1 + $0x1b40] sm:$0xf]
    %v1072 = vld [vmem:[%s1 + $0x1b44] sm:$0xff]
    %v1073 = vld [vmem:[%s1 + $0x1b4c] sm:$0xff]
    %v1074 = vld [vmem:[%s1 + $0x1b54] sm:$0xf]
    %v1075 = vld [vmem:[%s1 + $0x1b58] sm:$0xff]
    %v1076 = vld [vmem:[%s1 + $0x1b60] sm:$0xff]
    %v1077 = vld [vmem:[%s1 + $0x1b68] sm:$0xf]
    %v1078 = vld [vmem:[%s1 + $0x1b6c] sm:$0xff]
    %v1079 = vld [vmem:[%s1 + $0x1b74] sm:$0xff]
    %v1080 = vld [vmem:[%s1 + $0x1b7c] sm:$0xf]
    %v1081 = vld [vmem:[%s1 + $0x1b80] sm:$0xff]
    %v1082 = vld [vmem:[%s1 + $0x1b88] sm:$0xff]
    %v1083 = vld [vmem:[%s1 + $0x1b90] sm:$0xf]
    %v1084 = vld [vmem:[%s1 + $0x1b94] sm:$0xff]
    %v1085 = vld [vmem:[%s1 + $0x1b9c] sm:$0xff]
    %v1086 = vld [vmem:[%s1 + $0x1ba4] sm:$0xf]
    %v1087 = vld [vmem:[%s1 + $0x1ba8] sm:$0xff]
    %v1088 = vld [vmem:[%s1 + $0x1bb0] sm:$0xff]
    %v1089 = vld [vmem:[%s1 + $0x1bb8] sm:$0xf]
    %v1090 = vld [vmem:[%s1 + $0x1bbc] sm:$0xff]
    %v1091 = vld [vmem:[%s1 + $0x1bc4] sm:$0xff]
    %v1092 = vld [vmem:[%s1 + $0x1bcc] sm:$0xf]
    %v1093 = vld [vmem:[%s1 + $0x1bd0] sm:$0xff]
    %v1094 = vld [vmem:[%s1 + $0x1bd8] sm:$0xff]
    %v1095 = vld [vmem:[%s1 + $0x1be0] sm:$0xf]
    %v1096 = vld [vmem:[%s1 + $0x1be4] sm:$0xff]
    %v1097 = vld [vmem:[%s1 + $0x1bec] sm:$0xff]
    %v1098 = vld [vmem:[%s1 + $0x1bf4] sm:$0xf]
    %v1099 = vld [vmem:[%s1 + $0x1bf8] sm:$0xff]
    %v1100 = vld [vmem:[%s1 + $0x1c00] sm:$0xff]
    %v1101 = vld [vmem:[%s1 + $0x1c08] sm:$0xf]
    %v1102 = vld [vmem:[%s1 + $0x1c0c] sm:$0xff]
    %v1103 = vld [vmem:[%s1 + $0x1c14] sm:$0xff]
    %v1104 = vld [vmem:[%s1 + $0x1c1c] sm:$0xf]
    %v1105 = vld [vmem:[%s1 + $0x1c20] sm:$0xff]
    %v1106 = vld [vmem:[%s1 + $0x1c28] sm:$0xff]
    %v1107 = vld [vmem:[%s1 + $0x1c30] sm:$0xf]
    %v1108 = vld [vmem:[%s1 + $0x1c34] sm:$0xff]
    %v1109 = vld [vmem:[%s1 + $0x1c3c] sm:$0xff]
    %v1110 = vld [vmem:[%s1 + $0x1c44] sm:$0xf]
    %v1111 = vld [vmem:[%s1 + $0x1c48] sm:$0xff]
    %v1112 = vld [vmem:[%s1 + $0x1c50] sm:$0xff]
    %v1113 = vld [vmem:[%s1 + $0x1c58] sm:$0xf]
    %v1114 = vld [vmem:[%s1 + $0x1c5c] sm:$0xff]
    %v1115 = vld [vmem:[%s1 + $0x1c64] sm:$0xff]
    %v1116 = vld [vmem:[%s1 + $0x1c6c] sm:$0xf]
    %v1117 = vld [vmem:[%s1 + $0x1c70] sm:$0xff]
    %v1118 = vld [vmem:[%s1 + $0x1c78] sm:$0xff]
    %v1119 = vld [vmem:[%s1 + $0x1c80] sm:$0xf]
    %v1120 = vld [vmem:[%s1 + $0x1c84] sm:$0xff]
    %v1121 = vld [vmem:[%s1 + $0x1c8c] sm:$0xff]
    %v1122 = vld [vmem:[%s1 + $0x1c94] sm:$0xf]
    %v1123 = vld [vmem:[%s1 + $0x1c98] sm:$0xff]
    %v1124 = vld [vmem:[%s1 + $0x1ca0] sm:$0xff]
    %v1125 = vld [vmem:[%s1 + $0x1ca8] sm:$0xf]
    %v1126 = vld [vmem:[%s1 + $0x1cac] sm:$0xff]
    %v1127 = vld [vmem:[%s1 + $0x1cb4] sm:$0xff]
    %v1128 = vld [vmem:[%s1 + $0x1cbc] sm:$0xf]
    %v1129 = vld [vmem:[%s1 + $0x1cc0] sm:$0xff]
    %v1130 = vld [vmem:[%s1 + $0x1cc8] sm:$0xff]
    %v1131 = vld [vmem:[%s1 + $0x1cd0] sm:$0xf]
    %v1132 = vld [vmem:[%s1 + $0x1cd4] sm:$0xff]
    %v1133 = vld [vmem:[%s1 + $0x1cdc] sm:$0xff]
    %v1134 = vld [vmem:[%s1 + $0x1ce4] sm:$0xf]
    %v1135 = vld [vmem:[%s1 + $0x1ce8] sm:$0xff]
    %v1136 = vld [vmem:[%s1 + $0x1cf0] sm:$0xff]
    %v1137 = vld [vmem:[%s1 + $0x1cf8] sm:$0xf]
    %v1138 = vld [vmem:[%s1 + $0x1cfc] sm:$0xff]
    %v1139 = vld [vmem:[%s1 + $0x1d04] sm:$0xff]
    %v1140 = vld [vmem:[%s1 + $0x1d0c] sm:$0xf]
    %v1141 = vld [vmem:[%s1 + $0x1d10] sm:$0xff]
    %v1142 = vld [vmem:[%s1 + $0x1d18] sm:$0xff]
    %v1143 = vld [vmem:[%s1 + $0x1d20] sm:$0xf]
    %v1144 = vld [vmem:[%s1 + $0x1d24] sm:$0xff]
    %v1145 = vld [vmem:[%s1 + $0x1d2c] sm:$0xff]
    %v1146 = vld [vmem:[%s1 + $0x1d34] sm:$0xf]
    %v1147 = vld [vmem:[%s1 + $0x1d38] sm:$0xff]
    %v1148 = vld [vmem:[%s1 + $0x1d40] sm:$0xff]
    %v1149 = vld [vmem:[%s1 + $0x1d48] sm:$0xf]
    %v1150 = vld [vmem:[%s1 + $0x1d4c] sm:$0xff]
    %v1151 = vld [vmem:[%s1 + $0x1d54] sm:$0xff]
    %v1152 = vld [vmem:[%s1 + $0x1d5c] sm:$0xf]
    %v1153 = vld [vmem:[%s1 + $0x1d60] sm:$0xff]
    %v1154 = vld [vmem:[%s1 + $0x1d68] sm:$0xff]
    %v1155 = vld [vmem:[%s1 + $0x1d70] sm:$0xf]
    %v1156 = vld [vmem:[%s1 + $0x1d74] sm:$0xff]
    %v1157 = vld [vmem:[%s1 + $0x1d7c] sm:$0xff]
    %v1158 = vld [vmem:[%s1 + $0x1d84] sm:$0xf]
    %v1159 = vld [vmem:[%s1 + $0x1d88] sm:$0xff]
    %v1160 = vld [vmem:[%s1 + $0x1d90] sm:$0xff]
    %v1161 = vld [vmem:[%s1 + $0x1d98] sm:$0xf]
    %v1162 = vld [vmem:[%s1 + $0x1d9c] sm:$0xff]
    %v1163 = vld [vmem:[%s1 + $0x1da4] sm:$0xff]
    %v1164 = vld [vmem:[%s1 + $0x1dac] sm:$0xf]
    %v1165 = vld [vmem:[%s1 + $0x1db0] sm:$0xff]
    %v1166 = vld [vmem:[%s1 + $0x1db8] sm:$0xff]
    %v1167 = vld [vmem:[%s1 + $0x1dc0] sm:$0xf]
    %v1168 = vld [vmem:[%s1 + $0x1dc4] sm:$0xff]
    %v1169 = vld [vmem:[%s1 + $0x1dcc] sm:$0xff]
    %v1170 = vld [vmem:[%s1 + $0x1dd4] sm:$0xf]
    %v1171 = vld [vmem:[%s1 + $0x1dd8] sm:$0xff]
    %v1172 = vld [vmem:[%s1 + $0x1de0] sm:$0xff]
    %v1173 = vld [vmem:[%s1 + $0x1de8] sm:$0xf]
    %v1174 = vld [vmem:[%s1 + $0x1dec] sm:$0xff]
    %v1175 = vld [vmem:[%s1 + $0x1df4] sm:$0xff]
    %v1176 = vld [vmem:[%s1 + $0x1dfc] sm:$0xf]
    %v1177 = vld [vmem:[%s1 + $0x1e00] sm:$0xff]
    %v1178 = vld [vmem:[%s1 + $0x1e08] sm:$0xff]
    %v1179 = vld [vmem:[%s1 + $0x1e10] sm:$0xf]
    %v1180 = vld [vmem:[%s1 + $0x1e14] sm:$0xff]
    %v1181 = vld [vmem:[%s1 + $0x1e1c] sm:$0xff]
    %v1182 = vld [vmem:[%s1 + $0x1e24] sm:$0xf]
    %v1183 = vld [vmem:[%s1 + $0x1e28] sm:$0xff]
    %v1184 = vld [vmem:[%s1 + $0x1e30] sm:$0xff]
    %v1185 = vld [vmem:[%s1 + $0x1e38] sm:$0xf]
    %v1186 = vld [vmem:[%s1 + $0x1e3c] sm:$0xff]
    %v1187 = vld [vmem:[%s1 + $0x1e44] sm:$0xff]
    %v1188 = vld [vmem:[%s1 + $0x1e4c] sm:$0xf]
    %v1189 = vld [vmem:[%s1 + $0x1e50] sm:$0xff]
    %v1190 = vld [vmem:[%s1 + $0x1e58] sm:$0xff]
    %v1191 = vld [vmem:[%s1 + $0x1e60] sm:$0xf]
    %v1192 = vld [vmem:[%s1 + $0x1e64] sm:$0xff]
    %v1193 = vld [vmem:[%s1 + $0x1e6c] sm:$0xff]
    %v1194 = vld [vmem:[%s1 + $0x1e74] sm:$0xf]
    %v1195 = vld [vmem:[%s1 + $0x1e78] sm:$0xff]
    %v1196 = vld [vmem:[%s1 + $0x1e80] sm:$0xff]
    %v1197 = vld [vmem:[%s1 + $0x1e88] sm:$0xf]
    %v1198 = vld [vmem:[%s1 + $0x1e8c] sm:$0xff]
    %v1199 = vld [vmem:[%s1 + $0x1e94] sm:$0xff]
    %v1200 = vld [vmem:[%s1 + $0x1e9c] sm:$0xf]
    %v1201 = vld [vmem:[%s1 + $0x1ea0] sm:$0xff]
    %v1202 = vld [vmem:[%s1 + $0x1ea8] sm:$0xff]
    %v1203 = vld [vmem:[%s1 + $0x1eb0] sm:$0xf]
    %v1204 = vld [vmem:[%s1 + $0x1eb4] sm:$0xff]
    %v1205 = vld [vmem:[%s1 + $0x1ebc] sm:$0xff]
    %v1206 = vld [vmem:[%s1 + $0x1ec4] sm:$0xf]
    %v1207 = vld [vmem:[%s1 + $0x1ec8] sm:$0xff]
    %v1208 = vld [vmem:[%s1 + $0x1ed0] sm:$0xff]
    %v1209 = vld [vmem:[%s1 + $0x1ed8] sm:$0xf]
    %v1210 = vld [vmem:[%s1 + $0x1edc] sm:$0xff]
    %v1211 = vld [vmem:[%s1 + $0x1ee4] sm:$0xff]
    %v1212 = vld [vmem:[%s1 + $0x1eec] sm:$0xf]
    %v1213 = vld [vmem:[%s1 + $0x1ef0] sm:$0xff]
    %v1214 = vld [vmem:[%s1 + $0x1ef8] sm:$0xff]
    %v1215 = vld [vmem:[%s1 + $0x1f00] sm:$0xf]
    %v1216 = vld [vmem:[%s1 + $0x1f04] sm:$0xff]
    %v1217 = vld [vmem:[%s1 + $0x1f0c] sm:$0xff]
    %v1218 = vld [vmem:[%s1 + $0x1f14] sm:$0xf]
    %v1219 = vld [vmem:[%s1 + $0x1f18] sm:$0xff]
    %v1220 = vld [vmem:[%s1 + $0x1f20] sm:$0xff]
    %v1221 = vld [vmem:[%s1 + $0x1f28] sm:$0xf]
    %v1222 = vld [vmem:[%s1 + $0x1f2c] sm:$0xff]
    %v1223 = vld [vmem:[%s1 + $0x1f34] sm:$0xff]
    %v1224 = vld [vmem:[%s1 + $0x1f3c] sm:$0xf]
    %v1225 = vld [vmem:[%s2] sm:$0x1f]
    %v1227 = vperm.slane %v1225, 0
    %v1228 = vperm.slane %v1225, 1
    %v1229 = vperm.slane %v1225, 2
    %v1230 = vperm.slane %v1225, 3
    %v1231 = vperm.slane %v1225, 4
    %1238 = vst [vmem:[#allocation1] ss:$9 sm:$0xff] %v21
    %v1239 = vld [vmem:[#allocation1] sm:$0xff]
    %v1240 = vld [vmem:[#allocation1 + $0x9] sm:$0xff]
    %v1241 = vld [vmem:[#allocation1 + $0x12] sm:$0xff]
    %v1242 = vld [vmem:[#allocation1 + $0x1b] sm:$0xff]
    %v1243 = vld [vmem:[#allocation1 + $0x24] sm:$0xff]
    %v1244 = vld [vmem:[#allocation1 + $0x2d] sm:$0xff]
    %v1245 = vld [vmem:[#allocation1 + $0x36] sm:$0xff]
    %v1246 = vld [vmem:[#allocation1 + $0x3f] sm:$0xff]
    %1248 = vst [vmem:[#allocation1] ss:$9 sm:$0xff] %v22
    %v1249 = vld [vmem:[#allocation1] sm:$0xff]
    %v1250 = vld [vmem:[#allocation1 + $0x9] sm:$0xff]
    %v1251 = vld [vmem:[#allocation1 + $0x12] sm:$0xff]
    %v1252 = vld [vmem:[#allocation1 + $0x1b] sm:$0xff]
    %v1253 = vld [vmem:[#allocation1 + $0x24] sm:$0xff]
    %v1254 = vld [vmem:[#allocation1 + $0x2d] sm:$0xff]
    %v1255 = vld [vmem:[#allocation1 + $0x36] sm:$0xff]
    %v1256 = vld [vmem:[#allocation1 + $0x3f] sm:$0xff]
    %1258 = vst [vmem:[#allocation1] ss:$9 sm:$0xff] %v23
    %v1259 = vld [vmem:[#allocation1] sm:$0xff]
    %v1260 = vld [vmem:[#allocation1 + $0x9] sm:$0xff]
    %v1261 = vld [vmem:[#allocation1 + $0x12] sm:$0xff]
    %v1262 = vld [vmem:[#allocation1 + $0x1b] sm:$0xff]
    %v1263 = vld [vmem:[#allocation1 + $0x24] sm:$0xff]
    %v1264 = vld [vmem:[#allocation1 + $0x2d] sm:$0xff]
    %v1265 = vld [vmem:[#allocation1 + $0x36] sm:$0xff]
    %v1266 = vld [vmem:[#allocation1 + $0x3f] sm:$0xff]
    %1268 = vst [vmem:[#allocation1] ss:$9 sm:$0xff] %v24
    %v1269 = vld [vmem:[#allocation1] sm:$0xff]
    %v2495 = vunpack.c.l.b16 %v25
    %v2496 = vunpack.c.h.b16 %v25
    %v2497 = vunpack.c.l.b16 %v26
    %v2498 = vunpack.c.h.b16 %v26
    %v2499 = vunpack.c.l.b16 %v27
    %v2500 = vunpack.c.l.b16 %v28
    %v2501 = vunpack.c.h.b16 %v28
    %v2502 = vunpack.c.l.b16 %v29
    %v2503 = vunpack.c.h.b16 %v29
    %v2504 = vunpack.c.l.b16 %v30
    %v2505 = vunpack.c.l.b16 %v31
    %v2506 = vunpack.c.h.b16 %v31
    %v2507 = vunpack.c.l.b16 %v32
    %v2508 = vunpack.c.h.b16 %v32
    %v2509 = vunpack.c.l.b16 %v33
    %v2510 = vunpack.c.l.b16 %v34
    %v2511 = vunpack.c.h.b16 %v34
    %v2512 = vunpack.c.l.b16 %v35
    %v2513 = vunpack.c.h.b16 %v35
    %v2514 = vunpack.c.l.b16 %v36
    %v2515 = vunpack.c.l.b16 %v37
    %v2516 = vunpack.c.h.b16 %v37
    %v2517 = vunpack.c.l.b16 %v38
    %v2518 = vunpack.c.h.b16 %v38
    %v2519 = vunpack.c.l.b16 %v39
    %v2520 = vunpack.c.l.b16 %v40
    %v2521 = vunpack.c.h.b16 %v40
    %v2522 = vunpack.c.l.b16 %v41
    %v2523 = vunpack.c.h.b16 %v41
    %v2524 = vunpack.c.l.b16 %v42
    %v2525 = vunpack.c.l.b16 %v43
    %v2526 = vunpack.c.h.b16 %v43
    %v2527 = vunpack.c.l.b16 %v44
    %v2528 = vunpack.c.h.b16 %v44
    %v2529 = vunpack.c.l.b16 %v45
    %v2530 = vunpack.c.l.b16 %v46
    %v2531 = vunpack.c.h.b16 %v46
    %v2532 = vunpack.c.l.b16 %v47
    %v2533 = vunpack.c.h.b16 %v47
    %v2534 = vunpack.c.l.b16 %v48
    %v2535 = vunpack.c.l.b16 %v49
    %v2536 = vunpack.c.h.b16 %v49
    %v2537 = vunpack.c.l.b16 %v50
    %v2538 = vunpack.c.h.b16 %v50
    %v2539 = vunpack.c.l.b16 %v51
    %v2540 = vunpack.c.l.b16 %v52
    %v2541 = vunpack.c.h.b16 %v52
    %v2542 = vunpack.c.l.b16 %v53
    %v2543 = vunpack.c.h.b16 %v53
    %v2544 = vunpack.c.l.b16 %v54
    %v2545 = vunpack.c.l.b16 %v55
    %v2546 = vunpack.c.h.b16 %v55
    %v2547 = vunpack.c.l.b16 %v56
    %v2548 = vunpack.c.h.b16 %v56
    %v2549 = vunpack.c.l.b16 %v57
    %v2550 = vunpack.c.l.b16 %v58
    %v2551 = vunpack.c.h.b16 %v58
    %v2552 = vunpack.c.l.b16 %v59
    %v2553 = vunpack.c.h.b16 %v59
    %v2554 = vunpack.c.l.b16 %v60
    %v2555 = vunpack.c.l.b16 %v61
    %v2556 = vunpack.c.h.b16 %v61
    %v2557 = vunpack.c.l.b16 %v62
    %v2558 = vunpack.c.h.b16 %v62
    %v2559 = vunpack.c.l.b16 %v63
    %v2560 = vunpack.c.l.b16 %v64
    %v2561 = vunpack.c.h.b16 %v64
    %v2562 = vunpack.c.l.b16 %v65
    %v2563 = vunpack.c.h.b16 %v65
    %v2564 = vunpack.c.l.b16 %v66
    %v2565 = vunpack.c.l.b16 %v67
    %v2566 = vunpack.c.h.b16 %v67
    %v2567 = vunpack.c.l.b16 %v68
    %v2568 = vunpack.c.h.b16 %v68
    %v2569 = vunpack.c.l.b16 %v69
    %v2570 = vunpack.c.l.b16 %v70
    %v2571 = vunpack.c.h.b16 %v70
    %v2572 = vunpack.c.l.b16 %v71
    %v2573 = vunpack.c.h.b16 %v71
    %v2574 = vunpack.c.l.b16 %v72
    %v2575 = vunpack.c.l.b16 %v73
    %v2576 = vunpack.c.h.b16 %v73
    %v2577 = vunpack.c.l.b16 %v74
    %v2578 = vunpack.c.h.b16 %v74
    %v2579 = vunpack.c.l.b16 %v75
    %v2580 = vunpack.c.l.b16 %v76
    %v2581 = vunpack.c.h.b16 %v76
    %v2582 = vunpack.c.l.b16 %v77
    %v2583 = vunpack.c.h.b16 %v77
    %v2584 = vunpack.c.l.b16 %v78
    %v2585 = vunpack.c.l.b16 %v79
    %v2586 = vunpack.c.h.b16 %v79
    %v2587 = vunpack.c.l.b16 %v80
    %v2588 = vunpack.c.h.b16 %v80
    %v2589 = vunpack.c.l.b16 %v81
    %v2590 = vunpack.c.l.b16 %v82
    %v2591 = vunpack.c.h.b16 %v82
    %v2592 = vunpack.c.l.b16 %v83
    %v2593 = vunpack.c.h.b16 %v83
    %v2594 = vunpack.c.l.b16 %v84
    %v2595 = vunpack.c.l.b16 %v85
    %v2596 = vunpack.c.h.b16 %v85
    %v2597 = vunpack.c.l.b16 %v86
    %v2598 = vunpack.c.h.b16 %v86
    %v2599 = vunpack.c.l.b16 %v87
    %v2600 = vunpack.c.l.b16 %v88
    %v2601 = vunpack.c.h.b16 %v88
    %v2602 = vunpack.c.l.b16 %v89
    %v2603 = vunpack.c.h.b16 %v89
    %v2604 = vunpack.c.l.b16 %v90
    %v2605 = vunpack.c.l.b16 %v91
    %v2606 = vunpack.c.h.b16 %v91
    %v2607 = vunpack.c.l.b16 %v92
    %v2608 = vunpack.c.h.b16 %v92
    %v2609 = vunpack.c.l.b16 %v93
    %v2610 = vunpack.c.l.b16 %v94
    %v2611 = vunpack.c.h.b16 %v94
    %v2612 = vunpack.c.l.b16 %v95
    %v2613 = vunpack.c.h.b16 %v95
    %v2614 = vunpack.c.l.b16 %v96
    %v2615 = vunpack.c.l.b16 %v97
    %v2616 = vunpack.c.h.b16 %v97
    %v2617 = vunpack.c.l.b16 %v98
    %v2618 = vunpack.c.h.b16 %v98
    %v2619 = vunpack.c.l.b16 %v99
    %v2620 = vunpack.c.l.b16 %v100
    %v2621 = vunpack.c.h.b16 %v100
    %v2622 = vunpack.c.l.b16 %v101
    %v2623 = vunpack.c.h.b16 %v101
    %v2624 = vunpack.c.l.b16 %v102
    %v2625 = vunpack.c.l.b16 %v103
    %v2626 = vunpack.c.h.b16 %v103
    %v2627 = vunpack.c.l.b16 %v104
    %v2628 = vunpack.c.h.b16 %v104
    %v2629 = vunpack.c.l.b16 %v105
    %v2630 = vunpack.c.l.b16 %v106
    %v2631 = vunpack.c.h.b16 %v106
    %v2632 = vunpack.c.l.b16 %v107
    %v2633 = vunpack.c.h.b16 %v107
    %v2634 = vunpack.c.l.b16 %v108
    %v2635 = vunpack.c.l.b16 %v109
    %v2636 = vunpack.c.h.b16 %v109
    %v2637 = vunpack.c.l.b16 %v110
    %v2638 = vunpack.c.h.b16 %v110
    %v2639 = vunpack.c.l.b16 %v111
    %v2640 = vunpack.c.l.b16 %v112
    %v2641 = vunpack.c.h.b16 %v112
    %v2642 = vunpack.c.l.b16 %v113
    %v2643 = vunpack.c.h.b16 %v113
    %v2644 = vunpack.c.l.b16 %v114
    %v2645 = vunpack.c.l.b16 %v115
    %v2646 = vunpack.c.h.b16 %v115
    %v2647 = vunpack.c.l.b16 %v116
    %v2648 = vunpack.c.h.b16 %v116
    %v2649 = vunpack.c.l.b16 %v117
    %v2650 = vunpack.c.l.b16 %v118
    %v2651 = vunpack.c.h.b16 %v118
    %v2652 = vunpack.c.l.b16 %v119
    %v2653 = vunpack.c.h.b16 %v119
    %v2654 = vunpack.c.l.b16 %v120
    %v2655 = vunpack.c.l.b16 %v121
    %v2656 = vunpack.c.h.b16 %v121
    %v2657 = vunpack.c.l.b16 %v122
    %v2658 = vunpack.c.h.b16 %v122
    %v2659 = vunpack.c.l.b16 %v123
    %v2660 = vunpack.c.l.b16 %v124
    %v2661 = vunpack.c.h.b16 %v124
    %v2662 = vunpack.c.l.b16 %v125
    %v2663 = vunpack.c.h.b16 %v125
    %v2664 = vunpack.c.l.b16 %v126
    %v2665 = vunpack.c.l.b16 %v127
    %v2666 = vunpack.c.h.b16 %v127
    %v2667 = vunpack.c.l.b16 %v128
    %v2668 = vunpack.c.h.b16 %v128
    %v2669 = vunpack.c.l.b16 %v129
    %v2670 = vunpack.c.l.b16 %v130
    %v2671 = vunpack.c.h.b16 %v130
    %v2672 = vunpack.c.l.b16 %v131
    %v2673 = vunpack.c.h.b16 %v131
    %v2674 = vunpack.c.l.b16 %v132
    %v2675 = vunpack.c.l.b16 %v133
    %v2676 = vunpack.c.h.b16 %v133
    %v2677 = vunpack.c.l.b16 %v134
    %v2678 = vunpack.c.h.b16 %v134
    %v2679 = vunpack.c.l.b16 %v135
    %v2680 = vunpack.c.l.b16 %v136
    %v2681 = vunpack.c.h.b16 %v136
    %v2682 = vunpack.c.l.b16 %v137
    %v2683 = vunpack.c.h.b16 %v137
    %v2684 = vunpack.c.l.b16 %v138
    %v2685 = vunpack.c.l.b16 %v139
    %v2686 = vunpack.c.h.b16 %v139
    %v2687 = vunpack.c.l.b16 %v140
    %v2688 = vunpack.c.h.b16 %v140
    %v2689 = vunpack.c.l.b16 %v141
    %v2690 = vunpack.c.l.b16 %v142
    %v2691 = vunpack.c.h.b16 %v142
    %v2692 = vunpack.c.l.b16 %v143
    %v2693 = vunpack.c.h.b16 %v143
    %v2694 = vunpack.c.l.b16 %v144
    %v2695 = vunpack.c.l.b16 %v145
    %v2696 = vunpack.c.h.b16 %v145
    %v2697 = vunpack.c.l.b16 %v146
    %v2698 = vunpack.c.h.b16 %v146
    %v2699 = vunpack.c.l.b16 %v147
    %v2700 = vunpack.c.l.b16 %v148
    %v2701 = vunpack.c.h.b16 %v148
    %v2702 = vunpack.c.l.b16 %v149
    %v2703 = vunpack.c.h.b16 %v149
    %v2704 = vunpack.c.l.b16 %v150
    %v2705 = vunpack.c.l.b16 %v151
    %v2706 = vunpack.c.h.b16 %v151
    %v2707 = vunpack.c.l.b16 %v152
    %v2708 = vunpack.c.h.b16 %v152
    %v2709 = vunpack.c.l.b16 %v153
    %v2710 = vunpack.c.l.b16 %v154
    %v2711 = vunpack.c.h.b16 %v154
    %v2712 = vunpack.c.l.b16 %v155
    %v2713 = vunpack.c.h.b16 %v155
    %v2714 = vunpack.c.l.b16 %v156
    %v2715 = vunpack.c.l.b16 %v157
    %v2716 = vunpack.c.h.b16 %v157
    %v2717 = vunpack.c.l.b16 %v158
    %v2718 = vunpack.c.h.b16 %v158
    %v2719 = vunpack.c.l.b16 %v159
    %v2720 = vunpack.c.l.b16 %v160
    %v2721 = vunpack.c.h.b16 %v160
    %v2722 = vunpack.c.l.b16 %v161
    %v2723 = vunpack.c.h.b16 %v161
    %v2724 = vunpack.c.l.b16 %v162
    %v2725 = vunpack.c.l.b16 %v163
    %v2726 = vunpack.c.h.b16 %v163
    %v2727 = vunpack.c.l.b16 %v164
    %v2728 = vunpack.c.h.b16 %v164
    %v2729 = vunpack.c.l.b16 %v165
    %v2730 = vunpack.c.l.b16 %v166
    %v2731 = vunpack.c.h.b16 %v166
    %v2732 = vunpack.c.l.b16 %v167
    %v2733 = vunpack.c.h.b16 %v167
    %v2734 = vunpack.c.l.b16 %v168
    %v2735 = vunpack.c.l.b16 %v169
    %v2736 = vunpack.c.h.b16 %v169
    %v2737 = vunpack.c.l.b16 %v170
    %v2738 = vunpack.c.h.b16 %v170
    %v2739 = vunpack.c.l.b16 %v171
    %v2740 = vunpack.c.l.b16 %v172
    %v2741 = vunpack.c.h.b16 %v172
    %v2742 = vunpack.c.l.b16 %v173
    %v2743 = vunpack.c.h.b16 %v173
    %v2744 = vunpack.c.l.b16 %v174
    %v2745 = vunpack.c.l.b16 %v175
    %v2746 = vunpack.c.h.b16 %v175
    %v2747 = vunpack.c.l.b16 %v176
    %v2748 = vunpack.c.h.b16 %v176
    %v2749 = vunpack.c.l.b16 %v177
    %v2750 = vunpack.c.l.b16 %v178
    %v2751 = vunpack.c.h.b16 %v178
    %v2752 = vunpack.c.l.b16 %v179
    %v2753 = vunpack.c.h.b16 %v179
    %v2754 = vunpack.c.l.b16 %v180
    %v2755 = vunpack.c.l.b16 %v181
    %v2756 = vunpack.c.h.b16 %v181
    %v2757 = vunpack.c.l.b16 %v182
    %v2758 = vunpack.c.h.b16 %v182
    %v2759 = vunpack.c.l.b16 %v183
    %v2760 = vunpack.c.l.b16 %v184
    %v2761 = vunpack.c.h.b16 %v184
    %v2762 = vunpack.c.l.b16 %v185
    %v2763 = vunpack.c.h.b16 %v185
    %v2764 = vunpack.c.l.b16 %v186
    %v2765 = vunpack.c.l.b16 %v187
    %v2766 = vunpack.c.h.b16 %v187
    %v2767 = vunpack.c.l.b16 %v188
    %v2768 = vunpack.c.h.b16 %v188
    %v2769 = vunpack.c.l.b16 %v189
    %v2770 = vunpack.c.l.b16 %v190
    %v2771 = vunpack.c.h.b16 %v190
    %v2772 = vunpack.c.l.b16 %v191
    %v2773 = vunpack.c.h.b16 %v191
    %v2774 = vunpack.c.l.b16 %v192
    %v2775 = vunpack.c.l.b16 %v193
    %v2776 = vunpack.c.h.b16 %v193
    %v2777 = vunpack.c.l.b16 %v194
    %v2778 = vunpack.c.h.b16 %v194
    %v2779 = vunpack.c.l.b16 %v195
    %v2780 = vunpack.c.l.b16 %v196
    %v2781 = vunpack.c.h.b16 %v196
    %v2782 = vunpack.c.l.b16 %v197
    %v2783 = vunpack.c.h.b16 %v197
    %v2784 = vunpack.c.l.b16 %v198
    %v2785 = vunpack.c.l.b16 %v199
    %v2786 = vunpack.c.h.b16 %v199
    %v2787 = vunpack.c.l.b16 %v200
    %v2788 = vunpack.c.h.b16 %v200
    %v2789 = vunpack.c.l.b16 %v201
    %v2790 = vunpack.c.l.b16 %v202
    %v2791 = vunpack.c.h.b16 %v202
    %v2792 = vunpack.c.l.b16 %v203
    %v2793 = vunpack.c.h.b16 %v203
    %v2794 = vunpack.c.l.b16 %v204
    %v2795 = vunpack.c.l.b16 %v205
    %v2796 = vunpack.c.h.b16 %v205
    %v2797 = vunpack.c.l.b16 %v206
    %v2798 = vunpack.c.h.b16 %v206
    %v2799 = vunpack.c.l.b16 %v207
    %v2800 = vunpack.c.l.b16 %v208
    %v2801 = vunpack.c.h.b16 %v208
    %v2802 = vunpack.c.l.b16 %v209
    %v2803 = vunpack.c.h.b16 %v209
    %v2804 = vunpack.c.l.b16 %v210
    %v2805 = vunpack.c.l.b16 %v211
    %v2806 = vunpack.c.h.b16 %v211
    %v2807 = vunpack.c.l.b16 %v212
    %v2808 = vunpack.c.h.b16 %v212
    %v2809 = vunpack.c.l.b16 %v213
    %v2810 = vunpack.c.l.b16 %v214
    %v2811 = vunpack.c.h.b16 %v214
    %v2812 = vunpack.c.l.b16 %v215
    %v2813 = vunpack.c.h.b16 %v215
    %v2814 = vunpack.c.l.b16 %v216
    %v2815 = vunpack.c.l.b16 %v217
    %v2816 = vunpack.c.h.b16 %v217
    %v2817 = vunpack.c.l.b16 %v218
    %v2818 = vunpack.c.h.b16 %v218
    %v2819 = vunpack.c.l.b16 %v219
    %v2820 = vunpack.c.l.b16 %v220
    %v2821 = vunpack.c.h.b16 %v220
    %v2822 = vunpack.c.l.b16 %v221
    %v2823 = vunpack.c.h.b16 %v221
    %v2824 = vunpack.c.l.b16 %v222
    %v2825 = vunpack.c.l.b16 %v223
    %v2826 = vunpack.c.h.b16 %v223
    %v2827 = vunpack.c.l.b16 %v224
    %v2828 = vunpack.c.h.b16 %v224
    %v2829 = vunpack.c.l.b16 %v225
    %v2830 = vunpack.c.l.b16 %v226
    %v2831 = vunpack.c.h.b16 %v226
    %v2832 = vunpack.c.l.b16 %v227
    %v2833 = vunpack.c.h.b16 %v227
    %v2834 = vunpack.c.l.b16 %v228
    %v2835 = vunpack.c.l.b16 %v229
    %v2836 = vunpack.c.h.b16 %v229
    %v2837 = vunpack.c.l.b16 %v230
    %v2838 = vunpack.c.h.b16 %v230
    %v2839 = vunpack.c.l.b16 %v231
    %v2840 = vunpack.c.l.b16 %v232
    %v2841 = vunpack.c.h.b16 %v232
    %v2842 = vunpack.c.l.b16 %v233
    %v2843 = vunpack.c.h.b16 %v233
    %v2844 = vunpack.c.l.b16 %v234
    %v2845 = vunpack.c.l.b16 %v235
    %v2846 = vunpack.c.h.b16 %v235
    %v2847 = vunpack.c.l.b16 %v236
    %v2848 = vunpack.c.h.b16 %v236
    %v2849 = vunpack.c.l.b16 %v237
    %v2850 = vunpack.c.l.b16 %v238
    %v2851 = vunpack.c.h.b16 %v238
    %v2852 = vunpack.c.l.b16 %v239
    %v2853 = vunpack.c.h.b16 %v239
    %v2854 = vunpack.c.l.b16 %v240
    %v2855 = vunpack.c.l.b16 %v241
    %v2856 = vunpack.c.h.b16 %v241
    %v2857 = vunpack.c.l.b16 %v242
    %v2858 = vunpack.c.h.b16 %v242
    %v2859 = vunpack.c.l.b16 %v243
    %v2860 = vunpack.c.l.b16 %v244
    %v2861 = vunpack.c.h.b16 %v244
    %v2862 = vunpack.c.l.b16 %v245
    %v2863 = vunpack.c.h.b16 %v245
    %v2864 = vunpack.c.l.b16 %v246
    %v2865 = vunpack.c.l.b16 %v247
    %v2866 = vunpack.c.h.b16 %v247
    %v2867 = vunpack.c.l.b16 %v248
    %v2868 = vunpack.c.h.b16 %v248
    %v2869 = vunpack.c.l.b16 %v249
    %v2870 = vunpack.c.l.b16 %v250
    %v2871 = vunpack.c.h.b16 %v250
    %v2872 = vunpack.c.l.b16 %v251
    %v2873 = vunpack.c.h.b16 %v251
    %v2874 = vunpack.c.l.b16 %v252
    %v2875 = vunpack.c.l.b16 %v253
    %v2876 = vunpack.c.h.b16 %v253
    %v2877 = vunpack.c.l.b16 %v254
    %v2878 = vunpack.c.h.b16 %v254
    %v2879 = vunpack.c.l.b16 %v255
    %v2880 = vunpack.c.l.b16 %v256
    %v2881 = vunpack.c.h.b16 %v256
    %v2882 = vunpack.c.l.b16 %v257
    %v2883 = vunpack.c.h.b16 %v257
    %v2884 = vunpack.c.l.b16 %v258
    %v2885 = vunpack.c.l.b16 %v259
    %v2886 = vunpack.c.h.b16 %v259
    %v2887 = vunpack.c.l.b16 %v260
    %v2888 = vunpack.c.h.b16 %v260
    %v2889 = vunpack.c.l.b16 %v261
    %v2890 = vunpack.c.l.b16 %v262
    %v2891 = vunpack.c.h.b16 %v262
    %v2892 = vunpack.c.l.b16 %v263
    %v2893 = vunpack.c.h.b16 %v263
    %v2894 = vunpack.c.l.b16 %v264
    %v2895 = vunpack.c.l.b16 %v265
    %v2896 = vunpack.c.h.b16 %v265
    %v2897 = vunpack.c.l.b16 %v266
    %v2898 = vunpack.c.h.b16 %v266
    %v2899 = vunpack.c.l.b16 %v267
    %v2900 = vunpack.c.l.b16 %v268
    %v2901 = vunpack.c.h.b16 %v268
    %v2902 = vunpack.c.l.b16 %v269
    %v2903 = vunpack.c.h.b16 %v269
    %v2904 = vunpack.c.l.b16 %v270
    %v2905 = vunpack.c.l.b16 %v271
    %v2906 = vunpack.c.h.b16 %v271
    %v2907 = vunpack.c.l.b16 %v272
    %v2908 = vunpack.c.h.b16 %v272
    %v2909 = vunpack.c.l.b16 %v273
    %v2910 = vunpack.c.l.b16 %v274
    %v2911 = vunpack.c.h.b16 %v274
    %v2912 = vunpack.c.l.b16 %v275
    %v2913 = vunpack.c.h.b16 %v275
    %v2914 = vunpack.c.l.b16 %v276
    %v2915 = vunpack.c.l.b16 %v277
    %v2916 = vunpack.c.h.b16 %v277
    %v2917 = vunpack.c.l.b16 %v278
    %v2918 = vunpack.c.h.b16 %v278
    %v2919 = vunpack.c.l.b16 %v279
    %v2920 = vunpack.c.l.b16 %v280
    %v2921 = vunpack.c.h.b16 %v280
    %v2922 = vunpack.c.l.b16 %v281
    %v2923 = vunpack.c.h.b16 %v281
    %v2924 = vunpack.c.l.b16 %v282
    %v2925 = vunpack.c.l.b16 %v283
    %v2926 = vunpack.c.h.b16 %v283
    %v2927 = vunpack.c.l.b16 %v284
    %v2928 = vunpack.c.h.b16 %v284
    %v2929 = vunpack.c.l.b16 %v285
    %v2930 = vunpack.c.l.b16 %v286
    %v2931 = vunpack.c.h.b16 %v286
    %v2932 = vunpack.c.l.b16 %v287
    %v2933 = vunpack.c.h.b16 %v287
    %v2934 = vunpack.c.l.b16 %v288
    %v2935 = vunpack.c.l.b16 %v289
    %v2936 = vunpack.c.h.b16 %v289
    %v2937 = vunpack.c.l.b16 %v290
    %v2938 = vunpack.c.h.b16 %v290
    %v2939 = vunpack.c.l.b16 %v291
    %v2940 = vunpack.c.l.b16 %v292
    %v2941 = vunpack.c.h.b16 %v292
    %v2942 = vunpack.c.l.b16 %v293
    %v2943 = vunpack.c.h.b16 %v293
    %v2944 = vunpack.c.l.b16 %v294
    %v2945 = vunpack.c.l.b16 %v295
    %v2946 = vunpack.c.h.b16 %v295
    %v2947 = vunpack.c.l.b16 %v296
    %v2948 = vunpack.c.h.b16 %v296
    %v2949 = vunpack.c.l.b16 %v297
    %v2950 = vunpack.c.l.b16 %v298
    %v2951 = vunpack.c.h.b16 %v298
    %v2952 = vunpack.c.l.b16 %v299
    %v2953 = vunpack.c.h.b16 %v299
    %v2954 = vunpack.c.l.b16 %v300
    %v2955 = vunpack.c.l.b16 %v301
    %v2956 = vunpack.c.h.b16 %v301
    %v2957 = vunpack.c.l.b16 %v302
    %v2958 = vunpack.c.h.b16 %v302
    %v2959 = vunpack.c.l.b16 %v303
    %v2960 = vunpack.c.l.b16 %v304
    %v2961 = vunpack.c.h.b16 %v304
    %v2962 = vunpack.c.l.b16 %v305
    %v2963 = vunpack.c.h.b16 %v305
    %v2964 = vunpack.c.l.b16 %v306
    %v2965 = vunpack.c.l.b16 %v307
    %v2966 = vunpack.c.h.b16 %v307
    %v2967 = vunpack.c.l.b16 %v308
    %v2968 = vunpack.c.h.b16 %v308
    %v2969 = vunpack.c.l.b16 %v309
    %v2970 = vunpack.c.l.b16 %v310
    %v2971 = vunpack.c.h.b16 %v310
    %v2972 = vunpack.c.l.b16 %v311
    %v2973 = vunpack.c.h.b16 %v311
    %v2974 = vunpack.c.l.b16 %v312
    %v2975 = vunpack.c.l.b16 %v313
    %v2976 = vunpack.c.h.b16 %v313
    %v2977 = vunpack.c.l.b16 %v314
    %v2978 = vunpack.c.h.b16 %v314
    %v2979 = vunpack.c.l.b16 %v315
    %v2980 = vunpack.c.l.b16 %v316
    %v2981 = vunpack.c.h.b16 %v316
    %v2982 = vunpack.c.l.b16 %v317
    %v2983 = vunpack.c.h.b16 %v317
    %v2984 = vunpack.c.l.b16 %v318
    %v2985 = vunpack.c.l.b16 %v319
    %v2986 = vunpack.c.h.b16 %v319
    %v2987 = vunpack.c.l.b16 %v320
    %v2988 = vunpack.c.h.b16 %v320
    %v2989 = vunpack.c.l.b16 %v321
    %v2990 = vunpack.c.l.b16 %v322
    %v2991 = vunpack.c.h.b16 %v322
    %v2992 = vunpack.c.l.b16 %v323
    %v2993 = vunpack.c.h.b16 %v323
    %v2994 = vunpack.c.l.b16 %v324
    %v2995 = vunpack.c.l.b16 %v325
    %v2996 = vunpack.c.h.b16 %v325
    %v2997 = vunpack.c.l.b16 %v326
    %v2998 = vunpack.c.h.b16 %v326
    %v2999 = vunpack.c.l.b16 %v327
    %v3000 = vunpack.c.l.b16 %v328
    %v3001 = vunpack.c.h.b16 %v328
    %v3002 = vunpack.c.l.b16 %v329
    %v3003 = vunpack.c.h.b16 %v329
    %v3004 = vunpack.c.l.b16 %v330
    %v3005 = vunpack.c.l.b16 %v331
    %v3006 = vunpack.c.h.b16 %v331
    %v3007 = vunpack.c.l.b16 %v332
    %v3008 = vunpack.c.h.b16 %v332
    %v3009 = vunpack.c.l.b16 %v333
    %v3010 = vunpack.c.l.b16 %v334
    %v3011 = vunpack.c.h.b16 %v334
    %v3012 = vunpack.c.l.b16 %v335
    %v3013 = vunpack.c.h.b16 %v335
    %v3014 = vunpack.c.l.b16 %v336
    %v3015 = vunpack.c.l.b16 %v337
    %v3016 = vunpack.c.h.b16 %v337
    %v3017 = vunpack.c.l.b16 %v338
    %v3018 = vunpack.c.h.b16 %v338
    %v3019 = vunpack.c.l.b16 %v339
    %v3020 = vunpack.c.l.b16 %v340
    %v3021 = vunpack.c.h.b16 %v340
    %v3022 = vunpack.c.l.b16 %v341
    %v3023 = vunpack.c.h.b16 %v341
    %v3024 = vunpack.c.l.b16 %v342
    %v3025 = vunpack.c.l.b16 %v343
    %v3026 = vunpack.c.h.b16 %v343
    %v3027 = vunpack.c.l.b16 %v344
    %v3028 = vunpack.c.h.b16 %v344
    %v3029 = vunpack.c.l.b16 %v345
    %v3030 = vunpack.c.l.b16 %v346
    %v3031 = vunpack.c.h.b16 %v346
    %v3032 = vunpack.c.l.b16 %v347
    %v3033 = vunpack.c.h.b16 %v347
    %v3034 = vunpack.c.l.b16 %v348
    %v3035 = vunpack.c.l.b16 %v349
    %v3036 = vunpack.c.h.b16 %v349
    %v3037 = vunpack.c.l.b16 %v350
    %v3038 = vunpack.c.h.b16 %v350
    %v3039 = vunpack.c.l.b16 %v351
    %v3040 = vunpack.c.l.b16 %v352
    %v3041 = vunpack.c.h.b16 %v352
    %v3042 = vunpack.c.l.b16 %v353
    %v3043 = vunpack.c.h.b16 %v353
    %v3044 = vunpack.c.l.b16 %v354
    %v3045 = vunpack.c.l.b16 %v355
    %v3046 = vunpack.c.h.b16 %v355
    %v3047 = vunpack.c.l.b16 %v356
    %v3048 = vunpack.c.h.b16 %v356
    %v3049 = vunpack.c.l.b16 %v357
    %v3050 = vunpack.c.l.b16 %v358
    %v3051 = vunpack.c.h.b16 %v358
    %v3052 = vunpack.c.l.b16 %v359
    %v3053 = vunpack.c.h.b16 %v359
    %v3054 = vunpack.c.l.b16 %v360
    %v3055 = vunpack.c.l.b16 %v361
    %v3056 = vunpack.c.h.b16 %v361
    %v3057 = vunpack.c.l.b16 %v362
    %v3058 = vunpack.c.h.b16 %v362
    %v3059 = vunpack.c.l.b16 %v363
    %v3060 = vunpack.c.l.b16 %v364
    %v3061 = vunpack.c.h.b16 %v364
    %v3062 = vunpack.c.l.b16 %v365
    %v3063 = vunpack.c.h.b16 %v365
    %v3064 = vunpack.c.l.b16 %v366
    %v3065 = vunpack.c.l.b16 %v367
    %v3066 = vunpack.c.h.b16 %v367
    %v3067 = vunpack.c.l.b16 %v368
    %v3068 = vunpack.c.h.b16 %v368
    %v3069 = vunpack.c.l.b16 %v369
    %v3070 = vunpack.c.l.b16 %v370
    %v3071 = vunpack.c.h.b16 %v370
    %v3072 = vunpack.c.l.b16 %v371
    %v3073 = vunpack.c.h.b16 %v371
    %v3074 = vunpack.c.l.b16 %v372
    %v3075 = vunpack.c.l.b16 %v373
    %v3076 = vunpack.c.h.b16 %v373
    %v3077 = vunpack.c.l.b16 %v374
    %v3078 = vunpack.c.h.b16 %v374
    %v3079 = vunpack.c.l.b16 %v375
    %v3080 = vunpack.c.l.b16 %v376
    %v3081 = vunpack.c.h.b16 %v376
    %v3082 = vunpack.c.l.b16 %v377
    %v3083 = vunpack.c.h.b16 %v377
    %v3084 = vunpack.c.l.b16 %v378
    %v3085 = vunpack.c.l.b16 %v379
    %v3086 = vunpack.c.h.b16 %v379
    %v3087 = vunpack.c.l.b16 %v380
    %v3088 = vunpack.c.h.b16 %v380
    %v3089 = vunpack.c.l.b16 %v381
    %v3090 = vunpack.c.l.b16 %v382
    %v3091 = vunpack.c.h.b16 %v382
    %v3092 = vunpack.c.l.b16 %v383
    %v3093 = vunpack.c.h.b16 %v383
    %v3094 = vunpack.c.l.b16 %v384
    %v3095 = vunpack.c.l.b16 %v385
    %v3096 = vunpack.c.h.b16 %v385
    %v3097 = vunpack.c.l.b16 %v386
    %v3098 = vunpack.c.h.b16 %v386
    %v3099 = vunpack.c.l.b16 %v387
    %v3100 = vunpack.c.l.b16 %v388
    %v3101 = vunpack.c.h.b16 %v388
    %v3102 = vunpack.c.l.b16 %v389
    %v3103 = vunpack.c.h.b16 %v389
    %v3104 = vunpack.c.l.b16 %v390
    %v3105 = vunpack.c.l.b16 %v391
    %v3106 = vunpack.c.h.b16 %v391
    %v3107 = vunpack.c.l.b16 %v392
    %v3108 = vunpack.c.h.b16 %v392
    %v3109 = vunpack.c.l.b16 %v393
    %v3110 = vunpack.c.l.b16 %v394
    %v3111 = vunpack.c.h.b16 %v394
    %v3112 = vunpack.c.l.b16 %v395
    %v3113 = vunpack.c.h.b16 %v395
    %v3114 = vunpack.c.l.b16 %v396
    %v3115 = vunpack.c.l.b16 %v397
    %v3116 = vunpack.c.h.b16 %v397
    %v3117 = vunpack.c.l.b16 %v398
    %v3118 = vunpack.c.h.b16 %v398
    %v3119 = vunpack.c.l.b16 %v399
    %v3120 = vunpack.c.l.b16 %v400
    %v3121 = vunpack.c.h.b16 %v400
    %v3122 = vunpack.c.l.b16 %v401
    %v3123 = vunpack.c.h.b16 %v401
    %v3124 = vunpack.c.l.b16 %v402
    %v3125 = vunpack.c.l.b16 %v403
    %v3126 = vunpack.c.h.b16 %v403
    %v3127 = vunpack.c.l.b16 %v404
    %v3128 = vunpack.c.h.b16 %v404
    %v3129 = vunpack.c.l.b16 %v405
    %v3130 = vunpack.c.l.b16 %v406
    %v3131 = vunpack.c.h.b16 %v406
    %v3132 = vunpack.c.l.b16 %v407
    %v3133 = vunpack.c.h.b16 %v407
    %v3134 = vunpack.c.l.b16 %v408
    %v3135 = vunpack.c.l.b16 %v409
    %v3136 = vunpack.c.h.b16 %v409
    %v3137 = vunpack.c.l.b16 %v410
    %v3138 = vunpack.c.h.b16 %v410
    %v3139 = vunpack.c.l.b16 %v411
    %v3140 = vunpack.c.l.b16 %v412
    %v3141 = vunpack.c.h.b16 %v412
    %v3142 = vunpack.c.l.b16 %v413
    %v3143 = vunpack.c.h.b16 %v413
    %v3144 = vunpack.c.l.b16 %v414
    %v3145 = vunpack.c.l.b16 %v415
    %v3146 = vunpack.c.h.b16 %v415
    %v3147 = vunpack.c.l.b16 %v416
    %v3148 = vunpack.c.h.b16 %v416
    %v3149 = vunpack.c.l.b16 %v417
    %v3150 = vunpack.c.l.b16 %v418
    %v3151 = vunpack.c.h.b16 %v418
    %v3152 = vunpack.c.l.b16 %v419
    %v3153 = vunpack.c.h.b16 %v419
    %v3154 = vunpack.c.l.b16 %v420
    %v3155 = vunpack.c.l.b16 %v421
    %v3156 = vunpack.c.h.b16 %v421
    %v3157 = vunpack.c.l.b16 %v422
    %v3158 = vunpack.c.h.b16 %v422
    %v3159 = vunpack.c.l.b16 %v423
    %v3160 = vunpack.c.l.b16 %v424
    %v3161 = vunpack.c.h.b16 %v424
    %v3162 = vunpack.c.l.b16 %v425
    %v3163 = vunpack.c.h.b16 %v425
    %v3164 = vunpack.c.l.b16 %v426
    %v3165 = vunpack.c.l.b16 %v427
    %v3166 = vunpack.c.h.b16 %v427
    %v3167 = vunpack.c.l.b16 %v428
    %v3168 = vunpack.c.h.b16 %v428
    %v3169 = vunpack.c.l.b16 %v429
    %v3170 = vunpack.c.l.b16 %v430
    %v3171 = vunpack.c.h.b16 %v430
    %v3172 = vunpack.c.l.b16 %v431
    %v3173 = vunpack.c.h.b16 %v431
    %v3174 = vunpack.c.l.b16 %v432
    %v3175 = vunpack.c.l.b16 %v433
    %v3176 = vunpack.c.h.b16 %v433
    %v3177 = vunpack.c.l.b16 %v434
    %v3178 = vunpack.c.h.b16 %v434
    %v3179 = vunpack.c.l.b16 %v435
    %v3180 = vunpack.c.l.b16 %v436
    %v3181 = vunpack.c.h.b16 %v436
    %v3182 = vunpack.c.l.b16 %v437
    %v3183 = vunpack.c.h.b16 %v437
    %v3184 = vunpack.c.l.b16 %v438
    %v3185 = vunpack.c.l.b16 %v439
    %v3186 = vunpack.c.h.b16 %v439
    %v3187 = vunpack.c.l.b16 %v440
    %v3188 = vunpack.c.h.b16 %v440
    %v3189 = vunpack.c.l.b16 %v441
    %v3190 = vunpack.c.l.b16 %v442
    %v3191 = vunpack.c.h.b16 %v442
    %v3192 = vunpack.c.l.b16 %v443
    %v3193 = vunpack.c.h.b16 %v443
    %v3194 = vunpack.c.l.b16 %v444
    %v3195 = vunpack.c.l.b16 %v445
    %v3196 = vunpack.c.h.b16 %v445
    %v3197 = vunpack.c.l.b16 %v446
    %v3198 = vunpack.c.h.b16 %v446
    %v3199 = vunpack.c.l.b16 %v447
    %v3200 = vunpack.c.l.b16 %v448
    %v3201 = vunpack.c.h.b16 %v448
    %v3202 = vunpack.c.l.b16 %v449
    %v3203 = vunpack.c.h.b16 %v449
    %v3204 = vunpack.c.l.b16 %v450
    %v3205 = vunpack.c.l.b16 %v451
    %v3206 = vunpack.c.h.b16 %v451
    %v3207 = vunpack.c.l.b16 %v452
    %v3208 = vunpack.c.h.b16 %v452
    %v3209 = vunpack.c.l.b16 %v453
    %v3210 = vunpack.c.l.b16 %v454
    %v3211 = vunpack.c.h.b16 %v454
    %v3212 = vunpack.c.l.b16 %v455
    %v3213 = vunpack.c.h.b16 %v455
    %v3214 = vunpack.c.l.b16 %v456
    %v3215 = vunpack.c.l.b16 %v457
    %v3216 = vunpack.c.h.b16 %v457
    %v3217 = vunpack.c.l.b16 %v458
    %v3218 = vunpack.c.h.b16 %v458
    %v3219 = vunpack.c.l.b16 %v459
    %v3220 = vunpack.c.l.b16 %v460
    %v3221 = vunpack.c.h.b16 %v460
    %v3222 = vunpack.c.l.b16 %v461
    %v3223 = vunpack.c.h.b16 %v461
    %v3224 = vunpack.c.l.b16 %v462
    %v3225 = vunpack.c.l.b16 %v463
    %v3226 = vunpack.c.h.b16 %v463
    %v3227 = vunpack.c.l.b16 %v464
    %v3228 = vunpack.c.h.b16 %v464
    %v3229 = vunpack.c.l.b16 %v465
    %v3230 = vunpack.c.l.b16 %v466
    %v3231 = vunpack.c.h.b16 %v466
    %v3232 = vunpack.c.l.b16 %v467
    %v3233 = vunpack.c.h.b16 %v467
    %v3234 = vunpack.c.l.b16 %v468
    %v3235 = vunpack.c.l.b16 %v469
    %v3236 = vunpack.c.h.b16 %v469
    %v3237 = vunpack.c.l.b16 %v470
    %v3238 = vunpack.c.h.b16 %v470
    %v3239 = vunpack.c.l.b16 %v471
    %v3240 = vunpack.c.l.b16 %v472
    %v3241 = vunpack.c.h.b16 %v472
    %v3242 = vunpack.c.l.b16 %v473
    %v3243 = vunpack.c.h.b16 %v473
    %v3244 = vunpack.c.l.b16 %v474
    %v3245 = vunpack.c.l.b16 %v475
    %v3246 = vunpack.c.h.b16 %v475
    %v3247 = vunpack.c.l.b16 %v476
    %v3248 = vunpack.c.h.b16 %v476
    %v3249 = vunpack.c.l.b16 %v477
    %v3250 = vunpack.c.l.b16 %v478
    %v3251 = vunpack.c.h.b16 %v478
    %v3252 = vunpack.c.l.b16 %v479
    %v3253 = vunpack.c.h.b16 %v479
    %v3254 = vunpack.c.l.b16 %v480
    %v3255 = vunpack.c.l.b16 %v481
    %v3256 = vunpack.c.h.b16 %v481
    %v3257 = vunpack.c.l.b16 %v482
    %v3258 = vunpack.c.h.b16 %v482
    %v3259 = vunpack.c.l.b16 %v483
    %v3260 = vunpack.c.l.b16 %v484
    %v3261 = vunpack.c.h.b16 %v484
    %v3262 = vunpack.c.l.b16 %v485
    %v3263 = vunpack.c.h.b16 %v485
    %v3264 = vunpack.c.l.b16 %v486
    %v3265 = vunpack.c.l.b16 %v487
    %v3266 = vunpack.c.h.b16 %v487
    %v3267 = vunpack.c.l.b16 %v488
    %v3268 = vunpack.c.h.b16 %v488
    %v3269 = vunpack.c.l.b16 %v489
    %v3270 = vunpack.c.l.b16 %v490
    %v3271 = vunpack.c.h.b16 %v490
    %v3272 = vunpack.c.l.b16 %v491
    %v3273 = vunpack.c.h.b16 %v491
    %v3274 = vunpack.c.l.b16 %v492
    %v3275 = vunpack.c.l.b16 %v493
    %v3276 = vunpack.c.h.b16 %v493
    %v3277 = vunpack.c.l.b16 %v494
    %v3278 = vunpack.c.h.b16 %v494
    %v3279 = vunpack.c.l.b16 %v495
    %v3280 = vunpack.c.l.b16 %v496
    %v3281 = vunpack.c.h.b16 %v496
    %v3282 = vunpack.c.l.b16 %v497
    %v3283 = vunpack.c.h.b16 %v497
    %v3284 = vunpack.c.l.b16 %v498
    %v3285 = vunpack.c.l.b16 %v499
    %v3286 = vunpack.c.h.b16 %v499
    %v3287 = vunpack.c.l.b16 %v500
    %v3288 = vunpack.c.h.b16 %v500
    %v3289 = vunpack.c.l.b16 %v501
    %v3290 = vunpack.c.l.b16 %v502
    %v3291 = vunpack.c.h.b16 %v502
    %v3292 = vunpack.c.l.b16 %v503
    %v3293 = vunpack.c.h.b16 %v503
    %v3294 = vunpack.c.l.b16 %v504
    %v3295 = vunpack.c.l.b16 %v505
    %v3296 = vunpack.c.h.b16 %v505
    %v3297 = vunpack.c.l.b16 %v506
    %v3298 = vunpack.c.h.b16 %v506
    %v3299 = vunpack.c.l.b16 %v507
    %v3300 = vunpack.c.l.b16 %v508
    %v3301 = vunpack.c.h.b16 %v508
    %v3302 = vunpack.c.l.b16 %v509
    %v3303 = vunpack.c.h.b16 %v509
    %v3304 = vunpack.c.l.b16 %v510
    %v3305 = vunpack.c.l.b16 %v511
    %v3306 = vunpack.c.h.b16 %v511
    %v3307 = vunpack.c.l.b16 %v512
    %v3308 = vunpack.c.h.b16 %v512
    %v3309 = vunpack.c.l.b16 %v513
    %v3310 = vunpack.c.l.b16 %v514
    %v3311 = vunpack.c.h.b16 %v514
    %v3312 = vunpack.c.l.b16 %v515
    %v3313 = vunpack.c.h.b16 %v515
    %v3314 = vunpack.c.l.b16 %v516
    %v3315 = vunpack.c.l.b16 %v517
    %v3316 = vunpack.c.h.b16 %v517
    %v3317 = vunpack.c.l.b16 %v518
    %v3318 = vunpack.c.h.b16 %v518
    %v3319 = vunpack.c.l.b16 %v519
    %v3320 = vunpack.c.l.b16 %v520
    %v3321 = vunpack.c.h.b16 %v520
    %v3322 = vunpack.c.l.b16 %v521
    %v3323 = vunpack.c.h.b16 %v521
    %v3324 = vunpack.c.l.b16 %v522
    %v3325 = vunpack.c.l.b16 %v523
    %v3326 = vunpack.c.h.b16 %v523
    %v3327 = vunpack.c.l.b16 %v524
    %v3328 = vunpack.c.h.b16 %v524
    %v3329 = vunpack.c.l.b16 %v525
    %v3330 = vunpack.c.l.b16 %v526
    %v3331 = vunpack.c.h.b16 %v526
    %v3332 = vunpack.c.l.b16 %v527
    %v3333 = vunpack.c.h.b16 %v527
    %v3334 = vunpack.c.l.b16 %v528
    %v3335 = vunpack.c.l.b16 %v529
    %v3336 = vunpack.c.h.b16 %v529
    %v3337 = vunpack.c.l.b16 %v530
    %v3338 = vunpack.c.h.b16 %v530
    %v3339 = vunpack.c.l.b16 %v531
    %v3340 = vunpack.c.l.b16 %v532
    %v3341 = vunpack.c.h.b16 %v532
    %v3342 = vunpack.c.l.b16 %v533
    %v3343 = vunpack.c.h.b16 %v533
    %v3344 = vunpack.c.l.b16 %v534
    %v3345 = vunpack.c.l.b16 %v535
    %v3346 = vunpack.c.h.b16 %v535
    %v3347 = vunpack.c.l.b16 %v536
    %v3348 = vunpack.c.h.b16 %v536
    %v3349 = vunpack.c.l.b16 %v537
    %v3350 = vunpack.c.l.b16 %v538
    %v3351 = vunpack.c.h.b16 %v538
    %v3352 = vunpack.c.l.b16 %v539
    %v3353 = vunpack.c.h.b16 %v539
    %v3354 = vunpack.c.l.b16 %v540
    %v3355 = vunpack.c.l.b16 %v541
    %v3356 = vunpack.c.h.b16 %v541
    %v3357 = vunpack.c.l.b16 %v542
    %v3358 = vunpack.c.h.b16 %v542
    %v3359 = vunpack.c.l.b16 %v543
    %v3360 = vunpack.c.l.b16 %v544
    %v3361 = vunpack.c.h.b16 %v544
    %v3362 = vunpack.c.l.b16 %v545
    %v3363 = vunpack.c.h.b16 %v545
    %v3364 = vunpack.c.l.b16 %v546
    %v3365 = vunpack.c.l.b16 %v547
    %v3366 = vunpack.c.h.b16 %v547
    %v3367 = vunpack.c.l.b16 %v548
    %v3368 = vunpack.c.h.b16 %v548
    %v3369 = vunpack.c.l.b16 %v549
    %v3370 = vunpack.c.l.b16 %v550
    %v3371 = vunpack.c.h.b16 %v550
    %v3372 = vunpack.c.l.b16 %v551
    %v3373 = vunpack.c.h.b16 %v551
    %v3374 = vunpack.c.l.b16 %v552
    %v3375 = vunpack.c.l.b16 %v553
    %v3376 = vunpack.c.h.b16 %v553
    %v3377 = vunpack.c.l.b16 %v554
    %v3378 = vunpack.c.h.b16 %v554
    %v3379 = vunpack.c.l.b16 %v555
    %v3380 = vunpack.c.l.b16 %v556
    %v3381 = vunpack.c.h.b16 %v556
    %v3382 = vunpack.c.l.b16 %v557
    %v3383 = vunpack.c.h.b16 %v557
    %v3384 = vunpack.c.l.b16 %v558
    %v3385 = vunpack.c.l.b16 %v559
    %v3386 = vunpack.c.h.b16 %v559
    %v3387 = vunpack.c.l.b16 %v560
    %v3388 = vunpack.c.h.b16 %v560
    %v3389 = vunpack.c.l.b16 %v561
    %v3390 = vunpack.c.l.b16 %v562
    %v3391 = vunpack.c.h.b16 %v562
    %v3392 = vunpack.c.l.b16 %v563
    %v3393 = vunpack.c.h.b16 %v563
    %v3394 = vunpack.c.l.b16 %v564
    %v3395 = vunpack.c.l.b16 %v565
    %v3396 = vunpack.c.h.b16 %v565
    %v3397 = vunpack.c.l.b16 %v566
    %v3398 = vunpack.c.h.b16 %v566
    %v3399 = vunpack.c.l.b16 %v567
    %v3400 = vunpack.c.l.b16 %v568
    %v3401 = vunpack.c.h.b16 %v568
    %v3402 = vunpack.c.l.b16 %v569
    %v3403 = vunpack.c.h.b16 %v569
    %v3404 = vunpack.c.l.b16 %v570
    %v3405 = vunpack.c.l.b16 %v571
    %v3406 = vunpack.c.h.b16 %v571
    %v3407 = vunpack.c.l.b16 %v572
    %v3408 = vunpack.c.h.b16 %v572
    %v3409 = vunpack.c.l.b16 %v573
    %v3410 = vunpack.c.l.b16 %v574
    %v3411 = vunpack.c.h.b16 %v574
    %v3412 = vunpack.c.l.b16 %v575
    %v3413 = vunpack.c.h.b16 %v575
    %v3414 = vunpack.c.l.b16 %v576
    %v3415 = vunpack.c.l.b16 %v577
    %v3416 = vunpack.c.h.b16 %v577
    %v3417 = vunpack.c.l.b16 %v578
    %v3418 = vunpack.c.h.b16 %v578
    %v3419 = vunpack.c.l.b16 %v579
    %v3420 = vunpack.c.l.b16 %v580
    %v3421 = vunpack.c.h.b16 %v580
    %v3422 = vunpack.c.l.b16 %v581
    %v3423 = vunpack.c.h.b16 %v581
    %v3424 = vunpack.c.l.b16 %v582
    %v3425 = vunpack.c.l.b16 %v583
    %v3426 = vunpack.c.h.b16 %v583
    %v3427 = vunpack.c.l.b16 %v584
    %v3428 = vunpack.c.h.b16 %v584
    %v3429 = vunpack.c.l.b16 %v585
    %v3430 = vunpack.c.l.b16 %v586
    %v3431 = vunpack.c.h.b16 %v586
    %v3432 = vunpack.c.l.b16 %v587
    %v3433 = vunpack.c.h.b16 %v587
    %v3434 = vunpack.c.l.b16 %v588
    %v3435 = vunpack.c.l.b16 %v589
    %v3436 = vunpack.c.h.b16 %v589
    %v3437 = vunpack.c.l.b16 %v590
    %v3438 = vunpack.c.h.b16 %v590
    %v3439 = vunpack.c.l.b16 %v591
    %v3440 = vunpack.c.l.b16 %v592
    %v3441 = vunpack.c.h.b16 %v592
    %v3442 = vunpack.c.l.b16 %v593
    %v3443 = vunpack.c.h.b16 %v593
    %v3444 = vunpack.c.l.b16 %v594
    %v3445 = vunpack.c.l.b16 %v595
    %v3446 = vunpack.c.h.b16 %v595
    %v3447 = vunpack.c.l.b16 %v596
    %v3448 = vunpack.c.h.b16 %v596
    %v3449 = vunpack.c.l.b16 %v597
    %v3450 = vunpack.c.l.b16 %v598
    %v3451 = vunpack.c.h.b16 %v598
    %v3452 = vunpack.c.l.b16 %v599
    %v3453 = vunpack.c.h.b16 %v599
    %v3454 = vunpack.c.l.b16 %v600
    %v3455 = vunpack.c.l.b16 %v601
    %v3456 = vunpack.c.h.b16 %v601
    %v3457 = vunpack.c.l.b16 %v602
    %v3458 = vunpack.c.h.b16 %v602
    %v3459 = vunpack.c.l.b16 %v603
    %v3460 = vunpack.c.l.b16 %v604
    %v3461 = vunpack.c.h.b16 %v604
    %v3462 = vunpack.c.l.b16 %v605
    %v3463 = vunpack.c.h.b16 %v605
    %v3464 = vunpack.c.l.b16 %v606
    %v3465 = vunpack.c.l.b16 %v607
    %v3466 = vunpack.c.h.b16 %v607
    %v3467 = vunpack.c.l.b16 %v608
    %v3468 = vunpack.c.h.b16 %v608
    %v3469 = vunpack.c.l.b16 %v609
    %v3470 = vunpack.c.l.b16 %v610
    %v3471 = vunpack.c.h.b16 %v610
    %v3472 = vunpack.c.l.b16 %v611
    %v3473 = vunpack.c.h.b16 %v611
    %v3474 = vunpack.c.l.b16 %v612
    %v3475 = vunpack.c.l.b16 %v613
    %v3476 = vunpack.c.h.b16 %v613
    %v3477 = vunpack.c.l.b16 %v614
    %v3478 = vunpack.c.h.b16 %v614
    %v3479 = vunpack.c.l.b16 %v615
    %v3480 = vunpack.c.l.b16 %v616
    %v3481 = vunpack.c.h.b16 %v616
    %v3482 = vunpack.c.l.b16 %v617
    %v3483 = vunpack.c.h.b16 %v617
    %v3484 = vunpack.c.l.b16 %v618
    %v3485 = vunpack.c.l.b16 %v619
    %v3486 = vunpack.c.h.b16 %v619
    %v3487 = vunpack.c.l.b16 %v620
    %v3488 = vunpack.c.h.b16 %v620
    %v3489 = vunpack.c.l.b16 %v621
    %v3490 = vunpack.c.l.b16 %v622
    %v3491 = vunpack.c.h.b16 %v622
    %v3492 = vunpack.c.l.b16 %v623
    %v3493 = vunpack.c.h.b16 %v623
    %v3494 = vunpack.c.l.b16 %v624
    %v3495 = vunpack.c.l.b16 %v625
    %v3496 = vunpack.c.h.b16 %v625
    %v3497 = vunpack.c.l.b16 %v626
    %v3498 = vunpack.c.h.b16 %v626
    %v3499 = vunpack.c.l.b16 %v627
    %v3500 = vunpack.c.l.b16 %v628
    %v3501 = vunpack.c.h.b16 %v628
    %v3502 = vunpack.c.l.b16 %v629
    %v3503 = vunpack.c.h.b16 %v629
    %v3504 = vunpack.c.l.b16 %v630
    %v3505 = vunpack.c.l.b16 %v631
    %v3506 = vunpack.c.h.b16 %v631
    %v3507 = vunpack.c.l.b16 %v632
    %v3508 = vunpack.c.h.b16 %v632
    %v3509 = vunpack.c.l.b16 %v633
    %v3510 = vunpack.c.l.b16 %v634
    %v3511 = vunpack.c.h.b16 %v634
    %v3512 = vunpack.c.l.b16 %v635
    %v3513 = vunpack.c.h.b16 %v635
    %v3514 = vunpack.c.l.b16 %v636
    %v3515 = vunpack.c.l.b16 %v637
    %v3516 = vunpack.c.h.b16 %v637
    %v3517 = vunpack.c.l.b16 %v638
    %v3518 = vunpack.c.h.b16 %v638
    %v3519 = vunpack.c.l.b16 %v639
    %v3520 = vunpack.c.l.b16 %v640
    %v3521 = vunpack.c.h.b16 %v640
    %v3522 = vunpack.c.l.b16 %v641
    %v3523 = vunpack.c.h.b16 %v641
    %v3524 = vunpack.c.l.b16 %v642
    %v3525 = vunpack.c.l.b16 %v643
    %v3526 = vunpack.c.h.b16 %v643
    %v3527 = vunpack.c.l.b16 %v644
    %v3528 = vunpack.c.h.b16 %v644
    %v3529 = vunpack.c.l.b16 %v645
    %v3530 = vunpack.c.l.b16 %v646
    %v3531 = vunpack.c.h.b16 %v646
    %v3532 = vunpack.c.l.b16 %v647
    %v3533 = vunpack.c.h.b16 %v647
    %v3534 = vunpack.c.l.b16 %v648
    %v3535 = vunpack.c.l.b16 %v649
    %v3536 = vunpack.c.h.b16 %v649
    %v3537 = vunpack.c.l.b16 %v650
    %v3538 = vunpack.c.h.b16 %v650
    %v3539 = vunpack.c.l.b16 %v651
    %v3540 = vunpack.c.l.b16 %v652
    %v3541 = vunpack.c.h.b16 %v652
    %v3542 = vunpack.c.l.b16 %v653
    %v3543 = vunpack.c.h.b16 %v653
    %v3544 = vunpack.c.l.b16 %v654
    %v3545 = vunpack.c.l.b16 %v655
    %v3546 = vunpack.c.h.b16 %v655
    %v3547 = vunpack.c.l.b16 %v656
    %v3548 = vunpack.c.h.b16 %v656
    %v3549 = vunpack.c.l.b16 %v657
    %v3550 = vunpack.c.l.b16 %v658
    %v3551 = vunpack.c.h.b16 %v658
    %v3552 = vunpack.c.l.b16 %v659
    %v3553 = vunpack.c.h.b16 %v659
    %v3554 = vunpack.c.l.b16 %v660
    %v3555 = vunpack.c.l.b16 %v661
    %v3556 = vunpack.c.h.b16 %v661
    %v3557 = vunpack.c.l.b16 %v662
    %v3558 = vunpack.c.h.b16 %v662
    %v3559 = vunpack.c.l.b16 %v663
    %v3560 = vunpack.c.l.b16 %v664
    %v3561 = vunpack.c.h.b16 %v664
    %v3562 = vunpack.c.l.b16 %v665
    %v3563 = vunpack.c.h.b16 %v665
    %v3564 = vunpack.c.l.b16 %v666
    %v3565 = vunpack.c.l.b16 %v667
    %v3566 = vunpack.c.h.b16 %v667
    %v3567 = vunpack.c.l.b16 %v668
    %v3568 = vunpack.c.h.b16 %v668
    %v3569 = vunpack.c.l.b16 %v669
    %v3570 = vunpack.c.l.b16 %v670
    %v3571 = vunpack.c.h.b16 %v670
    %v3572 = vunpack.c.l.b16 %v671
    %v3573 = vunpack.c.h.b16 %v671
    %v3574 = vunpack.c.l.b16 %v672
    %v3575 = vunpack.c.l.b16 %v673
    %v3576 = vunpack.c.h.b16 %v673
    %v3577 = vunpack.c.l.b16 %v674
    %v3578 = vunpack.c.h.b16 %v674
    %v3579 = vunpack.c.l.b16 %v675
    %v3580 = vunpack.c.l.b16 %v676
    %v3581 = vunpack.c.h.b16 %v676
    %v3582 = vunpack.c.l.b16 %v677
    %v3583 = vunpack.c.h.b16 %v677
    %v3584 = vunpack.c.l.b16 %v678
    %v3585 = vunpack.c.l.b16 %v679
    %v3586 = vunpack.c.h.b16 %v679
    %v3587 = vunpack.c.l.b16 %v680
    %v3588 = vunpack.c.h.b16 %v680
    %v3589 = vunpack.c.l.b16 %v681
    %v3590 = vunpack.c.l.b16 %v682
    %v3591 = vunpack.c.h.b16 %v682
    %v3592 = vunpack.c.l.b16 %v683
    %v3593 = vunpack.c.h.b16 %v683
    %v3594 = vunpack.c.l.b16 %v684
    %v3595 = vunpack.c.l.b16 %v685
    %v3596 = vunpack.c.h.b16 %v685
    %v3597 = vunpack.c.l.b16 %v686
    %v3598 = vunpack.c.h.b16 %v686
    %v3599 = vunpack.c.l.b16 %v687
    %v3600 = vunpack.c.l.b16 %v688
    %v3601 = vunpack.c.h.b16 %v688
    %v3602 = vunpack.c.l.b16 %v689
    %v3603 = vunpack.c.h.b16 %v689
    %v3604 = vunpack.c.l.b16 %v690
    %v3605 = vunpack.c.l.b16 %v691
    %v3606 = vunpack.c.h.b16 %v691
    %v3607 = vunpack.c.l.b16 %v692
    %v3608 = vunpack.c.h.b16 %v692
    %v3609 = vunpack.c.l.b16 %v693
    %v3610 = vunpack.c.l.b16 %v694
    %v3611 = vunpack.c.h.b16 %v694
    %v3612 = vunpack.c.l.b16 %v695
    %v3613 = vunpack.c.h.b16 %v695
    %v3614 = vunpack.c.l.b16 %v696
    %v3615 = vunpack.c.l.b16 %v697
    %v3616 = vunpack.c.h.b16 %v697
    %v3617 = vunpack.c.l.b16 %v698
    %v3618 = vunpack.c.h.b16 %v698
    %v3619 = vunpack.c.l.b16 %v699
    %v3620 = vunpack.c.l.b16 %v700
    %v3621 = vunpack.c.h.b16 %v700
    %v3622 = vunpack.c.l.b16 %v701
    %v3623 = vunpack.c.h.b16 %v701
    %v3624 = vunpack.c.l.b16 %v702
    %v3625 = vunpack.c.l.b16 %v703
    %v3626 = vunpack.c.h.b16 %v703
    %v3627 = vunpack.c.l.b16 %v704
    %v3628 = vunpack.c.h.b16 %v704
    %v3629 = vunpack.c.l.b16 %v705
    %v3630 = vunpack.c.l.b16 %v706
    %v3631 = vunpack.c.h.b16 %v706
    %v3632 = vunpack.c.l.b16 %v707
    %v3633 = vunpack.c.h.b16 %v707
    %v3634 = vunpack.c.l.b16 %v708
    %v3635 = vunpack.c.l.b16 %v709
    %v3636 = vunpack.c.h.b16 %v709
    %v3637 = vunpack.c.l.b16 %v710
    %v3638 = vunpack.c.h.b16 %v710
    %v3639 = vunpack.c.l.b16 %v711
    %v3640 = vunpack.c.l.b16 %v712
    %v3641 = vunpack.c.h.b16 %v712
    %v3642 = vunpack.c.l.b16 %v713
    %v3643 = vunpack.c.h.b16 %v713
    %v3644 = vunpack.c.l.b16 %v714
    %v3645 = vunpack.c.l.b16 %v715
    %v3646 = vunpack.c.h.b16 %v715
    %v3647 = vunpack.c.l.b16 %v716
    %v3648 = vunpack.c.h.b16 %v716
    %v3649 = vunpack.c.l.b16 %v717
    %v3650 = vunpack.c.l.b16 %v718
    %v3651 = vunpack.c.h.b16 %v718
    %v3652 = vunpack.c.l.b16 %v719
    %v3653 = vunpack.c.h.b16 %v719
    %v3654 = vunpack.c.l.b16 %v720
    %v3655 = vunpack.c.l.b16 %v721
    %v3656 = vunpack.c.h.b16 %v721
    %v3657 = vunpack.c.l.b16 %v722
    %v3658 = vunpack.c.h.b16 %v722
    %v3659 = vunpack.c.l.b16 %v723
    %v3660 = vunpack.c.l.b16 %v724
    %v3661 = vunpack.c.h.b16 %v724
    %v3662 = vunpack.c.l.b16 %v725
    %v3663 = vunpack.c.h.b16 %v725
    %v3664 = vunpack.c.l.b16 %v726
    %v3665 = vunpack.c.l.b16 %v727
    %v3666 = vunpack.c.h.b16 %v727
    %v3667 = vunpack.c.l.b16 %v728
    %v3668 = vunpack.c.h.b16 %v728
    %v3669 = vunpack.c.l.b16 %v729
    %v3670 = vunpack.c.l.b16 %v730
    %v3671 = vunpack.c.h.b16 %v730
    %v3672 = vunpack.c.l.b16 %v731
    %v3673 = vunpack.c.h.b16 %v731
    %v3674 = vunpack.c.l.b16 %v732
    %v3675 = vunpack.c.l.b16 %v733
    %v3676 = vunpack.c.h.b16 %v733
    %v3677 = vunpack.c.l.b16 %v734
    %v3678 = vunpack.c.h.b16 %v734
    %v3679 = vunpack.c.l.b16 %v735
    %v3680 = vunpack.c.l.b16 %v736
    %v3681 = vunpack.c.h.b16 %v736
    %v3682 = vunpack.c.l.b16 %v737
    %v3683 = vunpack.c.h.b16 %v737
    %v3684 = vunpack.c.l.b16 %v738
    %v3685 = vunpack.c.l.b16 %v739
    %v3686 = vunpack.c.h.b16 %v739
    %v3687 = vunpack.c.l.b16 %v740
    %v3688 = vunpack.c.h.b16 %v740
    %v3689 = vunpack.c.l.b16 %v741
    %v3690 = vunpack.c.l.b16 %v742
    %v3691 = vunpack.c.h.b16 %v742
    %v3692 = vunpack.c.l.b16 %v743
    %v3693 = vunpack.c.h.b16 %v743
    %v3694 = vunpack.c.l.b16 %v744
    %v3695 = vunpack.c.l.b16 %v745
    %v3696 = vunpack.c.h.b16 %v745
    %v3697 = vunpack.c.l.b16 %v746
    %v3698 = vunpack.c.h.b16 %v746
    %v3699 = vunpack.c.l.b16 %v747
    %v3700 = vunpack.c.l.b16 %v748
    %v3701 = vunpack.c.h.b16 %v748
    %v3702 = vunpack.c.l.b16 %v749
    %v3703 = vunpack.c.h.b16 %v749
    %v3704 = vunpack.c.l.b16 %v750
    %v3705 = vunpack.c.l.b16 %v751
    %v3706 = vunpack.c.h.b16 %v751
    %v3707 = vunpack.c.l.b16 %v752
    %v3708 = vunpack.c.h.b16 %v752
    %v3709 = vunpack.c.l.b16 %v753
    %v3710 = vunpack.c.l.b16 %v754
    %v3711 = vunpack.c.h.b16 %v754
    %v3712 = vunpack.c.l.b16 %v755
    %v3713 = vunpack.c.h.b16 %v755
    %v3714 = vunpack.c.l.b16 %v756
    %v3715 = vunpack.c.l.b16 %v757
    %v3716 = vunpack.c.h.b16 %v757
    %v3717 = vunpack.c.l.b16 %v758
    %v3718 = vunpack.c.h.b16 %v758
    %v3719 = vunpack.c.l.b16 %v759
    %v3720 = vunpack.c.l.b16 %v760
    %v3721 = vunpack.c.h.b16 %v760
    %v3722 = vunpack.c.l.b16 %v761
    %v3723 = vunpack.c.h.b16 %v761
    %v3724 = vunpack.c.l.b16 %v762
    %v3725 = vunpack.c.l.b16 %v763
    %v3726 = vunpack.c.h.b16 %v763
    %v3727 = vunpack.c.l.b16 %v764
    %v3728 = vunpack.c.h.b16 %v764
    %v3729 = vunpack.c.l.b16 %v765
    %v3730 = vunpack.c.l.b16 %v766
    %v3731 = vunpack.c.h.b16 %v766
    %v3732 = vunpack.c.l.b16 %v767
    %v3733 = vunpack.c.h.b16 %v767
    %v3734 = vunpack.c.l.b16 %v768
    %v3735 = vunpack.c.l.b16 %v769
    %v3736 = vunpack.c.h.b16 %v769
    %v3737 = vunpack.c.l.b16 %v770
    %v3738 = vunpack.c.h.b16 %v770
    %v3739 = vunpack.c.l.b16 %v771
    %v3740 = vunpack.c.l.b16 %v772
    %v3741 = vunpack.c.h.b16 %v772
    %v3742 = vunpack.c.l.b16 %v773
    %v3743 = vunpack.c.h.b16 %v773
    %v3744 = vunpack.c.l.b16 %v774
    %v3745 = vunpack.c.l.b16 %v775
    %v3746 = vunpack.c.h.b16 %v775
    %v3747 = vunpack.c.l.b16 %v776
    %v3748 = vunpack.c.h.b16 %v776
    %v3749 = vunpack.c.l.b16 %v777
    %v3750 = vunpack.c.l.b16 %v778
    %v3751 = vunpack.c.h.b16 %v778
    %v3752 = vunpack.c.l.b16 %v779
    %v3753 = vunpack.c.h.b16 %v779
    %v3754 = vunpack.c.l.b16 %v780
    %v3755 = vunpack.c.l.b16 %v781
    %v3756 = vunpack.c.h.b16 %v781
    %v3757 = vunpack.c.l.b16 %v782
    %v3758 = vunpack.c.h.b16 %v782
    %v3759 = vunpack.c.l.b16 %v783
    %v3760 = vunpack.c.l.b16 %v784
    %v3761 = vunpack.c.h.b16 %v784
    %v3762 = vunpack.c.l.b16 %v785
    %v3763 = vunpack.c.h.b16 %v785
    %v3764 = vunpack.c.l.b16 %v786
    %v3765 = vunpack.c.l.b16 %v787
    %v3766 = vunpack.c.h.b16 %v787
    %v3767 = vunpack.c.l.b16 %v788
    %v3768 = vunpack.c.h.b16 %v788
    %v3769 = vunpack.c.l.b16 %v789
    %v3770 = vunpack.c.l.b16 %v790
    %v3771 = vunpack.c.h.b16 %v790
    %v3772 = vunpack.c.l.b16 %v791
    %v3773 = vunpack.c.h.b16 %v791
    %v3774 = vunpack.c.l.b16 %v792
    %v3775 = vunpack.c.l.b16 %v793
    %v3776 = vunpack.c.h.b16 %v793
    %v3777 = vunpack.c.l.b16 %v794
    %v3778 = vunpack.c.h.b16 %v794
    %v3779 = vunpack.c.l.b16 %v795
    %v3780 = vunpack.c.l.b16 %v796
    %v3781 = vunpack.c.h.b16 %v796
    %v3782 = vunpack.c.l.b16 %v797
    %v3783 = vunpack.c.h.b16 %v797
    %v3784 = vunpack.c.l.b16 %v798
    %v3785 = vunpack.c.l.b16 %v799
    %v3786 = vunpack.c.h.b16 %v799
    %v3787 = vunpack.c.l.b16 %v800
    %v3788 = vunpack.c.h.b16 %v800
    %v3789 = vunpack.c.l.b16 %v801
    %v3790 = vunpack.c.l.b16 %v802
    %v3791 = vunpack.c.h.b16 %v802
    %v3792 = vunpack.c.l.b16 %v803
    %v3793 = vunpack.c.h.b16 %v803
    %v3794 = vunpack.c.l.b16 %v804
    %v3795 = vunpack.c.l.b16 %v805
    %v3796 = vunpack.c.h.b16 %v805
    %v3797 = vunpack.c.l.b16 %v806
    %v3798 = vunpack.c.h.b16 %v806
    %v3799 = vunpack.c.l.b16 %v807
    %v3800 = vunpack.c.l.b16 %v808
    %v3801 = vunpack.c.h.b16 %v808
    %v3802 = vunpack.c.l.b16 %v809
    %v3803 = vunpack.c.h.b16 %v809
    %v3804 = vunpack.c.l.b16 %v810
    %v3805 = vunpack.c.l.b16 %v811
    %v3806 = vunpack.c.h.b16 %v811
    %v3807 = vunpack.c.l.b16 %v812
    %v3808 = vunpack.c.h.b16 %v812
    %v3809 = vunpack.c.l.b16 %v813
    %v3810 = vunpack.c.l.b16 %v814
    %v3811 = vunpack.c.h.b16 %v814
    %v3812 = vunpack.c.l.b16 %v815
    %v3813 = vunpack.c.h.b16 %v815
    %v3814 = vunpack.c.l.b16 %v816
    %v3815 = vunpack.c.l.b16 %v817
    %v3816 = vunpack.c.h.b16 %v817
    %v3817 = vunpack.c.l.b16 %v818
    %v3818 = vunpack.c.h.b16 %v818
    %v3819 = vunpack.c.l.b16 %v819
    %v3820 = vunpack.c.l.b16 %v820
    %v3821 = vunpack.c.h.b16 %v820
    %v3822 = vunpack.c.l.b16 %v821
    %v3823 = vunpack.c.h.b16 %v821
    %v3824 = vunpack.c.l.b16 %v822
    %v3825 = vunpack.c.l.b16 %v823
    %v3826 = vunpack.c.h.b16 %v823
    %v3827 = vunpack.c.l.b16 %v824
    %v3828 = vunpack.c.h.b16 %v824
    %v3829 = vunpack.c.l.b16 %v825
    %v3830 = vunpack.c.l.b16 %v826
    %v3831 = vunpack.c.h.b16 %v826
    %v3832 = vunpack.c.l.b16 %v827
    %v3833 = vunpack.c.h.b16 %v827
    %v3834 = vunpack.c.l.b16 %v828
    %v3835 = vunpack.c.l.b16 %v829
    %v3836 = vunpack.c.h.b16 %v829
    %v3837 = vunpack.c.l.b16 %v830
    %v3838 = vunpack.c.h.b16 %v830
    %v3839 = vunpack.c.l.b16 %v831
    %v3840 = vunpack.c.l.b16 %v832
    %v3841 = vunpack.c.h.b16 %v832
    %v3842 = vunpack.c.l.b16 %v833
    %v3843 = vunpack.c.h.b16 %v833
    %v3844 = vunpack.c.l.b16 %v834
    %v3845 = vunpack.c.l.b16 %v835
    %v3846 = vunpack.c.h.b16 %v835
    %v3847 = vunpack.c.l.b16 %v836
    %v3848 = vunpack.c.h.b16 %v836
    %v3849 = vunpack.c.l.b16 %v837
    %v3850 = vunpack.c.l.b16 %v838
    %v3851 = vunpack.c.h.b16 %v838
    %v3852 = vunpack.c.l.b16 %v839
    %v3853 = vunpack.c.h.b16 %v839
    %v3854 = vunpack.c.l.b16 %v840
    %v3855 = vunpack.c.l.b16 %v841
    %v3856 = vunpack.c.h.b16 %v841
    %v3857 = vunpack.c.l.b16 %v842
    %v3858 = vunpack.c.h.b16 %v842
    %v3859 = vunpack.c.l.b16 %v843
    %v3860 = vunpack.c.l.b16 %v844
    %v3861 = vunpack.c.h.b16 %v844
    %v3862 = vunpack.c.l.b16 %v845
    %v3863 = vunpack.c.h.b16 %v845
    %v3864 = vunpack.c.l.b16 %v846
    %v3865 = vunpack.c.l.b16 %v847
    %v3866 = vunpack.c.h.b16 %v847
    %v3867 = vunpack.c.l.b16 %v848
    %v3868 = vunpack.c.h.b16 %v848
    %v3869 = vunpack.c.l.b16 %v849
    %v3870 = vunpack.c.l.b16 %v850
    %v3871 = vunpack.c.h.b16 %v850
    %v3872 = vunpack.c.l.b16 %v851
    %v3873 = vunpack.c.h.b16 %v851
    %v3874 = vunpack.c.l.b16 %v852
    %v3875 = vunpack.c.l.b16 %v853
    %v3876 = vunpack.c.h.b16 %v853
    %v3877 = vunpack.c.l.b16 %v854
    %v3878 = vunpack.c.h.b16 %v854
    %v3879 = vunpack.c.l.b16 %v855
    %v3880 = vunpack.c.l.b16 %v856
    %v3881 = vunpack.c.h.b16 %v856
    %v3882 = vunpack.c.l.b16 %v857
    %v3883 = vunpack.c.h.b16 %v857
    %v3884 = vunpack.c.l.b16 %v858
    %v3885 = vunpack.c.l.b16 %v859
    %v3886 = vunpack.c.h.b16 %v859
    %v3887 = vunpack.c.l.b16 %v860
    %v3888 = vunpack.c.h.b16 %v860
    %v3889 = vunpack.c.l.b16 %v861
    %v3890 = vunpack.c.l.b16 %v862
    %v3891 = vunpack.c.h.b16 %v862
    %v3892 = vunpack.c.l.b16 %v863
    %v3893 = vunpack.c.h.b16 %v863
    %v3894 = vunpack.c.l.b16 %v864
    %v3895 = vunpack.c.l.b16 %v865
    %v3896 = vunpack.c.h.b16 %v865
    %v3897 = vunpack.c.l.b16 %v866
    %v3898 = vunpack.c.h.b16 %v866
    %v3899 = vunpack.c.l.b16 %v867
    %v3900 = vunpack.c.l.b16 %v868
    %v3901 = vunpack.c.h.b16 %v868
    %v3902 = vunpack.c.l.b16 %v869
    %v3903 = vunpack.c.h.b16 %v869
    %v3904 = vunpack.c.l.b16 %v870
    %v3905 = vunpack.c.l.b16 %v871
    %v3906 = vunpack.c.h.b16 %v871
    %v3907 = vunpack.c.l.b16 %v872
    %v3908 = vunpack.c.h.b16 %v872
    %v3909 = vunpack.c.l.b16 %v873
    %v3910 = vunpack.c.l.b16 %v874
    %v3911 = vunpack.c.h.b16 %v874
    %v3912 = vunpack.c.l.b16 %v875
    %v3913 = vunpack.c.h.b16 %v875
    %v3914 = vunpack.c.l.b16 %v876
    %v3915 = vunpack.c.l.b16 %v877
    %v3916 = vunpack.c.h.b16 %v877
    %v3917 = vunpack.c.l.b16 %v878
    %v3918 = vunpack.c.h.b16 %v878
    %v3919 = vunpack.c.l.b16 %v879
    %v3920 = vunpack.c.l.b16 %v880
    %v3921 = vunpack.c.h.b16 %v880
    %v3922 = vunpack.c.l.b16 %v881
    %v3923 = vunpack.c.h.b16 %v881
    %v3924 = vunpack.c.l.b16 %v882
    %v3925 = vunpack.c.l.b16 %v883
    %v3926 = vunpack.c.h.b16 %v883
    %v3927 = vunpack.c.l.b16 %v884
    %v3928 = vunpack.c.h.b16 %v884
    %v3929 = vunpack.c.l.b16 %v885
    %v3930 = vunpack.c.l.b16 %v886
    %v3931 = vunpack.c.h.b16 %v886
    %v3932 = vunpack.c.l.b16 %v887
    %v3933 = vunpack.c.h.b16 %v887
    %v3934 = vunpack.c.l.b16 %v888
    %v3935 = vunpack.c.l.b16 %v889
    %v3936 = vunpack.c.h.b16 %v889
    %v3937 = vunpack.c.l.b16 %v890
    %v3938 = vunpack.c.h.b16 %v890
    %v3939 = vunpack.c.l.b16 %v891
    %v3940 = vunpack.c.l.b16 %v892
    %v3941 = vunpack.c.h.b16 %v892
    %v3942 = vunpack.c.l.b16 %v893
    %v3943 = vunpack.c.h.b16 %v893
    %v3944 = vunpack.c.l.b16 %v894
    %v3945 = vunpack.c.l.b16 %v895
    %v3946 = vunpack.c.h.b16 %v895
    %v3947 = vunpack.c.l.b16 %v896
    %v3948 = vunpack.c.h.b16 %v896
    %v3949 = vunpack.c.l.b16 %v897
    %v3950 = vunpack.c.l.b16 %v898
    %v3951 = vunpack.c.h.b16 %v898
    %v3952 = vunpack.c.l.b16 %v899
    %v3953 = vunpack.c.h.b16 %v899
    %v3954 = vunpack.c.l.b16 %v900
    %v3955 = vunpack.c.l.b16 %v901
    %v3956 = vunpack.c.h.b16 %v901
    %v3957 = vunpack.c.l.b16 %v902
    %v3958 = vunpack.c.h.b16 %v902
    %v3959 = vunpack.c.l.b16 %v903
    %v3960 = vunpack.c.l.b16 %v904
    %v3961 = vunpack.c.h.b16 %v904
    %v3962 = vunpack.c.l.b16 %v905
    %v3963 = vunpack.c.h.b16 %v905
    %v3964 = vunpack.c.l.b16 %v906
    %v3965 = vunpack.c.l.b16 %v907
    %v3966 = vunpack.c.h.b16 %v907
    %v3967 = vunpack.c.l.b16 %v908
    %v3968 = vunpack.c.h.b16 %v908
    %v3969 = vunpack.c.l.b16 %v909
    %v3970 = vunpack.c.l.b16 %v910
    %v3971 = vunpack.c.h.b16 %v910
    %v3972 = vunpack.c.l.b16 %v911
    %v3973 = vunpack.c.h.b16 %v911
    %v3974 = vunpack.c.l.b16 %v912
    %v3975 = vunpack.c.l.b16 %v913
    %v3976 = vunpack.c.h.b16 %v913
    %v3977 = vunpack.c.l.b16 %v914
    %v3978 = vunpack.c.h.b16 %v914
    %v3979 = vunpack.c.l.b16 %v915
    %v3980 = vunpack.c.l.b16 %v916
    %v3981 = vunpack.c.h.b16 %v916
    %v3982 = vunpack.c.l.b16 %v917
    %v3983 = vunpack.c.h.b16 %v917
    %v3984 = vunpack.c.l.b16 %v918
    %v3985 = vunpack.c.l.b16 %v919
    %v3986 = vunpack.c.h.b16 %v919
    %v3987 = vunpack.c.l.b16 %v920
    %v3988 = vunpack.c.h.b16 %v920
    %v3989 = vunpack.c.l.b16 %v921
    %v3990 = vunpack.c.l.b16 %v922
    %v3991 = vunpack.c.h.b16 %v922
    %v3992 = vunpack.c.l.b16 %v923
    %v3993 = vunpack.c.h.b16 %v923
    %v3994 = vunpack.c.l.b16 %v924
    %v3995 = vunpack.c.l.b16 %v925
    %v3996 = vunpack.c.h.b16 %v925
    %v3997 = vunpack.c.l.b16 %v926
    %v3998 = vunpack.c.h.b16 %v926
    %v3999 = vunpack.c.l.b16 %v927
    %v4000 = vunpack.c.l.b16 %v928
    %v4001 = vunpack.c.h.b16 %v928
    %v4002 = vunpack.c.l.b16 %v929
    %v4003 = vunpack.c.h.b16 %v929
    %v4004 = vunpack.c.l.b16 %v930
    %v4005 = vunpack.c.l.b16 %v931
    %v4006 = vunpack.c.h.b16 %v931
    %v4007 = vunpack.c.l.b16 %v932
    %v4008 = vunpack.c.h.b16 %v932
    %v4009 = vunpack.c.l.b16 %v933
    %v4010 = vunpack.c.l.b16 %v934
    %v4011 = vunpack.c.h.b16 %v934
    %v4012 = vunpack.c.l.b16 %v935
    %v4013 = vunpack.c.h.b16 %v935
    %v4014 = vunpack.c.l.b16 %v936
    %v4015 = vunpack.c.l.b16 %v937
    %v4016 = vunpack.c.h.b16 %v937
    %v4017 = vunpack.c.l.b16 %v938
    %v4018 = vunpack.c.h.b16 %v938
    %v4019 = vunpack.c.l.b16 %v939
    %v4020 = vunpack.c.l.b16 %v940
    %v4021 = vunpack.c.h.b16 %v940
    %v4022 = vunpack.c.l.b16 %v941
    %v4023 = vunpack.c.h.b16 %v941
    %v4024 = vunpack.c.l.b16 %v942
    %v4025 = vunpack.c.l.b16 %v943
    %v4026 = vunpack.c.h.b16 %v943
    %v4027 = vunpack.c.l.b16 %v944
    %v4028 = vunpack.c.h.b16 %v944
    %v4029 = vunpack.c.l.b16 %v945
    %v4030 = vunpack.c.l.b16 %v946
    %v4031 = vunpack.c.h.b16 %v946
    %v4032 = vunpack.c.l.b16 %v947
    %v4033 = vunpack.c.h.b16 %v947
    %v4034 = vunpack.c.l.b16 %v948
    %v4035 = vunpack.c.l.b16 %v949
    %v4036 = vunpack.c.h.b16 %v949
    %v4037 = vunpack.c.l.b16 %v950
    %v4038 = vunpack.c.h.b16 %v950
    %v4039 = vunpack.c.l.b16 %v951
    %v4040 = vunpack.c.l.b16 %v952
    %v4041 = vunpack.c.h.b16 %v952
    %v4042 = vunpack.c.l.b16 %v953
    %v4043 = vunpack.c.h.b16 %v953
    %v4044 = vunpack.c.l.b16 %v954
    %v4045 = vunpack.c.l.b16 %v955
    %v4046 = vunpack.c.h.b16 %v955
    %v4047 = vunpack.c.l.b16 %v956
    %v4048 = vunpack.c.h.b16 %v956
    %v4049 = vunpack.c.l.b16 %v957
    %v4050 = vunpack.c.l.b16 %v958
    %v4051 = vunpack.c.h.b16 %v958
    %v4052 = vunpack.c.l.b16 %v959
    %v4053 = vunpack.c.h.b16 %v959
    %v4054 = vunpack.c.l.b16 %v960
    %v4055 = vunpack.c.l.b16 %v961
    %v4056 = vunpack.c.h.b16 %v961
    %v4057 = vunpack.c.l.b16 %v962
    %v4058 = vunpack.c.h.b16 %v962
    %v4059 = vunpack.c.l.b16 %v963
    %v4060 = vunpack.c.l.b16 %v964
    %v4061 = vunpack.c.h.b16 %v964
    %v4062 = vunpack.c.l.b16 %v965
    %v4063 = vunpack.c.h.b16 %v965
    %v4064 = vunpack.c.l.b16 %v966
    %v4065 = vunpack.c.l.b16 %v967
    %v4066 = vunpack.c.h.b16 %v967
    %v4067 = vunpack.c.l.b16 %v968
    %v4068 = vunpack.c.h.b16 %v968
    %v4069 = vunpack.c.l.b16 %v969
    %v4070 = vunpack.c.l.b16 %v970
    %v4071 = vunpack.c.h.b16 %v970
    %v4072 = vunpack.c.l.b16 %v971
    %v4073 = vunpack.c.h.b16 %v971
    %v4074 = vunpack.c.l.b16 %v972
    %v4075 = vunpack.c.l.b16 %v973
    %v4076 = vunpack.c.h.b16 %v973
    %v4077 = vunpack.c.l.b16 %v974
    %v4078 = vunpack.c.h.b16 %v974
    %v4079 = vunpack.c.l.b16 %v975
    %v4080 = vunpack.c.l.b16 %v976
    %v4081 = vunpack.c.h.b16 %v976
    %v4082 = vunpack.c.l.b16 %v977
    %v4083 = vunpack.c.h.b16 %v977
    %v4084 = vunpack.c.l.b16 %v978
    %v4085 = vunpack.c.l.b16 %v979
    %v4086 = vunpack.c.h.b16 %v979
    %v4087 = vunpack.c.l.b16 %v980
    %v4088 = vunpack.c.h.b16 %v980
    %v4089 = vunpack.c.l.b16 %v981
    %v4090 = vunpack.c.l.b16 %v982
    %v4091 = vunpack.c.h.b16 %v982
    %v4092 = vunpack.c.l.b16 %v983
    %v4093 = vunpack.c.h.b16 %v983
    %v4094 = vunpack.c.l.b16 %v984
    %v4095 = vunpack.c.l.b16 %v985
    %v4096 = vunpack.c.h.b16 %v985
    %v4097 = vunpack.c.l.b16 %v986
    %v4098 = vunpack.c.h.b16 %v986
    %v4099 = vunpack.c.l.b16 %v987
    %v4100 = vunpack.c.l.b16 %v988
    %v4101 = vunpack.c.h.b16 %v988
    %v4102 = vunpack.c.l.b16 %v989
    %v4103 = vunpack.c.h.b16 %v989
    %v4104 = vunpack.c.l.b16 %v990
    %v4105 = vunpack.c.l.b16 %v991
    %v4106 = vunpack.c.h.b16 %v991
    %v4107 = vunpack.c.l.b16 %v992
    %v4108 = vunpack.c.h.b16 %v992
    %v4109 = vunpack.c.l.b16 %v993
    %v4110 = vunpack.c.l.b16 %v994
    %v4111 = vunpack.c.h.b16 %v994
    %v4112 = vunpack.c.l.b16 %v995
    %v4113 = vunpack.c.h.b16 %v995
    %v4114 = vunpack.c.l.b16 %v996
    %v4115 = vunpack.c.l.b16 %v997
    %v4116 = vunpack.c.h.b16 %v997
    %v4117 = vunpack.c.l.b16 %v998
    %v4118 = vunpack.c.h.b16 %v998
    %v4119 = vunpack.c.l.b16 %v999
    %v4120 = vunpack.c.l.b16 %v1000
    %v4121 = vunpack.c.h.b16 %v1000
    %v4122 = vunpack.c.l.b16 %v1001
    %v4123 = vunpack.c.h.b16 %v1001
    %v4124 = vunpack.c.l.b16 %v1002
    %v4125 = vunpack.c.l.b16 %v1003
    %v4126 = vunpack.c.h.b16 %v1003
    %v4127 = vunpack.c.l.b16 %v1004
    %v4128 = vunpack.c.h.b16 %v1004
    %v4129 = vunpack.c.l.b16 %v1005
    %v4130 = vunpack.c.l.b16 %v1006
    %v4131 = vunpack.c.h.b16 %v1006
    %v4132 = vunpack.c.l.b16 %v1007
    %v4133 = vunpack.c.h.b16 %v1007
    %v4134 = vunpack.c.l.b16 %v1008
    %v4135 = vunpack.c.l.b16 %v1009
    %v4136 = vunpack.c.h.b16 %v1009
    %v4137 = vunpack.c.l.b16 %v1010
    %v4138 = vunpack.c.h.b16 %v1010
    %v4139 = vunpack.c.l.b16 %v1011
    %v4140 = vunpack.c.l.b16 %v1012
    %v4141 = vunpack.c.h.b16 %v1012
    %v4142 = vunpack.c.l.b16 %v1013
    %v4143 = vunpack.c.h.b16 %v1013
    %v4144 = vunpack.c.l.b16 %v1014
    %v4145 = vunpack.c.l.b16 %v1015
    %v4146 = vunpack.c.h.b16 %v1015
    %v4147 = vunpack.c.l.b16 %v1016
    %v4148 = vunpack.c.h.b16 %v1016
    %v4149 = vunpack.c.l.b16 %v1017
    %v4150 = vunpack.c.l.b16 %v1018
    %v4151 = vunpack.c.h.b16 %v1018
    %v4152 = vunpack.c.l.b16 %v1019
    %v4153 = vunpack.c.h.b16 %v1019
    %v4154 = vunpack.c.l.b16 %v1020
    %v4155 = vunpack.c.l.b16 %v1021
    %v4156 = vunpack.c.h.b16 %v1021
    %v4157 = vunpack.c.l.b16 %v1022
    %v4158 = vunpack.c.h.b16 %v1022
    %v4159 = vunpack.c.l.b16 %v1023
    %v4160 = vunpack.c.l.b16 %v1024
    %v4161 = vunpack.c.h.b16 %v1024
    %v4162 = vunpack.c.l.b16 %v1025
    %v4163 = vunpack.c.h.b16 %v1025
    %v4164 = vunpack.c.l.b16 %v1026
    %v4165 = vunpack.c.l.b16 %v1027
    %v4166 = vunpack.c.h.b16 %v1027
    %v4167 = vunpack.c.l.b16 %v1028
    %v4168 = vunpack.c.h.b16 %v1028
    %v4169 = vunpack.c.l.b16 %v1029
    %v4170 = vunpack.c.l.b16 %v1030
    %v4171 = vunpack.c.h.b16 %v1030
    %v4172 = vunpack.c.l.b16 %v1031
    %v4173 = vunpack.c.h.b16 %v1031
    %v4174 = vunpack.c.l.b16 %v1032
    %v4175 = vunpack.c.l.b16 %v1033
    %v4176 = vunpack.c.h.b16 %v1033
    %v4177 = vunpack.c.l.b16 %v1034
    %v4178 = vunpack.c.h.b16 %v1034
    %v4179 = vunpack.c.l.b16 %v1035
    %v4180 = vunpack.c.l.b16 %v1036
    %v4181 = vunpack.c.h.b16 %v1036
    %v4182 = vunpack.c.l.b16 %v1037
    %v4183 = vunpack.c.h.b16 %v1037
    %v4184 = vunpack.c.l.b16 %v1038
    %v4185 = vunpack.c.l.b16 %v1039
    %v4186 = vunpack.c.h.b16 %v1039
    %v4187 = vunpack.c.l.b16 %v1040
    %v4188 = vunpack.c.h.b16 %v1040
    %v4189 = vunpack.c.l.b16 %v1041
    %v4190 = vunpack.c.l.b16 %v1042
    %v4191 = vunpack.c.h.b16 %v1042
    %v4192 = vunpack.c.l.b16 %v1043
    %v4193 = vunpack.c.h.b16 %v1043
    %v4194 = vunpack.c.l.b16 %v1044
    %v4195 = vunpack.c.l.b16 %v1045
    %v4196 = vunpack.c.h.b16 %v1045
    %v4197 = vunpack.c.l.b16 %v1046
    %v4198 = vunpack.c.h.b16 %v1046
    %v4199 = vunpack.c.l.b16 %v1047
    %v4200 = vunpack.c.l.b16 %v1048
    %v4201 = vunpack.c.h.b16 %v1048
    %v4202 = vunpack.c.l.b16 %v1049
    %v4203 = vunpack.c.h.b16 %v1049
    %v4204 = vunpack.c.l.b16 %v1050
    %v4205 = vunpack.c.l.b16 %v1051
    %v4206 = vunpack.c.h.b16 %v1051
    %v4207 = vunpack.c.l.b16 %v1052
    %v4208 = vunpack.c.h.b16 %v1052
    %v4209 = vunpack.c.l.b16 %v1053
    %v4210 = vunpack.c.l.b16 %v1054
    %v4211 = vunpack.c.h.b16 %v1054
    %v4212 = vunpack.c.l.b16 %v1055
    %v4213 = vunpack.c.h.b16 %v1055
    %v4214 = vunpack.c.l.b16 %v1056
    %v4215 = vunpack.c.l.b16 %v1057
    %v4216 = vunpack.c.h.b16 %v1057
    %v4217 = vunpack.c.l.b16 %v1058
    %v4218 = vunpack.c.h.b16 %v1058
    %v4219 = vunpack.c.l.b16 %v1059
    %v4220 = vunpack.c.l.b16 %v1060
    %v4221 = vunpack.c.h.b16 %v1060
    %v4222 = vunpack.c.l.b16 %v1061
    %v4223 = vunpack.c.h.b16 %v1061
    %v4224 = vunpack.c.l.b16 %v1062
    %v4225 = vunpack.c.l.b16 %v1063
    %v4226 = vunpack.c.h.b16 %v1063
    %v4227 = vunpack.c.l.b16 %v1064
    %v4228 = vunpack.c.h.b16 %v1064
    %v4229 = vunpack.c.l.b16 %v1065
    %v4230 = vunpack.c.l.b16 %v1066
    %v4231 = vunpack.c.h.b16 %v1066
    %v4232 = vunpack.c.l.b16 %v1067
    %v4233 = vunpack.c.h.b16 %v1067
    %v4234 = vunpack.c.l.b16 %v1068
    %v4235 = vunpack.c.l.b16 %v1069
    %v4236 = vunpack.c.h.b16 %v1069
    %v4237 = vunpack.c.l.b16 %v1070
    %v4238 = vunpack.c.h.b16 %v1070
    %v4239 = vunpack.c.l.b16 %v1071
    %v4240 = vunpack.c.l.b16 %v1072
    %v4241 = vunpack.c.h.b16 %v1072
    %v4242 = vunpack.c.l.b16 %v1073
    %v4243 = vunpack.c.h.b16 %v1073
    %v4244 = vunpack.c.l.b16 %v1074
    %v4245 = vunpack.c.l.b16 %v1075
    %v4246 = vunpack.c.h.b16 %v1075
    %v4247 = vunpack.c.l.b16 %v1076
    %v4248 = vunpack.c.h.b16 %v1076
    %v4249 = vunpack.c.l.b16 %v1077
    %v4250 = vunpack.c.l.b16 %v1078
    %v4251 = vunpack.c.h.b16 %v1078
    %v4252 = vunpack.c.l.b16 %v1079
    %v4253 = vunpack.c.h.b16 %v1079
    %v4254 = vunpack.c.l.b16 %v1080
    %v4255 = vunpack.c.l.b16 %v1081
    %v4256 = vunpack.c.h.b16 %v1081
    %v4257 = vunpack.c.l.b16 %v1082
    %v4258 = vunpack.c.h.b16 %v1082
    %v4259 = vunpack.c.l.b16 %v1083
    %v4260 = vunpack.c.l.b16 %v1084
    %v4261 = vunpack.c.h.b16 %v1084
    %v4262 = vunpack.c.l.b16 %v1085
    %v4263 = vunpack.c.h.b16 %v1085
    %v4264 = vunpack.c.l.b16 %v1086
    %v4265 = vunpack.c.l.b16 %v1087
    %v4266 = vunpack.c.h.b16 %v1087
    %v4267 = vunpack.c.l.b16 %v1088
    %v4268 = vunpack.c.h.b16 %v1088
    %v4269 = vunpack.c.l.b16 %v1089
    %v4270 = vunpack.c.l.b16 %v1090
    %v4271 = vunpack.c.h.b16 %v1090
    %v4272 = vunpack.c.l.b16 %v1091
    %v4273 = vunpack.c.h.b16 %v1091
    %v4274 = vunpack.c.l.b16 %v1092
    %v4275 = vunpack.c.l.b16 %v1093
    %v4276 = vunpack.c.h.b16 %v1093
    %v4277 = vunpack.c.l.b16 %v1094
    %v4278 = vunpack.c.h.b16 %v1094
    %v4279 = vunpack.c.l.b16 %v1095
    %v4280 = vunpack.c.l.b16 %v1096
    %v4281 = vunpack.c.h.b16 %v1096
    %v4282 = vunpack.c.l.b16 %v1097
    %v4283 = vunpack.c.h.b16 %v1097
    %v4284 = vunpack.c.l.b16 %v1098
    %v4285 = vunpack.c.l.b16 %v1099
    %v4286 = vunpack.c.h.b16 %v1099
    %v4287 = vunpack.c.l.b16 %v1100
    %v4288 = vunpack.c.h.b16 %v1100
    %v4289 = vunpack.c.l.b16 %v1101
    %v4290 = vunpack.c.l.b16 %v1102
    %v4291 = vunpack.c.h.b16 %v1102
    %v4292 = vunpack.c.l.b16 %v1103
    %v4293 = vunpack.c.h.b16 %v1103
    %v4294 = vunpack.c.l.b16 %v1104
    %v4295 = vunpack.c.l.b16 %v1105
    %v4296 = vunpack.c.h.b16 %v1105
    %v4297 = vunpack.c.l.b16 %v1106
    %v4298 = vunpack.c.h.b16 %v1106
    %v4299 = vunpack.c.l.b16 %v1107
    %v4300 = vunpack.c.l.b16 %v1108
    %v4301 = vunpack.c.h.b16 %v1108
    %v4302 = vunpack.c.l.b16 %v1109
    %v4303 = vunpack.c.h.b16 %v1109
    %v4304 = vunpack.c.l.b16 %v1110
    %v4305 = vunpack.c.l.b16 %v1111
    %v4306 = vunpack.c.h.b16 %v1111
    %v4307 = vunpack.c.l.b16 %v1112
    %v4308 = vunpack.c.h.b16 %v1112
    %v4309 = vunpack.c.l.b16 %v1113
    %v4310 = vunpack.c.l.b16 %v1114
    %v4311 = vunpack.c.h.b16 %v1114
    %v4312 = vunpack.c.l.b16 %v1115
    %v4313 = vunpack.c.h.b16 %v1115
    %v4314 = vunpack.c.l.b16 %v1116
    %v4315 = vunpack.c.l.b16 %v1117
    %v4316 = vunpack.c.h.b16 %v1117
    %v4317 = vunpack.c.l.b16 %v1118
    %v4318 = vunpack.c.h.b16 %v1118
    %v4319 = vunpack.c.l.b16 %v1119
    %v4320 = vunpack.c.l.b16 %v1120
    %v4321 = vunpack.c.h.b16 %v1120
    %v4322 = vunpack.c.l.b16 %v1121
    %v4323 = vunpack.c.h.b16 %v1121
    %v4324 = vunpack.c.l.b16 %v1122
    %v4325 = vunpack.c.l.b16 %v1123
    %v4326 = vunpack.c.h.b16 %v1123
    %v4327 = vunpack.c.l.b16 %v1124
    %v4328 = vunpack.c.h.b16 %v1124
    %v4329 = vunpack.c.l.b16 %v1125
    %v4330 = vunpack.c.l.b16 %v1126
    %v4331 = vunpack.c.h.b16 %v1126
    %v4332 = vunpack.c.l.b16 %v1127
    %v4333 = vunpack.c.h.b16 %v1127
    %v4334 = vunpack.c.l.b16 %v1128
    %v4335 = vunpack.c.l.b16 %v1129
    %v4336 = vunpack.c.h.b16 %v1129
    %v4337 = vunpack.c.l.b16 %v1130
    %v4338 = vunpack.c.h.b16 %v1130
    %v4339 = vunpack.c.l.b16 %v1131
    %v4340 = vunpack.c.l.b16 %v1132
    %v4341 = vunpack.c.h.b16 %v1132
    %v4342 = vunpack.c.l.b16 %v1133
    %v4343 = vunpack.c.h.b16 %v1133
    %v4344 = vunpack.c.l.b16 %v1134
    %v4345 = vunpack.c.l.b16 %v1135
    %v4346 = vunpack.c.h.b16 %v1135
    %v4347 = vunpack.c.l.b16 %v1136
    %v4348 = vunpack.c.h.b16 %v1136
    %v4349 = vunpack.c.l.b16 %v1137
    %v4350 = vunpack.c.l.b16 %v1138
    %v4351 = vunpack.c.h.b16 %v1138
    %v4352 = vunpack.c.l.b16 %v1139
    %v4353 = vunpack.c.h.b16 %v1139
    %v4354 = vunpack.c.l.b16 %v1140
    %v4355 = vunpack.c.l.b16 %v1141
    %v4356 = vunpack.c.h.b16 %v1141
    %v4357 = vunpack.c.l.b16 %v1142
    %v4358 = vunpack.c.h.b16 %v1142
    %v4359 = vunpack.c.l.b16 %v1143
    %v4360 = vunpack.c.l.b16 %v1144
    %v4361 = vunpack.c.h.b16 %v1144
    %v4362 = vunpack.c.l.b16 %v1145
    %v4363 = vunpack.c.h.b16 %v1145
    %v4364 = vunpack.c.l.b16 %v1146
    %v4365 = vunpack.c.l.b16 %v1147
    %v4366 = vunpack.c.h.b16 %v1147
    %v4367 = vunpack.c.l.b16 %v1148
    %v4368 = vunpack.c.h.b16 %v1148
    %v4369 = vunpack.c.l.b16 %v1149
    %v4370 = vunpack.c.l.b16 %v1150
    %v4371 = vunpack.c.h.b16 %v1150
    %v4372 = vunpack.c.l.b16 %v1151
    %v4373 = vunpack.c.h.b16 %v1151
    %v4374 = vunpack.c.l.b16 %v1152
    %v4375 = vunpack.c.l.b16 %v1153
    %v4376 = vunpack.c.h.b16 %v1153
    %v4377 = vunpack.c.l.b16 %v1154
    %v4378 = vunpack.c.h.b16 %v1154
    %v4379 = vunpack.c.l.b16 %v1155
    %v4380 = vunpack.c.l.b16 %v1156
    %v4381 = vunpack.c.h.b16 %v1156
    %v4382 = vunpack.c.l.b16 %v1157
    %v4383 = vunpack.c.h.b16 %v1157
    %v4384 = vunpack.c.l.b16 %v1158
    %v4385 = vunpack.c.l.b16 %v1159
    %v4386 = vunpack.c.h.b16 %v1159
    %v4387 = vunpack.c.l.b16 %v1160
    %v4388 = vunpack.c.h.b16 %v1160
    %v4389 = vunpack.c.l.b16 %v1161
    %v4390 = vunpack.c.l.b16 %v1162
    %v4391 = vunpack.c.h.b16 %v1162
    %v4392 = vunpack.c.l.b16 %v1163
    %v4393 = vunpack.c.h.b16 %v1163
    %v4394 = vunpack.c.l.b16 %v1164
    %v4395 = vunpack.c.l.b16 %v1165
    %v4396 = vunpack.c.h.b16 %v1165
    %v4397 = vunpack.c.l.b16 %v1166
    %v4398 = vunpack.c.h.b16 %v1166
    %v4399 = vunpack.c.l.b16 %v1167
    %v4400 = vunpack.c.l.b16 %v1168
    %v4401 = vunpack.c.h.b16 %v1168
    %v4402 = vunpack.c.l.b16 %v1169
    %v4403 = vunpack.c.h.b16 %v1169
    %v4404 = vunpack.c.l.b16 %v1170
    %v4405 = vunpack.c.l.b16 %v1171
    %v4406 = vunpack.c.h.b16 %v1171
    %v4407 = vunpack.c.l.b16 %v1172
    %v4408 = vunpack.c.h.b16 %v1172
    %v4409 = vunpack.c.l.b16 %v1173
    %v4410 = vunpack.c.l.b16 %v1174
    %v4411 = vunpack.c.h.b16 %v1174
    %v4412 = vunpack.c.l.b16 %v1175
    %v4413 = vunpack.c.h.b16 %v1175
    %v4414 = vunpack.c.l.b16 %v1176
    %v4415 = vunpack.c.l.b16 %v1177
    %v4416 = vunpack.c.h.b16 %v1177
    %v4417 = vunpack.c.l.b16 %v1178
    %v4418 = vunpack.c.h.b16 %v1178
    %v4419 = vunpack.c.l.b16 %v1179
    %v4420 = vunpack.c.l.b16 %v1180
    %v4421 = vunpack.c.h.b16 %v1180
    %v4422 = vunpack.c.l.b16 %v1181
    %v4423 = vunpack.c.h.b16 %v1181
    %v4424 = vunpack.c.l.b16 %v1182
    %v4425 = vunpack.c.l.b16 %v1183
    %v4426 = vunpack.c.h.b16 %v1183
    %v4427 = vunpack.c.l.b16 %v1184
    %v4428 = vunpack.c.h.b16 %v1184
    %v4429 = vunpack.c.l.b16 %v1185
    %v4430 = vunpack.c.l.b16 %v1186
    %v4431 = vunpack.c.h.b16 %v1186
    %v4432 = vunpack.c.l.b16 %v1187
    %v4433 = vunpack.c.h.b16 %v1187
    %v4434 = vunpack.c.l.b16 %v1188
    %v4435 = vunpack.c.l.b16 %v1189
    %v4436 = vunpack.c.h.b16 %v1189
    %v4437 = vunpack.c.l.b16 %v1190
    %v4438 = vunpack.c.h.b16 %v1190
    %v4439 = vunpack.c.l.b16 %v1191
    %v4440 = vunpack.c.l.b16 %v1192
    %v4441 = vunpack.c.h.b16 %v1192
    %v4442 = vunpack.c.l.b16 %v1193
    %v4443 = vunpack.c.h.b16 %v1193
    %v4444 = vunpack.c.l.b16 %v1194
    %v4445 = vunpack.c.l.b16 %v1195
    %v4446 = vunpack.c.h.b16 %v1195
    %v4447 = vunpack.c.l.b16 %v1196
    %v4448 = vunpack.c.h.b16 %v1196
    %v4449 = vunpack.c.l.b16 %v1197
    %v4450 = vunpack.c.l.b16 %v1198
    %v4451 = vunpack.c.h.b16 %v1198
    %v4452 = vunpack.c.l.b16 %v1199
    %v4453 = vunpack.c.h.b16 %v1199
    %v4454 = vunpack.c.l.b16 %v1200
    %v4455 = vunpack.c.l.b16 %v1201
    %v4456 = vunpack.c.h.b16 %v1201
    %v4457 = vunpack.c.l.b16 %v1202
    %v4458 = vunpack.c.h.b16 %v1202
    %v4459 = vunpack.c.l.b16 %v1203
    %v4460 = vunpack.c.l.b16 %v1204
    %v4461 = vunpack.c.h.b16 %v1204
    %v4462 = vunpack.c.l.b16 %v1205
    %v4463 = vunpack.c.h.b16 %v1205
    %v4464 = vunpack.c.l.b16 %v1206
    %v4465 = vunpack.c.l.b16 %v1207
    %v4466 = vunpack.c.h.b16 %v1207
    %v4467 = vunpack.c.l.b16 %v1208
    %v4468 = vunpack.c.h.b16 %v1208
    %v4469 = vunpack.c.l.b16 %v1209
    %v4470 = vunpack.c.l.b16 %v1210
    %v4471 = vunpack.c.h.b16 %v1210
    %v4472 = vunpack.c.l.b16 %v1211
    %v4473 = vunpack.c.h.b16 %v1211
    %v4474 = vunpack.c.l.b16 %v1212
    %v4475 = vunpack.c.l.b16 %v1213
    %v4476 = vunpack.c.h.b16 %v1213
    %v4477 = vunpack.c.l.b16 %v1214
    %v4478 = vunpack.c.h.b16 %v1214
    %v4479 = vunpack.c.l.b16 %v1215
    %v4480 = vunpack.c.l.b16 %v1216
    %v4481 = vunpack.c.h.b16 %v1216
    %v4482 = vunpack.c.l.b16 %v1217
    %v4483 = vunpack.c.h.b16 %v1217
    %v4484 = vunpack.c.l.b16 %v1218
    %v4485 = vunpack.c.l.b16 %v1219
    %v4486 = vunpack.c.h.b16 %v1219
    %v4487 = vunpack.c.l.b16 %v1220
    %v4488 = vunpack.c.h.b16 %v1220
    %v4489 = vunpack.c.l.b16 %v1221
    %v4490 = vunpack.c.l.b16 %v1222
    %v4491 = vunpack.c.h.b16 %v1222
    %v4492 = vunpack.c.l.b16 %v1223
    %v4493 = vunpack.c.h.b16 %v1223
    %v4494 = vunpack.c.l.b16 %v1224
    %v4495 = vpack.c.b16 %v2500, %v2495
    %v4496 = vpack.c.b16 %v2501, %v2496
    %v4497 = vpack.c.b16 %v2502, %v2497
    %v4498 = vpack.c.b16 %v2503, %v2498
    %v4499 = vpack.c.b16 %v2504, %v2499
    %v4500 = vpack.c.b16 %v2510, %v2505
    %v4501 = vpack.c.b16 %v2511, %v2506
    %v4502 = vpack.c.b16 %v2512, %v2507
    %v4503 = vpack.c.b16 %v2513, %v2508
    %v4504 = vpack.c.b16 %v2514, %v2509
    %v4505 = vpack.c.b16 %v2520, %v2515
    %v4506 = vpack.c.b16 %v2521, %v2516
    %v4507 = vpack.c.b16 %v2522, %v2517
    %v4508 = vpack.c.b16 %v2523, %v2518
    %v4509 = vpack.c.b16 %v2524, %v2519
    %v4510 = vpack.c.b16 %v2530, %v2525
    %v4511 = vpack.c.b16 %v2531, %v2526
    %v4512 = vpack.c.b16 %v2532, %v2527
    %v4513 = vpack.c.b16 %v2533, %v2528
    %v4514 = vpack.c.b16 %v2534, %v2529
    %v4515 = vpack.c.b16 %v2540, %v2535
    %v4516 = vpack.c.b16 %v2541, %v2536
    %v4517 = vpack.c.b16 %v2542, %v2537
    %v4518 = vpack.c.b16 %v2543, %v2538
    %v4519 = vpack.c.b16 %v2544, %v2539
    %v4520 = vpack.c.b16 %v2550, %v2545
    %v4521 = vpack.c.b16 %v2551, %v2546
    %v4522 = vpack.c.b16 %v2552, %v2547
    %v4523 = vpack.c.b16 %v2553, %v2548
    %v4524 = vpack.c.b16 %v2554, %v2549
    %v4525 = vpack.c.b16 %v2560, %v2555
    %v4526 = vpack.c.b16 %v2561, %v2556
    %v4527 = vpack.c.b16 %v2562, %v2557
    %v4528 = vpack.c.b16 %v2563, %v2558
    %v4529 = vpack.c.b16 %v2564, %v2559
    %v4530 = vpack.c.b16 %v2570, %v2565
    %v4531 = vpack.c.b16 %v2571, %v2566
    %v4532 = vpack.c.b16 %v2572, %v2567
    %v4533 = vpack.c.b16 %v2573, %v2568
    %v4534 = vpack.c.b16 %v2574, %v2569
    %v4535 = vpack.c.b16 %v2580, %v2575
    %v4536 = vpack.c.b16 %v2581, %v2576
    %v4537 = vpack.c.b16 %v2582, %v2577
    %v4538 = vpack.c.b16 %v2583, %v2578
    %v4539 = vpack.c.b16 %v2584, %v2579
    %v4540 = vpack.c.b16 %v2590, %v2585
    %v4541 = vpack.c.b16 %v2591, %v2586
    %v4542 = vpack.c.b16 %v2592, %v2587
    %v4543 = vpack.c.b16 %v2593, %v2588
    %v4544 = vpack.c.b16 %v2594, %v2589
    %v4545 = vpack.c.b16 %v2600, %v2595
    %v4546 = vpack.c.b16 %v2601, %v2596
    %v4547 = vpack.c.b16 %v2602, %v2597
    %v4548 = vpack.c.b16 %v2603, %v2598
    %v4549 = vpack.c.b16 %v2604, %v2599
    %v4550 = vpack.c.b16 %v2610, %v2605
    %v4551 = vpack.c.b16 %v2611, %v2606
    %v4552 = vpack.c.b16 %v2612, %v2607
    %v4553 = vpack.c.b16 %v2613, %v2608
    %v4554 = vpack.c.b16 %v2614, %v2609
    %v4555 = vpack.c.b16 %v2620, %v2615
    %v4556 = vpack.c.b16 %v2621, %v2616
    %v4557 = vpack.c.b16 %v2622, %v2617
    %v4558 = vpack.c.b16 %v2623, %v2618
    %v4559 = vpack.c.b16 %v2624, %v2619
    %v4560 = vpack.c.b16 %v2630, %v2625
    %v4561 = vpack.c.b16 %v2631, %v2626
    %v4562 = vpack.c.b16 %v2632, %v2627
    %v4563 = vpack.c.b16 %v2633, %v2628
    %v4564 = vpack.c.b16 %v2634, %v2629
    %v4565 = vpack.c.b16 %v2640, %v2635
    %v4566 = vpack.c.b16 %v2641, %v2636
    %v4567 = vpack.c.b16 %v2642, %v2637
    %v4568 = vpack.c.b16 %v2643, %v2638
    %v4569 = vpack.c.b16 %v2644, %v2639
    %v4570 = vpack.c.b16 %v2650, %v2645
    %v4571 = vpack.c.b16 %v2651, %v2646
    %v4572 = vpack.c.b16 %v2652, %v2647
    %v4573 = vpack.c.b16 %v2653, %v2648
    %v4574 = vpack.c.b16 %v2654, %v2649
    %v4575 = vpack.c.b16 %v2660, %v2655
    %v4576 = vpack.c.b16 %v2661, %v2656
    %v4577 = vpack.c.b16 %v2662, %v2657
    %v4578 = vpack.c.b16 %v2663, %v2658
    %v4579 = vpack.c.b16 %v2664, %v2659
    %v4580 = vpack.c.b16 %v2670, %v2665
    %v4581 = vpack.c.b16 %v2671, %v2666
    %v4582 = vpack.c.b16 %v2672, %v2667
    %v4583 = vpack.c.b16 %v2673, %v2668
    %v4584 = vpack.c.b16 %v2674, %v2669
    %v4585 = vpack.c.b16 %v2680, %v2675
    %v4586 = vpack.c.b16 %v2681, %v2676
    %v4587 = vpack.c.b16 %v2682, %v2677
    %v4588 = vpack.c.b16 %v2683, %v2678
    %v4589 = vpack.c.b16 %v2684, %v2679
    %v4590 = vpack.c.b16 %v2690, %v2685
    %v4591 = vpack.c.b16 %v2691, %v2686
    %v4592 = vpack.c.b16 %v2692, %v2687
    %v4593 = vpack.c.b16 %v2693, %v2688
    %v4594 = vpack.c.b16 %v2694, %v2689
    %v4595 = vpack.c.b16 %v2700, %v2695
    %v4596 = vpack.c.b16 %v2701, %v2696
    %v4597 = vpack.c.b16 %v2702, %v2697
    %v4598 = vpack.c.b16 %v2703, %v2698
    %v4599 = vpack.c.b16 %v2704, %v2699
    %v4600 = vpack.c.b16 %v2710, %v2705
    %v4601 = vpack.c.b16 %v2711, %v2706
    %v4602 = vpack.c.b16 %v2712, %v2707
    %v4603 = vpack.c.b16 %v2713, %v2708
    %v4604 = vpack.c.b16 %v2714, %v2709
    %v4605 = vpack.c.b16 %v2720, %v2715
    %v4606 = vpack.c.b16 %v2721, %v2716
    %v4607 = vpack.c.b16 %v2722, %v2717
    %v4608 = vpack.c.b16 %v2723, %v2718
    %v4609 = vpack.c.b16 %v2724, %v2719
    %v4610 = vpack.c.b16 %v2730, %v2725
    %v4611 = vpack.c.b16 %v2731, %v2726
    %v4612 = vpack.c.b16 %v2732, %v2727
    %v4613 = vpack.c.b16 %v2733, %v2728
    %v4614 = vpack.c.b16 %v2734, %v2729
    %v4615 = vpack.c.b16 %v2740, %v2735
    %v4616 = vpack.c.b16 %v2741, %v2736
    %v4617 = vpack.c.b16 %v2742, %v2737
    %v4618 = vpack.c.b16 %v2743, %v2738
    %v4619 = vpack.c.b16 %v2744, %v2739
    %v4620 = vpack.c.b16 %v2750, %v2745
    %v4621 = vpack.c.b16 %v2751, %v2746
    %v4622 = vpack.c.b16 %v2752, %v2747
    %v4623 = vpack.c.b16 %v2753, %v2748
    %v4624 = vpack.c.b16 %v2754, %v2749
    %v4625 = vpack.c.b16 %v2760, %v2755
    %v4626 = vpack.c.b16 %v2761, %v2756
    %v4627 = vpack.c.b16 %v2762, %v2757
    %v4628 = vpack.c.b16 %v2763, %v2758
    %v4629 = vpack.c.b16 %v2764, %v2759
    %v4630 = vpack.c.b16 %v2770, %v2765
    %v4631 = vpack.c.b16 %v2771, %v2766
    %v4632 = vpack.c.b16 %v2772, %v2767
    %v4633 = vpack.c.b16 %v2773, %v2768
    %v4634 = vpack.c.b16 %v2774, %v2769
    %v4635 = vpack.c.b16 %v2780, %v2775
    %v4636 = vpack.c.b16 %v2781, %v2776
    %v4637 = vpack.c.b16 %v2782, %v2777
    %v4638 = vpack.c.b16 %v2783, %v2778
    %v4639 = vpack.c.b16 %v2784, %v2779
    %v4640 = vpack.c.b16 %v2790, %v2785
    %v4641 = vpack.c.b16 %v2791, %v2786
    %v4642 = vpack.c.b16 %v2792, %v2787
    %v4643 = vpack.c.b16 %v2793, %v2788
    %v4644 = vpack.c.b16 %v2794, %v2789
    %v4645 = vpack.c.b16 %v2800, %v2795
    %v4646 = vpack.c.b16 %v2801, %v2796
    %v4647 = vpack.c.b16 %v2802, %v2797
    %v4648 = vpack.c.b16 %v2803, %v2798
    %v4649 = vpack.c.b16 %v2804, %v2799
    %v4650 = vpack.c.b16 %v2810, %v2805
    %v4651 = vpack.c.b16 %v2811, %v2806
    %v4652 = vpack.c.b16 %v2812, %v2807
    %v4653 = vpack.c.b16 %v2813, %v2808
    %v4654 = vpack.c.b16 %v2814, %v2809
    %v4655 = vpack.c.b16 %v2820, %v2815
    %v4656 = vpack.c.b16 %v2821, %v2816
    %v4657 = vpack.c.b16 %v2822, %v2817
    %v4658 = vpack.c.b16 %v2823, %v2818
    %v4659 = vpack.c.b16 %v2824, %v2819
    %v4660 = vpack.c.b16 %v2830, %v2825
    %v4661 = vpack.c.b16 %v2831, %v2826
    %v4662 = vpack.c.b16 %v2832, %v2827
    %v4663 = vpack.c.b16 %v2833, %v2828
    %v4664 = vpack.c.b16 %v2834, %v2829
    %v4665 = vpack.c.b16 %v2840, %v2835
    %v4666 = vpack.c.b16 %v2841, %v2836
    %v4667 = vpack.c.b16 %v2842, %v2837
    %v4668 = vpack.c.b16 %v2843, %v2838
    %v4669 = vpack.c.b16 %v2844, %v2839
    %v4670 = vpack.c.b16 %v2850, %v2845
    %v4671 = vpack.c.b16 %v2851, %v2846
    %v4672 = vpack.c.b16 %v2852, %v2847
    %v4673 = vpack.c.b16 %v2853, %v2848
    %v4674 = vpack.c.b16 %v2854, %v2849
    %v4675 = vpack.c.b16 %v2860, %v2855
    %v4676 = vpack.c.b16 %v2861, %v2856
    %v4677 = vpack.c.b16 %v2862, %v2857
    %v4678 = vpack.c.b16 %v2863, %v2858
    %v4679 = vpack.c.b16 %v2864, %v2859
    %v4680 = vpack.c.b16 %v2870, %v2865
    %v4681 = vpack.c.b16 %v2871, %v2866
    %v4682 = vpack.c.b16 %v2872, %v2867
    %v4683 = vpack.c.b16 %v2873, %v2868
    %v4684 = vpack.c.b16 %v2874, %v2869
    %v4685 = vpack.c.b16 %v2880, %v2875
    %v4686 = vpack.c.b16 %v2881, %v2876
    %v4687 = vpack.c.b16 %v2882, %v2877
    %v4688 = vpack.c.b16 %v2883, %v2878
    %v4689 = vpack.c.b16 %v2884, %v2879
    %v4690 = vpack.c.b16 %v2890, %v2885
    %v4691 = vpack.c.b16 %v2891, %v2886
    %v4692 = vpack.c.b16 %v2892, %v2887
    %v4693 = vpack.c.b16 %v2893, %v2888
    %v4694 = vpack.c.b16 %v2894, %v2889
    %v4695 = vpack.c.b16 %v2900, %v2895
    %v4696 = vpack.c.b16 %v2901, %v2896
    %v4697 = vpack.c.b16 %v2902, %v2897
    %v4698 = vpack.c.b16 %v2903, %v2898
    %v4699 = vpack.c.b16 %v2904, %v2899
    %v4700 = vpack.c.b16 %v2910, %v2905
    %v4701 = vpack.c.b16 %v2911, %v2906
    %v4702 = vpack.c.b16 %v2912, %v2907
    %v4703 = vpack.c.b16 %v2913, %v2908
    %v4704 = vpack.c.b16 %v2914, %v2909
    %v4705 = vpack.c.b16 %v2920, %v2915
    %v4706 = vpack.c.b16 %v2921, %v2916
    %v4707 = vpack.c.b16 %v2922, %v2917
    %v4708 = vpack.c.b16 %v2923, %v2918
    %v4709 = vpack.c.b16 %v2924, %v2919
    %v4710 = vpack.c.b16 %v2930, %v2925
    %v4711 = vpack.c.b16 %v2931, %v2926
    %v4712 = vpack.c.b16 %v2932, %v2927
    %v4713 = vpack.c.b16 %v2933, %v2928
    %v4714 = vpack.c.b16 %v2934, %v2929
    %v4715 = vpack.c.b16 %v2940, %v2935
    %v4716 = vpack.c.b16 %v2941, %v2936
    %v4717 = vpack.c.b16 %v2942, %v2937
    %v4718 = vpack.c.b16 %v2943, %v2938
    %v4719 = vpack.c.b16 %v2944, %v2939
    %v4720 = vpack.c.b16 %v2950, %v2945
    %v4721 = vpack.c.b16 %v2951, %v2946
    %v4722 = vpack.c.b16 %v2952, %v2947
    %v4723 = vpack.c.b16 %v2953, %v2948
    %v4724 = vpack.c.b16 %v2954, %v2949
    %v4725 = vpack.c.b16 %v2960, %v2955
    %v4726 = vpack.c.b16 %v2961, %v2956
    %v4727 = vpack.c.b16 %v2962, %v2957
    %v4728 = vpack.c.b16 %v2963, %v2958
    %v4729 = vpack.c.b16 %v2964, %v2959
    %v4730 = vpack.c.b16 %v2970, %v2965
    %v4731 = vpack.c.b16 %v2971, %v2966
    %v4732 = vpack.c.b16 %v2972, %v2967
    %v4733 = vpack.c.b16 %v2973, %v2968
    %v4734 = vpack.c.b16 %v2974, %v2969
    %v4735 = vpack.c.b16 %v2980, %v2975
    %v4736 = vpack.c.b16 %v2981, %v2976
    %v4737 = vpack.c.b16 %v2982, %v2977
    %v4738 = vpack.c.b16 %v2983, %v2978
    %v4739 = vpack.c.b16 %v2984, %v2979
    %v4740 = vpack.c.b16 %v2990, %v2985
    %v4741 = vpack.c.b16 %v2991, %v2986
    %v4742 = vpack.c.b16 %v2992, %v2987
    %v4743 = vpack.c.b16 %v2993, %v2988
    %v4744 = vpack.c.b16 %v2994, %v2989
    %v4745 = vpack.c.b16 %v3000, %v2995
    %v4746 = vpack.c.b16 %v3001, %v2996
    %v4747 = vpack.c.b16 %v3002, %v2997
    %v4748 = vpack.c.b16 %v3003, %v2998
    %v4749 = vpack.c.b16 %v3004, %v2999
    %v4750 = vpack.c.b16 %v3010, %v3005
    %v4751 = vpack.c.b16 %v3011, %v3006
    %v4752 = vpack.c.b16 %v3012, %v3007
    %v4753 = vpack.c.b16 %v3013, %v3008
    %v4754 = vpack.c.b16 %v3014, %v3009
    %v4755 = vpack.c.b16 %v3020, %v3015
    %v4756 = vpack.c.b16 %v3021, %v3016
    %v4757 = vpack.c.b16 %v3022, %v3017
    %v4758 = vpack.c.b16 %v3023, %v3018
    %v4759 = vpack.c.b16 %v3024, %v3019
    %v4760 = vpack.c.b16 %v3030, %v3025
    %v4761 = vpack.c.b16 %v3031, %v3026
    %v4762 = vpack.c.b16 %v3032, %v3027
    %v4763 = vpack.c.b16 %v3033, %v3028
    %v4764 = vpack.c.b16 %v3034, %v3029
    %v4765 = vpack.c.b16 %v3040, %v3035
    %v4766 = vpack.c.b16 %v3041, %v3036
    %v4767 = vpack.c.b16 %v3042, %v3037
    %v4768 = vpack.c.b16 %v3043, %v3038
    %v4769 = vpack.c.b16 %v3044, %v3039
    %v4770 = vpack.c.b16 %v3050, %v3045
    %v4771 = vpack.c.b16 %v3051, %v3046
    %v4772 = vpack.c.b16 %v3052, %v3047
    %v4773 = vpack.c.b16 %v3053, %v3048
    %v4774 = vpack.c.b16 %v3054, %v3049
    %v4775 = vpack.c.b16 %v3060, %v3055
    %v4776 = vpack.c.b16 %v3061, %v3056
    %v4777 = vpack.c.b16 %v3062, %v3057
    %v4778 = vpack.c.b16 %v3063, %v3058
    %v4779 = vpack.c.b16 %v3064, %v3059
    %v4780 = vpack.c.b16 %v3070, %v3065
    %v4781 = vpack.c.b16 %v3071, %v3066
    %v4782 = vpack.c.b16 %v3072, %v3067
    %v4783 = vpack.c.b16 %v3073, %v3068
    %v4784 = vpack.c.b16 %v3074, %v3069
    %v4785 = vpack.c.b16 %v3080, %v3075
    %v4786 = vpack.c.b16 %v3081, %v3076
    %v4787 = vpack.c.b16 %v3082, %v3077
    %v4788 = vpack.c.b16 %v3083, %v3078
    %v4789 = vpack.c.b16 %v3084, %v3079
    %v4790 = vpack.c.b16 %v3090, %v3085
    %v4791 = vpack.c.b16 %v3091, %v3086
    %v4792 = vpack.c.b16 %v3092, %v3087
    %v4793 = vpack.c.b16 %v3093, %v3088
    %v4794 = vpack.c.b16 %v3094, %v3089
    %v4795 = vpack.c.b16 %v3100, %v3095
    %v4796 = vpack.c.b16 %v3101, %v3096
    %v4797 = vpack.c.b16 %v3102, %v3097
    %v4798 = vpack.c.b16 %v3103, %v3098
    %v4799 = vpack.c.b16 %v3104, %v3099
    %v4800 = vpack.c.b16 %v3110, %v3105
    %v4801 = vpack.c.b16 %v3111, %v3106
    %v4802 = vpack.c.b16 %v3112, %v3107
    %v4803 = vpack.c.b16 %v3113, %v3108
    %v4804 = vpack.c.b16 %v3114, %v3109
    %v4805 = vpack.c.b16 %v3120, %v3115
    %v4806 = vpack.c.b16 %v3121, %v3116
    %v4807 = vpack.c.b16 %v3122, %v3117
    %v4808 = vpack.c.b16 %v3123, %v3118
    %v4809 = vpack.c.b16 %v3124, %v3119
    %v4810 = vpack.c.b16 %v3130, %v3125
    %v4811 = vpack.c.b16 %v3131, %v3126
    %v4812 = vpack.c.b16 %v3132, %v3127
    %v4813 = vpack.c.b16 %v3133, %v3128
    %v4814 = vpack.c.b16 %v3134, %v3129
    %v4815 = vpack.c.b16 %v3140, %v3135
    %v4816 = vpack.c.b16 %v3141, %v3136
    %v4817 = vpack.c.b16 %v3142, %v3137
    %v4818 = vpack.c.b16 %v3143, %v3138
    %v4819 = vpack.c.b16 %v3144, %v3139
    %v4820 = vpack.c.b16 %v3150, %v3145
    %v4821 = vpack.c.b16 %v3151, %v3146
    %v4822 = vpack.c.b16 %v3152, %v3147
    %v4823 = vpack.c.b16 %v3153, %v3148
    %v4824 = vpack.c.b16 %v3154, %v3149
    %v4825 = vpack.c.b16 %v3160, %v3155
    %v4826 = vpack.c.b16 %v3161, %v3156
    %v4827 = vpack.c.b16 %v3162, %v3157
    %v4828 = vpack.c.b16 %v3163, %v3158
    %v4829 = vpack.c.b16 %v3164, %v3159
    %v4830 = vpack.c.b16 %v3170, %v3165
    %v4831 = vpack.c.b16 %v3171, %v3166
    %v4832 = vpack.c.b16 %v3172, %v3167
    %v4833 = vpack.c.b16 %v3173, %v3168
    %v4834 = vpack.c.b16 %v3174, %v3169
    %v4835 = vpack.c.b16 %v3180, %v3175
    %v4836 = vpack.c.b16 %v3181, %v3176
    %v4837 = vpack.c.b16 %v3182, %v3177
    %v4838 = vpack.c.b16 %v3183, %v3178
    %v4839 = vpack.c.b16 %v3184, %v3179
    %v4840 = vpack.c.b16 %v3190, %v3185
    %v4841 = vpack.c.b16 %v3191, %v3186
    %v4842 = vpack.c.b16 %v3192, %v3187
    %v4843 = vpack.c.b16 %v3193, %v3188
    %v4844 = vpack.c.b16 %v3194, %v3189
    %v4845 = vpack.c.b16 %v3200, %v3195
    %v4846 = vpack.c.b16 %v3201, %v3196
    %v4847 = vpack.c.b16 %v3202, %v3197
    %v4848 = vpack.c.b16 %v3203, %v3198
    %v4849 = vpack.c.b16 %v3204, %v3199
    %v4850 = vpack.c.b16 %v3210, %v3205
    %v4851 = vpack.c.b16 %v3211, %v3206
    %v4852 = vpack.c.b16 %v3212, %v3207
    %v4853 = vpack.c.b16 %v3213, %v3208
    %v4854 = vpack.c.b16 %v3214, %v3209
    %v4855 = vpack.c.b16 %v3220, %v3215
    %v4856 = vpack.c.b16 %v3221, %v3216
    %v4857 = vpack.c.b16 %v3222, %v3217
    %v4858 = vpack.c.b16 %v3223, %v3218
    %v4859 = vpack.c.b16 %v3224, %v3219
    %v4860 = vpack.c.b16 %v3230, %v3225
    %v4861 = vpack.c.b16 %v3231, %v3226
    %v4862 = vpack.c.b16 %v3232, %v3227
    %v4863 = vpack.c.b16 %v3233, %v3228
    %v4864 = vpack.c.b16 %v3234, %v3229
    %v4865 = vpack.c.b16 %v3240, %v3235
    %v4866 = vpack.c.b16 %v3241, %v3236
    %v4867 = vpack.c.b16 %v3242, %v3237
    %v4868 = vpack.c.b16 %v3243, %v3238
    %v4869 = vpack.c.b16 %v3244, %v3239
    %v4870 = vpack.c.b16 %v3250, %v3245
    %v4871 = vpack.c.b16 %v3251, %v3246
    %v4872 = vpack.c.b16 %v3252, %v3247
    %v4873 = vpack.c.b16 %v3253, %v3248
    %v4874 = vpack.c.b16 %v3254, %v3249
    %v4875 = vpack.c.b16 %v3260, %v3255
    %v4876 = vpack.c.b16 %v3261, %v3256
    %v4877 = vpack.c.b16 %v3262, %v3257
    %v4878 = vpack.c.b16 %v3263, %v3258
    %v4879 = vpack.c.b16 %v3264, %v3259
    %v4880 = vpack.c.b16 %v3270, %v3265
    %v4881 = vpack.c.b16 %v3271, %v3266
    %v4882 = vpack.c.b16 %v3272, %v3267
    %v4883 = vpack.c.b16 %v3273, %v3268
    %v4884 = vpack.c.b16 %v3274, %v3269
    %v4885 = vpack.c.b16 %v3280, %v3275
    %v4886 = vpack.c.b16 %v3281, %v3276
    %v4887 = vpack.c.b16 %v3282, %v3277
    %v4888 = vpack.c.b16 %v3283, %v3278
    %v4889 = vpack.c.b16 %v3284, %v3279
    %v4890 = vpack.c.b16 %v3290, %v3285
    %v4891 = vpack.c.b16 %v3291, %v3286
    %v4892 = vpack.c.b16 %v3292, %v3287
    %v4893 = vpack.c.b16 %v3293, %v3288
    %v4894 = vpack.c.b16 %v3294, %v3289
    %v4895 = vpack.c.b16 %v3300, %v3295
    %v4896 = vpack.c.b16 %v3301, %v3296
    %v4897 = vpack.c.b16 %v3302, %v3297
    %v4898 = vpack.c.b16 %v3303, %v3298
    %v4899 = vpack.c.b16 %v3304, %v3299
    %v4900 = vpack.c.b16 %v3310, %v3305
    %v4901 = vpack.c.b16 %v3311, %v3306
    %v4902 = vpack.c.b16 %v3312, %v3307
    %v4903 = vpack.c.b16 %v3313, %v3308
    %v4904 = vpack.c.b16 %v3314, %v3309
    %v4905 = vpack.c.b16 %v3320, %v3315
    %v4906 = vpack.c.b16 %v3321, %v3316
    %v4907 = vpack.c.b16 %v3322, %v3317
    %v4908 = vpack.c.b16 %v3323, %v3318
    %v4909 = vpack.c.b16 %v3324, %v3319
    %v4910 = vpack.c.b16 %v3330, %v3325
    %v4911 = vpack.c.b16 %v3331, %v3326
    %v4912 = vpack.c.b16 %v3332, %v3327
    %v4913 = vpack.c.b16 %v3333, %v3328
    %v4914 = vpack.c.b16 %v3334, %v3329
    %v4915 = vpack.c.b16 %v3340, %v3335
    %v4916 = vpack.c.b16 %v3341, %v3336
    %v4917 = vpack.c.b16 %v3342, %v3337
    %v4918 = vpack.c.b16 %v3343, %v3338
    %v4919 = vpack.c.b16 %v3344, %v3339
    %v4920 = vpack.c.b16 %v3350, %v3345
    %v4921 = vpack.c.b16 %v3351, %v3346
    %v4922 = vpack.c.b16 %v3352, %v3347
    %v4923 = vpack.c.b16 %v3353, %v3348
    %v4924 = vpack.c.b16 %v3354, %v3349
    %v4925 = vpack.c.b16 %v3360, %v3355
    %v4926 = vpack.c.b16 %v3361, %v3356
    %v4927 = vpack.c.b16 %v3362, %v3357
    %v4928 = vpack.c.b16 %v3363, %v3358
    %v4929 = vpack.c.b16 %v3364, %v3359
    %v4930 = vpack.c.b16 %v3370, %v3365
    %v4931 = vpack.c.b16 %v3371, %v3366
    %v4932 = vpack.c.b16 %v3372, %v3367
    %v4933 = vpack.c.b16 %v3373, %v3368
    %v4934 = vpack.c.b16 %v3374, %v3369
    %v4935 = vpack.c.b16 %v3380, %v3375
    %v4936 = vpack.c.b16 %v3381, %v3376
    %v4937 = vpack.c.b16 %v3382, %v3377
    %v4938 = vpack.c.b16 %v3383, %v3378
    %v4939 = vpack.c.b16 %v3384, %v3379
    %v4940 = vpack.c.b16 %v3390, %v3385
    %v4941 = vpack.c.b16 %v3391, %v3386
    %v4942 = vpack.c.b16 %v3392, %v3387
    %v4943 = vpack.c.b16 %v3393, %v3388
    %v4944 = vpack.c.b16 %v3394, %v3389
    %v4945 = vpack.c.b16 %v3400, %v3395
    %v4946 = vpack.c.b16 %v3401, %v3396
    %v4947 = vpack.c.b16 %v3402, %v3397
    %v4948 = vpack.c.b16 %v3403, %v3398
    %v4949 = vpack.c.b16 %v3404, %v3399
    %v4950 = vpack.c.b16 %v3410, %v3405
    %v4951 = vpack.c.b16 %v3411, %v3406
    %v4952 = vpack.c.b16 %v3412, %v3407
    %v4953 = vpack.c.b16 %v3413, %v3408
    %v4954 = vpack.c.b16 %v3414, %v3409
    %v4955 = vpack.c.b16 %v3420, %v3415
    %v4956 = vpack.c.b16 %v3421, %v3416
    %v4957 = vpack.c.b16 %v3422, %v3417
    %v4958 = vpack.c.b16 %v3423, %v3418
    %v4959 = vpack.c.b16 %v3424, %v3419
    %v4960 = vpack.c.b16 %v3430, %v3425
    %v4961 = vpack.c.b16 %v3431, %v3426
    %v4962 = vpack.c.b16 %v3432, %v3427
    %v4963 = vpack.c.b16 %v3433, %v3428
    %v4964 = vpack.c.b16 %v3434, %v3429
    %v4965 = vpack.c.b16 %v3440, %v3435
    %v4966 = vpack.c.b16 %v3441, %v3436
    %v4967 = vpack.c.b16 %v3442, %v3437
    %v4968 = vpack.c.b16 %v3443, %v3438
    %v4969 = vpack.c.b16 %v3444, %v3439
    %v4970 = vpack.c.b16 %v3450, %v3445
    %v4971 = vpack.c.b16 %v3451, %v3446
    %v4972 = vpack.c.b16 %v3452, %v3447
    %v4973 = vpack.c.b16 %v3453, %v3448
    %v4974 = vpack.c.b16 %v3454, %v3449
    %v4975 = vpack.c.b16 %v3460, %v3455
    %v4976 = vpack.c.b16 %v3461, %v3456
    %v4977 = vpack.c.b16 %v3462, %v3457
    %v4978 = vpack.c.b16 %v3463, %v3458
    %v4979 = vpack.c.b16 %v3464, %v3459
    %v4980 = vpack.c.b16 %v3470, %v3465
    %v4981 = vpack.c.b16 %v3471, %v3466
    %v4982 = vpack.c.b16 %v3472, %v3467
    %v4983 = vpack.c.b16 %v3473, %v3468
    %v4984 = vpack.c.b16 %v3474, %v3469
    %v4985 = vpack.c.b16 %v3480, %v3475
    %v4986 = vpack.c.b16 %v3481, %v3476
    %v4987 = vpack.c.b16 %v3482, %v3477
    %v4988 = vpack.c.b16 %v3483, %v3478
    %v4989 = vpack.c.b16 %v3484, %v3479
    %v4990 = vpack.c.b16 %v3490, %v3485
    %v4991 = vpack.c.b16 %v3491, %v3486
    %v4992 = vpack.c.b16 %v3492, %v3487
    %v4993 = vpack.c.b16 %v3493, %v3488
    %v4994 = vpack.c.b16 %v3494, %v3489
    %v4995 = vpack.c.b16 %v3500, %v3495
    %v4996 = vpack.c.b16 %v3501, %v3496
    %v4997 = vpack.c.b16 %v3502, %v3497
    %v4998 = vpack.c.b16 %v3503, %v3498
    %v4999 = vpack.c.b16 %v3504, %v3499
    %v5000 = vpack.c.b16 %v3510, %v3505
    %v5001 = vpack.c.b16 %v3511, %v3506
    %v5002 = vpack.c.b16 %v3512, %v3507
    %v5003 = vpack.c.b16 %v3513, %v3508
    %v5004 = vpack.c.b16 %v3514, %v3509
    %v5005 = vpack.c.b16 %v3520, %v3515
    %v5006 = vpack.c.b16 %v3521, %v3516
    %v5007 = vpack.c.b16 %v3522, %v3517
    %v5008 = vpack.c.b16 %v3523, %v3518
    %v5009 = vpack.c.b16 %v3524, %v3519
    %v5010 = vpack.c.b16 %v3530, %v3525
    %v5011 = vpack.c.b16 %v3531, %v3526
    %v5012 = vpack.c.b16 %v3532, %v3527
    %v5013 = vpack.c.b16 %v3533, %v3528
    %v5014 = vpack.c.b16 %v3534, %v3529
    %v5015 = vpack.c.b16 %v3540, %v3535
    %v5016 = vpack.c.b16 %v3541, %v3536
    %v5017 = vpack.c.b16 %v3542, %v3537
    %v5018 = vpack.c.b16 %v3543, %v3538
    %v5019 = vpack.c.b16 %v3544, %v3539
    %v5020 = vpack.c.b16 %v3550, %v3545
    %v5021 = vpack.c.b16 %v3551, %v3546
    %v5022 = vpack.c.b16 %v3552, %v3547
    %v5023 = vpack.c.b16 %v3553, %v3548
    %v5024 = vpack.c.b16 %v3554, %v3549
    %v5025 = vpack.c.b16 %v3560, %v3555
    %v5026 = vpack.c.b16 %v3561, %v3556
    %v5027 = vpack.c.b16 %v3562, %v3557
    %v5028 = vpack.c.b16 %v3563, %v3558
    %v5029 = vpack.c.b16 %v3564, %v3559
    %v5030 = vpack.c.b16 %v3570, %v3565
    %v5031 = vpack.c.b16 %v3571, %v3566
    %v5032 = vpack.c.b16 %v3572, %v3567
    %v5033 = vpack.c.b16 %v3573, %v3568
    %v5034 = vpack.c.b16 %v3574, %v3569
    %v5035 = vpack.c.b16 %v3580, %v3575
    %v5036 = vpack.c.b16 %v3581, %v3576
    %v5037 = vpack.c.b16 %v3582, %v3577
    %v5038 = vpack.c.b16 %v3583, %v3578
    %v5039 = vpack.c.b16 %v3584, %v3579
    %v5040 = vpack.c.b16 %v3590, %v3585
    %v5041 = vpack.c.b16 %v3591, %v3586
    %v5042 = vpack.c.b16 %v3592, %v3587
    %v5043 = vpack.c.b16 %v3593, %v3588
    %v5044 = vpack.c.b16 %v3594, %v3589
    %v5045 = vpack.c.b16 %v3600, %v3595
    %v5046 = vpack.c.b16 %v3601, %v3596
    %v5047 = vpack.c.b16 %v3602, %v3597
    %v5048 = vpack.c.b16 %v3603, %v3598
    %v5049 = vpack.c.b16 %v3604, %v3599
    %v5050 = vpack.c.b16 %v3610, %v3605
    %v5051 = vpack.c.b16 %v3611, %v3606
    %v5052 = vpack.c.b16 %v3612, %v3607
    %v5053 = vpack.c.b16 %v3613, %v3608
    %v5054 = vpack.c.b16 %v3614, %v3609
    %v5055 = vpack.c.b16 %v3620, %v3615
    %v5056 = vpack.c.b16 %v3621, %v3616
    %v5057 = vpack.c.b16 %v3622, %v3617
    %v5058 = vpack.c.b16 %v3623, %v3618
    %v5059 = vpack.c.b16 %v3624, %v3619
    %v5060 = vpack.c.b16 %v3630, %v3625
    %v5061 = vpack.c.b16 %v3631, %v3626
    %v5062 = vpack.c.b16 %v3632, %v3627
    %v5063 = vpack.c.b16 %v3633, %v3628
    %v5064 = vpack.c.b16 %v3634, %v3629
    %v5065 = vpack.c.b16 %v3640, %v3635
    %v5066 = vpack.c.b16 %v3641, %v3636
    %v5067 = vpack.c.b16 %v3642, %v3637
    %v5068 = vpack.c.b16 %v3643, %v3638
    %v5069 = vpack.c.b16 %v3644, %v3639
    %v5070 = vpack.c.b16 %v3650, %v3645
    %v5071 = vpack.c.b16 %v3651, %v3646
    %v5072 = vpack.c.b16 %v3652, %v3647
    %v5073 = vpack.c.b16 %v3653, %v3648
    %v5074 = vpack.c.b16 %v3654, %v3649
    %v5075 = vpack.c.b16 %v3660, %v3655
    %v5076 = vpack.c.b16 %v3661, %v3656
    %v5077 = vpack.c.b16 %v3662, %v3657
    %v5078 = vpack.c.b16 %v3663, %v3658
    %v5079 = vpack.c.b16 %v3664, %v3659
    %v5080 = vpack.c.b16 %v3670, %v3665
    %v5081 = vpack.c.b16 %v3671, %v3666
    %v5082 = vpack.c.b16 %v3672, %v3667
    %v5083 = vpack.c.b16 %v3673, %v3668
    %v5084 = vpack.c.b16 %v3674, %v3669
    %v5085 = vpack.c.b16 %v3680, %v3675
    %v5086 = vpack.c.b16 %v3681, %v3676
    %v5087 = vpack.c.b16 %v3682, %v3677
    %v5088 = vpack.c.b16 %v3683, %v3678
    %v5089 = vpack.c.b16 %v3684, %v3679
    %v5090 = vpack.c.b16 %v3690, %v3685
    %v5091 = vpack.c.b16 %v3691, %v3686
    %v5092 = vpack.c.b16 %v3692, %v3687
    %v5093 = vpack.c.b16 %v3693, %v3688
    %v5094 = vpack.c.b16 %v3694, %v3689
    %v5095 = vpack.c.b16 %v3700, %v3695
    %v5096 = vpack.c.b16 %v3701, %v3696
    %v5097 = vpack.c.b16 %v3702, %v3697
    %v5098 = vpack.c.b16 %v3703, %v3698
    %v5099 = vpack.c.b16 %v3704, %v3699
    %v5100 = vpack.c.b16 %v3710, %v3705
    %v5101 = vpack.c.b16 %v3711, %v3706
    %v5102 = vpack.c.b16 %v3712, %v3707
    %v5103 = vpack.c.b16 %v3713, %v3708
    %v5104 = vpack.c.b16 %v3714, %v3709
    %v5105 = vpack.c.b16 %v3720, %v3715
    %v5106 = vpack.c.b16 %v3721, %v3716
    %v5107 = vpack.c.b16 %v3722, %v3717
    %v5108 = vpack.c.b16 %v3723, %v3718
    %v5109 = vpack.c.b16 %v3724, %v3719
    %v5110 = vpack.c.b16 %v3730, %v3725
    %v5111 = vpack.c.b16 %v3731, %v3726
    %v5112 = vpack.c.b16 %v3732, %v3727
    %v5113 = vpack.c.b16 %v3733, %v3728
    %v5114 = vpack.c.b16 %v3734, %v3729
    %v5115 = vpack.c.b16 %v3740, %v3735
    %v5116 = vpack.c.b16 %v3741, %v3736
    %v5117 = vpack.c.b16 %v3742, %v3737
    %v5118 = vpack.c.b16 %v3743, %v3738
    %v5119 = vpack.c.b16 %v3744, %v3739
    %v5120 = vpack.c.b16 %v3750, %v3745
    %v5121 = vpack.c.b16 %v3751, %v3746
    %v5122 = vpack.c.b16 %v3752, %v3747
    %v5123 = vpack.c.b16 %v3753, %v3748
    %v5124 = vpack.c.b16 %v3754, %v3749
    %v5125 = vpack.c.b16 %v3760, %v3755
    %v5126 = vpack.c.b16 %v3761, %v3756
    %v5127 = vpack.c.b16 %v3762, %v3757
    %v5128 = vpack.c.b16 %v3763, %v3758
    %v5129 = vpack.c.b16 %v3764, %v3759
    %v5130 = vpack.c.b16 %v3770, %v3765
    %v5131 = vpack.c.b16 %v3771, %v3766
    %v5132 = vpack.c.b16 %v3772, %v3767
    %v5133 = vpack.c.b16 %v3773, %v3768
    %v5134 = vpack.c.b16 %v3774, %v3769
    %v5135 = vpack.c.b16 %v3780, %v3775
    %v5136 = vpack.c.b16 %v3781, %v3776
    %v5137 = vpack.c.b16 %v3782, %v3777
    %v5138 = vpack.c.b16 %v3783, %v3778
    %v5139 = vpack.c.b16 %v3784, %v3779
    %v5140 = vpack.c.b16 %v3790, %v3785
    %v5141 = vpack.c.b16 %v3791, %v3786
    %v5142 = vpack.c.b16 %v3792, %v3787
    %v5143 = vpack.c.b16 %v3793, %v3788
    %v5144 = vpack.c.b16 %v3794, %v3789
    %v5145 = vpack.c.b16 %v3800, %v3795
    %v5146 = vpack.c.b16 %v3801, %v3796
    %v5147 = vpack.c.b16 %v3802, %v3797
    %v5148 = vpack.c.b16 %v3803, %v3798
    %v5149 = vpack.c.b16 %v3804, %v3799
    %v5150 = vpack.c.b16 %v3810, %v3805
    %v5151 = vpack.c.b16 %v3811, %v3806
    %v5152 = vpack.c.b16 %v3812, %v3807
    %v5153 = vpack.c.b16 %v3813, %v3808
    %v5154 = vpack.c.b16 %v3814, %v3809
    %v5155 = vpack.c.b16 %v3820, %v3815
    %v5156 = vpack.c.b16 %v3821, %v3816
    %v5157 = vpack.c.b16 %v3822, %v3817
    %v5158 = vpack.c.b16 %v3823, %v3818
    %v5159 = vpack.c.b16 %v3824, %v3819
    %v5160 = vpack.c.b16 %v3830, %v3825
    %v5161 = vpack.c.b16 %v3831, %v3826
    %v5162 = vpack.c.b16 %v3832, %v3827
    %v5163 = vpack.c.b16 %v3833, %v3828
    %v5164 = vpack.c.b16 %v3834, %v3829
    %v5165 = vpack.c.b16 %v3840, %v3835
    %v5166 = vpack.c.b16 %v3841, %v3836
    %v5167 = vpack.c.b16 %v3842, %v3837
    %v5168 = vpack.c.b16 %v3843, %v3838
    %v5169 = vpack.c.b16 %v3844, %v3839
    %v5170 = vpack.c.b16 %v3850, %v3845
    %v5171 = vpack.c.b16 %v3851, %v3846
    %v5172 = vpack.c.b16 %v3852, %v3847
    %v5173 = vpack.c.b16 %v3853, %v3848
    %v5174 = vpack.c.b16 %v3854, %v3849
    %v5175 = vpack.c.b16 %v3860, %v3855
    %v5176 = vpack.c.b16 %v3861, %v3856
    %v5177 = vpack.c.b16 %v3862, %v3857
    %v5178 = vpack.c.b16 %v3863, %v3858
    %v5179 = vpack.c.b16 %v3864, %v3859
    %v5180 = vpack.c.b16 %v3870, %v3865
    %v5181 = vpack.c.b16 %v3871, %v3866
    %v5182 = vpack.c.b16 %v3872, %v3867
    %v5183 = vpack.c.b16 %v3873, %v3868
    %v5184 = vpack.c.b16 %v3874, %v3869
    %v5185 = vpack.c.b16 %v3880, %v3875
    %v5186 = vpack.c.b16 %v3881, %v3876
    %v5187 = vpack.c.b16 %v3882, %v3877
    %v5188 = vpack.c.b16 %v3883, %v3878
    %v5189 = vpack.c.b16 %v3884, %v3879
    %v5190 = vpack.c.b16 %v3890, %v3885
    %v5191 = vpack.c.b16 %v3891, %v3886
    %v5192 = vpack.c.b16 %v3892, %v3887
    %v5193 = vpack.c.b16 %v3893, %v3888
    %v5194 = vpack.c.b16 %v3894, %v3889
    %v5195 = vpack.c.b16 %v3900, %v3895
    %v5196 = vpack.c.b16 %v3901, %v3896
    %v5197 = vpack.c.b16 %v3902, %v3897
    %v5198 = vpack.c.b16 %v3903, %v3898
    %v5199 = vpack.c.b16 %v3904, %v3899
    %v5200 = vpack.c.b16 %v3910, %v3905
    %v5201 = vpack.c.b16 %v3911, %v3906
    %v5202 = vpack.c.b16 %v3912, %v3907
    %v5203 = vpack.c.b16 %v3913, %v3908
    %v5204 = vpack.c.b16 %v3914, %v3909
    %v5205 = vpack.c.b16 %v3920, %v3915
    %v5206 = vpack.c.b16 %v3921, %v3916
    %v5207 = vpack.c.b16 %v3922, %v3917
    %v5208 = vpack.c.b16 %v3923, %v3918
    %v5209 = vpack.c.b16 %v3924, %v3919
    %v5210 = vpack.c.b16 %v3930, %v3925
    %v5211 = vpack.c.b16 %v3931, %v3926
    %v5212 = vpack.c.b16 %v3932, %v3927
    %v5213 = vpack.c.b16 %v3933, %v3928
    %v5214 = vpack.c.b16 %v3934, %v3929
    %v5215 = vpack.c.b16 %v3940, %v3935
    %v5216 = vpack.c.b16 %v3941, %v3936
    %v5217 = vpack.c.b16 %v3942, %v3937
    %v5218 = vpack.c.b16 %v3943, %v3938
    %v5219 = vpack.c.b16 %v3944, %v3939
    %v5220 = vpack.c.b16 %v3950, %v3945
    %v5221 = vpack.c.b16 %v3951, %v3946
    %v5222 = vpack.c.b16 %v3952, %v3947
    %v5223 = vpack.c.b16 %v3953, %v3948
    %v5224 = vpack.c.b16 %v3954, %v3949
    %v5225 = vpack.c.b16 %v3960, %v3955
    %v5226 = vpack.c.b16 %v3961, %v3956
    %v5227 = vpack.c.b16 %v3962, %v3957
    %v5228 = vpack.c.b16 %v3963, %v3958
    %v5229 = vpack.c.b16 %v3964, %v3959
    %v5230 = vpack.c.b16 %v3970, %v3965
    %v5231 = vpack.c.b16 %v3971, %v3966
    %v5232 = vpack.c.b16 %v3972, %v3967
    %v5233 = vpack.c.b16 %v3973, %v3968
    %v5234 = vpack.c.b16 %v3974, %v3969
    %v5235 = vpack.c.b16 %v3980, %v3975
    %v5236 = vpack.c.b16 %v3981, %v3976
    %v5237 = vpack.c.b16 %v3982, %v3977
    %v5238 = vpack.c.b16 %v3983, %v3978
    %v5239 = vpack.c.b16 %v3984, %v3979
    %v5240 = vpack.c.b16 %v3990, %v3985
    %v5241 = vpack.c.b16 %v3991, %v3986
    %v5242 = vpack.c.b16 %v3992, %v3987
    %v5243 = vpack.c.b16 %v3993, %v3988
    %v5244 = vpack.c.b16 %v3994, %v3989
    %v5245 = vpack.c.b16 %v4000, %v3995
    %v5246 = vpack.c.b16 %v4001, %v3996
    %v5247 = vpack.c.b16 %v4002, %v3997
    %v5248 = vpack.c.b16 %v4003, %v3998
    %v5249 = vpack.c.b16 %v4004, %v3999
    %v5250 = vpack.c.b16 %v4010, %v4005
    %v5251 = vpack.c.b16 %v4011, %v4006
    %v5252 = vpack.c.b16 %v4012, %v4007
    %v5253 = vpack.c.b16 %v4013, %v4008
    %v5254 = vpack.c.b16 %v4014, %v4009
    %v5255 = vpack.c.b16 %v4020, %v4015
    %v5256 = vpack.c.b16 %v4021, %v4016
    %v5257 = vpack.c.b16 %v4022, %v4017
    %v5258 = vpack.c.b16 %v4023, %v4018
    %v5259 = vpack.c.b16 %v4024, %v4019
    %v5260 = vpack.c.b16 %v4030, %v4025
    %v5261 = vpack.c.b16 %v4031, %v4026
    %v5262 = vpack.c.b16 %v4032, %v4027
    %v5263 = vpack.c.b16 %v4033, %v4028
    %v5264 = vpack.c.b16 %v4034, %v4029
    %v5265 = vpack.c.b16 %v4040, %v4035
    %v5266 = vpack.c.b16 %v4041, %v4036
    %v5267 = vpack.c.b16 %v4042, %v4037
    %v5268 = vpack.c.b16 %v4043, %v4038
    %v5269 = vpack.c.b16 %v4044, %v4039
    %v5270 = vpack.c.b16 %v4050, %v4045
    %v5271 = vpack.c.b16 %v4051, %v4046
    %v5272 = vpack.c.b16 %v4052, %v4047
    %v5273 = vpack.c.b16 %v4053, %v4048
    %v5274 = vpack.c.b16 %v4054, %v4049
    %v5275 = vpack.c.b16 %v4060, %v4055
    %v5276 = vpack.c.b16 %v4061, %v4056
    %v5277 = vpack.c.b16 %v4062, %v4057
    %v5278 = vpack.c.b16 %v4063, %v4058
    %v5279 = vpack.c.b16 %v4064, %v4059
    %v5280 = vpack.c.b16 %v4070, %v4065
    %v5281 = vpack.c.b16 %v4071, %v4066
    %v5282 = vpack.c.b16 %v4072, %v4067
    %v5283 = vpack.c.b16 %v4073, %v4068
    %v5284 = vpack.c.b16 %v4074, %v4069
    %v5285 = vpack.c.b16 %v4080, %v4075
    %v5286 = vpack.c.b16 %v4081, %v4076
    %v5287 = vpack.c.b16 %v4082, %v4077
    %v5288 = vpack.c.b16 %v4083, %v4078
    %v5289 = vpack.c.b16 %v4084, %v4079
    %v5290 = vpack.c.b16 %v4090, %v4085
    %v5291 = vpack.c.b16 %v4091, %v4086
    %v5292 = vpack.c.b16 %v4092, %v4087
    %v5293 = vpack.c.b16 %v4093, %v4088
    %v5294 = vpack.c.b16 %v4094, %v4089
    %v5295 = vpack.c.b16 %v4100, %v4095
    %v5296 = vpack.c.b16 %v4101, %v4096
    %v5297 = vpack.c.b16 %v4102, %v4097
    %v5298 = vpack.c.b16 %v4103, %v4098
    %v5299 = vpack.c.b16 %v4104, %v4099
    %v5300 = vpack.c.b16 %v4110, %v4105
    %v5301 = vpack.c.b16 %v4111, %v4106
    %v5302 = vpack.c.b16 %v4112, %v4107
    %v5303 = vpack.c.b16 %v4113, %v4108
    %v5304 = vpack.c.b16 %v4114, %v4109
    %v5305 = vpack.c.b16 %v4120, %v4115
    %v5306 = vpack.c.b16 %v4121, %v4116
    %v5307 = vpack.c.b16 %v4122, %v4117
    %v5308 = vpack.c.b16 %v4123, %v4118
    %v5309 = vpack.c.b16 %v4124, %v4119
    %v5310 = vpack.c.b16 %v4130, %v4125
    %v5311 = vpack.c.b16 %v4131, %v4126
    %v5312 = vpack.c.b16 %v4132, %v4127
    %v5313 = vpack.c.b16 %v4133, %v4128
    %v5314 = vpack.c.b16 %v4134, %v4129
    %v5315 = vpack.c.b16 %v4140, %v4135
    %v5316 = vpack.c.b16 %v4141, %v4136
    %v5317 = vpack.c.b16 %v4142, %v4137
    %v5318 = vpack.c.b16 %v4143, %v4138
    %v5319 = vpack.c.b16 %v4144, %v4139
    %v5320 = vpack.c.b16 %v4150, %v4145
    %v5321 = vpack.c.b16 %v4151, %v4146
    %v5322 = vpack.c.b16 %v4152, %v4147
    %v5323 = vpack.c.b16 %v4153, %v4148
    %v5324 = vpack.c.b16 %v4154, %v4149
    %v5325 = vpack.c.b16 %v4160, %v4155
    %v5326 = vpack.c.b16 %v4161, %v4156
    %v5327 = vpack.c.b16 %v4162, %v4157
    %v5328 = vpack.c.b16 %v4163, %v4158
    %v5329 = vpack.c.b16 %v4164, %v4159
    %v5330 = vpack.c.b16 %v4170, %v4165
    %v5331 = vpack.c.b16 %v4171, %v4166
    %v5332 = vpack.c.b16 %v4172, %v4167
    %v5333 = vpack.c.b16 %v4173, %v4168
    %v5334 = vpack.c.b16 %v4174, %v4169
    %v5335 = vpack.c.b16 %v4180, %v4175
    %v5336 = vpack.c.b16 %v4181, %v4176
    %v5337 = vpack.c.b16 %v4182, %v4177
    %v5338 = vpack.c.b16 %v4183, %v4178
    %v5339 = vpack.c.b16 %v4184, %v4179
    %v5340 = vpack.c.b16 %v4190, %v4185
    %v5341 = vpack.c.b16 %v4191, %v4186
    %v5342 = vpack.c.b16 %v4192, %v4187
    %v5343 = vpack.c.b16 %v4193, %v4188
    %v5344 = vpack.c.b16 %v4194, %v4189
    %v5345 = vpack.c.b16 %v4200, %v4195
    %v5346 = vpack.c.b16 %v4201, %v4196
    %v5347 = vpack.c.b16 %v4202, %v4197
    %v5348 = vpack.c.b16 %v4203, %v4198
    %v5349 = vpack.c.b16 %v4204, %v4199
    %v5350 = vpack.c.b16 %v4210, %v4205
    %v5351 = vpack.c.b16 %v4211, %v4206
    %v5352 = vpack.c.b16 %v4212, %v4207
    %v5353 = vpack.c.b16 %v4213, %v4208
    %v5354 = vpack.c.b16 %v4214, %v4209
    %v5355 = vpack.c.b16 %v4220, %v4215
    %v5356 = vpack.c.b16 %v4221, %v4216
    %v5357 = vpack.c.b16 %v4222, %v4217
    %v5358 = vpack.c.b16 %v4223, %v4218
    %v5359 = vpack.c.b16 %v4224, %v4219
    %v5360 = vpack.c.b16 %v4230, %v4225
    %v5361 = vpack.c.b16 %v4231, %v4226
    %v5362 = vpack.c.b16 %v4232, %v4227
    %v5363 = vpack.c.b16 %v4233, %v4228
    %v5364 = vpack.c.b16 %v4234, %v4229
    %v5365 = vpack.c.b16 %v4240, %v4235
    %v5366 = vpack.c.b16 %v4241, %v4236
    %v5367 = vpack.c.b16 %v4242, %v4237
    %v5368 = vpack.c.b16 %v4243, %v4238
    %v5369 = vpack.c.b16 %v4244, %v4239
    %v5370 = vpack.c.b16 %v4250, %v4245
    %v5371 = vpack.c.b16 %v4251, %v4246
    %v5372 = vpack.c.b16 %v4252, %v4247
    %v5373 = vpack.c.b16 %v4253, %v4248
    %v5374 = vpack.c.b16 %v4254, %v4249
    %v5375 = vpack.c.b16 %v4260, %v4255
    %v5376 = vpack.c.b16 %v4261, %v4256
    %v5377 = vpack.c.b16 %v4262, %v4257
    %v5378 = vpack.c.b16 %v4263, %v4258
    %v5379 = vpack.c.b16 %v4264, %v4259
    %v5380 = vpack.c.b16 %v4270, %v4265
    %v5381 = vpack.c.b16 %v4271, %v4266
    %v5382 = vpack.c.b16 %v4272, %v4267
    %v5383 = vpack.c.b16 %v4273, %v4268
    %v5384 = vpack.c.b16 %v4274, %v4269
    %v5385 = vpack.c.b16 %v4280, %v4275
    %v5386 = vpack.c.b16 %v4281, %v4276
    %v5387 = vpack.c.b16 %v4282, %v4277
    %v5388 = vpack.c.b16 %v4283, %v4278
    %v5389 = vpack.c.b16 %v4284, %v4279
    %v5390 = vpack.c.b16 %v4290, %v4285
    %v5391 = vpack.c.b16 %v4291, %v4286
    %v5392 = vpack.c.b16 %v4292, %v4287
    %v5393 = vpack.c.b16 %v4293, %v4288
    %v5394 = vpack.c.b16 %v4294, %v4289
    %v5395 = vpack.c.b16 %v4300, %v4295
    %v5396 = vpack.c.b16 %v4301, %v4296
    %v5397 = vpack.c.b16 %v4302, %v4297
    %v5398 = vpack.c.b16 %v4303, %v4298
    %v5399 = vpack.c.b16 %v4304, %v4299
    %v5400 = vpack.c.b16 %v4310, %v4305
    %v5401 = vpack.c.b16 %v4311, %v4306
    %v5402 = vpack.c.b16 %v4312, %v4307
    %v5403 = vpack.c.b16 %v4313, %v4308
    %v5404 = vpack.c.b16 %v4314, %v4309
    %v5405 = vpack.c.b16 %v4320, %v4315
    %v5406 = vpack.c.b16 %v4321, %v4316
    %v5407 = vpack.c.b16 %v4322, %v4317
    %v5408 = vpack.c.b16 %v4323, %v4318
    %v5409 = vpack.c.b16 %v4324, %v4319
    %v5410 = vpack.c.b16 %v4330, %v4325
    %v5411 = vpack.c.b16 %v4331, %v4326
    %v5412 = vpack.c.b16 %v4332, %v4327
    %v5413 = vpack.c.b16 %v4333, %v4328
    %v5414 = vpack.c.b16 %v4334, %v4329
    %v5415 = vpack.c.b16 %v4340, %v4335
    %v5416 = vpack.c.b16 %v4341, %v4336
    %v5417 = vpack.c.b16 %v4342, %v4337
    %v5418 = vpack.c.b16 %v4343, %v4338
    %v5419 = vpack.c.b16 %v4344, %v4339
    %v5420 = vpack.c.b16 %v4350, %v4345
    %v5421 = vpack.c.b16 %v4351, %v4346
    %v5422 = vpack.c.b16 %v4352, %v4347
    %v5423 = vpack.c.b16 %v4353, %v4348
    %v5424 = vpack.c.b16 %v4354, %v4349
    %v5425 = vpack.c.b16 %v4360, %v4355
    %v5426 = vpack.c.b16 %v4361, %v4356
    %v5427 = vpack.c.b16 %v4362, %v4357
    %v5428 = vpack.c.b16 %v4363, %v4358
    %v5429 = vpack.c.b16 %v4364, %v4359
    %v5430 = vpack.c.b16 %v4370, %v4365
    %v5431 = vpack.c.b16 %v4371, %v4366
    %v5432 = vpack.c.b16 %v4372, %v4367
    %v5433 = vpack.c.b16 %v4373, %v4368
    %v5434 = vpack.c.b16 %v4374, %v4369
    %v5435 = vpack.c.b16 %v4380, %v4375
    %v5436 = vpack.c.b16 %v4381, %v4376
    %v5437 = vpack.c.b16 %v4382, %v4377
    %v5438 = vpack.c.b16 %v4383, %v4378
    %v5439 = vpack.c.b16 %v4384, %v4379
    %v5440 = vpack.c.b16 %v4390, %v4385
    %v5441 = vpack.c.b16 %v4391, %v4386
    %v5442 = vpack.c.b16 %v4392, %v4387
    %v5443 = vpack.c.b16 %v4393, %v4388
    %v5444 = vpack.c.b16 %v4394, %v4389
    %v5445 = vpack.c.b16 %v4400, %v4395
    %v5446 = vpack.c.b16 %v4401, %v4396
    %v5447 = vpack.c.b16 %v4402, %v4397
    %v5448 = vpack.c.b16 %v4403, %v4398
    %v5449 = vpack.c.b16 %v4404, %v4399
    %v5450 = vpack.c.b16 %v4410, %v4405
    %v5451 = vpack.c.b16 %v4411, %v4406
    %v5452 = vpack.c.b16 %v4412, %v4407
    %v5453 = vpack.c.b16 %v4413, %v4408
    %v5454 = vpack.c.b16 %v4414, %v4409
    %v5455 = vpack.c.b16 %v4420, %v4415
    %v5456 = vpack.c.b16 %v4421, %v4416
    %v5457 = vpack.c.b16 %v4422, %v4417
    %v5458 = vpack.c.b16 %v4423, %v4418
    %v5459 = vpack.c.b16 %v4424, %v4419
    %v5460 = vpack.c.b16 %v4430, %v4425
    %v5461 = vpack.c.b16 %v4431, %v4426
    %v5462 = vpack.c.b16 %v4432, %v4427
    %v5463 = vpack.c.b16 %v4433, %v4428
    %v5464 = vpack.c.b16 %v4434, %v4429
    %v5465 = vpack.c.b16 %v4440, %v4435
    %v5466 = vpack.c.b16 %v4441, %v4436
    %v5467 = vpack.c.b16 %v4442, %v4437
    %v5468 = vpack.c.b16 %v4443, %v4438
    %v5469 = vpack.c.b16 %v4444, %v4439
    %v5470 = vpack.c.b16 %v4450, %v4445
    %v5471 = vpack.c.b16 %v4451, %v4446
    %v5472 = vpack.c.b16 %v4452, %v4447
    %v5473 = vpack.c.b16 %v4453, %v4448
    %v5474 = vpack.c.b16 %v4454, %v4449
    %v5475 = vpack.c.b16 %v4460, %v4455
    %v5476 = vpack.c.b16 %v4461, %v4456
    %v5477 = vpack.c.b16 %v4462, %v4457
    %v5478 = vpack.c.b16 %v4463, %v4458
    %v5479 = vpack.c.b16 %v4464, %v4459
    %v5480 = vpack.c.b16 %v4470, %v4465
    %v5481 = vpack.c.b16 %v4471, %v4466
    %v5482 = vpack.c.b16 %v4472, %v4467
    %v5483 = vpack.c.b16 %v4473, %v4468
    %v5484 = vpack.c.b16 %v4474, %v4469
    %v5485 = vpack.c.b16 %v4480, %v4475
    %v5486 = vpack.c.b16 %v4481, %v4476
    %v5487 = vpack.c.b16 %v4482, %v4477
    %v5488 = vpack.c.b16 %v4483, %v4478
    %v5489 = vpack.c.b16 %v4484, %v4479
    %v5490 = vpack.c.b16 %v4490, %v4485
    %v5491 = vpack.c.b16 %v4491, %v4486
    %v5492 = vpack.c.b16 %v4492, %v4487
    %v5493 = vpack.c.b16 %v4493, %v4488
    %v5494 = vpack.c.b16 %v4494, %v4489
    %6495 = vmatpush.bf16.msra.mxu0 %v4530
    %6496 = vmatpush.bf16.msra.mxu0 %v4525
    %6497 = vmatpush.bf16.msra.mxu0 %v4520
    %6498 = vmatpush.bf16.msra.mxu0 %v4515
    %6499 = vmatpush.bf16.msra.mxu0 %v4510
    %6500 = vmatpush.bf16.msra.mxu0 %v4505
    %6501 = vmatpush.bf16.msra.mxu0 %v4500
    %6502 = vmatpush.bf16.msra.mxu0 %v4495
    %6503 = vmatmul.bf16.gmra.mxu0 %v1239
    %v6504 = vpop.f32.mrf.mxu0
    %v6505 = vadd.f32 %v1227, %v6504
    %v6506 = vpop.f32.mrf.mxu0
    %6507 = vdwg.mxu0
    %6508 = vmatpush.bf16.msra.mxu0 %v4570
    %6509 = vmatpush.bf16.msra.mxu0 %v4565
    %6510 = vmatpush.bf16.msra.mxu0 %v4560
    %6511 = vmatpush.bf16.msra.mxu0 %v4555
    %6512 = vmatpush.bf16.msra.mxu0 %v4550
    %6513 = vmatpush.bf16.msra.mxu0 %v4545
    %6514 = vmatpush.bf16.msra.mxu0 %v4540
    %6515 = vmatpush.bf16.msra.mxu0 %v4535
    %6516 = vmatmul.bf16.gmra.mxu0 %v1240
    %v6517 = vpop.f32.mrf.mxu0
    %v6518 = vadd.f32 %v6505, %v6517
    %v6519 = vpop.f32.mrf.mxu0
    %6520 = vdwg.mxu0
    %6521 = vmatpush.bf16.msra.mxu0 %v4610
    %6522 = vmatpush.bf16.msra.mxu0 %v4605
    %6523 = vmatpush.bf16.msra.mxu0 %v4600
    %6524 = vmatpush.bf16.msra.mxu0 %v4595
    %6525 = vmatpush.bf16.msra.mxu0 %v4590
    %6526 = vmatpush.bf16.msra.mxu0 %v4585
    %6527 = vmatpush.bf16.msra.mxu0 %v4580
    %6528 = vmatpush.bf16.msra.mxu0 %v4575
    %6529 = vmatmul.bf16.gmra.mxu0 %v1241
    %v6530 = vpop.f32.mrf.mxu0
    %v6531 = vadd.f32 %v6518, %v6530
    %v6532 = vpop.f32.mrf.mxu0
    %6533 = vdwg.mxu0
    %6534 = vmatpush.bf16.msra.mxu0 %v4650
    %6535 = vmatpush.bf16.msra.mxu0 %v4645
    %6536 = vmatpush.bf16.msra.mxu0 %v4640
    %6537 = vmatpush.bf16.msra.mxu0 %v4635
    %6538 = vmatpush.bf16.msra.mxu0 %v4630
    %6539 = vmatpush.bf16.msra.mxu0 %v4625
    %6540 = vmatpush.bf16.msra.mxu0 %v4620
    %6541 = vmatpush.bf16.msra.mxu0 %v4615
    %6542 = vmatmul.bf16.gmra.mxu0 %v1242
    %v6543 = vpop.f32.mrf.mxu0
    %v6544 = vadd.f32 %v6531, %v6543
    %v6545 = vpop.f32.mrf.mxu0
    %6546 = vdwg.mxu0
    %6547 = vmatpush.bf16.msra.mxu0 %v4690
    %6548 = vmatpush.bf16.msra.mxu0 %v4685
    %6549 = vmatpush.bf16.msra.mxu0 %v4680
    %6550 = vmatpush.bf16.msra.mxu0 %v4675
    %6551 = vmatpush.bf16.msra.mxu0 %v4670
    %6552 = vmatpush.bf16.msra.mxu0 %v4665
    %6553 = vmatpush.bf16.msra.mxu0 %v4660
    %6554 = vmatpush.bf16.msra.mxu0 %v4655
    %6555 = vmatmul.bf16.gmra.mxu0 %v1243
    %v6556 = vpop.f32.mrf.mxu0
    %v6557 = vadd.f32 %v6544, %v6556
    %v6558 = vpop.f32.mrf.mxu0
    %6559 = vdwg.mxu0
    %6560 = vmatpush.bf16.msra.mxu0 %v4730
    %6561 = vmatpush.bf16.msra.mxu0 %v4725
    %6562 = vmatpush.bf16.msra.mxu0 %v4720
    %6563 = vmatpush.bf16.msra.mxu0 %v4715
    %6564 = vmatpush.bf16.msra.mxu0 %v4710
    %6565 = vmatpush.bf16.msra.mxu0 %v4705
    %6566 = vmatpush.bf16.msra.mxu0 %v4700
    %6567 = vmatpush.bf16.msra.mxu0 %v4695
    %6568 = vmatmul.bf16.gmra.mxu0 %v1244
    %v6569 = vpop.f32.mrf.mxu0
    %v6570 = vadd.f32 %v6557, %v6569
    %v6571 = vpop.f32.mrf.mxu0
    %6572 = vdwg.mxu0
    %6573 = vmatpush.bf16.msra.mxu0 %v4770
    %6574 = vmatpush.bf16.msra.mxu0 %v4765
    %6575 = vmatpush.bf16.msra.mxu0 %v4760
    %6576 = vmatpush.bf16.msra.mxu0 %v4755
    %6577 = vmatpush.bf16.msra.mxu0 %v4750
    %6578 = vmatpush.bf16.msra.mxu0 %v4745
    %6579 = vmatpush.bf16.msra.mxu0 %v4740
    %6580 = vmatpush.bf16.msra.mxu0 %v4735
    %6581 = vmatmul.bf16.gmra.mxu0 %v1245
    %v6582 = vpop.f32.mrf.mxu0
    %v6583 = vadd.f32 %v6570, %v6582
    %v6584 = vpop.f32.mrf.mxu0
    %6585 = vdwg.mxu0
    %6586 = vmatpush.bf16.msra.mxu0 %v4810
    %6587 = vmatpush.bf16.msra.mxu0 %v4805
    %6588 = vmatpush.bf16.msra.mxu0 %v4800
    %6589 = vmatpush.bf16.msra.mxu0 %v4795
    %6590 = vmatpush.bf16.msra.mxu0 %v4790
    %6591 = vmatpush.bf16.msra.mxu0 %v4785
    %6592 = vmatpush.bf16.msra.mxu0 %v4780
    %6593 = vmatpush.bf16.msra.mxu0 %v4775
    %6594 = vmatmul.bf16.gmra.mxu0 %v1246
    %v6595 = vpop.f32.mrf.mxu0
    %v6596 = vadd.f32 %v6583, %v6595
    %v6597 = vpop.f32.mrf.mxu0
    %6598 = vdwg.mxu0
    %6599 = vmatpush.bf16.msra.mxu0 %v4850
    %6600 = vmatpush.bf16.msra.mxu0 %v4845
    %6601 = vmatpush.bf16.msra.mxu0 %v4840
    %6602 = vmatpush.bf16.msra.mxu0 %v4835
    %6603 = vmatpush.bf16.msra.mxu0 %v4830
    %6604 = vmatpush.bf16.msra.mxu0 %v4825
    %6605 = vmatpush.bf16.msra.mxu0 %v4820
    %6606 = vmatpush.bf16.msra.mxu0 %v4815
    %6607 = vmatmul.bf16.gmra.mxu0 %v1249
    %v6608 = vpop.f32.mrf.mxu0
    %v6609 = vadd.f32 %v6596, %v6608
    %v6610 = vpop.f32.mrf.mxu0
    %6611 = vdwg.mxu0
    %6612 = vmatpush.bf16.msra.mxu0 %v4890
    %6613 = vmatpush.bf16.msra.mxu0 %v4885
    %6614 = vmatpush.bf16.msra.mxu0 %v4880
    %6615 = vmatpush.bf16.msra.mxu0 %v4875
    %6616 = vmatpush.bf16.msra.mxu0 %v4870
    %6617 = vmatpush.bf16.msra.mxu0 %v4865
    %6618 = vmatpush.bf16.msra.mxu0 %v4860
    %6619 = vmatpush.bf16.msra.mxu0 %v4855
    %6620 = vmatmul.bf16.gmra.mxu0 %v1250
    %v6621 = vpop.f32.mrf.mxu0
    %v6622 = vadd.f32 %v6609, %v6621
    %v6623 = vpop.f32.mrf.mxu0
    %6624 = vdwg.mxu0
    %6625 = vmatpush.bf16.msra.mxu0 %v4930
    %6626 = vmatpush.bf16.msra.mxu0 %v4925
    %6627 = vmatpush.bf16.msra.mxu0 %v4920
    %6628 = vmatpush.bf16.msra.mxu0 %v4915
    %6629 = vmatpush.bf16.msra.mxu0 %v4910
    %6630 = vmatpush.bf16.msra.mxu0 %v4905
    %6631 = vmatpush.bf16.msra.mxu0 %v4900
    %6632 = vmatpush.bf16.msra.mxu0 %v4895
    %6633 = vmatmul.bf16.gmra.mxu0 %v1251
    %v6634 = vpop.f32.mrf.mxu0
    %v6635 = vadd.f32 %v6622, %v6634
    %v6636 = vpop.f32.mrf.mxu0
    %6637 = vdwg.mxu0
    %6638 = vmatpush.bf16.msra.mxu0 %v4970
    %6639 = vmatpush.bf16.msra.mxu0 %v4965
    %6640 = vmatpush.bf16.msra.mxu0 %v4960
    %6641 = vmatpush.bf16.msra.mxu0 %v4955
    %6642 = vmatpush.bf16.msra.mxu0 %v4950
    %6643 = vmatpush.bf16.msra.mxu0 %v4945
    %6644 = vmatpush.bf16.msra.mxu0 %v4940
    %6645 = vmatpush.bf16.msra.mxu0 %v4935
    %6646 = vmatmul.bf16.gmra.mxu0 %v1252
    %v6647 = vpop.f32.mrf.mxu0
    %v6648 = vadd.f32 %v6635, %v6647
    %v6649 = vpop.f32.mrf.mxu0
    %6650 = vdwg.mxu0
    %6651 = vmatpush.bf16.msra.mxu0 %v5010
    %6652 = vmatpush.bf16.msra.mxu0 %v5005
    %6653 = vmatpush.bf16.msra.mxu0 %v5000
    %6654 = vmatpush.bf16.msra.mxu0 %v4995
    %6655 = vmatpush.bf16.msra.mxu0 %v4990
    %6656 = vmatpush.bf16.msra.mxu0 %v4985
    %6657 = vmatpush.bf16.msra.mxu0 %v4980
    %6658 = vmatpush.bf16.msra.mxu0 %v4975
    %6659 = vmatmul.bf16.gmra.mxu0 %v1253
    %v6660 = vpop.f32.mrf.mxu0
    %v6661 = vadd.f32 %v6648, %v6660
    %v6662 = vpop.f32.mrf.mxu0
    %6663 = vdwg.mxu0
    %6664 = vmatpush.bf16.msra.mxu0 %v5050
    %6665 = vmatpush.bf16.msra.mxu0 %v5045
    %6666 = vmatpush.bf16.msra.mxu0 %v5040
    %6667 = vmatpush.bf16.msra.mxu0 %v5035
    %6668 = vmatpush.bf16.msra.mxu0 %v5030
    %6669 = vmatpush.bf16.msra.mxu0 %v5025
    %6670 = vmatpush.bf16.msra.mxu0 %v5020
    %6671 = vmatpush.bf16.msra.mxu0 %v5015
    %6672 = vmatmul.bf16.gmra.mxu0 %v1254
    %v6673 = vpop.f32.mrf.mxu0
    %v6674 = vadd.f32 %v6661, %v6673
    %v6675 = vpop.f32.mrf.mxu0
    %6676 = vdwg.mxu0
    %6677 = vmatpush.bf16.msra.mxu0 %v5090
    %6678 = vmatpush.bf16.msra.mxu0 %v5085
    %6679 = vmatpush.bf16.msra.mxu0 %v5080
    %6680 = vmatpush.bf16.msra.mxu0 %v5075
    %6681 = vmatpush.bf16.msra.mxu0 %v5070
    %6682 = vmatpush.bf16.msra.mxu0 %v5065
    %6683 = vmatpush.bf16.msra.mxu0 %v5060
    %6684 = vmatpush.bf16.msra.mxu0 %v5055
    %6685 = vmatmul.bf16.gmra.mxu0 %v1255
    %v6686 = vpop.f32.mrf.mxu0
    %v6687 = vadd.f32 %v6674, %v6686
    %v6688 = vpop.f32.mrf.mxu0
    %6689 = vdwg.mxu0
    %6690 = vmatpush.bf16.msra.mxu0 %v5130
    %6691 = vmatpush.bf16.msra.mxu0 %v5125
    %6692 = vmatpush.bf16.msra.mxu0 %v5120
    %6693 = vmatpush.bf16.msra.mxu0 %v5115
    %6694 = vmatpush.bf16.msra.mxu0 %v5110
    %6695 = vmatpush.bf16.msra.mxu0 %v5105
    %6696 = vmatpush.bf16.msra.mxu0 %v5100
    %6697 = vmatpush.bf16.msra.mxu0 %v5095
    %6698 = vmatmul.bf16.gmra.mxu0 %v1256
    %v6699 = vpop.f32.mrf.mxu0
    %v6700 = vadd.f32 %v6687, %v6699
    %v6701 = vpop.f32.mrf.mxu0
    %6702 = vdwg.mxu0
    %6703 = vmatpush.bf16.msra.mxu0 %v5170
    %6704 = vmatpush.bf16.msra.mxu0 %v5165
    %6705 = vmatpush.bf16.msra.mxu0 %v5160
    %6706 = vmatpush.bf16.msra.mxu0 %v5155
    %6707 = vmatpush.bf16.msra.mxu0 %v5150
    %6708 = vmatpush.bf16.msra.mxu0 %v5145
    %6709 = vmatpush.bf16.msra.mxu0 %v5140
    %6710 = vmatpush.bf16.msra.mxu0 %v5135
    %6711 = vmatmul.bf16.gmra.mxu0 %v1259
    %v6712 = vpop.f32.mrf.mxu0
    %v6713 = vadd.f32 %v6700, %v6712
    %v6714 = vpop.f32.mrf.mxu0
    %6715 = vdwg.mxu0
    %6716 = vmatpush.bf16.msra.mxu0 %v5210
    %6717 = vmatpush.bf16.msra.mxu0 %v5205
    %6718 = vmatpush.bf16.msra.mxu0 %v5200
    %6719 = vmatpush.bf16.msra.mxu0 %v5195
    %6720 = vmatpush.bf16.msra.mxu0 %v5190
    %6721 = vmatpush.bf16.msra.mxu0 %v5185
    %6722 = vmatpush.bf16.msra.mxu0 %v5180
    %6723 = vmatpush.bf16.msra.mxu0 %v5175
    %6724 = vmatmul.bf16.gmra.mxu0 %v1260
    %v6725 = vpop.f32.mrf.mxu0
    %v6726 = vadd.f32 %v6713, %v6725
    %v6727 = vpop.f32.mrf.mxu0
    %6728 = vdwg.mxu0
    %6729 = vmatpush.bf16.msra.mxu0 %v5250
    %6730 = vmatpush.bf16.msra.mxu0 %v5245
    %6731 = vmatpush.bf16.msra.mxu0 %v5240
    %6732 = vmatpush.bf16.msra.mxu0 %v5235
    %6733 = vmatpush.bf16.msra.mxu0 %v5230
    %6734 = vmatpush.bf16.msra.mxu0 %v5225
    %6735 = vmatpush.bf16.msra.mxu0 %v5220
    %6736 = vmatpush.bf16.msra.mxu0 %v5215
    %6737 = vmatmul.bf16.gmra.mxu0 %v1261
    %v6738 = vpop.f32.mrf.mxu0
    %v6739 = vadd.f32 %v6726, %v6738
    %v6740 = vpop.f32.mrf.mxu0
    %6741 = vdwg.mxu0
    %6742 = vmatpush.bf16.msra.mxu0 %v5290
    %6743 = vmatpush.bf16.msra.mxu0 %v5285
    %6744 = vmatpush.bf16.msra.mxu0 %v5280
    %6745 = vmatpush.bf16.msra.mxu0 %v5275
    %6746 = vmatpush.bf16.msra.mxu0 %v5270
    %6747 = vmatpush.bf16.msra.mxu0 %v5265
    %6748 = vmatpush.bf16.msra.mxu0 %v5260
    %6749 = vmatpush.bf16.msra.mxu0 %v5255
    %6750 = vmatmul.bf16.gmra.mxu0 %v1262
    %v6751 = vpop.f32.mrf.mxu0
    %v6752 = vadd.f32 %v6739, %v6751
    %v6753 = vpop.f32.mrf.mxu0
    %6754 = vdwg.mxu0
    %6755 = vmatpush.bf16.msra.mxu0 %v5330
    %6756 = vmatpush.bf16.msra.mxu0 %v5325
    %6757 = vmatpush.bf16.msra.mxu0 %v5320
    %6758 = vmatpush.bf16.msra.mxu0 %v5315
    %6759 = vmatpush.bf16.msra.mxu0 %v5310
    %6760 = vmatpush.bf16.msra.mxu0 %v5305
    %6761 = vmatpush.bf16.msra.mxu0 %v5300
    %6762 = vmatpush.bf16.msra.mxu0 %v5295
    %6763 = vmatmul.bf16.gmra.mxu0 %v1263
    %v6764 = vpop.f32.mrf.mxu0
    %v6765 = vadd.f32 %v6752, %v6764
    %v6766 = vpop.f32.mrf.mxu0
    %6767 = vdwg.mxu0
    %6768 = vmatpush.bf16.msra.mxu0 %v5370
    %6769 = vmatpush.bf16.msra.mxu0 %v5365
    %6770 = vmatpush.bf16.msra.mxu0 %v5360
    %6771 = vmatpush.bf16.msra.mxu0 %v5355
    %6772 = vmatpush.bf16.msra.mxu0 %v5350
    %6773 = vmatpush.bf16.msra.mxu0 %v5345
    %6774 = vmatpush.bf16.msra.mxu0 %v5340
    %6775 = vmatpush.bf16.msra.mxu0 %v5335
    %6776 = vmatmul.bf16.gmra.mxu0 %v1264
    %v6777 = vpop.f32.mrf.mxu0
    %v6778 = vadd.f32 %v6765, %v6777
    %v6779 = vpop.f32.mrf.mxu0
    %6780 = vdwg.mxu0
    %6781 = vmatpush.bf16.msra.mxu0 %v5410
    %6782 = vmatpush.bf16.msra.mxu0 %v5405
    %6783 = vmatpush.bf16.msra.mxu0 %v5400
    %6784 = vmatpush.bf16.msra.mxu0 %v5395
    %6785 = vmatpush.bf16.msra.mxu0 %v5390
    %6786 = vmatpush.bf16.msra.mxu0 %v5385
    %6787 = vmatpush.bf16.msra.mxu0 %v5380
    %6788 = vmatpush.bf16.msra.mxu0 %v5375
    %6789 = vmatmul.bf16.gmra.mxu0 %v1265
    %v6790 = vpop.f32.mrf.mxu0
    %v6791 = vadd.f32 %v6778, %v6790
    %v6792 = vpop.f32.mrf.mxu0
    %6793 = vdwg.mxu0
    %6794 = vmatpush.bf16.msra.mxu0 %v5450
    %6795 = vmatpush.bf16.msra.mxu0 %v5445
    %6796 = vmatpush.bf16.msra.mxu0 %v5440
    %6797 = vmatpush.bf16.msra.mxu0 %v5435
    %6798 = vmatpush.bf16.msra.mxu0 %v5430
    %6799 = vmatpush.bf16.msra.mxu0 %v5425
    %6800 = vmatpush.bf16.msra.mxu0 %v5420
    %6801 = vmatpush.bf16.msra.mxu0 %v5415
    %6802 = vmatmul.bf16.gmra.mxu0 %v1266
    %v6803 = vpop.f32.mrf.mxu0
    %v6804 = vadd.f32 %v6791, %v6803
    %v6805 = vpop.f32.mrf.mxu0
    %6806 = vdwg.mxu0
    %6807 = vmatpush.bf16.msra.mxu0 %v5490
    %6808 = vmatpush.bf16.msra.mxu0 %v5485
    %6809 = vmatpush.bf16.msra.mxu0 %v5480
    %6810 = vmatpush.bf16.msra.mxu0 %v5475
    %6811 = vmatpush.bf16.msra.mxu0 %v5470
    %6812 = vmatpush.bf16.msra.mxu0 %v5465
    %6813 = vmatpush.bf16.msra.mxu0 %v5460
    %6814 = vmatpush.bf16.msra.mxu0 %v5455
    %6815 = vmatmul.bf16.gmra.mxu0 %v1269
    %v6816 = vpop.f32.mrf.mxu0
    %v6817 = vadd.f32 %v6804, %v6816
    %v6818 = vpop.f32.mrf.mxu0
    %6819 = vdwg.mxu0
    %6820 = vmatpush.bf16.msra.mxu0 %v4531
    %6821 = vmatpush.bf16.msra.mxu0 %v4526
    %6822 = vmatpush.bf16.msra.mxu0 %v4521
    %6823 = vmatpush.bf16.msra.mxu0 %v4516
    %6824 = vmatpush.bf16.msra.mxu0 %v4511
    %6825 = vmatpush.bf16.msra.mxu0 %v4506
    %6826 = vmatpush.bf16.msra.mxu0 %v4501
    %6827 = vmatpush.bf16.msra.mxu0 %v4496
    %6828 = vmatmul.bf16.gmra.mxu0 %v1239
    %v6829 = vpop.f32.mrf.mxu0
    %v6830 = vadd.f32 %v1228, %v6829
    %v6831 = vpop.f32.mrf.mxu0
    %6832 = vdwg.mxu0
    %6833 = vmatpush.bf16.msra.mxu0 %v4571
    %6834 = vmatpush.bf16.msra.mxu0 %v4566
    %6835 = vmatpush.bf16.msra.mxu0 %v4561
    %6836 = vmatpush.bf16.msra.mxu0 %v4556
    %6837 = vmatpush.bf16.msra.mxu0 %v4551
    %6838 = vmatpush.bf16.msra.mxu0 %v4546
    %6839 = vmatpush.bf16.msra.mxu0 %v4541
    %6840 = vmatpush.bf16.msra.mxu0 %v4536
    %6841 = vmatmul.bf16.gmra.mxu0 %v1240
    %v6842 = vpop.f32.mrf.mxu0
    %v6843 = vadd.f32 %v6830, %v6842
    %v6844 = vpop.f32.mrf.mxu0
    %6845 = vdwg.mxu0
    %6846 = vmatpush.bf16.msra.mxu0 %v4611
    %6847 = vmatpush.bf16.msra.mxu0 %v4606
    %6848 = vmatpush.bf16.msra.mxu0 %v4601
    %6849 = vmatpush.bf16.msra.mxu0 %v4596
    %6850 = vmatpush.bf16.msra.mxu0 %v4591
    %6851 = vmatpush.bf16.msra.mxu0 %v4586
    %6852 = vmatpush.bf16.msra.mxu0 %v4581
    %6853 = vmatpush.bf16.msra.mxu0 %v4576
    %6854 = vmatmul.bf16.gmra.mxu0 %v1241
    %v6855 = vpop.f32.mrf.mxu0
    %v6856 = vadd.f32 %v6843, %v6855
    %v6857 = vpop.f32.mrf.mxu0
    %6858 = vdwg.mxu0
    %6859 = vmatpush.bf16.msra.mxu0 %v4651
    %6860 = vmatpush.bf16.msra.mxu0 %v4646
    %6861 = vmatpush.bf16.msra.mxu0 %v4641
    %6862 = vmatpush.bf16.msra.mxu0 %v4636
    %6863 = vmatpush.bf16.msra.mxu0 %v4631
    %6864 = vmatpush.bf16.msra.mxu0 %v4626
    %6865 = vmatpush.bf16.msra.mxu0 %v4621
    %6866 = vmatpush.bf16.msra.mxu0 %v4616
    %6867 = vmatmul.bf16.gmra.mxu0 %v1242
    %v6868 = vpop.f32.mrf.mxu0
    %v6869 = vadd.f32 %v6856, %v6868
    %v6870 = vpop.f32.mrf.mxu0
    %6871 = vdwg.mxu0
    %6872 = vmatpush.bf16.msra.mxu0 %v4691
    %6873 = vmatpush.bf16.msra.mxu0 %v4686
    %6874 = vmatpush.bf16.msra.mxu0 %v4681
    %6875 = vmatpush.bf16.msra.mxu0 %v4676
    %6876 = vmatpush.bf16.msra.mxu0 %v4671
    %6877 = vmatpush.bf16.msra.mxu0 %v4666
    %6878 = vmatpush.bf16.msra.mxu0 %v4661
    %6879 = vmatpush.bf16.msra.mxu0 %v4656
    %6880 = vmatmul.bf16.gmra.mxu0 %v1243
    %v6881 = vpop.f32.mrf.mxu0
    %v6882 = vadd.f32 %v6869, %v6881
    %v6883 = vpop.f32.mrf.mxu0
    %6884 = vdwg.mxu0
    %6885 = vmatpush.bf16.msra.mxu0 %v4731
    %6886 = vmatpush.bf16.msra.mxu0 %v4726
    %6887 = vmatpush.bf16.msra.mxu0 %v4721
    %6888 = vmatpush.bf16.msra.mxu0 %v4716
    %6889 = vmatpush.bf16.msra.mxu0 %v4711
    %6890 = vmatpush.bf16.msra.mxu0 %v4706
    %6891 = vmatpush.bf16.msra.mxu0 %v4701
    %6892 = vmatpush.bf16.msra.mxu0 %v4696
    %6893 = vmatmul.bf16.gmra.mxu0 %v1244
    %v6894 = vpop.f32.mrf.mxu0
    %v6895 = vadd.f32 %v6882, %v6894
    %v6896 = vpop.f32.mrf.mxu0
    %6897 = vdwg.mxu0
    %6898 = vmatpush.bf16.msra.mxu0 %v4771
    %6899 = vmatpush.bf16.msra.mxu0 %v4766
    %6900 = vmatpush.bf16.msra.mxu0 %v4761
    %6901 = vmatpush.bf16.msra.mxu0 %v4756
    %6902 = vmatpush.bf16.msra.mxu0 %v4751
    %6903 = vmatpush.bf16.msra.mxu0 %v4746
    %6904 = vmatpush.bf16.msra.mxu0 %v4741
    %6905 = vmatpush.bf16.msra.mxu0 %v4736
    %6906 = vmatmul.bf16.gmra.mxu0 %v1245
    %v6907 = vpop.f32.mrf.mxu0
    %v6908 = vadd.f32 %v6895, %v6907
    %v6909 = vpop.f32.mrf.mxu0
    %6910 = vdwg.mxu0
    %6911 = vmatpush.bf16.msra.mxu0 %v4811
    %6912 = vmatpush.bf16.msra.mxu0 %v4806
    %6913 = vmatpush.bf16.msra.mxu0 %v4801
    %6914 = vmatpush.bf16.msra.mxu0 %v4796
    %6915 = vmatpush.bf16.msra.mxu0 %v4791
    %6916 = vmatpush.bf16.msra.mxu0 %v4786
    %6917 = vmatpush.bf16.msra.mxu0 %v4781
    %6918 = vmatpush.bf16.msra.mxu0 %v4776
    %6919 = vmatmul.bf16.gmra.mxu0 %v1246
    %v6920 = vpop.f32.mrf.mxu0
    %v6921 = vadd.f32 %v6908, %v6920
    %v6922 = vpop.f32.mrf.mxu0
    %6923 = vdwg.mxu0
    %6924 = vmatpush.bf16.msra.mxu0 %v4851
    %6925 = vmatpush.bf16.msra.mxu0 %v4846
    %6926 = vmatpush.bf16.msra.mxu0 %v4841
    %6927 = vmatpush.bf16.msra.mxu0 %v4836
    %6928 = vmatpush.bf16.msra.mxu0 %v4831
    %6929 = vmatpush.bf16.msra.mxu0 %v4826
    %6930 = vmatpush.bf16.msra.mxu0 %v4821
    %6931 = vmatpush.bf16.msra.mxu0 %v4816
    %6932 = vmatmul.bf16.gmra.mxu0 %v1249
    %v6933 = vpop.f32.mrf.mxu0
    %v6934 = vadd.f32 %v6921, %v6933
    %v6935 = vpop.f32.mrf.mxu0
    %6936 = vdwg.mxu0
    %6937 = vmatpush.bf16.msra.mxu0 %v4891
    %6938 = vmatpush.bf16.msra.mxu0 %v4886
    %6939 = vmatpush.bf16.msra.mxu0 %v4881
    %6940 = vmatpush.bf16.msra.mxu0 %v4876
    %6941 = vmatpush.bf16.msra.mxu0 %v4871
    %6942 = vmatpush.bf16.msra.mxu0 %v4866
    %6943 = vmatpush.bf16.msra.mxu0 %v4861
    %6944 = vmatpush.bf16.msra.mxu0 %v4856
    %6945 = vmatmul.bf16.gmra.mxu0 %v1250
    %v6946 = vpop.f32.mrf.mxu0
    %v6947 = vadd.f32 %v6934, %v6946
    %v6948 = vpop.f32.mrf.mxu0
    %6949 = vdwg.mxu0
    %6950 = vmatpush.bf16.msra.mxu0 %v4931
    %6951 = vmatpush.bf16.msra.mxu0 %v4926
    %6952 = vmatpush.bf16.msra.mxu0 %v4921
    %6953 = vmatpush.bf16.msra.mxu0 %v4916
    %6954 = vmatpush.bf16.msra.mxu0 %v4911
    %6955 = vmatpush.bf16.msra.mxu0 %v4906
    %6956 = vmatpush.bf16.msra.mxu0 %v4901
    %6957 = vmatpush.bf16.msra.mxu0 %v4896
    %6958 = vmatmul.bf16.gmra.mxu0 %v1251
    %v6959 = vpop.f32.mrf.mxu0
    %v6960 = vadd.f32 %v6947, %v6959
    %v6961 = vpop.f32.mrf.mxu0
    %6962 = vdwg.mxu0
    %6963 = vmatpush.bf16.msra.mxu0 %v4971
    %6964 = vmatpush.bf16.msra.mxu0 %v4966
    %6965 = vmatpush.bf16.msra.mxu0 %v4961
    %6966 = vmatpush.bf16.msra.mxu0 %v4956
    %6967 = vmatpush.bf16.msra.mxu0 %v4951
    %6968 = vmatpush.bf16.msra.mxu0 %v4946
    %6969 = vmatpush.bf16.msra.mxu0 %v4941
    %6970 = vmatpush.bf16.msra.mxu0 %v4936
    %6971 = vmatmul.bf16.gmra.mxu0 %v1252
    %v6972 = vpop.f32.mrf.mxu0
    %v6973 = vadd.f32 %v6960, %v6972
    %v6974 = vpop.f32.mrf.mxu0
    %6975 = vdwg.mxu0
    %6976 = vmatpush.bf16.msra.mxu0 %v5011
    %6977 = vmatpush.bf16.msra.mxu0 %v5006
    %6978 = vmatpush.bf16.msra.mxu0 %v5001
    %6979 = vmatpush.bf16.msra.mxu0 %v4996
    %6980 = vmatpush.bf16.msra.mxu0 %v4991
    %6981 = vmatpush.bf16.msra.mxu0 %v4986
    %6982 = vmatpush.bf16.msra.mxu0 %v4981
    %6983 = vmatpush.bf16.msra.mxu0 %v4976
    %6984 = vmatmul.bf16.gmra.mxu0 %v1253
    %v6985 = vpop.f32.mrf.mxu0
    %v6986 = vadd.f32 %v6973, %v6985
    %v6987 = vpop.f32.mrf.mxu0
    %6988 = vdwg.mxu0
    %6989 = vmatpush.bf16.msra.mxu0 %v5051
    %6990 = vmatpush.bf16.msra.mxu0 %v5046
    %6991 = vmatpush.bf16.msra.mxu0 %v5041
    %6992 = vmatpush.bf16.msra.mxu0 %v5036
    %6993 = vmatpush.bf16.msra.mxu0 %v5031
    %6994 = vmatpush.bf16.msra.mxu0 %v5026
    %6995 = vmatpush.bf16.msra.mxu0 %v5021
    %6996 = vmatpush.bf16.msra.mxu0 %v5016
    %6997 = vmatmul.bf16.gmra.mxu0 %v1254
    %v6998 = vpop.f32.mrf.mxu0
    %v6999 = vadd.f32 %v6986, %v6998
    %v7000 = vpop.f32.mrf.mxu0
    %7001 = vdwg.mxu0
    %7002 = vmatpush.bf16.msra.mxu0 %v5091
    %7003 = vmatpush.bf16.msra.mxu0 %v5086
    %7004 = vmatpush.bf16.msra.mxu0 %v5081
    %7005 = vmatpush.bf16.msra.mxu0 %v5076
    %7006 = vmatpush.bf16.msra.mxu0 %v5071
    %7007 = vmatpush.bf16.msra.mxu0 %v5066
    %7008 = vmatpush.bf16.msra.mxu0 %v5061
    %7009 = vmatpush.bf16.msra.mxu0 %v5056
    %7010 = vmatmul.bf16.gmra.mxu0 %v1255
    %v7011 = vpop.f32.mrf.mxu0
    %v7012 = vadd.f32 %v6999, %v7011
    %v7013 = vpop.f32.mrf.mxu0
    %7014 = vdwg.mxu0
    %7015 = vmatpush.bf16.msra.mxu0 %v5131
    %7016 = vmatpush.bf16.msra.mxu0 %v5126
    %7017 = vmatpush.bf16.msra.mxu0 %v5121
    %7018 = vmatpush.bf16.msra.mxu0 %v5116
    %7019 = vmatpush.bf16.msra.mxu0 %v5111
    %7020 = vmatpush.bf16.msra.mxu0 %v5106
    %7021 = vmatpush.bf16.msra.mxu0 %v5101
    %7022 = vmatpush.bf16.msra.mxu0 %v5096
    %7023 = vmatmul.bf16.gmra.mxu0 %v1256
    %v7024 = vpop.f32.mrf.mxu0
    %v7025 = vadd.f32 %v7012, %v7024
    %v7026 = vpop.f32.mrf.mxu0
    %7027 = vdwg.mxu0
    %7028 = vmatpush.bf16.msra.mxu0 %v5171
    %7029 = vmatpush.bf16.msra.mxu0 %v5166
    %7030 = vmatpush.bf16.msra.mxu0 %v5161
    %7031 = vmatpush.bf16.msra.mxu0 %v5156
    %7032 = vmatpush.bf16.msra.mxu0 %v5151
    %7033 = vmatpush.bf16.msra.mxu0 %v5146
    %7034 = vmatpush.bf16.msra.mxu0 %v5141
    %7035 = vmatpush.bf16.msra.mxu0 %v5136
    %7036 = vmatmul.bf16.gmra.mxu0 %v1259
    %v7037 = vpop.f32.mrf.mxu0
    %v7038 = vadd.f32 %v7025, %v7037
    %v7039 = vpop.f32.mrf.mxu0
    %7040 = vdwg.mxu0
    %7041 = vmatpush.bf16.msra.mxu0 %v5211
    %7042 = vmatpush.bf16.msra.mxu0 %v5206
    %7043 = vmatpush.bf16.msra.mxu0 %v5201
    %7044 = vmatpush.bf16.msra.mxu0 %v5196
    %7045 = vmatpush.bf16.msra.mxu0 %v5191
    %7046 = vmatpush.bf16.msra.mxu0 %v5186
    %7047 = vmatpush.bf16.msra.mxu0 %v5181
    %7048 = vmatpush.bf16.msra.mxu0 %v5176
    %7049 = vmatmul.bf16.gmra.mxu0 %v1260
    %v7050 = vpop.f32.mrf.mxu0
    %v7051 = vadd.f32 %v7038, %v7050
    %v7052 = vpop.f32.mrf.mxu0
    %7053 = vdwg.mxu0
    %7054 = vmatpush.bf16.msra.mxu0 %v5251
    %7055 = vmatpush.bf16.msra.mxu0 %v5246
    %7056 = vmatpush.bf16.msra.mxu0 %v5241
    %7057 = vmatpush.bf16.msra.mxu0 %v5236
    %7058 = vmatpush.bf16.msra.mxu0 %v5231
    %7059 = vmatpush.bf16.msra.mxu0 %v5226
    %7060 = vmatpush.bf16.msra.mxu0 %v5221
    %7061 = vmatpush.bf16.msra.mxu0 %v5216
    %7062 = vmatmul.bf16.gmra.mxu0 %v1261
    %v7063 = vpop.f32.mrf.mxu0
    %v7064 = vadd.f32 %v7051, %v7063
    %v7065 = vpop.f32.mrf.mxu0
    %7066 = vdwg.mxu0
    %7067 = vmatpush.bf16.msra.mxu0 %v5291
    %7068 = vmatpush.bf16.msra.mxu0 %v5286
    %7069 = vmatpush.bf16.msra.mxu0 %v5281
    %7070 = vmatpush.bf16.msra.mxu0 %v5276
    %7071 = vmatpush.bf16.msra.mxu0 %v5271
    %7072 = vmatpush.bf16.msra.mxu0 %v5266
    %7073 = vmatpush.bf16.msra.mxu0 %v5261
    %7074 = vmatpush.bf16.msra.mxu0 %v5256
    %7075 = vmatmul.bf16.gmra.mxu0 %v1262
    %v7076 = vpop.f32.mrf.mxu0
    %v7077 = vadd.f32 %v7064, %v7076
    %v7078 = vpop.f32.mrf.mxu0
    %7079 = vdwg.mxu0
    %7080 = vmatpush.bf16.msra.mxu0 %v5331
    %7081 = vmatpush.bf16.msra.mxu0 %v5326
    %7082 = vmatpush.bf16.msra.mxu0 %v5321
    %7083 = vmatpush.bf16.msra.mxu0 %v5316
    %7084 = vmatpush.bf16.msra.mxu0 %v5311
    %7085 = vmatpush.bf16.msra.mxu0 %v5306
    %7086 = vmatpush.bf16.msra.mxu0 %v5301
    %7087 = vmatpush.bf16.msra.mxu0 %v5296
    %7088 = vmatmul.bf16.gmra.mxu0 %v1263
    %v7089 = vpop.f32.mrf.mxu0
    %v7090 = vadd.f32 %v7077, %v7089
    %v7091 = vpop.f32.mrf.mxu0
    %7092 = vdwg.mxu0
    %7093 = vmatpush.bf16.msra.mxu0 %v5371
    %7094 = vmatpush.bf16.msra.mxu0 %v5366
    %7095 = vmatpush.bf16.msra.mxu0 %v5361
    %7096 = vmatpush.bf16.msra.mxu0 %v5356
    %7097 = vmatpush.bf16.msra.mxu0 %v5351
    %7098 = vmatpush.bf16.msra.mxu0 %v5346
    %7099 = vmatpush.bf16.msra.mxu0 %v5341
    %7100 = vmatpush.bf16.msra.mxu0 %v5336
    %7101 = vmatmul.bf16.gmra.mxu0 %v1264
    %v7102 = vpop.f32.mrf.mxu0
    %v7103 = vadd.f32 %v7090, %v7102
    %v7104 = vpop.f32.mrf.mxu0
    %7105 = vdwg.mxu0
    %7106 = vmatpush.bf16.msra.mxu0 %v5411
    %7107 = vmatpush.bf16.msra.mxu0 %v5406
    %7108 = vmatpush.bf16.msra.mxu0 %v5401
    %7109 = vmatpush.bf16.msra.mxu0 %v5396
    %7110 = vmatpush.bf16.msra.mxu0 %v5391
    %7111 = vmatpush.bf16.msra.mxu0 %v5386
    %7112 = vmatpush.bf16.msra.mxu0 %v5381
    %7113 = vmatpush.bf16.msra.mxu0 %v5376
    %7114 = vmatmul.bf16.gmra.mxu0 %v1265
    %v7115 = vpop.f32.mrf.mxu0
    %v7116 = vadd.f32 %v7103, %v7115
    %v7117 = vpop.f32.mrf.mxu0
    %7118 = vdwg.mxu0
    %7119 = vmatpush.bf16.msra.mxu0 %v5451
    %7120 = vmatpush.bf16.msra.mxu0 %v5446
    %7121 = vmatpush.bf16.msra.mxu0 %v5441
    %7122 = vmatpush.bf16.msra.mxu0 %v5436
    %7123 = vmatpush.bf16.msra.mxu0 %v5431
    %7124 = vmatpush.bf16.msra.mxu0 %v5426
    %7125 = vmatpush.bf16.msra.mxu0 %v5421
    %7126 = vmatpush.bf16.msra.mxu0 %v5416
    %7127 = vmatmul.bf16.gmra.mxu0 %v1266
    %v7128 = vpop.f32.mrf.mxu0
    %v7129 = vadd.f32 %v7116, %v7128
    %v7130 = vpop.f32.mrf.mxu0
    %7131 = vdwg.mxu0
    %7132 = vmatpush.bf16.msra.mxu0 %v5491
    %7133 = vmatpush.bf16.msra.mxu0 %v5486
    %7134 = vmatpush.bf16.msra.mxu0 %v5481
    %7135 = vmatpush.bf16.msra.mxu0 %v5476
    %7136 = vmatpush.bf16.msra.mxu0 %v5471
    %7137 = vmatpush.bf16.msra.mxu0 %v5466
    %7138 = vmatpush.bf16.msra.mxu0 %v5461
    %7139 = vmatpush.bf16.msra.mxu0 %v5456
    %7140 = vmatmul.bf16.gmra.mxu0 %v1269
    %v7141 = vpop.f32.mrf.mxu0
    %v7142 = vadd.f32 %v7129, %v7141
    %v7143 = vpop.f32.mrf.mxu0
    %7144 = vdwg.mxu0
    %7145 = vmatpush.bf16.msra.mxu0 %v4532
    %7146 = vmatpush.bf16.msra.mxu0 %v4527
    %7147 = vmatpush.bf16.msra.mxu0 %v4522
    %7148 = vmatpush.bf16.msra.mxu0 %v4517
    %7149 = vmatpush.bf16.msra.mxu0 %v4512
    %7150 = vmatpush.bf16.msra.mxu0 %v4507
    %7151 = vmatpush.bf16.msra.mxu0 %v4502
    %7152 = vmatpush.bf16.msra.mxu0 %v4497
    %7153 = vmatmul.bf16.gmra.mxu0 %v1239
    %v7154 = vpop.f32.mrf.mxu0
    %v7155 = vadd.f32 %v1229, %v7154
    %v7156 = vpop.f32.mrf.mxu0
    %7157 = vdwg.mxu0
    %7158 = vmatpush.bf16.msra.mxu0 %v4572
    %7159 = vmatpush.bf16.msra.mxu0 %v4567
    %7160 = vmatpush.bf16.msra.mxu0 %v4562
    %7161 = vmatpush.bf16.msra.mxu0 %v4557
    %7162 = vmatpush.bf16.msra.mxu0 %v4552
    %7163 = vmatpush.bf16.msra.mxu0 %v4547
    %7164 = vmatpush.bf16.msra.mxu0 %v4542
    %7165 = vmatpush.bf16.msra.mxu0 %v4537
    %7166 = vmatmul.bf16.gmra.mxu0 %v1240
    %v7167 = vpop.f32.mrf.mxu0
    %v7168 = vadd.f32 %v7155, %v7167
    %v7169 = vpop.f32.mrf.mxu0
    %7170 = vdwg.mxu0
    %7171 = vmatpush.bf16.msra.mxu0 %v4612
    %7172 = vmatpush.bf16.msra.mxu0 %v4607
    %7173 = vmatpush.bf16.msra.mxu0 %v4602
    %7174 = vmatpush.bf16.msra.mxu0 %v4597
    %7175 = vmatpush.bf16.msra.mxu0 %v4592
    %7176 = vmatpush.bf16.msra.mxu0 %v4587
    %7177 = vmatpush.bf16.msra.mxu0 %v4582
    %7178 = vmatpush.bf16.msra.mxu0 %v4577
    %7179 = vmatmul.bf16.gmra.mxu0 %v1241
    %v7180 = vpop.f32.mrf.mxu0
    %v7181 = vadd.f32 %v7168, %v7180
    %v7182 = vpop.f32.mrf.mxu0
    %7183 = vdwg.mxu0
    %7184 = vmatpush.bf16.msra.mxu0 %v4652
    %7185 = vmatpush.bf16.msra.mxu0 %v4647
    %7186 = vmatpush.bf16.msra.mxu0 %v4642
    %7187 = vmatpush.bf16.msra.mxu0 %v4637
    %7188 = vmatpush.bf16.msra.mxu0 %v4632
    %7189 = vmatpush.bf16.msra.mxu0 %v4627
    %7190 = vmatpush.bf16.msra.mxu0 %v4622
    %7191 = vmatpush.bf16.msra.mxu0 %v4617
    %7192 = vmatmul.bf16.gmra.mxu0 %v1242
    %v7193 = vpop.f32.mrf.mxu0
    %v7194 = vadd.f32 %v7181, %v7193
    %v7195 = vpop.f32.mrf.mxu0
    %7196 = vdwg.mxu0
    %7197 = vmatpush.bf16.msra.mxu0 %v4692
    %7198 = vmatpush.bf16.msra.mxu0 %v4687
    %7199 = vmatpush.bf16.msra.mxu0 %v4682
    %7200 = vmatpush.bf16.msra.mxu0 %v4677
    %7201 = vmatpush.bf16.msra.mxu0 %v4672
    %7202 = vmatpush.bf16.msra.mxu0 %v4667
    %7203 = vmatpush.bf16.msra.mxu0 %v4662
    %7204 = vmatpush.bf16.msra.mxu0 %v4657
    %7205 = vmatmul.bf16.gmra.mxu0 %v1243
    %v7206 = vpop.f32.mrf.mxu0
    %v7207 = vadd.f32 %v7194, %v7206
    %v7208 = vpop.f32.mrf.mxu0
    %7209 = vdwg.mxu0
    %7210 = vmatpush.bf16.msra.mxu0 %v4732
    %7211 = vmatpush.bf16.msra.mxu0 %v4727
    %7212 = vmatpush.bf16.msra.mxu0 %v4722
    %7213 = vmatpush.bf16.msra.mxu0 %v4717
    %7214 = vmatpush.bf16.msra.mxu0 %v4712
    %7215 = vmatpush.bf16.msra.mxu0 %v4707
    %7216 = vmatpush.bf16.msra.mxu0 %v4702
    %7217 = vmatpush.bf16.msra.mxu0 %v4697
    %7218 = vmatmul.bf16.gmra.mxu0 %v1244
    %v7219 = vpop.f32.mrf.mxu0
    %v7220 = vadd.f32 %v7207, %v7219
    %v7221 = vpop.f32.mrf.mxu0
    %7222 = vdwg.mxu0
    %7223 = vmatpush.bf16.msra.mxu0 %v4772
    %7224 = vmatpush.bf16.msra.mxu0 %v4767
    %7225 = vmatpush.bf16.msra.mxu0 %v4762
    %7226 = vmatpush.bf16.msra.mxu0 %v4757
    %7227 = vmatpush.bf16.msra.mxu0 %v4752
    %7228 = vmatpush.bf16.msra.mxu0 %v4747
    %7229 = vmatpush.bf16.msra.mxu0 %v4742
    %7230 = vmatpush.bf16.msra.mxu0 %v4737
    %7231 = vmatmul.bf16.gmra.mxu0 %v1245
    %v7232 = vpop.f32.mrf.mxu0
    %v7233 = vadd.f32 %v7220, %v7232
    %v7234 = vpop.f32.mrf.mxu0
    %7235 = vdwg.mxu0
    %7236 = vmatpush.bf16.msra.mxu0 %v4812
    %7237 = vmatpush.bf16.msra.mxu0 %v4807
    %7238 = vmatpush.bf16.msra.mxu0 %v4802
    %7239 = vmatpush.bf16.msra.mxu0 %v4797
    %7240 = vmatpush.bf16.msra.mxu0 %v4792
    %7241 = vmatpush.bf16.msra.mxu0 %v4787
    %7242 = vmatpush.bf16.msra.mxu0 %v4782
    %7243 = vmatpush.bf16.msra.mxu0 %v4777
    %7244 = vmatmul.bf16.gmra.mxu0 %v1246
    %v7245 = vpop.f32.mrf.mxu0
    %v7246 = vadd.f32 %v7233, %v7245
    %v7247 = vpop.f32.mrf.mxu0
    %7248 = vdwg.mxu0
    %7249 = vmatpush.bf16.msra.mxu0 %v4852
    %7250 = vmatpush.bf16.msra.mxu0 %v4847
    %7251 = vmatpush.bf16.msra.mxu0 %v4842
    %7252 = vmatpush.bf16.msra.mxu0 %v4837
    %7253 = vmatpush.bf16.msra.mxu0 %v4832
    %7254 = vmatpush.bf16.msra.mxu0 %v4827
    %7255 = vmatpush.bf16.msra.mxu0 %v4822
    %7256 = vmatpush.bf16.msra.mxu0 %v4817
    %7257 = vmatmul.bf16.gmra.mxu0 %v1249
    %v7258 = vpop.f32.mrf.mxu0
    %v7259 = vadd.f32 %v7246, %v7258
    %v7260 = vpop.f32.mrf.mxu0
    %7261 = vdwg.mxu0
    %7262 = vmatpush.bf16.msra.mxu0 %v4892
    %7263 = vmatpush.bf16.msra.mxu0 %v4887
    %7264 = vmatpush.bf16.msra.mxu0 %v4882
    %7265 = vmatpush.bf16.msra.mxu0 %v4877
    %7266 = vmatpush.bf16.msra.mxu0 %v4872
    %7267 = vmatpush.bf16.msra.mxu0 %v4867
    %7268 = vmatpush.bf16.msra.mxu0 %v4862
    %7269 = vmatpush.bf16.msra.mxu0 %v4857
    %7270 = vmatmul.bf16.gmra.mxu0 %v1250
    %v7271 = vpop.f32.mrf.mxu0
    %v7272 = vadd.f32 %v7259, %v7271
    %v7273 = vpop.f32.mrf.mxu0
    %7274 = vdwg.mxu0
    %7275 = vmatpush.bf16.msra.mxu0 %v4932
    %7276 = vmatpush.bf16.msra.mxu0 %v4927
    %7277 = vmatpush.bf16.msra.mxu0 %v4922
    %7278 = vmatpush.bf16.msra.mxu0 %v4917
    %7279 = vmatpush.bf16.msra.mxu0 %v4912
    %7280 = vmatpush.bf16.msra.mxu0 %v4907
    %7281 = vmatpush.bf16.msra.mxu0 %v4902
    %7282 = vmatpush.bf16.msra.mxu0 %v4897
    %7283 = vmatmul.bf16.gmra.mxu0 %v1251
    %v7284 = vpop.f32.mrf.mxu0
    %v7285 = vadd.f32 %v7272, %v7284
    %v7286 = vpop.f32.mrf.mxu0
    %7287 = vdwg.mxu0
    %7288 = vmatpush.bf16.msra.mxu0 %v4972
    %7289 = vmatpush.bf16.msra.mxu0 %v4967
    %7290 = vmatpush.bf16.msra.mxu0 %v4962
    %7291 = vmatpush.bf16.msra.mxu0 %v4957
    %7292 = vmatpush.bf16.msra.mxu0 %v4952
    %7293 = vmatpush.bf16.msra.mxu0 %v4947
    %7294 = vmatpush.bf16.msra.mxu0 %v4942
    %7295 = vmatpush.bf16.msra.mxu0 %v4937
    %7296 = vmatmul.bf16.gmra.mxu0 %v1252
    %v7297 = vpop.f32.mrf.mxu0
    %v7298 = vadd.f32 %v7285, %v7297
    %v7299 = vpop.f32.mrf.mxu0
    %7300 = vdwg.mxu0
    %7301 = vmatpush.bf16.msra.mxu0 %v5012
    %7302 = vmatpush.bf16.msra.mxu0 %v5007
    %7303 = vmatpush.bf16.msra.mxu0 %v5002
    %7304 = vmatpush.bf16.msra.mxu0 %v4997
    %7305 = vmatpush.bf16.msra.mxu0 %v4992
    %7306 = vmatpush.bf16.msra.mxu0 %v4987
    %7307 = vmatpush.bf16.msra.mxu0 %v4982
    %7308 = vmatpush.bf16.msra.mxu0 %v4977
    %7309 = vmatmul.bf16.gmra.mxu0 %v1253
    %v7310 = vpop.f32.mrf.mxu0
    %v7311 = vadd.f32 %v7298, %v7310
    %v7312 = vpop.f32.mrf.mxu0
    %7313 = vdwg.mxu0
    %7314 = vmatpush.bf16.msra.mxu0 %v5052
    %7315 = vmatpush.bf16.msra.mxu0 %v5047
    %7316 = vmatpush.bf16.msra.mxu0 %v5042
    %7317 = vmatpush.bf16.msra.mxu0 %v5037
    %7318 = vmatpush.bf16.msra.mxu0 %v5032
    %7319 = vmatpush.bf16.msra.mxu0 %v5027
    %7320 = vmatpush.bf16.msra.mxu0 %v5022
    %7321 = vmatpush.bf16.msra.mxu0 %v5017
    %7322 = vmatmul.bf16.gmra.mxu0 %v1254
    %v7323 = vpop.f32.mrf.mxu0
    %v7324 = vadd.f32 %v7311, %v7323
    %v7325 = vpop.f32.mrf.mxu0
    %7326 = vdwg.mxu0
    %7327 = vmatpush.bf16.msra.mxu0 %v5092
    %7328 = vmatpush.bf16.msra.mxu0 %v5087
    %7329 = vmatpush.bf16.msra.mxu0 %v5082
    %7330 = vmatpush.bf16.msra.mxu0 %v5077
    %7331 = vmatpush.bf16.msra.mxu0 %v5072
    %7332 = vmatpush.bf16.msra.mxu0 %v5067
    %7333 = vmatpush.bf16.msra.mxu0 %v5062
    %7334 = vmatpush.bf16.msra.mxu0 %v5057
    %7335 = vmatmul.bf16.gmra.mxu0 %v1255
    %v7336 = vpop.f32.mrf.mxu0
    %v7337 = vadd.f32 %v7324, %v7336
    %v7338 = vpop.f32.mrf.mxu0
    %7339 = vdwg.mxu0
    %7340 = vmatpush.bf16.msra.mxu0 %v5132
    %7341 = vmatpush.bf16.msra.mxu0 %v5127
    %7342 = vmatpush.bf16.msra.mxu0 %v5122
    %7343 = vmatpush.bf16.msra.mxu0 %v5117
    %7344 = vmatpush.bf16.msra.mxu0 %v5112
    %7345 = vmatpush.bf16.msra.mxu0 %v5107
    %7346 = vmatpush.bf16.msra.mxu0 %v5102
    %7347 = vmatpush.bf16.msra.mxu0 %v5097
    %7348 = vmatmul.bf16.gmra.mxu0 %v1256
    %v7349 = vpop.f32.mrf.mxu0
    %v7350 = vadd.f32 %v7337, %v7349
    %v7351 = vpop.f32.mrf.mxu0
    %7352 = vdwg.mxu0
    %7353 = vmatpush.bf16.msra.mxu0 %v5172
    %7354 = vmatpush.bf16.msra.mxu0 %v5167
    %7355 = vmatpush.bf16.msra.mxu0 %v5162
    %7356 = vmatpush.bf16.msra.mxu0 %v5157
    %7357 = vmatpush.bf16.msra.mxu0 %v5152
    %7358 = vmatpush.bf16.msra.mxu0 %v5147
    %7359 = vmatpush.bf16.msra.mxu0 %v5142
    %7360 = vmatpush.bf16.msra.mxu0 %v5137
    %7361 = vmatmul.bf16.gmra.mxu0 %v1259
    %v7362 = vpop.f32.mrf.mxu0
    %v7363 = vadd.f32 %v7350, %v7362
    %v7364 = vpop.f32.mrf.mxu0
    %7365 = vdwg.mxu0
    %7366 = vmatpush.bf16.msra.mxu0 %v5212
    %7367 = vmatpush.bf16.msra.mxu0 %v5207
    %7368 = vmatpush.bf16.msra.mxu0 %v5202
    %7369 = vmatpush.bf16.msra.mxu0 %v5197
    %7370 = vmatpush.bf16.msra.mxu0 %v5192
    %7371 = vmatpush.bf16.msra.mxu0 %v5187
    %7372 = vmatpush.bf16.msra.mxu0 %v5182
    %7373 = vmatpush.bf16.msra.mxu0 %v5177
    %7374 = vmatmul.bf16.gmra.mxu0 %v1260
    %v7375 = vpop.f32.mrf.mxu0
    %v7376 = vadd.f32 %v7363, %v7375
    %v7377 = vpop.f32.mrf.mxu0
    %7378 = vdwg.mxu0
    %7379 = vmatpush.bf16.msra.mxu0 %v5252
    %7380 = vmatpush.bf16.msra.mxu0 %v5247
    %7381 = vmatpush.bf16.msra.mxu0 %v5242
    %7382 = vmatpush.bf16.msra.mxu0 %v5237
    %7383 = vmatpush.bf16.msra.mxu0 %v5232
    %7384 = vmatpush.bf16.msra.mxu0 %v5227
    %7385 = vmatpush.bf16.msra.mxu0 %v5222
    %7386 = vmatpush.bf16.msra.mxu0 %v5217
    %7387 = vmatmul.bf16.gmra.mxu0 %v1261
    %v7388 = vpop.f32.mrf.mxu0
    %v7389 = vadd.f32 %v7376, %v7388
    %v7390 = vpop.f32.mrf.mxu0
    %7391 = vdwg.mxu0
    %7392 = vmatpush.bf16.msra.mxu0 %v5292
    %7393 = vmatpush.bf16.msra.mxu0 %v5287
    %7394 = vmatpush.bf16.msra.mxu0 %v5282
    %7395 = vmatpush.bf16.msra.mxu0 %v5277
    %7396 = vmatpush.bf16.msra.mxu0 %v5272
    %7397 = vmatpush.bf16.msra.mxu0 %v5267
    %7398 = vmatpush.bf16.msra.mxu0 %v5262
    %7399 = vmatpush.bf16.msra.mxu0 %v5257
    %7400 = vmatmul.bf16.gmra.mxu0 %v1262
    %v7401 = vpop.f32.mrf.mxu0
    %v7402 = vadd.f32 %v7389, %v7401
    %v7403 = vpop.f32.mrf.mxu0
    %7404 = vdwg.mxu0
    %7405 = vmatpush.bf16.msra.mxu0 %v5332
    %7406 = vmatpush.bf16.msra.mxu0 %v5327
    %7407 = vmatpush.bf16.msra.mxu0 %v5322
    %7408 = vmatpush.bf16.msra.mxu0 %v5317
    %7409 = vmatpush.bf16.msra.mxu0 %v5312
    %7410 = vmatpush.bf16.msra.mxu0 %v5307
    %7411 = vmatpush.bf16.msra.mxu0 %v5302
    %7412 = vmatpush.bf16.msra.mxu0 %v5297
    %7413 = vmatmul.bf16.gmra.mxu0 %v1263
    %v7414 = vpop.f32.mrf.mxu0
    %v7415 = vadd.f32 %v7402, %v7414
    %v7416 = vpop.f32.mrf.mxu0
    %7417 = vdwg.mxu0
    %7418 = vmatpush.bf16.msra.mxu0 %v5372
    %7419 = vmatpush.bf16.msra.mxu0 %v5367
    %7420 = vmatpush.bf16.msra.mxu0 %v5362
    %7421 = vmatpush.bf16.msra.mxu0 %v5357
    %7422 = vmatpush.bf16.msra.mxu0 %v5352
    %7423 = vmatpush.bf16.msra.mxu0 %v5347
    %7424 = vmatpush.bf16.msra.mxu0 %v5342
    %7425 = vmatpush.bf16.msra.mxu0 %v5337
    %7426 = vmatmul.bf16.gmra.mxu0 %v1264
    %v7427 = vpop.f32.mrf.mxu0
    %v7428 = vadd.f32 %v7415, %v7427
    %v7429 = vpop.f32.mrf.mxu0
    %7430 = vdwg.mxu0
    %7431 = vmatpush.bf16.msra.mxu0 %v5412
    %7432 = vmatpush.bf16.msra.mxu0 %v5407
    %7433 = vmatpush.bf16.msra.mxu0 %v5402
    %7434 = vmatpush.bf16.msra.mxu0 %v5397
    %7435 = vmatpush.bf16.msra.mxu0 %v5392
    %7436 = vmatpush.bf16.msra.mxu0 %v5387
    %7437 = vmatpush.bf16.msra.mxu0 %v5382
    %7438 = vmatpush.bf16.msra.mxu0 %v5377
    %7439 = vmatmul.bf16.gmra.mxu0 %v1265
    %v7440 = vpop.f32.mrf.mxu0
    %v7441 = vadd.f32 %v7428, %v7440
    %v7442 = vpop.f32.mrf.mxu0
    %7443 = vdwg.mxu0
    %7444 = vmatpush.bf16.msra.mxu0 %v5452
    %7445 = vmatpush.bf16.msra.mxu0 %v5447
    %7446 = vmatpush.bf16.msra.mxu0 %v5442
    %7447 = vmatpush.bf16.msra.mxu0 %v5437
    %7448 = vmatpush.bf16.msra.mxu0 %v5432
    %7449 = vmatpush.bf16.msra.mxu0 %v5427
    %7450 = vmatpush.bf16.msra.mxu0 %v5422
    %7451 = vmatpush.bf16.msra.mxu0 %v5417
    %7452 = vmatmul.bf16.gmra.mxu0 %v1266
    %v7453 = vpop.f32.mrf.mxu0
    %v7454 = vadd.f32 %v7441, %v7453
    %v7455 = vpop.f32.mrf.mxu0
    %7456 = vdwg.mxu0
    %7457 = vmatpush.bf16.msra.mxu0 %v5492
    %7458 = vmatpush.bf16.msra.mxu0 %v5487
    %7459 = vmatpush.bf16.msra.mxu0 %v5482
    %7460 = vmatpush.bf16.msra.mxu0 %v5477
    %7461 = vmatpush.bf16.msra.mxu0 %v5472
    %7462 = vmatpush.bf16.msra.mxu0 %v5467
    %7463 = vmatpush.bf16.msra.mxu0 %v5462
    %7464 = vmatpush.bf16.msra.mxu0 %v5457
    %7465 = vmatmul.bf16.gmra.mxu0 %v1269
    %v7466 = vpop.f32.mrf.mxu0
    %v7467 = vadd.f32 %v7454, %v7466
    %v7468 = vpop.f32.mrf.mxu0
    %7469 = vdwg.mxu0
    %7470 = vmatpush.bf16.msra.mxu0 %v4533
    %7471 = vmatpush.bf16.msra.mxu0 %v4528
    %7472 = vmatpush.bf16.msra.mxu0 %v4523
    %7473 = vmatpush.bf16.msra.mxu0 %v4518
    %7474 = vmatpush.bf16.msra.mxu0 %v4513
    %7475 = vmatpush.bf16.msra.mxu0 %v4508
    %7476 = vmatpush.bf16.msra.mxu0 %v4503
    %7477 = vmatpush.bf16.msra.mxu0 %v4498
    %7478 = vmatmul.bf16.gmra.mxu0 %v1239
    %v7479 = vpop.f32.mrf.mxu0
    %v7480 = vadd.f32 %v1230, %v7479
    %v7481 = vpop.f32.mrf.mxu0
    %7482 = vdwg.mxu0
    %7483 = vmatpush.bf16.msra.mxu0 %v4573
    %7484 = vmatpush.bf16.msra.mxu0 %v4568
    %7485 = vmatpush.bf16.msra.mxu0 %v4563
    %7486 = vmatpush.bf16.msra.mxu0 %v4558
    %7487 = vmatpush.bf16.msra.mxu0 %v4553
    %7488 = vmatpush.bf16.msra.mxu0 %v4548
    %7489 = vmatpush.bf16.msra.mxu0 %v4543
    %7490 = vmatpush.bf16.msra.mxu0 %v4538
    %7491 = vmatmul.bf16.gmra.mxu0 %v1240
    %v7492 = vpop.f32.mrf.mxu0
    %v7493 = vadd.f32 %v7480, %v7492
    %v7494 = vpop.f32.mrf.mxu0
    %7495 = vdwg.mxu0
    %7496 = vmatpush.bf16.msra.mxu0 %v4613
    %7497 = vmatpush.bf16.msra.mxu0 %v4608
    %7498 = vmatpush.bf16.msra.mxu0 %v4603
    %7499 = vmatpush.bf16.msra.mxu0 %v4598
    %7500 = vmatpush.bf16.msra.mxu0 %v4593
    %7501 = vmatpush.bf16.msra.mxu0 %v4588
    %7502 = vmatpush.bf16.msra.mxu0 %v4583
    %7503 = vmatpush.bf16.msra.mxu0 %v4578
    %7504 = vmatmul.bf16.gmra.mxu0 %v1241
    %v7505 = vpop.f32.mrf.mxu0
    %v7506 = vadd.f32 %v7493, %v7505
    %v7507 = vpop.f32.mrf.mxu0
    %7508 = vdwg.mxu0
    %7509 = vmatpush.bf16.msra.mxu0 %v4653
    %7510 = vmatpush.bf16.msra.mxu0 %v4648
    %7511 = vmatpush.bf16.msra.mxu0 %v4643
    %7512 = vmatpush.bf16.msra.mxu0 %v4638
    %7513 = vmatpush.bf16.msra.mxu0 %v4633
    %7514 = vmatpush.bf16.msra.mxu0 %v4628
    %7515 = vmatpush.bf16.msra.mxu0 %v4623
    %7516 = vmatpush.bf16.msra.mxu0 %v4618
    %7517 = vmatmul.bf16.gmra.mxu0 %v1242
    %v7518 = vpop.f32.mrf.mxu0
    %v7519 = vadd.f32 %v7506, %v7518
    %v7520 = vpop.f32.mrf.mxu0
    %7521 = vdwg.mxu0
    %7522 = vmatpush.bf16.msra.mxu0 %v4693
    %7523 = vmatpush.bf16.msra.mxu0 %v4688
    %7524 = vmatpush.bf16.msra.mxu0 %v4683
    %7525 = vmatpush.bf16.msra.mxu0 %v4678
    %7526 = vmatpush.bf16.msra.mxu0 %v4673
    %7527 = vmatpush.bf16.msra.mxu0 %v4668
    %7528 = vmatpush.bf16.msra.mxu0 %v4663
    %7529 = vmatpush.bf16.msra.mxu0 %v4658
    %7530 = vmatmul.bf16.gmra.mxu0 %v1243
    %v7531 = vpop.f32.mrf.mxu0
    %v7532 = vadd.f32 %v7519, %v7531
    %v7533 = vpop.f32.mrf.mxu0
    %7534 = vdwg.mxu0
    %7535 = vmatpush.bf16.msra.mxu0 %v4733
    %7536 = vmatpush.bf16.msra.mxu0 %v4728
    %7537 = vmatpush.bf16.msra.mxu0 %v4723
    %7538 = vmatpush.bf16.msra.mxu0 %v4718
    %7539 = vmatpush.bf16.msra.mxu0 %v4713
    %7540 = vmatpush.bf16.msra.mxu0 %v4708
    %7541 = vmatpush.bf16.msra.mxu0 %v4703
    %7542 = vmatpush.bf16.msra.mxu0 %v4698
    %7543 = vmatmul.bf16.gmra.mxu0 %v1244
    %v7544 = vpop.f32.mrf.mxu0
    %v7545 = vadd.f32 %v7532, %v7544
    %v7546 = vpop.f32.mrf.mxu0
    %7547 = vdwg.mxu0
    %7548 = vmatpush.bf16.msra.mxu0 %v4773
    %7549 = vmatpush.bf16.msra.mxu0 %v4768
    %7550 = vmatpush.bf16.msra.mxu0 %v4763
    %7551 = vmatpush.bf16.msra.mxu0 %v4758
    %7552 = vmatpush.bf16.msra.mxu0 %v4753
    %7553 = vmatpush.bf16.msra.mxu0 %v4748
    %7554 = vmatpush.bf16.msra.mxu0 %v4743
    %7555 = vmatpush.bf16.msra.mxu0 %v4738
    %7556 = vmatmul.bf16.gmra.mxu0 %v1245
    %v7557 = vpop.f32.mrf.mxu0
    %v7558 = vadd.f32 %v7545, %v7557
    %v7559 = vpop.f32.mrf.mxu0
    %7560 = vdwg.mxu0
    %7561 = vmatpush.bf16.msra.mxu0 %v4813
    %7562 = vmatpush.bf16.msra.mxu0 %v4808
    %7563 = vmatpush.bf16.msra.mxu0 %v4803
    %7564 = vmatpush.bf16.msra.mxu0 %v4798
    %7565 = vmatpush.bf16.msra.mxu0 %v4793
    %7566 = vmatpush.bf16.msra.mxu0 %v4788
    %7567 = vmatpush.bf16.msra.mxu0 %v4783
    %7568 = vmatpush.bf16.msra.mxu0 %v4778
    %7569 = vmatmul.bf16.gmra.mxu0 %v1246
    %v7570 = vpop.f32.mrf.mxu0
    %v7571 = vadd.f32 %v7558, %v7570
    %v7572 = vpop.f32.mrf.mxu0
    %7573 = vdwg.mxu0
    %7574 = vmatpush.bf16.msra.mxu0 %v4853
    %7575 = vmatpush.bf16.msra.mxu0 %v4848
    %7576 = vmatpush.bf16.msra.mxu0 %v4843
    %7577 = vmatpush.bf16.msra.mxu0 %v4838
    %7578 = vmatpush.bf16.msra.mxu0 %v4833
    %7579 = vmatpush.bf16.msra.mxu0 %v4828
    %7580 = vmatpush.bf16.msra.mxu0 %v4823
    %7581 = vmatpush.bf16.msra.mxu0 %v4818
    %7582 = vmatmul.bf16.gmra.mxu0 %v1249
    %v7583 = vpop.f32.mrf.mxu0
    %v7584 = vadd.f32 %v7571, %v7583
    %v7585 = vpop.f32.mrf.mxu0
    %7586 = vdwg.mxu0
    %7587 = vmatpush.bf16.msra.mxu0 %v4893
    %7588 = vmatpush.bf16.msra.mxu0 %v4888
    %7589 = vmatpush.bf16.msra.mxu0 %v4883
    %7590 = vmatpush.bf16.msra.mxu0 %v4878
    %7591 = vmatpush.bf16.msra.mxu0 %v4873
    %7592 = vmatpush.bf16.msra.mxu0 %v4868
    %7593 = vmatpush.bf16.msra.mxu0 %v4863
    %7594 = vmatpush.bf16.msra.mxu0 %v4858
    %7595 = vmatmul.bf16.gmra.mxu0 %v1250
    %v7596 = vpop.f32.mrf.mxu0
    %v7597 = vadd.f32 %v7584, %v7596
    %v7598 = vpop.f32.mrf.mxu0
    %7599 = vdwg.mxu0
    %7600 = vmatpush.bf16.msra.mxu0 %v4933
    %7601 = vmatpush.bf16.msra.mxu0 %v4928
    %7602 = vmatpush.bf16.msra.mxu0 %v4923
    %7603 = vmatpush.bf16.msra.mxu0 %v4918
    %7604 = vmatpush.bf16.msra.mxu0 %v4913
    %7605 = vmatpush.bf16.msra.mxu0 %v4908
    %7606 = vmatpush.bf16.msra.mxu0 %v4903
    %7607 = vmatpush.bf16.msra.mxu0 %v4898
    %7608 = vmatmul.bf16.gmra.mxu0 %v1251
    %v7609 = vpop.f32.mrf.mxu0
    %v7610 = vadd.f32 %v7597, %v7609
    %v7611 = vpop.f32.mrf.mxu0
    %7612 = vdwg.mxu0
    %7613 = vmatpush.bf16.msra.mxu0 %v4973
    %7614 = vmatpush.bf16.msra.mxu0 %v4968
    %7615 = vmatpush.bf16.msra.mxu0 %v4963
    %7616 = vmatpush.bf16.msra.mxu0 %v4958
    %7617 = vmatpush.bf16.msra.mxu0 %v4953
    %7618 = vmatpush.bf16.msra.mxu0 %v4948
    %7619 = vmatpush.bf16.msra.mxu0 %v4943
    %7620 = vmatpush.bf16.msra.mxu0 %v4938
    %7621 = vmatmul.bf16.gmra.mxu0 %v1252
    %v7622 = vpop.f32.mrf.mxu0
    %v7623 = vadd.f32 %v7610, %v7622
    %v7624 = vpop.f32.mrf.mxu0
    %7625 = vdwg.mxu0
    %7626 = vmatpush.bf16.msra.mxu0 %v5013
    %7627 = vmatpush.bf16.msra.mxu0 %v5008
    %7628 = vmatpush.bf16.msra.mxu0 %v5003
    %7629 = vmatpush.bf16.msra.mxu0 %v4998
    %7630 = vmatpush.bf16.msra.mxu0 %v4993
    %7631 = vmatpush.bf16.msra.mxu0 %v4988
    %7632 = vmatpush.bf16.msra.mxu0 %v4983
    %7633 = vmatpush.bf16.msra.mxu0 %v4978
    %7634 = vmatmul.bf16.gmra.mxu0 %v1253
    %v7635 = vpop.f32.mrf.mxu0
    %v7636 = vadd.f32 %v7623, %v7635
    %v7637 = vpop.f32.mrf.mxu0
    %7638 = vdwg.mxu0
    %7639 = vmatpush.bf16.msra.mxu0 %v5053
    %7640 = vmatpush.bf16.msra.mxu0 %v5048
    %7641 = vmatpush.bf16.msra.mxu0 %v5043
    %7642 = vmatpush.bf16.msra.mxu0 %v5038
    %7643 = vmatpush.bf16.msra.mxu0 %v5033
    %7644 = vmatpush.bf16.msra.mxu0 %v5028
    %7645 = vmatpush.bf16.msra.mxu0 %v5023
    %7646 = vmatpush.bf16.msra.mxu0 %v5018
    %7647 = vmatmul.bf16.gmra.mxu0 %v1254
    %v7648 = vpop.f32.mrf.mxu0
    %v7649 = vadd.f32 %v7636, %v7648
    %v7650 = vpop.f32.mrf.mxu0
    %7651 = vdwg.mxu0
    %7652 = vmatpush.bf16.msra.mxu0 %v5093
    %7653 = vmatpush.bf16.msra.mxu0 %v5088
    %7654 = vmatpush.bf16.msra.mxu0 %v5083
    %7655 = vmatpush.bf16.msra.mxu0 %v5078
    %7656 = vmatpush.bf16.msra.mxu0 %v5073
    %7657 = vmatpush.bf16.msra.mxu0 %v5068
    %7658 = vmatpush.bf16.msra.mxu0 %v5063
    %7659 = vmatpush.bf16.msra.mxu0 %v5058
    %7660 = vmatmul.bf16.gmra.mxu0 %v1255
    %v7661 = vpop.f32.mrf.mxu0
    %v7662 = vadd.f32 %v7649, %v7661
    %v7663 = vpop.f32.mrf.mxu0
    %7664 = vdwg.mxu0
    %7665 = vmatpush.bf16.msra.mxu0 %v5133
    %7666 = vmatpush.bf16.msra.mxu0 %v5128
    %7667 = vmatpush.bf16.msra.mxu0 %v5123
    %7668 = vmatpush.bf16.msra.mxu0 %v5118
    %7669 = vmatpush.bf16.msra.mxu0 %v5113
    %7670 = vmatpush.bf16.msra.mxu0 %v5108
    %7671 = vmatpush.bf16.msra.mxu0 %v5103
    %7672 = vmatpush.bf16.msra.mxu0 %v5098
    %7673 = vmatmul.bf16.gmra.mxu0 %v1256
    %v7674 = vpop.f32.mrf.mxu0
    %v7675 = vadd.f32 %v7662, %v7674
    %v7676 = vpop.f32.mrf.mxu0
    %7677 = vdwg.mxu0
    %7678 = vmatpush.bf16.msra.mxu0 %v5173
    %7679 = vmatpush.bf16.msra.mxu0 %v5168
    %7680 = vmatpush.bf16.msra.mxu0 %v5163
    %7681 = vmatpush.bf16.msra.mxu0 %v5158
    %7682 = vmatpush.bf16.msra.mxu0 %v5153
    %7683 = vmatpush.bf16.msra.mxu0 %v5148
    %7684 = vmatpush.bf16.msra.mxu0 %v5143
    %7685 = vmatpush.bf16.msra.mxu0 %v5138
    %7686 = vmatmul.bf16.gmra.mxu0 %v1259
    %v7687 = vpop.f32.mrf.mxu0
    %v7688 = vadd.f32 %v7675, %v7687
    %v7689 = vpop.f32.mrf.mxu0
    %7690 = vdwg.mxu0
    %7691 = vmatpush.bf16.msra.mxu0 %v5213
    %7692 = vmatpush.bf16.msra.mxu0 %v5208
    %7693 = vmatpush.bf16.msra.mxu0 %v5203
    %7694 = vmatpush.bf16.msra.mxu0 %v5198
    %7695 = vmatpush.bf16.msra.mxu0 %v5193
    %7696 = vmatpush.bf16.msra.mxu0 %v5188
    %7697 = vmatpush.bf16.msra.mxu0 %v5183
    %7698 = vmatpush.bf16.msra.mxu0 %v5178
    %7699 = vmatmul.bf16.gmra.mxu0 %v1260
    %v7700 = vpop.f32.mrf.mxu0
    %v7701 = vadd.f32 %v7688, %v7700
    %v7702 = vpop.f32.mrf.mxu0
    %7703 = vdwg.mxu0
    %7704 = vmatpush.bf16.msra.mxu0 %v5253
    %7705 = vmatpush.bf16.msra.mxu0 %v5248
    %7706 = vmatpush.bf16.msra.mxu0 %v5243
    %7707 = vmatpush.bf16.msra.mxu0 %v5238
    %7708 = vmatpush.bf16.msra.mxu0 %v5233
    %7709 = vmatpush.bf16.msra.mxu0 %v5228
    %7710 = vmatpush.bf16.msra.mxu0 %v5223
    %7711 = vmatpush.bf16.msra.mxu0 %v5218
    %7712 = vmatmul.bf16.gmra.mxu0 %v1261
    %v7713 = vpop.f32.mrf.mxu0
    %v7714 = vadd.f32 %v7701, %v7713
    %v7715 = vpop.f32.mrf.mxu0
    %7716 = vdwg.mxu0
    %7717 = vmatpush.bf16.msra.mxu0 %v5293
    %7718 = vmatpush.bf16.msra.mxu0 %v5288
    %7719 = vmatpush.bf16.msra.mxu0 %v5283
    %7720 = vmatpush.bf16.msra.mxu0 %v5278
    %7721 = vmatpush.bf16.msra.mxu0 %v5273
    %7722 = vmatpush.bf16.msra.mxu0 %v5268
    %7723 = vmatpush.bf16.msra.mxu0 %v5263
    %7724 = vmatpush.bf16.msra.mxu0 %v5258
    %7725 = vmatmul.bf16.gmra.mxu0 %v1262
    %v7726 = vpop.f32.mrf.mxu0
    %v7727 = vadd.f32 %v7714, %v7726
    %v7728 = vpop.f32.mrf.mxu0
    %7729 = vdwg.mxu0
    %7730 = vmatpush.bf16.msra.mxu0 %v5333
    %7731 = vmatpush.bf16.msra.mxu0 %v5328
    %7732 = vmatpush.bf16.msra.mxu0 %v5323
    %7733 = vmatpush.bf16.msra.mxu0 %v5318
    %7734 = vmatpush.bf16.msra.mxu0 %v5313
    %7735 = vmatpush.bf16.msra.mxu0 %v5308
    %7736 = vmatpush.bf16.msra.mxu0 %v5303
    %7737 = vmatpush.bf16.msra.mxu0 %v5298
    %7738 = vmatmul.bf16.gmra.mxu0 %v1263
    %v7739 = vpop.f32.mrf.mxu0
    %v7740 = vadd.f32 %v7727, %v7739
    %v7741 = vpop.f32.mrf.mxu0
    %7742 = vdwg.mxu0
    %7743 = vmatpush.bf16.msra.mxu0 %v5373
    %7744 = vmatpush.bf16.msra.mxu0 %v5368
    %7745 = vmatpush.bf16.msra.mxu0 %v5363
    %7746 = vmatpush.bf16.msra.mxu0 %v5358
    %7747 = vmatpush.bf16.msra.mxu0 %v5353
    %7748 = vmatpush.bf16.msra.mxu0 %v5348
    %7749 = vmatpush.bf16.msra.mxu0 %v5343
    %7750 = vmatpush.bf16.msra.mxu0 %v5338
    %7751 = vmatmul.bf16.gmra.mxu0 %v1264
    %v7752 = vpop.f32.mrf.mxu0
    %v7753 = vadd.f32 %v7740, %v7752
    %v7754 = vpop.f32.mrf.mxu0
    %7755 = vdwg.mxu0
    %7756 = vmatpush.bf16.msra.mxu0 %v5413
    %7757 = vmatpush.bf16.msra.mxu0 %v5408
    %7758 = vmatpush.bf16.msra.mxu0 %v5403
    %7759 = vmatpush.bf16.msra.mxu0 %v5398
    %7760 = vmatpush.bf16.msra.mxu0 %v5393
    %7761 = vmatpush.bf16.msra.mxu0 %v5388
    %7762 = vmatpush.bf16.msra.mxu0 %v5383
    %7763 = vmatpush.bf16.msra.mxu0 %v5378
    %7764 = vmatmul.bf16.gmra.mxu0 %v1265
    %v7765 = vpop.f32.mrf.mxu0
    %v7766 = vadd.f32 %v7753, %v7765
    %v7767 = vpop.f32.mrf.mxu0
    %7768 = vdwg.mxu0
    %7769 = vmatpush.bf16.msra.mxu0 %v5453
    %7770 = vmatpush.bf16.msra.mxu0 %v5448
    %7771 = vmatpush.bf16.msra.mxu0 %v5443
    %7772 = vmatpush.bf16.msra.mxu0 %v5438
    %7773 = vmatpush.bf16.msra.mxu0 %v5433
    %7774 = vmatpush.bf16.msra.mxu0 %v5428
    %7775 = vmatpush.bf16.msra.mxu0 %v5423
    %7776 = vmatpush.bf16.msra.mxu0 %v5418
    %7777 = vmatmul.bf16.gmra.mxu0 %v1266
    %v7778 = vpop.f32.mrf.mxu0
    %v7779 = vadd.f32 %v7766, %v7778
    %v7780 = vpop.f32.mrf.mxu0
    %7781 = vdwg.mxu0
    %7782 = vmatpush.bf16.msra.mxu0 %v5493
    %7783 = vmatpush.bf16.msra.mxu0 %v5488
    %7784 = vmatpush.bf16.msra.mxu0 %v5483
    %7785 = vmatpush.bf16.msra.mxu0 %v5478
    %7786 = vmatpush.bf16.msra.mxu0 %v5473
    %7787 = vmatpush.bf16.msra.mxu0 %v5468
    %7788 = vmatpush.bf16.msra.mxu0 %v5463
    %7789 = vmatpush.bf16.msra.mxu0 %v5458
    %7790 = vmatmul.bf16.gmra.mxu0 %v1269
    %v7791 = vpop.f32.mrf.mxu0
    %v7792 = vadd.f32 %v7779, %v7791
    %v7793 = vpop.f32.mrf.mxu0
    %7794 = vdwg.mxu0
    %7795 = vmatpush.bf16.msra.mxu0 %v4534
    %7796 = vmatpush.bf16.msra.mxu0 %v4529
    %7797 = vmatpush.bf16.msra.mxu0 %v4524
    %7798 = vmatpush.bf16.msra.mxu0 %v4519
    %7799 = vmatpush.bf16.msra.mxu0 %v4514
    %7800 = vmatpush.bf16.msra.mxu0 %v4509
    %7801 = vmatpush.bf16.msra.mxu0 %v4504
    %7802 = vmatpush.bf16.msra.mxu0 %v4499
    %7803 = vmatmul.bf16.gmra.mxu0 %v1239
    %v7804 = vpop.f32.mrf.mxu0
    %v7805 = vadd.f32 %v1231, %v7804
    %v7806 = vpop.f32.mrf.mxu0
    %7807 = vdwg.mxu0
    %7808 = vmatpush.bf16.msra.mxu0 %v4574
    %7809 = vmatpush.bf16.msra.mxu0 %v4569
    %7810 = vmatpush.bf16.msra.mxu0 %v4564
    %7811 = vmatpush.bf16.msra.mxu0 %v4559
    %7812 = vmatpush.bf16.msra.mxu0 %v4554
    %7813 = vmatpush.bf16.msra.mxu0 %v4549
    %7814 = vmatpush.bf16.msra.mxu0 %v4544
    %7815 = vmatpush.bf16.msra.mxu0 %v4539
    %7816 = vmatmul.bf16.gmra.mxu0 %v1240
    %v7817 = vpop.f32.mrf.mxu0
    %v7818 = vadd.f32 %v7805, %v7817
    %v7819 = vpop.f32.mrf.mxu0
    %7820 = vdwg.mxu0
    %7821 = vmatpush.bf16.msra.mxu0 %v4614
    %7822 = vmatpush.bf16.msra.mxu0 %v4609
    %7823 = vmatpush.bf16.msra.mxu0 %v4604
    %7824 = vmatpush.bf16.msra.mxu0 %v4599
    %7825 = vmatpush.bf16.msra.mxu0 %v4594
    %7826 = vmatpush.bf16.msra.mxu0 %v4589
    %7827 = vmatpush.bf16.msra.mxu0 %v4584
    %7828 = vmatpush.bf16.msra.mxu0 %v4579
    %7829 = vmatmul.bf16.gmra.mxu0 %v1241
    %v7830 = vpop.f32.mrf.mxu0
    %v7831 = vadd.f32 %v7818, %v7830
    %v7832 = vpop.f32.mrf.mxu0
    %7833 = vdwg.mxu0
    %7834 = vmatpush.bf16.msra.mxu0 %v4654
    %7835 = vmatpush.bf16.msra.mxu0 %v4649
    %7836 = vmatpush.bf16.msra.mxu0 %v4644
    %7837 = vmatpush.bf16.msra.mxu0 %v4639
    %7838 = vmatpush.bf16.msra.mxu0 %v4634
    %7839 = vmatpush.bf16.msra.mxu0 %v4629
    %7840 = vmatpush.bf16.msra.mxu0 %v4624
    %7841 = vmatpush.bf16.msra.mxu0 %v4619
    %7842 = vmatmul.bf16.gmra.mxu0 %v1242
    %v7843 = vpop.f32.mrf.mxu0
    %v7844 = vadd.f32 %v7831, %v7843
    %v7845 = vpop.f32.mrf.mxu0
    %7846 = vdwg.mxu0
    %7847 = vmatpush.bf16.msra.mxu0 %v4694
    %7848 = vmatpush.bf16.msra.mxu0 %v4689
    %7849 = vmatpush.bf16.msra.mxu0 %v4684
    %7850 = vmatpush.bf16.msra.mxu0 %v4679
    %7851 = vmatpush.bf16.msra.mxu0 %v4674
    %7852 = vmatpush.bf16.msra.mxu0 %v4669
    %7853 = vmatpush.bf16.msra.mxu0 %v4664
    %7854 = vmatpush.bf16.msra.mxu0 %v4659
    %7855 = vmatmul.bf16.gmra.mxu0 %v1243
    %v7856 = vpop.f32.mrf.mxu0
    %v7857 = vadd.f32 %v7844, %v7856
    %v7858 = vpop.f32.mrf.mxu0
    %7859 = vdwg.mxu0
    %7860 = vmatpush.bf16.msra.mxu0 %v4734
    %7861 = vmatpush.bf16.msra.mxu0 %v4729
    %7862 = vmatpush.bf16.msra.mxu0 %v4724
    %7863 = vmatpush.bf16.msra.mxu0 %v4719
    %7864 = vmatpush.bf16.msra.mxu0 %v4714
    %7865 = vmatpush.bf16.msra.mxu0 %v4709
    %7866 = vmatpush.bf16.msra.mxu0 %v4704
    %7867 = vmatpush.bf16.msra.mxu0 %v4699
    %7868 = vmatmul.bf16.gmra.mxu0 %v1244
    %v7869 = vpop.f32.mrf.mxu0
    %v7870 = vadd.f32 %v7857, %v7869
    %v7871 = vpop.f32.mrf.mxu0
    %7872 = vdwg.mxu0
    %7873 = vmatpush.bf16.msra.mxu0 %v4774
    %7874 = vmatpush.bf16.msra.mxu0 %v4769
    %7875 = vmatpush.bf16.msra.mxu0 %v4764
    %7876 = vmatpush.bf16.msra.mxu0 %v4759
    %7877 = vmatpush.bf16.msra.mxu0 %v4754
    %7878 = vmatpush.bf16.msra.mxu0 %v4749
    %7879 = vmatpush.bf16.msra.mxu0 %v4744
    %7880 = vmatpush.bf16.msra.mxu0 %v4739
    %7881 = vmatmul.bf16.gmra.mxu0 %v1245
    %v7882 = vpop.f32.mrf.mxu0
    %v7883 = vadd.f32 %v7870, %v7882
    %v7884 = vpop.f32.mrf.mxu0
    %7885 = vdwg.mxu0
    %7886 = vmatpush.bf16.msra.mxu0 %v4814
    %7887 = vmatpush.bf16.msra.mxu0 %v4809
    %7888 = vmatpush.bf16.msra.mxu0 %v4804
    %7889 = vmatpush.bf16.msra.mxu0 %v4799
    %7890 = vmatpush.bf16.msra.mxu0 %v4794
    %7891 = vmatpush.bf16.msra.mxu0 %v4789
    %7892 = vmatpush.bf16.msra.mxu0 %v4784
    %7893 = vmatpush.bf16.msra.mxu0 %v4779
    %7894 = vmatmul.bf16.gmra.mxu0 %v1246
    %v7895 = vpop.f32.mrf.mxu0
    %v7896 = vadd.f32 %v7883, %v7895
    %v7897 = vpop.f32.mrf.mxu0
    %7898 = vdwg.mxu0
    %7899 = vmatpush.bf16.msra.mxu0 %v4854
    %7900 = vmatpush.bf16.msra.mxu0 %v4849
    %7901 = vmatpush.bf16.msra.mxu0 %v4844
    %7902 = vmatpush.bf16.msra.mxu0 %v4839
    %7903 = vmatpush.bf16.msra.mxu0 %v4834
    %7904 = vmatpush.bf16.msra.mxu0 %v4829
    %7905 = vmatpush.bf16.msra.mxu0 %v4824
    %7906 = vmatpush.bf16.msra.mxu0 %v4819
    %7907 = vmatmul.bf16.gmra.mxu0 %v1249
    %v7908 = vpop.f32.mrf.mxu0
    %v7909 = vadd.f32 %v7896, %v7908
    %v7910 = vpop.f32.mrf.mxu0
    %7911 = vdwg.mxu0
    %7912 = vmatpush.bf16.msra.mxu0 %v4894
    %7913 = vmatpush.bf16.msra.mxu0 %v4889
    %7914 = vmatpush.bf16.msra.mxu0 %v4884
    %7915 = vmatpush.bf16.msra.mxu0 %v4879
    %7916 = vmatpush.bf16.msra.mxu0 %v4874
    %7917 = vmatpush.bf16.msra.mxu0 %v4869
    %7918 = vmatpush.bf16.msra.mxu0 %v4864
    %7919 = vmatpush.bf16.msra.mxu0 %v4859
    %7920 = vmatmul.bf16.gmra.mxu0 %v1250
    %v7921 = vpop.f32.mrf.mxu0
    %v7922 = vadd.f32 %v7909, %v7921
    %v7923 = vpop.f32.mrf.mxu0
    %7924 = vdwg.mxu0
    %7925 = vmatpush.bf16.msra.mxu0 %v4934
    %7926 = vmatpush.bf16.msra.mxu0 %v4929
    %7927 = vmatpush.bf16.msra.mxu0 %v4924
    %7928 = vmatpush.bf16.msra.mxu0 %v4919
    %7929 = vmatpush.bf16.msra.mxu0 %v4914
    %7930 = vmatpush.bf16.msra.mxu0 %v4909
    %7931 = vmatpush.bf16.msra.mxu0 %v4904
    %7932 = vmatpush.bf16.msra.mxu0 %v4899
    %7933 = vmatmul.bf16.gmra.mxu0 %v1251
    %v7934 = vpop.f32.mrf.mxu0
    %v7935 = vadd.f32 %v7922, %v7934
    %v7936 = vpop.f32.mrf.mxu0
    %7937 = vdwg.mxu0
    %7938 = vmatpush.bf16.msra.mxu0 %v4974
    %7939 = vmatpush.bf16.msra.mxu0 %v4969
    %7940 = vmatpush.bf16.msra.mxu0 %v4964
    %7941 = vmatpush.bf16.msra.mxu0 %v4959
    %7942 = vmatpush.bf16.msra.mxu0 %v4954
    %7943 = vmatpush.bf16.msra.mxu0 %v4949
    %7944 = vmatpush.bf16.msra.mxu0 %v4944
    %7945 = vmatpush.bf16.msra.mxu0 %v4939
    %7946 = vmatmul.bf16.gmra.mxu0 %v1252
    %v7947 = vpop.f32.mrf.mxu0
    %v7948 = vadd.f32 %v7935, %v7947
    %v7949 = vpop.f32.mrf.mxu0
    %7950 = vdwg.mxu0
    %7951 = vmatpush.bf16.msra.mxu0 %v5014
    %7952 = vmatpush.bf16.msra.mxu0 %v5009
    %7953 = vmatpush.bf16.msra.mxu0 %v5004
    %7954 = vmatpush.bf16.msra.mxu0 %v4999
    %7955 = vmatpush.bf16.msra.mxu0 %v4994
    %7956 = vmatpush.bf16.msra.mxu0 %v4989
    %7957 = vmatpush.bf16.msra.mxu0 %v4984
    %7958 = vmatpush.bf16.msra.mxu0 %v4979
    %7959 = vmatmul.bf16.gmra.mxu0 %v1253
    %v7960 = vpop.f32.mrf.mxu0
    %v7961 = vadd.f32 %v7948, %v7960
    %v7962 = vpop.f32.mrf.mxu0
    %7963 = vdwg.mxu0
    %7964 = vmatpush.bf16.msra.mxu0 %v5054
    %7965 = vmatpush.bf16.msra.mxu0 %v5049
    %7966 = vmatpush.bf16.msra.mxu0 %v5044
    %7967 = vmatpush.bf16.msra.mxu0 %v5039
    %7968 = vmatpush.bf16.msra.mxu0 %v5034
    %7969 = vmatpush.bf16.msra.mxu0 %v5029
    %7970 = vmatpush.bf16.msra.mxu0 %v5024
    %7971 = vmatpush.bf16.msra.mxu0 %v5019
    %7972 = vmatmul.bf16.gmra.mxu0 %v1254
    %v7973 = vpop.f32.mrf.mxu0
    %v7974 = vadd.f32 %v7961, %v7973
    %v7975 = vpop.f32.mrf.mxu0
    %7976 = vdwg.mxu0
    %7977 = vmatpush.bf16.msra.mxu0 %v5094
    %7978 = vmatpush.bf16.msra.mxu0 %v5089
    %7979 = vmatpush.bf16.msra.mxu0 %v5084
    %7980 = vmatpush.bf16.msra.mxu0 %v5079
    %7981 = vmatpush.bf16.msra.mxu0 %v5074
    %7982 = vmatpush.bf16.msra.mxu0 %v5069
    %7983 = vmatpush.bf16.msra.mxu0 %v5064
    %7984 = vmatpush.bf16.msra.mxu0 %v5059
    %7985 = vmatmul.bf16.gmra.mxu0 %v1255
    %v7986 = vpop.f32.mrf.mxu0
    %v7987 = vadd.f32 %v7974, %v7986
    %v7988 = vpop.f32.mrf.mxu0
    %7989 = vdwg.mxu0
    %7990 = vmatpush.bf16.msra.mxu0 %v5134
    %7991 = vmatpush.bf16.msra.mxu0 %v5129
    %7992 = vmatpush.bf16.msra.mxu0 %v5124
    %7993 = vmatpush.bf16.msra.mxu0 %v5119
    %7994 = vmatpush.bf16.msra.mxu0 %v5114
    %7995 = vmatpush.bf16.msra.mxu0 %v5109
    %7996 = vmatpush.bf16.msra.mxu0 %v5104
    %7997 = vmatpush.bf16.msra.mxu0 %v5099
    %7998 = vmatmul.bf16.gmra.mxu0 %v1256
    %v7999 = vpop.f32.mrf.mxu0
    %v8000 = vadd.f32 %v7987, %v7999
    %v8001 = vpop.f32.mrf.mxu0
    %8002 = vdwg.mxu0
    %8003 = vmatpush.bf16.msra.mxu0 %v5174
    %8004 = vmatpush.bf16.msra.mxu0 %v5169
    %8005 = vmatpush.bf16.msra.mxu0 %v5164
    %8006 = vmatpush.bf16.msra.mxu0 %v5159
    %8007 = vmatpush.bf16.msra.mxu0 %v5154
    %8008 = vmatpush.bf16.msra.mxu0 %v5149
    %8009 = vmatpush.bf16.msra.mxu0 %v5144
    %8010 = vmatpush.bf16.msra.mxu0 %v5139
    %8011 = vmatmul.bf16.gmra.mxu0 %v1259
    %v8012 = vpop.f32.mrf.mxu0
    %v8013 = vadd.f32 %v8000, %v8012
    %v8014 = vpop.f32.mrf.mxu0
    %8015 = vdwg.mxu0
    %8016 = vmatpush.bf16.msra.mxu0 %v5214
    %8017 = vmatpush.bf16.msra.mxu0 %v5209
    %8018 = vmatpush.bf16.msra.mxu0 %v5204
    %8019 = vmatpush.bf16.msra.mxu0 %v5199
    %8020 = vmatpush.bf16.msra.mxu0 %v5194
    %8021 = vmatpush.bf16.msra.mxu0 %v5189
    %8022 = vmatpush.bf16.msra.mxu0 %v5184
    %8023 = vmatpush.bf16.msra.mxu0 %v5179
    %8024 = vmatmul.bf16.gmra.mxu0 %v1260
    %v8025 = vpop.f32.mrf.mxu0
    %v8026 = vadd.f32 %v8013, %v8025
    %v8027 = vpop.f32.mrf.mxu0
    %8028 = vdwg.mxu0
    %8029 = vmatpush.bf16.msra.mxu0 %v5254
    %8030 = vmatpush.bf16.msra.mxu0 %v5249
    %8031 = vmatpush.bf16.msra.mxu0 %v5244
    %8032 = vmatpush.bf16.msra.mxu0 %v5239
    %8033 = vmatpush.bf16.msra.mxu0 %v5234
    %8034 = vmatpush.bf16.msra.mxu0 %v5229
    %8035 = vmatpush.bf16.msra.mxu0 %v5224
    %8036 = vmatpush.bf16.msra.mxu0 %v5219
    %8037 = vmatmul.bf16.gmra.mxu0 %v1261
    %v8038 = vpop.f32.mrf.mxu0
    %v8039 = vadd.f32 %v8026, %v8038
    %v8040 = vpop.f32.mrf.mxu0
    %8041 = vdwg.mxu0
    %8042 = vmatpush.bf16.msra.mxu0 %v5294
    %8043 = vmatpush.bf16.msra.mxu0 %v5289
    %8044 = vmatpush.bf16.msra.mxu0 %v5284
    %8045 = vmatpush.bf16.msra.mxu0 %v5279
    %8046 = vmatpush.bf16.msra.mxu0 %v5274
    %8047 = vmatpush.bf16.msra.mxu0 %v5269
    %8048 = vmatpush.bf16.msra.mxu0 %v5264
    %8049 = vmatpush.bf16.msra.mxu0 %v5259
    %8050 = vmatmul.bf16.gmra.mxu0 %v1262
    %v8051 = vpop.f32.mrf.mxu0
    %v8052 = vadd.f32 %v8039, %v8051
    %v8053 = vpop.f32.mrf.mxu0
    %8054 = vdwg.mxu0
    %8055 = vmatpush.bf16.msra.mxu0 %v5334
    %8056 = vmatpush.bf16.msra.mxu0 %v5329
    %8057 = vmatpush.bf16.msra.mxu0 %v5324
    %8058 = vmatpush.bf16.msra.mxu0 %v5319
    %8059 = vmatpush.bf16.msra.mxu0 %v5314
    %8060 = vmatpush.bf16.msra.mxu0 %v5309
    %8061 = vmatpush.bf16.msra.mxu0 %v5304
    %8062 = vmatpush.bf16.msra.mxu0 %v5299
    %8063 = vmatmul.bf16.gmra.mxu0 %v1263
    %v8064 = vpop.f32.mrf.mxu0
    %v8065 = vadd.f32 %v8052, %v8064
    %v8066 = vpop.f32.mrf.mxu0
    %8067 = vdwg.mxu0
    %8068 = vmatpush.bf16.msra.mxu0 %v5374
    %8069 = vmatpush.bf16.msra.mxu0 %v5369
    %8070 = vmatpush.bf16.msra.mxu0 %v5364
    %8071 = vmatpush.bf16.msra.mxu0 %v5359
    %8072 = vmatpush.bf16.msra.mxu0 %v5354
    %8073 = vmatpush.bf16.msra.mxu0 %v5349
    %8074 = vmatpush.bf16.msra.mxu0 %v5344
    %8075 = vmatpush.bf16.msra.mxu0 %v5339
    %8076 = vmatmul.bf16.gmra.mxu0 %v1264
    %v8077 = vpop.f32.mrf.mxu0
    %v8078 = vadd.f32 %v8065, %v8077
    %v8079 = vpop.f32.mrf.mxu0
    %8080 = vdwg.mxu0
    %8081 = vmatpush.bf16.msra.mxu0 %v5414
    %8082 = vmatpush.bf16.msra.mxu0 %v5409
    %8083 = vmatpush.bf16.msra.mxu0 %v5404
    %8084 = vmatpush.bf16.msra.mxu0 %v5399
    %8085 = vmatpush.bf16.msra.mxu0 %v5394
    %8086 = vmatpush.bf16.msra.mxu0 %v5389
    %8087 = vmatpush.bf16.msra.mxu0 %v5384
    %8088 = vmatpush.bf16.msra.mxu0 %v5379
    %8089 = vmatmul.bf16.gmra.mxu0 %v1265
    %v8090 = vpop.f32.mrf.mxu0
    %v8091 = vadd.f32 %v8078, %v8090
    %v8092 = vpop.f32.mrf.mxu0
    %8093 = vdwg.mxu0
    %8094 = vmatpush.bf16.msra.mxu0 %v5454
    %8095 = vmatpush.bf16.msra.mxu0 %v5449
    %8096 = vmatpush.bf16.msra.mxu0 %v5444
    %8097 = vmatpush.bf16.msra.mxu0 %v5439
    %8098 = vmatpush.bf16.msra.mxu0 %v5434
    %8099 = vmatpush.bf16.msra.mxu0 %v5429
    %8100 = vmatpush.bf16.msra.mxu0 %v5424
    %8101 = vmatpush.bf16.msra.mxu0 %v5419
    %8102 = vmatmul.bf16.gmra.mxu0 %v1266
    %v8103 = vpop.f32.mrf.mxu0
    %v8104 = vadd.f32 %v8091, %v8103
    %v8105 = vpop.f32.mrf.mxu0
    %8106 = vdwg.mxu0
    %8107 = vmatpush.bf16.msra.mxu0 %v5494
    %8108 = vmatpush.bf16.msra.mxu0 %v5489
    %8109 = vmatpush.bf16.msra.mxu0 %v5484
    %8110 = vmatpush.bf16.msra.mxu0 %v5479
    %8111 = vmatpush.bf16.msra.mxu0 %v5474
    %8112 = vmatpush.bf16.msra.mxu0 %v5469
    %8113 = vmatpush.bf16.msra.mxu0 %v5464
    %8114 = vmatpush.bf16.msra.mxu0 %v5459
    %8115 = vmatmul.bf16.gmra.mxu0 %v1269
    %v8116 = vpop.f32.mrf.mxu0
    %v8117 = vadd.f32 %v8104, %v8116
    %v8118 = vpop.f32.mrf.mxu0
    %8119 = vdwg.mxu0
    %v8120 = vpack.c.bf16 %v6817, %v6817
    %v8121 = vpack.c.bf16 %v7142, %v7142
    %v8122 = vpack.c.bf16 %v7467, %v7467
    %v8123 = vpack.c.bf16 %v7792, %v7792
    %v8124 = vpack.c.bf16 %v8117, %v8117
    %v8125 = vld [vmem:[%s3] sm:$0xf]
    %v8126 = vld [vmem:[%s3 + $0x4] sm:$0xf]
    %v8127 = vld [vmem:[%s3 + $0x8] sm:$0xf]
    %v8128 = vld [vmem:[%s3 + $0xc] sm:$0xf]
    %v8129 = vld [vmem:[%s3 + $0x10] sm:$0xf]
    %v8130 = vld [vmem:[%s3 + $0x14] sm:$0xf]
    %v8131 = vld [vmem:[%s3 + $0x18] sm:$0xf]
    %v8132 = vld [vmem:[%s3 + $0x1c] sm:$0xf]
    %v8133 = vld [vmem:[%s3 + $0x20] sm:$0xf]
    %v8134 = vld [vmem:[%s3 + $0x24] sm:$0xf]
    %v8135 = vld [vmem:[%s3 + $0x28] sm:$0xf]
    %v8136 = vld [vmem:[%s3 + $0x2c] sm:$0xf]
    %v8137 = vld [vmem:[%s3 + $0x30] sm:$0xf]
    %v8138 = vld [vmem:[%s3 + $0x34] sm:$0xf]
    %v8139 = vld [vmem:[%s3 + $0x38] sm:$0xf]
    %v8140 = vld [vmem:[%s3 + $0x3c] sm:$0xf]
    %v8141 = vld [vmem:[%s3 + $0x40] sm:$0xf]
    %v8142 = vld [vmem:[%s3 + $0x44] sm:$0xf]
    %v8143 = vld [vmem:[%s3 + $0x48] sm:$0xf]
    %v8144 = vld [vmem:[%s3 + $0x4c] sm:$0xf]
    %v8145 = vld [vmem:[%s3 + $0x50] sm:$0xf]
    %v8146 = vld [vmem:[%s3 + $0x54] sm:$0xf]
    %v8147 = vld [vmem:[%s3 + $0x58] sm:$0xf]
    %v8148 = vld [vmem:[%s3 + $0x5c] sm:$0xf]
    %v8149 = vld [vmem:[%s3 + $0x60] sm:$0xf]
    %v8150 = vld [vmem:[%s3 + $0x64] sm:$0xf]
    %v8151 = vld [vmem:[%s3 + $0x68] sm:$0xf]
    %v8152 = vld [vmem:[%s3 + $0x6c] sm:$0xf]
    %v8153 = vld [vmem:[%s3 + $0x70] sm:$0xf]
    %v8154 = vld [vmem:[%s3 + $0x74] sm:$0xf]
    %v8155 = vld [vmem:[%s3 + $0x78] sm:$0xf]
    %v8156 = vld [vmem:[%s3 + $0x7c] sm:$0xf]
    %v8157 = vld [vmem:[%s3 + $0x80] sm:$0xf]
    %v8158 = vld [vmem:[%s3 + $0x84] sm:$0xf]
    %v8159 = vld [vmem:[%s3 + $0x88] sm:$0xf]
    %v8160 = vld [vmem:[%s3 + $0x8c] sm:$0xf]
    %v8161 = vld [vmem:[%s3 + $0x90] sm:$0xf]
    %v8162 = vld [vmem:[%s3 + $0x94] sm:$0xf]
    %v8163 = vld [vmem:[%s3 + $0x98] sm:$0xf]
    %v8164 = vld [vmem:[%s3 + $0x9c] sm:$0xf]
    %v8165 = vld [vmem:[%s3 + $0xa0] sm:$0xf]
    %v8166 = vld [vmem:[%s3 + $0xa4] sm:$0xf]
    %v8167 = vld [vmem:[%s3 + $0xa8] sm:$0xf]
    %v8168 = vld [vmem:[%s3 + $0xac] sm:$0xf]
    %v8169 = vld [vmem:[%s3 + $0xb0] sm:$0xf]
    %v8170 = vld [vmem:[%s3 + $0xb4] sm:$0xf]
    %v8171 = vld [vmem:[%s3 + $0xb8] sm:$0xf]
    %v8172 = vld [vmem:[%s3 + $0xbc] sm:$0xf]
    %v8173 = vld [vmem:[%s3 + $0xc0] sm:$0xf]
    %v8174 = vld [vmem:[%s3 + $0xc4] sm:$0xf]
    %v8175 = vld [vmem:[%s3 + $0xc8] sm:$0xf]
    %v8176 = vld [vmem:[%s3 + $0xcc] sm:$0xf]
    %v8177 = vld [vmem:[%s3 + $0xd0] sm:$0xf]
    %v8178 = vld [vmem:[%s3 + $0xd4] sm:$0xf]
    %v8179 = vld [vmem:[%s3 + $0xd8] sm:$0xf]
    %v8180 = vld [vmem:[%s3 + $0xdc] sm:$0xf]
    %v8181 = vld [vmem:[%s3 + $0xe0] sm:$0xf]
    %v8182 = vld [vmem:[%s3 + $0xe4] sm:$0xf]
    %v8183 = vld [vmem:[%s3 + $0xe8] sm:$0xf]
    %v8184 = vld [vmem:[%s3 + $0xec] sm:$0xf]
    %v8185 = vld [vmem:[%s3 + $0xf0] sm:$0xf]
    %v8186 = vld [vmem:[%s3 + $0xf4] sm:$0xf]
    %v8187 = vld [vmem:[%s3 + $0xf8] sm:$0xf]
    %v8188 = vld [vmem:[%s3 + $0xfc] sm:$0xf]
    %v8189 = vld [vmem:[%s3 + $0x100] sm:$0xf]
    %v8190 = vld [vmem:[%s3 + $0x104] sm:$0xf]
    %v8191 = vld [vmem:[%s3 + $0x108] sm:$0xf]
    %v8192 = vld [vmem:[%s3 + $0x10c] sm:$0xf]
    %v8193 = vld [vmem:[%s3 + $0x110] sm:$0xf]
    %v8194 = vld [vmem:[%s3 + $0x114] sm:$0xf]
    %v8195 = vld [vmem:[%s3 + $0x118] sm:$0xf]
    %v8196 = vld [vmem:[%s3 + $0x11c] sm:$0xf]
    %v8197 = vld [vmem:[%s3 + $0x120] sm:$0xf]
    %v8198 = vld [vmem:[%s3 + $0x124] sm:$0xf]
    %v8199 = vld [vmem:[%s3 + $0x128] sm:$0xf]
    %v8200 = vld [vmem:[%s3 + $0x12c] sm:$0xf]
    %v8201 = vld [vmem:[%s3 + $0x130] sm:$0xf]
    %v8202 = vld [vmem:[%s3 + $0x134] sm:$0xf]
    %v8203 = vld [vmem:[%s3 + $0x138] sm:$0x1]
    %v8204 = vld [vmem:[%s4] sm:$0x1]
    %v8206 = vperm.slane %v8204, 0
    %v8287 = vunpack.c.l.b16 %v8125
    %v8288 = vunpack.c.l.b16 %v8126
    %v8289 = vunpack.c.l.b16 %v8127
    %v8290 = vunpack.c.l.b16 %v8128
    %v8291 = vunpack.c.l.b16 %v8129
    %v8292 = vunpack.c.l.b16 %v8130
    %v8293 = vunpack.c.l.b16 %v8131
    %v8294 = vunpack.c.l.b16 %v8132
    %v8295 = vunpack.c.l.b16 %v8133
    %v8296 = vunpack.c.l.b16 %v8134
    %v8297 = vunpack.c.l.b16 %v8135
    %v8298 = vunpack.c.l.b16 %v8136
    %v8299 = vunpack.c.l.b16 %v8137
    %v8300 = vunpack.c.l.b16 %v8138
    %v8301 = vunpack.c.l.b16 %v8139
    %v8302 = vunpack.c.l.b16 %v8140
    %v8303 = vunpack.c.l.b16 %v8141
    %v8304 = vunpack.c.l.b16 %v8142
    %v8305 = vunpack.c.l.b16 %v8143
    %v8306 = vunpack.c.l.b16 %v8144
    %v8307 = vunpack.c.l.b16 %v8145
    %v8308 = vunpack.c.l.b16 %v8146
    %v8309 = vunpack.c.l.b16 %v8147
    %v8310 = vunpack.c.l.b16 %v8148
    %v8311 = vunpack.c.l.b16 %v8149
    %v8312 = vunpack.c.l.b16 %v8150
    %v8313 = vunpack.c.l.b16 %v8151
    %v8314 = vunpack.c.l.b16 %v8152
    %v8315 = vunpack.c.l.b16 %v8153
    %v8316 = vunpack.c.l.b16 %v8154
    %v8317 = vunpack.c.l.b16 %v8155
    %v8318 = vunpack.c.l.b16 %v8156
    %v8319 = vunpack.c.l.b16 %v8157
    %v8320 = vunpack.c.l.b16 %v8158
    %v8321 = vunpack.c.l.b16 %v8159
    %v8322 = vunpack.c.l.b16 %v8160
    %v8323 = vunpack.c.l.b16 %v8161
    %v8324 = vunpack.c.l.b16 %v8162
    %v8325 = vunpack.c.l.b16 %v8163
    %v8326 = vunpack.c.l.b16 %v8164
    %v8327 = vunpack.c.l.b16 %v8165
    %v8328 = vunpack.c.l.b16 %v8166
    %v8329 = vunpack.c.l.b16 %v8167
    %v8330 = vunpack.c.l.b16 %v8168
    %v8331 = vunpack.c.l.b16 %v8169
    %v8332 = vunpack.c.l.b16 %v8170
    %v8333 = vunpack.c.l.b16 %v8171
    %v8334 = vunpack.c.l.b16 %v8172
    %v8335 = vunpack.c.l.b16 %v8173
    %v8336 = vunpack.c.l.b16 %v8174
    %v8337 = vunpack.c.l.b16 %v8175
    %v8338 = vunpack.c.l.b16 %v8176
    %v8339 = vunpack.c.l.b16 %v8177
    %v8340 = vunpack.c.l.b16 %v8178
    %v8341 = vunpack.c.l.b16 %v8179
    %v8342 = vunpack.c.l.b16 %v8180
    %v8343 = vunpack.c.l.b16 %v8181
    %v8344 = vunpack.c.l.b16 %v8182
    %v8345 = vunpack.c.l.b16 %v8183
    %v8346 = vunpack.c.l.b16 %v8184
    %v8347 = vunpack.c.l.b16 %v8185
    %v8348 = vunpack.c.l.b16 %v8186
    %v8349 = vunpack.c.l.b16 %v8187
    %v8350 = vunpack.c.l.b16 %v8188
    %v8351 = vunpack.c.l.b16 %v8189
    %v8352 = vunpack.c.l.b16 %v8190
    %v8353 = vunpack.c.l.b16 %v8191
    %v8354 = vunpack.c.l.b16 %v8192
    %v8355 = vunpack.c.l.b16 %v8193
    %v8356 = vunpack.c.l.b16 %v8194
    %v8357 = vunpack.c.l.b16 %v8195
    %v8358 = vunpack.c.l.b16 %v8196
    %v8359 = vunpack.c.l.b16 %v8197
    %v8360 = vunpack.c.l.b16 %v8198
    %v8361 = vunpack.c.l.b16 %v8199
    %v8362 = vunpack.c.l.b16 %v8200
    %v8363 = vunpack.c.l.b16 %v8201
    %v8364 = vunpack.c.l.b16 %v8202
    %v8365 = vunpack.c.l.b16 %v8203
    %v8366 = vpack.c.b16 %v8288, %v8287
    %v8367 = vpack.c.b16 %v8290, %v8289
    %v8368 = vpack.c.b16 %v8292, %v8291
    %v8369 = vpack.c.b16 %v8294, %v8293
    %v8370 = vpack.c.b16 %v8296, %v8295
    %v8371 = vpack.c.b16 %v8298, %v8297
    %v8372 = vpack.c.b16 %v8300, %v8299
    %v8373 = vpack.c.b16 %v8302, %v8301
    %v8374 = vpack.c.b16 %v8304, %v8303
    %v8375 = vpack.c.b16 %v8306, %v8305
    %v8376 = vpack.c.b16 %v8308, %v8307
    %v8377 = vpack.c.b16 %v8310, %v8309
    %v8378 = vpack.c.b16 %v8312, %v8311
    %v8379 = vpack.c.b16 %v8314, %v8313
    %v8380 = vpack.c.b16 %v8316, %v8315
    %v8381 = vpack.c.b16 %v8318, %v8317
    %v8382 = vpack.c.b16 %v8320, %v8319
    %v8383 = vpack.c.b16 %v8322, %v8321
    %v8384 = vpack.c.b16 %v8324, %v8323
    %v8385 = vpack.c.b16 %v8326, %v8325
    %v8386 = vpack.c.b16 %v8328, %v8327
    %v8387 = vpack.c.b16 %v8330, %v8329
    %v8388 = vpack.c.b16 %v8332, %v8331
    %v8389 = vpack.c.b16 %v8334, %v8333
    %v8390 = vpack.c.b16 %v8336, %v8335
    %v8391 = vpack.c.b16 %v8338, %v8337
    %v8392 = vpack.c.b16 %v8340, %v8339
    %v8393 = vpack.c.b16 %v8342, %v8341
    %v8394 = vpack.c.b16 %v8344, %v8343
    %v8395 = vpack.c.b16 %v8346, %v8345
    %v8396 = vpack.c.b16 %v8348, %v8347
    %v8397 = vpack.c.b16 %v8350, %v8349
    %v8398 = vpack.c.b16 %v8352, %v8351
    %v8399 = vpack.c.b16 %v8354, %v8353
    %v8400 = vpack.c.b16 %v8356, %v8355
    %v8401 = vpack.c.b16 %v8358, %v8357
    %v8402 = vpack.c.b16 %v8360, %v8359
    %v8403 = vpack.c.b16 %v8362, %v8361
    %v8404 = vpack.c.b16 %v8364, %v8363
    %v8405 = vpack.c.b16 %v8365, %v8365
    %vm8445 = vcmask 924672
    %v8447 = vsel %vm8445, %v8124, 0
    %vm8449 = vcmask 1040384
    %v8450 = vsel 0, 4294967295, 65535
    %v8451 = vsel %vm8449, %v8450, 0
    %v8453 = vand.u32 %v8405, %v8451
    %8455 = vmatpush.bf16.msra.mxu0 %v8373
    %8456 = vmatpush.bf16.msra.mxu0 %v8372
    %8457 = vmatpush.bf16.msra.mxu0 %v8371
    %8458 = vmatpush.bf16.msra.mxu0 %v8370
    %8459 = vmatpush.bf16.msra.mxu0 %v8369
    %8460 = vmatpush.bf16.msra.mxu0 %v8368
    %8461 = vmatpush.bf16.msra.mxu0 %v8367
    %8462 = vmatpush.bf16.msra.mxu0 %v8366
    %8463 = vmatmul.bf16.gmra.mxu0 %v8120
    %v8464 = vpop.f32.mrf.mxu0
    %v8465 = vadd.f32 %v8206, %v8464
    %v8466 = vpop.f32.mrf.mxu0
    %8467 = vdwg.mxu0
    %8468 = vmatpush.bf16.msra.mxu0 %v8381
    %8469 = vmatpush.bf16.msra.mxu0 %v8380
    %8470 = vmatpush.bf16.msra.mxu0 %v8379
    %8471 = vmatpush.bf16.msra.mxu0 %v8378
    %8472 = vmatpush.bf16.msra.mxu0 %v8377
    %8473 = vmatpush.bf16.msra.mxu0 %v8376
    %8474 = vmatpush.bf16.msra.mxu0 %v8375
    %8475 = vmatpush.bf16.msra.mxu0 %v8374
    %8476 = vmatmul.bf16.gmra.mxu0 %v8121
    %v8477 = vpop.f32.mrf.mxu0
    %v8478 = vadd.f32 %v8465, %v8477
    %v8479 = vpop.f32.mrf.mxu0
    %8480 = vdwg.mxu0
    %8481 = vmatpush.bf16.msra.mxu0 %v8389
    %8482 = vmatpush.bf16.msra.mxu0 %v8388
    %8483 = vmatpush.bf16.msra.mxu0 %v8387
    %8484 = vmatpush.bf16.msra.mxu0 %v8386
    %8485 = vmatpush.bf16.msra.mxu0 %v8385
    %8486 = vmatpush.bf16.msra.mxu0 %v8384
    %8487 = vmatpush.bf16.msra.mxu0 %v8383
    %8488 = vmatpush.bf16.msra.mxu0 %v8382
    %8489 = vmatmul.bf16.gmra.mxu0 %v8122
    %v8490 = vpop.f32.mrf.mxu0
    %v8491 = vadd.f32 %v8478, %v8490
    %v8492 = vpop.f32.mrf.mxu0
    %8493 = vdwg.mxu0
    %8494 = vmatpush.bf16.msra.mxu0 %v8397
    %8495 = vmatpush.bf16.msra.mxu0 %v8396
    %8496 = vmatpush.bf16.msra.mxu0 %v8395
    %8497 = vmatpush.bf16.msra.mxu0 %v8394
    %8498 = vmatpush.bf16.msra.mxu0 %v8393
    %8499 = vmatpush.bf16.msra.mxu0 %v8392
    %8500 = vmatpush.bf16.msra.mxu0 %v8391
    %8501 = vmatpush.bf16.msra.mxu0 %v8390
    %8502 = vmatmul.bf16.gmra.mxu0 %v8123
    %v8503 = vpop.f32.mrf.mxu0
    %v8504 = vadd.f32 %v8491, %v8503
    %v8505 = vpop.f32.mrf.mxu0
    %8506 = vdwg.mxu0
    %8507 = vmatpush.bf16.msra.mxu0 %v8453
    %8508 = vmatpush.bf16.msra.mxu0 %v8404
    %8509 = vmatpush.bf16.msra.mxu0 %v8403
    %8510 = vmatpush.bf16.msra.mxu0 %v8402
    %8511 = vmatpush.bf16.msra.mxu0 %v8401
    %8512 = vmatpush.bf16.msra.mxu0 %v8400
    %8513 = vmatpush.bf16.msra.mxu0 %v8399
    %8514 = vmatpush.bf16.msra.mxu0 %v8398
    %8515 = vmatmul.bf16.gmra.mxu0 %v8447
    %v8516 = vpop.f32.mrf.mxu0
    %v8517 = vadd.f32 %v8504, %v8516
    %v8518 = vpop.f32.mrf.mxu0
    %8519 = vdwg.mxu0
    %vm8520 = vcmask 74752
    %8521 = vst.msk [vmem:[#allocation2] sm:$0x3] %vm8520, %v8517
    // Predicated region
    $region22: #{cnn_mnist_forward.7} parent=1 // pred_check
      _
    $region23: #{cnn_mnist_forward.7} parent=1 // pred_check_branch
      %8523 = sbr.rel (0) target = $region25
    $region24: #{cnn_mnist_forward.7} parent=1 // pred_region
      %8525 = vsyncadd [#allocation3], 0
      %s8527 = sshll.u32 [#allocation2], 4
      %s8528 = int_to_ptr.vmem [resolvable:$true] %s8527
      %s8529 = sshll.u32 %s5, 4
      %s8530 = int_to_ptr.hbm [resolvable:$true] %s8529
      %8532 = dma.vmem_to_hbm [thread:$0]  %s8528, 32, %s8530, [#allocation3]
    $region25: #{cnn_mnist_forward.7} parent=1 // pred_fallthru
      _
    // Predicated region
    $region26: #{cnn_mnist_forward.7} parent=1 // pred_check
      _
    $region27: #{cnn_mnist_forward.7} parent=1 // pred_check_branch
      %8534 = sbr.rel (0) target = $region29
    $region28: #{cnn_mnist_forward.7} parent=1 // pred_region
      %8536 = dma.done [#allocation3], 32
    $region29: #{cnn_mnist_forward.7} parent=1 // pred_fallthru
      _
    %8537 = vsyncpa [#allocation3], 1

</llo_original>
